<compile_context>
chip_gen: v5e
topology: v5e:2x2
jax: 0.10.0
libtpu: 0.0.40
codegen_flags: <defaults>
</compile_context>

<pallas_src>
import functools
import math

import jax
import jax.numpy as jnp
from jax import lax
from jax.experimental import pallas as pl
from jax.experimental.pallas import tpu as pltpu

_SQRT2 = math.sqrt(2.0)
_HALF_PI = math.pi / 2.0


def _gelu_exact(x):
    # nn.GELU() default (erf form, approximate='none')
    return 0.5 * x * (1.0 + lax.erf(x / _SQRT2))


# ---------------------------------------------------------------- kernel -----

def _fan_forward_kernel(*refs, num_fan, input_dim, p_dim, hidden_dim):
    """Fused FAN forward over one (tile_m, *) batch tile.

    refs = (src, emb_w, emb_b, [fan_w, fan_b]*num_fan, out_w, out_b, o_ref)
    fan_w columns: [0:p)   -> cos(p)        (weights = wp)
                   [p:2p)  -> sin(p)        (weights = wp, same p)
                   [2p: )  -> gelu(g)       (weights = wg)
    which reproduces torch.cat((cos_p, sin_p, g), dim=-1).
    """
    idx = 0
    src_ref = refs[idx]; idx += 1
    emb_w_ref = refs[idx]; idx += 1
    emb_b_ref = refs[idx]; idx += 1
    fan_refs = refs[idx: idx + 2 * num_fan]; idx += 2 * num_fan
    out_w_ref = refs[idx]; idx += 1
    out_b_ref = refs[idx]; idx += 1
    o_ref = refs[idx]

    src = src_ref[...]                                   # (tile_m, input_dim)

    # Embedding linear.  K == 1 -> VPU broadcast multiply-add (skip the MXU).
    if input_dim == 1:
        x = src * emb_w_ref[...] + emb_b_ref[...]        # (tile_m, hidden)
    else:
        x = jnp.dot(src, emb_w_ref[...],
                    preferred_element_type=jnp.float32) + emb_b_ref[...]

    tile_m = x.shape[0]
    # Hoisted per-column constants (JAX does not CSE broadcast_in_dim in loops).
    col = lax.broadcasted_iota(jnp.int32, (tile_m, hidden_dim), 1)
    trig_mask = col < 2 * p_dim                      # cos/sin columns
    sin_cols = jnp.logical_and(col >= p_dim, trig_mask)
    # sin(x) = cos(x - pi/2): one transcendental pass covers both cos and sin.
    trig_shift = jnp.where(sin_cols, jnp.float32(-_HALF_PI), jnp.float32(0.0))

    # FAN layers: single lane-dense (tile_m,H) @ (H,H) matmul per layer.
    for l in range(num_fan):
        w_ref = fan_refs[2 * l]
        b_ref = fan_refs[2 * l + 1]
        h = jnp.dot(x, w_ref[...],
                    preferred_element_type=jnp.float32) + b_ref[...]
        trig = jnp.cos(h + trig_shift)               # cos(p) / sin(p) columns
        x = jnp.where(trig_mask, trig, _gelu_exact(h))

    # Output linear.
    out = jnp.dot(x, out_w_ref[...],
                  preferred_element_type=jnp.float32) + out_b_ref[...]
    o_ref[...] = out.astype(o_ref.dtype)


# --------------------------------------------------------------- wrapper -----

def fan_forward(src, params, *, tile_m=256):
    """Fused FAN forward. src: (B, input_dim) f32 -> (B, output_dim) f32."""
    if src.ndim == 1:
        src = src[:, None]
    batch, input_dim = src.shape
    hidden_dim = params["emb_w"].shape[1]
    output_dim = params["out_w"].shape[1]
    num_fan = len(params["fan_w"])
    p_dim = hidden_dim // 4

    # Batch tile: multiple of 8 sublanes (or the full batch if small).
    if tile_m >= batch:
        tile_m = batch
    else:
        tile_m = max(8, (tile_m // 8) * 8)
    grid = (pl.cdiv(batch, tile_m),)

    def const_spec(arr):
        # Constant index_map -> block stays resident in VMEM across grid steps.
        return pl.BlockSpec(arr.shape, lambda i: (0, 0))

    in_specs = [pl.BlockSpec((tile_m, input_dim), lambda i: (i, 0)),
                const_spec(params["emb_w"]), const_spec(params["emb_b"])]
    inputs = [src, params["emb_w"], params["emb_b"]]
    for w, b in zip(params["fan_w"], params["fan_b"]):
        in_specs += [const_spec(w), const_spec(b)]
        inputs += [w, b]
    in_specs += [const_spec(params["out_w"]), const_spec(params["out_b"])]
    inputs += [params["out_w"], params["out_b"]]

    kern = functools.partial(_fan_forward_kernel, num_fan=num_fan,
                             input_dim=input_dim, p_dim=p_dim,
                             hidden_dim=hidden_dim)
    return pl.pallas_call(
        kern,
        out_shape=jax.ShapeDtypeStruct((batch, output_dim), jnp.float32),
        grid=grid,
        in_specs=in_specs,
        out_specs=pl.BlockSpec((tile_m, output_dim), lambda i: (i, 0)),
        compiler_params=pltpu.CompilerParams(
            dimension_semantics=("parallel",)),
    )(*inputs)


# ---------------------------------------------------------- params / ref -----

def init_params(key, input_dim=1, output_dim=1, hidden_dim=128, num_layers=3):
    """PyTorch-style nn.Linear init; weights pre-transposed to (in, out) and
    FANLayer weights pre-fused as [wp | wp | wg] (cos | sin | gelu columns)."""
    assert hidden_dim % 4 == 0
    p_dim = hidden_dim // 4
    g_dim = hidden_dim - hidden_dim // 2

    def linear(k, in_dim, out_dim):
        kw, kb = jax.random.split(k)
        lim = 1.0 / math.sqrt(in_dim)
        w = jax.random.uniform(kw, (in_dim, out_dim), jnp.float32, -lim, lim)
        b = jax.random.uniform(kb, (1, out_dim), jnp.float32, -lim, lim)
        return w, b

    keys = jax.random.split(key, num_layers + 1)
    emb_w, emb_b = linear(keys[0], input_dim, hidden_dim)
    fan_w, fan_b = [], []
    for l in range(num_layers - 1):
        kp, kg = jax.random.split(keys[1 + l])
        wp, bp = linear(kp, hidden_dim, p_dim)
        wg, bg = linear(kg, hidden_dim, g_dim)
        fan_w.append(jnp.concatenate([wp, wp, wg], axis=1))   # (hidden, hidden)
        fan_b.append(jnp.concatenate([bp, bp, bg], axis=1))   # (1, hidden)
    out_w, out_b = linear(keys[num_layers], hidden_dim, output_dim)
    return {"emb_w": emb_w, "emb_b": emb_b,
            "fan_w": fan_w, "fan_b": fan_b,
            "out_w": out_w, "out_b": out_b}


def fan_forward_reference(src, params):
    """Pure-JAX reference mirroring the PyTorch FAN forward."""
    if src.ndim == 1:
        src = src[:, None]
    hidden_dim = params["emb_w"].shape[1]
    p_dim = hidden_dim // 4
    x = src @ params["emb_w"] + params["emb_b"]
    for w, b in zip(params["fan_w"], params["fan_b"]):
        h = x @ w + b
        p = h[:, :p_dim]             # input_linear_p(x)  (same as h[:, p:2p])
        g = h[:, 2 * p_dim:]         # input_linear_g(x)
        x = jnp.concatenate([jnp.cos(p), jnp.sin(p), _gelu_exact(g)], axis=-1)
    return x @ params["out_w"] + params["out_b"]


# ------------------------------------------------------------------- main ----

if __name__ == "__main__":
    key = jax.random.PRNGKey(0)
    pkey, xkey = jax.random.split(key)

    INPUT_DIM, OUTPUT_DIM, HIDDEN_DIM, NUM_LAYERS, BATCH = 1, 1, 128, 3, 256
    params = init_params(pkey, input_dim=INPUT_DIM, output_dim=OUTPUT_DIM,
                         hidden_dim=HIDDEN_DIM, num_layers=NUM_LAYERS)
    src = jax.random.normal(xkey, (BATCH, INPUT_DIM), jnp.float32)

    fwd = jax.jit(functools.partial(fan_forward, tile_m=128))
    out = fwd(src, params)
    jax.block_until_ready(out)

    ref = fan_forward_reference(src, params)
    assert out.shape == (BATCH, OUTPUT_DIM)
    assert not bool(jnp.any(jnp.isnan(out)))
    assert bool(jnp.allclose(out, ref, atol=5e-2, rtol=5e-2)), (
        float(jnp.max(jnp.abs(out - ref))))
    print("KERNEL_OK")
</pallas_src>

<mosaic_0001>
module attributes {stable_mosaic.version = 11 : i64} {
  func.func @_fan_forward_kernel(%arg0: i32, %arg1: memref<128x1xf32, #tpu.memory_space<vmem>>, %arg2: memref<1x128xf32, #tpu.memory_space<vmem>>, %arg3: memref<1x128xf32, #tpu.memory_space<vmem>>, %arg4: memref<128x128xf32, #tpu.memory_space<vmem>>, %arg5: memref<1x128xf32, #tpu.memory_space<vmem>>, %arg6: memref<128x128xf32, #tpu.memory_space<vmem>>, %arg7: memref<1x128xf32, #tpu.memory_space<vmem>>, %arg8: memref<128x1xf32, #tpu.memory_space<vmem>>, %arg9: memref<1x1xf32, #tpu.memory_space<vmem>>, %arg10: memref<128x1xf32, #tpu.memory_space<vmem>>) attributes {dimension_semantics = [#tpu.dimension_semantics<parallel>], iteration_bounds = array<i64: 2>, scalar_prefetch = 0 : i64, scratch_operands = 0 : i64, tpu.core_type = #tpu.core_type<tc>, window_params = [{transform_indices = @transform_0, window_bounds = array<i64: 128, 1>}, {pipeline_mode = #tpu.pipeline_mode<synchronous>, transform_indices = @transform_1, window_bounds = array<i64: 1, 128>}, {pipeline_mode = #tpu.pipeline_mode<synchronous>, transform_indices = @transform_2, window_bounds = array<i64: 1, 128>}, {pipeline_mode = #tpu.pipeline_mode<synchronous>, transform_indices = @transform_3, window_bounds = array<i64: 128, 128>}, {pipeline_mode = #tpu.pipeline_mode<synchronous>, transform_indices = @transform_4, window_bounds = array<i64: 1, 128>}, {pipeline_mode = #tpu.pipeline_mode<synchronous>, transform_indices = @transform_5, window_bounds = array<i64: 128, 128>}, {pipeline_mode = #tpu.pipeline_mode<synchronous>, transform_indices = @transform_6, window_bounds = array<i64: 1, 128>}, {pipeline_mode = #tpu.pipeline_mode<synchronous>, transform_indices = @transform_7, window_bounds = array<i64: 128, 1>}, {pipeline_mode = #tpu.pipeline_mode<synchronous>, transform_indices = @transform_8, window_bounds = array<i64: 1, 1>}, {transform_indices = @transform_9, window_bounds = array<i64: 128, 1>}]} {
    %c0 = arith.constant 0 : index
    %c0_0 = arith.constant 0 : index
    %0 = vector.load %arg1[%c0, %c0_0] : memref<128x1xf32, #tpu.memory_space<vmem>>, vector<128x1xf32>
    %c0_1 = arith.constant 0 : index
    %c0_2 = arith.constant 0 : index
    %1 = vector.load %arg2[%c0_1, %c0_2] : memref<1x128xf32, #tpu.memory_space<vmem>>, vector<1x128xf32>
    %2 = vector.broadcast %0 : vector<128x1xf32> to vector<128x128xf32>
    %3 = vector.broadcast %1 : vector<1x128xf32> to vector<128x128xf32>
    %4 = arith.mulf %2, %3 : vector<128x128xf32>
    %c0_3 = arith.constant 0 : index
    %c0_4 = arith.constant 0 : index
    %5 = vector.load %arg3[%c0_3, %c0_4] : memref<1x128xf32, #tpu.memory_space<vmem>>, vector<1x128xf32>
    %6 = vector.broadcast %5 : vector<1x128xf32> to vector<128x128xf32>
    %7 = arith.addf %4, %6 : vector<128x128xf32>
    %8 = tpu.iota {dimensions = array<i32: 1>} : vector<128x128xi32>
    %c64_i32 = arith.constant 64 : i32
    %9 = vector.broadcast %c64_i32 : i32 to vector<128x128xi32>
    %10 = arith.cmpi slt, %8, %9 : vector<128x128xi32>
    %c32_i32 = arith.constant 32 : i32
    %11 = vector.broadcast %c32_i32 : i32 to vector<128x128xi32>
    %12 = arith.cmpi sge, %8, %11 : vector<128x128xi32>
    %13 = arith.andi %12, %10 : vector<128x128xi1>
    %cst = arith.constant -1.57079637 : f32
    %cst_5 = arith.constant 0.000000e+00 : f32
    %14 = vector.broadcast %cst : f32 to vector<128x128xf32>
    %15 = vector.broadcast %cst_5 : f32 to vector<128x128xf32>
    %16 = arith.select %13, %14, %15 : vector<128x128xi1>, vector<128x128xf32>
    %c0_6 = arith.constant 0 : index
    %c0_7 = arith.constant 0 : index
    %17 = vector.load %arg4[%c0_6, %c0_7] : memref<128x128xf32, #tpu.memory_space<vmem>>, vector<128x128xf32>
    %cst_8 = arith.constant dense<0.000000e+00> : vector<128x128xf32>
    %18 = tpu.matmul %7, %17, %cst_8 {dimension_numbers = #tpu.dot_dimension_numbers<[1], [0], [0], [1], [0, 0, 1, 1], [], []>} : vector<128x128xf32>, vector<128x128xf32>, vector<128x128xf32> -> vector<128x128xf32>
    %c0_9 = arith.constant 0 : index
    %c0_10 = arith.constant 0 : index
    %19 = vector.load %arg5[%c0_9, %c0_10] : memref<1x128xf32, #tpu.memory_space<vmem>>, vector<1x128xf32>
    %20 = vector.broadcast %19 : vector<1x128xf32> to vector<128x128xf32>
    %21 = arith.addf %18, %20 : vector<128x128xf32>
    %22 = arith.addf %21, %16 : vector<128x128xf32>
    %23 = math.cos %22 : vector<128x128xf32>
    %cst_11 = arith.constant 5.000000e-01 : f32
    %24 = vector.broadcast %cst_11 : f32 to vector<128x128xf32>
    %25 = arith.mulf %24, %21 : vector<128x128xf32>
    %cst_12 = arith.constant 1.41421354 : f32
    %26 = vector.broadcast %cst_12 : f32 to vector<128x128xf32>
    %27 = arith.divf %21, %26 : vector<128x128xf32>
    %28 = math.erf %27 : vector<128x128xf32>
    %cst_13 = arith.constant 1.000000e+00 : f32
    %29 = vector.broadcast %cst_13 : f32 to vector<128x128xf32>
    %30 = arith.addf %29, %28 : vector<128x128xf32>
    %31 = arith.mulf %25, %30 : vector<128x128xf32>
    %32 = arith.select %10, %23, %31 : vector<128x128xi1>, vector<128x128xf32>
    %c0_14 = arith.constant 0 : index
    %c0_15 = arith.constant 0 : index
    %33 = vector.load %arg6[%c0_14, %c0_15] : memref<128x128xf32, #tpu.memory_space<vmem>>, vector<128x128xf32>
    %cst_16 = arith.constant dense<0.000000e+00> : vector<128x128xf32>
    %34 = tpu.matmul %32, %33, %cst_16 {dimension_numbers = #tpu.dot_dimension_numbers<[1], [0], [0], [1], [0, 0, 1, 1], [], []>} : vector<128x128xf32>, vector<128x128xf32>, vector<128x128xf32> -> vector<128x128xf32>
    %c0_17 = arith.constant 0 : index
    %c0_18 = arith.constant 0 : index
    %35 = vector.load %arg7[%c0_17, %c0_18] : memref<1x128xf32, #tpu.memory_space<vmem>>, vector<1x128xf32>
    %36 = vector.broadcast %35 : vector<1x128xf32> to vector<128x128xf32>
    %37 = arith.addf %34, %36 : vector<128x128xf32>
    %38 = arith.addf %37, %16 : vector<128x128xf32>
    %39 = math.cos %38 : vector<128x128xf32>
    %cst_19 = arith.constant 5.000000e-01 : f32
    %40 = vector.broadcast %cst_19 : f32 to vector<128x128xf32>
    %41 = arith.mulf %40, %37 : vector<128x128xf32>
    %cst_20 = arith.constant 1.41421354 : f32
    %42 = vector.broadcast %cst_20 : f32 to vector<128x128xf32>
    %43 = arith.divf %37, %42 : vector<128x128xf32>
    %44 = math.erf %43 : vector<128x128xf32>
    %cst_21 = arith.constant 1.000000e+00 : f32
    %45 = vector.broadcast %cst_21 : f32 to vector<128x128xf32>
    %46 = arith.addf %45, %44 : vector<128x128xf32>
    %47 = arith.mulf %41, %46 : vector<128x128xf32>
    %48 = arith.select %10, %39, %47 : vector<128x128xi1>, vector<128x128xf32>
    %c0_22 = arith.constant 0 : index
    %c0_23 = arith.constant 0 : index
    %49 = vector.load %arg8[%c0_22, %c0_23] : memref<128x1xf32, #tpu.memory_space<vmem>>, vector<128x1xf32>
    %cst_24 = arith.constant dense<0.000000e+00> : vector<128x1xf32>
    %50 = tpu.matmul %48, %49, %cst_24 {dimension_numbers = #tpu.dot_dimension_numbers<[1], [0], [0], [1], [0, 0, 1, 1], [], []>} : vector<128x128xf32>, vector<128x1xf32>, vector<128x1xf32> -> vector<128x1xf32>
    %c0_25 = arith.constant 0 : index
    %c0_26 = arith.constant 0 : index
    %51 = vector.load %arg9[%c0_25, %c0_26] : memref<1x1xf32, #tpu.memory_space<vmem>>, vector<1x1xf32>
    %52 = vector.broadcast %51 : vector<1x1xf32> to vector<128x1xf32>
    %53 = arith.addf %50, %52 : vector<128x1xf32>
    %c0_27 = arith.constant 0 : index
    %c0_28 = arith.constant 0 : index
    %54 = vector.load %arg10[%c0_27, %c0_28] : memref<128x1xf32, #tpu.memory_space<vmem>>, vector<128x1xf32>
    tpu.vector_store %arg10[%c0_27, %c0_28], %53 {strides = array<i32>} : memref<128x1xf32, #tpu.memory_space<vmem>>, vector<128x1xf32>,
    return
  }
  func.func @transform_0(%arg0: i32) -> (i32, i32) {
    %c0_i32 = arith.constant 0 : i32
    %c0_i32_0 = arith.constant 0 : i32
    return %arg0, %c0_i32 : i32, i32
  }
  func.func @transform_1(%arg0: i32) -> (i32, i32) {
    %c0_i32 = arith.constant 0 : i32
    %c0_i32_0 = arith.constant 0 : i32
    %c0_i32_1 = arith.constant 0 : i32
    return %c0_i32, %c0_i32_0 : i32, i32
  }
  func.func @transform_2(%arg0: i32) -> (i32, i32) {
    %c0_i32 = arith.constant 0 : i32
    %c0_i32_0 = arith.constant 0 : i32
    %c0_i32_1 = arith.constant 0 : i32
    return %c0_i32, %c0_i32_0 : i32, i32
  }
  func.func @transform_3(%arg0: i32) -> (i32, i32) {
    %c0_i32 = arith.constant 0 : i32
    %c0_i32_0 = arith.constant 0 : i32
    %c0_i32_1 = arith.constant 0 : i32
    return %c0_i32, %c0_i32_0 : i32, i32
  }
  func.func @transform_4(%arg0: i32) -> (i32, i32) {
    %c0_i32 = arith.constant 0 : i32
    %c0_i32_0 = arith.constant 0 : i32
    %c0_i32_1 = arith.constant 0 : i32
    return %c0_i32, %c0_i32_0 : i32, i32
  }
  func.func @transform_5(%arg0: i32) -> (i32, i32) {
    %c0_i32 = arith.constant 0 : i32
    %c0_i32_0 = arith.constant 0 : i32
    %c0_i32_1 = arith.constant 0 : i32
    return %c0_i32, %c0_i32_0 : i32, i32
  }
  func.func @transform_6(%arg0: i32) -> (i32, i32) {
    %c0_i32 = arith.constant 0 : i32
    %c0_i32_0 = arith.constant 0 : i32
    %c0_i32_1 = arith.constant 0 : i32
    return %c0_i32, %c0_i32_0 : i32, i32
  }
  func.func @transform_7(%arg0: i32) -> (i32, i32) {
    %c0_i32 = arith.constant 0 : i32
    %c0_i32_0 = arith.constant 0 : i32
    %c0_i32_1 = arith.constant 0 : i32
    return %c0_i32, %c0_i32_0 : i32, i32
  }
  func.func @transform_8(%arg0: i32) -> (i32, i32) {
    %c0_i32 = arith.constant 0 : i32
    %c0_i32_0 = arith.constant 0 : i32
    %c0_i32_1 = arith.constant 0 : i32
    return %c0_i32, %c0_i32_0 : i32, i32
  }
  func.func @transform_9(%arg0: i32) -> (i32, i32) {
    %c0_i32 = arith.constant 0 : i32
    %c0_i32_0 = arith.constant 0 : i32
    return %arg0, %c0_i32 : i32, i32
  }
}

</mosaic_0001>

<llo_original>
// kernel: fan_forward.1
$region0: #{fan_forward.1}
  #allocation0 [shape = 'u32[]', space=smem, size = 0x4, offset = 0x4, fixed_abs, tag = 'smem constant byte address 0x4 - core index']
  #allocation1 [shape = 'u32[72,128]{1,0:T(1,128)}', space=vmem, size = 0x9000, scoped, tag = 'internal scratch']
  #allocation2 [shape = 'f32[1,1]{1,0:T(1,128)S(1)}', space=vmem, size = 0x200, scoped, tag = 'scoped memory for fan_forward.1']
  %s0 = inlined_call_operand.vmem [shape: f32[256,1], index: 0, kind: input, shape index: {}]
  %s1 = inlined_call_operand.vmem [shape: f32[1,128], index: 1, kind: input, shape index: {}]
  %s2 = inlined_call_operand.vmem [shape: f32[1,128], index: 2, kind: input, shape index: {}]
  %s3 = inlined_call_operand.vmem [shape: f32[128,128], index: 3, kind: input, shape index: {}]
  %s4 = inlined_call_operand.vmem [shape: f32[1,128], index: 4, kind: input, shape index: {}]
  %s5 = inlined_call_operand.vmem [shape: f32[128,128], index: 5, kind: input, shape index: {}]
  %s6 = inlined_call_operand.vmem [shape: f32[1,128], index: 6, kind: input, shape index: {}]
  %s7 = inlined_call_operand.vmem [shape: f32[128,1], index: 7, kind: input, shape index: {}]
  %s8 = inlined_call_operand.<no memory space> [shape: f32[1,1], index: 8, kind: input, shape index: {}]
  %s9 = inlined_call_operand.vmem [shape: f32[256,1], index: 9, kind: output, shape index: {}]
  %s10 = sld [smem:[#allocation0]]
  $region69: #{fan_forward.1} parent=0
    _
  %s12 = ssub.s32 1, %s10
  %s13 = scalar_select 0, %s12, %s10
  %v14 = vstv %s8
  %15 = vst [vmem:[#allocation2] sm:$0x1] %v14
  loop: start=0, step=1, limit=4
  $region2: #{fan_forward.1} parent=0 // loop_pre_header
    _
  $region3: #{fan_forward.1} parent=0 // loop_header
    %s17 = sphi 0, %s21
    %p18 = scmp.ge.s32.totalorder %s17, 4
    %s27 = sphi 0, %s29
    %s30 = sphi 0, %s27
    %s31 = sphi 0, %s30
    %s47 = sphi 0, %s31
    %s51 = sphi 0, %s51
    %s53 = sphi 0, %s51
    %s54 = sphi 0, %s53
    %s68 = sphi 0, %s54
    %s72 = sphi 0, %s72
    %s74 = sphi 0, %s72
    %s75 = sphi 0, %s74
    %s89 = sphi 0, %s75
    %s93 = sphi 0, %s93
    %s95 = sphi 0, %s93
    %s96 = sphi 0, %s95
    %s110 = sphi 0, %s96
    %s114 = sphi 0, %s114
    %s116 = sphi 0, %s114
    %s117 = sphi 0, %s116
    %s131 = sphi 0, %s117
    %s135 = sphi 0, %s135
    %s137 = sphi 0, %s135
    %s138 = sphi 0, %s137
    %s152 = sphi 0, %s138
    %s156 = sphi 0, %s156
    %s158 = sphi 0, %s156
    %s159 = sphi 0, %s158
    %s173 = sphi 0, %s159
    %s177 = sphi 0, %s177
    %s179 = sphi 0, %s177
    %s180 = sphi 0, %s179
    %s194 = sphi 0, %s180
    %s198 = sphi 0, %s198
    %s200 = sphi 0, %s198
    %s201 = sphi 0, %s200
    %s215 = sphi 0, %s201
    %s221 = sphi 0, %s223
    %s224 = sphi 0, %s221
    %s225 = sphi 0, %s224
    %s241 = sphi 0, %s225
  $region4: #{fan_forward.1} parent=0 // loop_header_branch
    %20 = sbr.rel (%p18) target = $region8
  $region5: #{fan_forward.1} parent=0 // loop_body
    %s22 = ssub.s32 %s17, 1
    %s23 = ssub.s32 %s17, 2
    %s24 = sadd.s32 %s17, 1
    %s25 = ssub.s32 %s17, %s24
    %p26 = scmp.eq.s32.totalorder %s25, 0
    %s28 = sadd.s32 %s27, 1
    %s29 = scalar_select %p26, %s27, %s28
    %p32 = pneg %p26
    %p33 = scmp.eq.s32.totalorder %s17, 1
    %p34 = por %p32, %p33
    %p35 = scmp.ne.s32.totalorder %s27, %s30
    %p36 = scmp.eq.s32.totalorder %s17, 0
    %p37 = por %p35, %p36
    %p38 = scmp.ne.s32.totalorder %s27, %s30
    %p39 = scmp.eq.s32.totalorder %s22, 1
    %p40 = por %p38, %p39
    %p41 = scmp.ne.s32.totalorder %s30, %s31
    %p42 = scmp.eq.s32.totalorder %s22, 0
    %p43 = por %p41, %p42
    %p44 = scmp.ne.s32.totalorder %s30, %s31
    %p45 = scmp.eq.s32.totalorder %s23, 1
    %p46 = por %p44, %p45
    %p48 = scmp.ne.s32.totalorder %s31, %s47
    %p49 = scmp.eq.s32.totalorder %s23, 0
    %p50 = por %p48, %p49
    %s52 = sadd.s32 %s51, 1
    %p55 = scmp.eq.s32.totalorder %s17, 1
    %p56 = scmp.ne.s32.totalorder %s51, %s53
    %p57 = scmp.eq.s32.totalorder %s17, 0
    %p58 = por %p56, %p57
    %p59 = scmp.ne.s32.totalorder %s51, %s53
    %p60 = scmp.eq.s32.totalorder %s22, 1
    %p61 = por %p59, %p60
    %p62 = scmp.ne.s32.totalorder %s53, %s54
    %p63 = scmp.eq.s32.totalorder %s22, 0
    %p64 = por %p62, %p63
    %p65 = scmp.ne.s32.totalorder %s53, %s54
    %p66 = scmp.eq.s32.totalorder %s23, 1
    %p67 = por %p65, %p66
    %p69 = scmp.ne.s32.totalorder %s54, %s68
    %p70 = scmp.eq.s32.totalorder %s23, 0
    %p71 = por %p69, %p70
    %s73 = sadd.s32 %s72, 1
    %p76 = scmp.eq.s32.totalorder %s17, 1
    %p77 = scmp.ne.s32.totalorder %s72, %s74
    %p78 = scmp.eq.s32.totalorder %s17, 0
    %p79 = por %p77, %p78
    %p80 = scmp.ne.s32.totalorder %s72, %s74
    %p81 = scmp.eq.s32.totalorder %s22, 1
    %p82 = por %p80, %p81
    %p83 = scmp.ne.s32.totalorder %s74, %s75
    %p84 = scmp.eq.s32.totalorder %s22, 0
    %p85 = por %p83, %p84
    %p86 = scmp.ne.s32.totalorder %s74, %s75
    %p87 = scmp.eq.s32.totalorder %s23, 1
    %p88 = por %p86, %p87
    %p90 = scmp.ne.s32.totalorder %s75, %s89
    %p91 = scmp.eq.s32.totalorder %s23, 0
    %p92 = por %p90, %p91
    %s94 = sadd.s32 %s93, 1
    %p97 = scmp.eq.s32.totalorder %s17, 1
    %p98 = scmp.ne.s32.totalorder %s93, %s95
    %p99 = scmp.eq.s32.totalorder %s17, 0
    %p100 = por %p98, %p99
    %p101 = scmp.ne.s32.totalorder %s93, %s95
    %p102 = scmp.eq.s32.totalorder %s22, 1
    %p103 = por %p101, %p102
    %p104 = scmp.ne.s32.totalorder %s95, %s96
    %p105 = scmp.eq.s32.totalorder %s22, 0
    %p106 = por %p104, %p105
    %p107 = scmp.ne.s32.totalorder %s95, %s96
    %p108 = scmp.eq.s32.totalorder %s23, 1
    %p109 = por %p107, %p108
    %p111 = scmp.ne.s32.totalorder %s96, %s110
    %p112 = scmp.eq.s32.totalorder %s23, 0
    %p113 = por %p111, %p112
    %s115 = sadd.s32 %s114, 1
    %p118 = scmp.eq.s32.totalorder %s17, 1
    %p119 = scmp.ne.s32.totalorder %s114, %s116
    %p120 = scmp.eq.s32.totalorder %s17, 0
    %p121 = por %p119, %p120
    %p122 = scmp.ne.s32.totalorder %s114, %s116
    %p123 = scmp.eq.s32.totalorder %s22, 1
    %p124 = por %p122, %p123
    %p125 = scmp.ne.s32.totalorder %s116, %s117
    %p126 = scmp.eq.s32.totalorder %s22, 0
    %p127 = por %p125, %p126
    %p128 = scmp.ne.s32.totalorder %s116, %s117
    %p129 = scmp.eq.s32.totalorder %s23, 1
    %p130 = por %p128, %p129
    %p132 = scmp.ne.s32.totalorder %s117, %s131
    %p133 = scmp.eq.s32.totalorder %s23, 0
    %p134 = por %p132, %p133
    %s136 = sadd.s32 %s135, 1
    %p139 = scmp.eq.s32.totalorder %s17, 1
    %p140 = scmp.ne.s32.totalorder %s135, %s137
    %p141 = scmp.eq.s32.totalorder %s17, 0
    %p142 = por %p140, %p141
    %p143 = scmp.ne.s32.totalorder %s135, %s137
    %p144 = scmp.eq.s32.totalorder %s22, 1
    %p145 = por %p143, %p144
    %p146 = scmp.ne.s32.totalorder %s137, %s138
    %p147 = scmp.eq.s32.totalorder %s22, 0
    %p148 = por %p146, %p147
    %p149 = scmp.ne.s32.totalorder %s137, %s138
    %p150 = scmp.eq.s32.totalorder %s23, 1
    %p151 = por %p149, %p150
    %p153 = scmp.ne.s32.totalorder %s138, %s152
    %p154 = scmp.eq.s32.totalorder %s23, 0
    %p155 = por %p153, %p154
    %s157 = sadd.s32 %s156, 1
    %p160 = scmp.eq.s32.totalorder %s17, 1
    %p161 = scmp.ne.s32.totalorder %s156, %s158
    %p162 = scmp.eq.s32.totalorder %s17, 0
    %p163 = por %p161, %p162
    %p164 = scmp.ne.s32.totalorder %s156, %s158
    %p165 = scmp.eq.s32.totalorder %s22, 1
    %p166 = por %p164, %p165
    %p167 = scmp.ne.s32.totalorder %s158, %s159
    %p168 = scmp.eq.s32.totalorder %s22, 0
    %p169 = por %p167, %p168
    %p170 = scmp.ne.s32.totalorder %s158, %s159
    %p171 = scmp.eq.s32.totalorder %s23, 1
    %p172 = por %p170, %p171
    %p174 = scmp.ne.s32.totalorder %s159, %s173
    %p175 = scmp.eq.s32.totalorder %s23, 0
    %p176 = por %p174, %p175
    %s178 = sadd.s32 %s177, 1
    %p181 = scmp.eq.s32.totalorder %s17, 1
    %p182 = scmp.ne.s32.totalorder %s177, %s179
    %p183 = scmp.eq.s32.totalorder %s17, 0
    %p184 = por %p182, %p183
    %p185 = scmp.ne.s32.totalorder %s177, %s179
    %p186 = scmp.eq.s32.totalorder %s22, 1
    %p187 = por %p185, %p186
    %p188 = scmp.ne.s32.totalorder %s179, %s180
    %p189 = scmp.eq.s32.totalorder %s22, 0
    %p190 = por %p188, %p189
    %p191 = scmp.ne.s32.totalorder %s179, %s180
    %p192 = scmp.eq.s32.totalorder %s23, 1
    %p193 = por %p191, %p192
    %p195 = scmp.ne.s32.totalorder %s180, %s194
    %p196 = scmp.eq.s32.totalorder %s23, 0
    %p197 = por %p195, %p196
    %s199 = sadd.s32 %s198, 1
    %p202 = scmp.eq.s32.totalorder %s17, 1
    %p203 = scmp.ne.s32.totalorder %s198, %s200
    %p204 = scmp.eq.s32.totalorder %s17, 0
    %p205 = por %p203, %p204
    %p206 = scmp.ne.s32.totalorder %s198, %s200
    %p207 = scmp.eq.s32.totalorder %s22, 1
    %p208 = por %p206, %p207
    %p209 = scmp.ne.s32.totalorder %s200, %s201
    %p210 = scmp.eq.s32.totalorder %s22, 0
    %p211 = por %p209, %p210
    %p212 = scmp.ne.s32.totalorder %s200, %s201
    %p213 = scmp.eq.s32.totalorder %s23, 1
    %p214 = por %p212, %p213
    %p216 = scmp.ne.s32.totalorder %s201, %s215
    %p217 = scmp.eq.s32.totalorder %s23, 0
    %p218 = por %p216, %p217
    %s219 = ssub.s32 %s17, %s24
    %p220 = scmp.eq.s32.totalorder %s219, 0
    %s222 = sadd.s32 %s221, 1
    %s223 = scalar_select %p220, %s221, %s222
    %p226 = pneg %p220
    %p227 = scmp.eq.s32.totalorder %s17, 1
    %p228 = por %p226, %p227
    %p229 = scmp.ne.s32.totalorder %s221, %s224
    %p230 = scmp.eq.s32.totalorder %s17, 0
    %p231 = por %p229, %p230
    %p232 = scmp.ne.s32.totalorder %s221, %s224
    %p233 = scmp.eq.s32.totalorder %s22, 1
    %p234 = por %p232, %p233
    %p235 = scmp.ne.s32.totalorder %s224, %s225
    %p236 = scmp.eq.s32.totalorder %s22, 0
    %p237 = por %p235, %p236
    %p238 = scmp.ne.s32.totalorder %s224, %s225
    %p239 = scmp.eq.s32.totalorder %s23, 1
    %p240 = por %p238, %p239
    %p242 = scmp.ne.s32.totalorder %s225, %s241
    %p243 = scmp.eq.s32.totalorder %s23, 0
    %p244 = por %p242, %p243
    %p245 = scmp.le.s32.totalorder 1, %s17
    %p246 = scmp.lt.s32.totalorder %s17, 3
    %p247 = pnand %p245, %p246
    %p248 = pneg %p247
    // Predicated region
    $region9: #{fan_forward.1} parent=5 // pred_check
      _
    $region10: #{fan_forward.1} parent=5 // pred_check_branch
      %250 = sbr.rel (%p247) target = $region12
    $region11: #{fan_forward.1} parent=5 // pred_region
      %s251 = ssub.s32 %s17, 1
      // Predicated region
      $region13: #{fan_forward.1} parent=11 // pred_check
        %p252 = pneg %p64
      $region14: #{fan_forward.1} parent=11 // pred_check_branch
        %254 = sbr.rel (%p252) target = $region16
      $region15: #{fan_forward.1} parent=11 // pred_region
        _
      $region16: #{fan_forward.1} parent=11 // pred_fallthru
        _
      // Predicated region
      $region17: #{fan_forward.1} parent=11 // pred_check
        %p255 = pneg %p85
      $region18: #{fan_forward.1} parent=11 // pred_check_branch
        %257 = sbr.rel (%p255) target = $region20
      $region19: #{fan_forward.1} parent=11 // pred_region
        _
      $region20: #{fan_forward.1} parent=11 // pred_fallthru
        _
      // Predicated region
      $region21: #{fan_forward.1} parent=11 // pred_check
        %p258 = pneg %p106
      $region22: #{fan_forward.1} parent=11 // pred_check_branch
        %260 = sbr.rel (%p258) target = $region24
      $region23: #{fan_forward.1} parent=11 // pred_region
        _
      $region24: #{fan_forward.1} parent=11 // pred_fallthru
        _
      // Predicated region
      $region25: #{fan_forward.1} parent=11 // pred_check
        %p261 = pneg %p127
      $region26: #{fan_forward.1} parent=11 // pred_check_branch
        %263 = sbr.rel (%p261) target = $region28
      $region27: #{fan_forward.1} parent=11 // pred_region
        _
      $region28: #{fan_forward.1} parent=11 // pred_fallthru
        _
      // Predicated region
      $region29: #{fan_forward.1} parent=11 // pred_check
        %p264 = pneg %p148
      $region30: #{fan_forward.1} parent=11 // pred_check_branch
        %266 = sbr.rel (%p264) target = $region32
      $region31: #{fan_forward.1} parent=11 // pred_region
        _
      $region32: #{fan_forward.1} parent=11 // pred_fallthru
        _
      // Predicated region
      $region33: #{fan_forward.1} parent=11 // pred_check
        %p267 = pneg %p169
      $region34: #{fan_forward.1} parent=11 // pred_check_branch
        %269 = sbr.rel (%p267) target = $region36
      $region35: #{fan_forward.1} parent=11 // pred_region
        _
      $region36: #{fan_forward.1} parent=11 // pred_fallthru
        _
      // Predicated region
      $region37: #{fan_forward.1} parent=11 // pred_check
        %p270 = pneg %p190
      $region38: #{fan_forward.1} parent=11 // pred_check_branch
        %272 = sbr.rel (%p270) target = $region40
      $region39: #{fan_forward.1} parent=11 // pred_region
        _
      $region40: #{fan_forward.1} parent=11 // pred_fallthru
        _
      // Predicated region
      $region41: #{fan_forward.1} parent=11 // pred_check
        %p273 = pneg %p211
      $region42: #{fan_forward.1} parent=11 // pred_check_branch
        %275 = sbr.rel (%p273) target = $region44
      $region43: #{fan_forward.1} parent=11 // pred_region
        _
      $region44: #{fan_forward.1} parent=11 // pred_fallthru
        _
    $region12: #{fan_forward.1} parent=5 // pred_fallthru
      _
    %p276 = scmp.lt.s32.totalorder %s17, 2
    // Predicated region
    $region45: #{fan_forward.1} parent=5 // pred_check
      %p277 = pneg %p276
    $region46: #{fan_forward.1} parent=5 // pred_check_branch
      %279 = sbr.rel (%p277) target = $region48
    $region47: #{fan_forward.1} parent=5 // pred_region
      // Predicated region
      $region49: #{fan_forward.1} parent=47 // pred_check
        %p280 = pneg %p37
      $region50: #{fan_forward.1} parent=47 // pred_check_branch
        %282 = sbr.rel (%p280) target = $region52
      $region51: #{fan_forward.1} parent=47 // pred_region
        %s283 = smul.u32 16, %s17
        %p284 = scmp.lt.s32.totalorder %s283, 31
        %s285 = scalar_select %p284, %s283, 31
        %s286 = smul.addr %s285, 8
        %s287 = scalar_lea.vmem %s0, %s286
        %s288 = smul.u32 16, %s17
      $region52: #{fan_forward.1} parent=47 // pred_fallthru
        _
    $region48: #{fan_forward.1} parent=5 // pred_fallthru
      _
    %p289 = scmp.le.s32.totalorder 1, %s17
    %p290 = scmp.lt.s32.totalorder %s17, 3
    %p291 = pnand %p289, %p290
    %p292 = pneg %p291
    // Predicated region
    $region53: #{fan_forward.1} parent=5 // pred_check
      _
    $region54: #{fan_forward.1} parent=5 // pred_check_branch
      %294 = sbr.rel (%p291) target = $region56
    $region55: #{fan_forward.1} parent=5 // pred_region
      %s295 = ssub.s32 %s17, 1
      %s296 = smul.u32 16, %s22
      %p297 = scmp.lt.s32.totalorder %s296, 31
      %s298 = scalar_select %p297, %s296, 31
      %s299 = smul.addr %s298, 8
      %s300 = scalar_lea.vmem %s0, %s299
      %p301 = pneg %p43
      %p302 = pneg %p40
      %p303 = pneg %p64
      %p304 = pneg %p61
      %p305 = pneg %p85
      %p306 = pneg %p82
      %p307 = pneg %p106
      %p308 = pneg %p103
      %p309 = pneg %p127
      %p310 = pneg %p124
      %p311 = pneg %p148
      %p312 = pneg %p145
      %p313 = pneg %p169
      %p314 = pneg %p166
      %p315 = pneg %p190
      %p316 = pneg %p187
      %p317 = pneg %p211
      %p318 = pneg %p208
      %p319 = pneg %p237
      %p320 = pneg %p234
      %s321 = smul.u32 16, %s22
      %p322 = scmp.lt.s32.totalorder %s321, 31
      %s323 = scalar_select %p322, %s321, 31
      %s324 = smul.addr %s323, 8
      %s325 = scalar_lea.vmem %s9, %s324
      %s326 = smul.u32 16, %s22
      %p327 = scmp.lt.s32.totalorder %s326, 31
      %s328 = scalar_select %p327, %s326, 31
      %s329 = smul.addr %s328, 8
      %s330 = scalar_lea.vmem %s0, %s329
      %s331 = smul.u32 16, %s22
      %s332 = smul.u32 16, %s22
      %p333 = scmp.lt.s32.totalorder %s332, 31
      %s334 = scalar_select %p333, %s332, 31
      %s335 = smul.addr %s334, 8
      %s336 = scalar_lea.vmem %s9, %s335
      %s337 = smul.u32 16, %s22
      %v338 = vld [vmem:[%s330] sm:$0xff]
      %v339 = vld [vmem:[%s330 + $0x8] sm:$0xff]
      %v340 = vld [vmem:[%s330 + $0x10] sm:$0xff]
      %v341 = vld [vmem:[%s330 + $0x18] sm:$0xff]
      %v342 = vld [vmem:[%s330 + $0x20] sm:$0xff]
      %v343 = vld [vmem:[%s330 + $0x28] sm:$0xff]
      %v344 = vld [vmem:[%s330 + $0x30] sm:$0xff]
      %v345 = vld [vmem:[%s330 + $0x38] sm:$0xff]
      %v346 = vld [vmem:[%s330 + $0x40] sm:$0xff]
      %v347 = vld [vmem:[%s330 + $0x48] sm:$0xff]
      %v348 = vld [vmem:[%s330 + $0x50] sm:$0xff]
      %v349 = vld [vmem:[%s330 + $0x58] sm:$0xff]
      %v350 = vld [vmem:[%s330 + $0x60] sm:$0xff]
      %v351 = vld [vmem:[%s330 + $0x68] sm:$0xff]
      %v352 = vld [vmem:[%s330 + $0x70] sm:$0xff]
      %v353 = vld [vmem:[%s330 + $0x78] sm:$0xff]
      %v354 = vld [vmem:[%s1] sm:$0x1]
      %356 = vset.pattern.permute.xlu0 0
      %357 = vperm.xlu0 %356, %v338
      %v358 = vpop.permute.xlu0 %357
      %361 = vset.pattern.permute.xlu0 0
      %362 = vperm.xlu0 %361, %v339
      %v363 = vpop.permute.xlu0 %362
      %366 = vset.pattern.permute.xlu0 0
      %367 = vperm.xlu0 %366, %v340
      %v368 = vpop.permute.xlu0 %367
      %371 = vset.pattern.permute.xlu0 0
      %372 = vperm.xlu0 %371, %v341
      %v373 = vpop.permute.xlu0 %372
      %376 = vset.pattern.permute.xlu0 0
      %377 = vperm.xlu0 %376, %v342
      %v378 = vpop.permute.xlu0 %377
      %381 = vset.pattern.permute.xlu0 0
      %382 = vperm.xlu0 %381, %v343
      %v383 = vpop.permute.xlu0 %382
      %386 = vset.pattern.permute.xlu0 0
      %387 = vperm.xlu0 %386, %v344
      %v388 = vpop.permute.xlu0 %387
      %391 = vset.pattern.permute.xlu0 0
      %392 = vperm.xlu0 %391, %v345
      %v393 = vpop.permute.xlu0 %392
      %396 = vset.pattern.permute.xlu0 0
      %397 = vperm.xlu0 %396, %v346
      %v398 = vpop.permute.xlu0 %397
      %401 = vset.pattern.permute.xlu0 0
      %402 = vperm.xlu0 %401, %v347
      %v403 = vpop.permute.xlu0 %402
      %406 = vset.pattern.permute.xlu0 0
      %407 = vperm.xlu0 %406, %v348
      %v408 = vpop.permute.xlu0 %407
      %411 = vset.pattern.permute.xlu0 0
      %412 = vperm.xlu0 %411, %v349
      %v413 = vpop.permute.xlu0 %412
      %416 = vset.pattern.permute.xlu0 0
      %417 = vperm.xlu0 %416, %v350
      %v418 = vpop.permute.xlu0 %417
      %421 = vset.pattern.permute.xlu0 0
      %422 = vperm.xlu0 %421, %v351
      %v423 = vpop.permute.xlu0 %422
      %426 = vset.pattern.permute.xlu0 0
      %427 = vperm.xlu0 %426, %v352
      %v428 = vpop.permute.xlu0 %427
      %431 = vset.pattern.permute.xlu0 0
      %432 = vperm.xlu0 %431, %v353
      %v433 = vpop.permute.xlu0 %432
      %v436 = vperm.slane %v354, 0
      %v438 = vmul.f32 %v358, %v436
      %v439 = vmul.f32 %v363, %v436
      %v440 = vmul.f32 %v368, %v436
      %v441 = vmul.f32 %v373, %v436
      %v442 = vmul.f32 %v378, %v436
      %v443 = vmul.f32 %v383, %v436
      %v444 = vmul.f32 %v388, %v436
      %v445 = vmul.f32 %v393, %v436
      %v446 = vmul.f32 %v398, %v436
      %v447 = vmul.f32 %v403, %v436
      %v448 = vmul.f32 %v408, %v436
      %v449 = vmul.f32 %v413, %v436
      %v450 = vmul.f32 %v418, %v436
      %v451 = vmul.f32 %v423, %v436
      %v452 = vmul.f32 %v428, %v436
      %v453 = vmul.f32 %v433, %v436
      %v454 = vld [vmem:[%s2] sm:$0x1]
      %v456 = vperm.slane %v454, 0
      %v458 = vadd.f32 %v438, %v456
      %v459 = vadd.f32 %v439, %v456
      %v460 = vadd.f32 %v440, %v456
      %v461 = vadd.f32 %v441, %v456
      %v462 = vadd.f32 %v442, %v456
      %v463 = vadd.f32 %v443, %v456
      %v464 = vadd.f32 %v444, %v456
      %v465 = vadd.f32 %v445, %v456
      %v466 = vadd.f32 %v446, %v456
      %v467 = vadd.f32 %v447, %v456
      %v468 = vadd.f32 %v448, %v456
      %v469 = vadd.f32 %v449, %v456
      %v470 = vadd.f32 %v450, %v456
      %v471 = vadd.f32 %v451, %v456
      %v472 = vadd.f32 %v452, %v456
      %v473 = vadd.f32 %v453, %v456
      %v474 = vlaneseq
      %v475 = vand.u32 %v474, 127
      %vm476 = vcmp.lt.s32.totalorder %v475, 64
      %vm477 = vcmp.ge.s32.totalorder %v475, 32
      %vm478 = vmand %vm477, %vm476
      %v479 = vsel %vm478, -1.5707964, 0.0
      %v480 = vld [vmem:[%s3] sm:$0xff]
      %v481 = vld [vmem:[%s3 + $0x8] sm:$0xff]
      %v482 = vld [vmem:[%s3 + $0x10] sm:$0xff]
      %v483 = vld [vmem:[%s3 + $0x18] sm:$0xff]
      %v484 = vld [vmem:[%s3 + $0x20] sm:$0xff]
      %v485 = vld [vmem:[%s3 + $0x28] sm:$0xff]
      %v486 = vld [vmem:[%s3 + $0x30] sm:$0xff]
      %v487 = vld [vmem:[%s3 + $0x38] sm:$0xff]
      %v488 = vld [vmem:[%s3 + $0x40] sm:$0xff]
      %v489 = vld [vmem:[%s3 + $0x48] sm:$0xff]
      %v490 = vld [vmem:[%s3 + $0x50] sm:$0xff]
      %v491 = vld [vmem:[%s3 + $0x58] sm:$0xff]
      %v492 = vld [vmem:[%s3 + $0x60] sm:$0xff]
      %v493 = vld [vmem:[%s3 + $0x68] sm:$0xff]
      %v494 = vld [vmem:[%s3 + $0x70] sm:$0xff]
      %v495 = vld [vmem:[%s3 + $0x78] sm:$0xff]
      %v496 = vld [vmem:[%s4] sm:$0x1]
      %v498 = vperm.slane %v496, 0
      %500 = vmatpush.msra.mxu0 %v495
      %501 = vmatpush.msra.mxu0 %v494
      %502 = vmatpush.msra.mxu0 %v493
      %503 = vmatpush.msra.mxu0 %v492
      %504 = vmatpush.msra.mxu0 %v491
      %505 = vmatpush.msra.mxu0 %v490
      %506 = vmatpush.msra.mxu0 %v489
      %507 = vmatpush.msra.mxu0 %v488
      %508 = vmatpush.msra.mxu0 %v487
      %509 = vmatpush.msra.mxu0 %v486
      %510 = vmatpush.msra.mxu0 %v485
      %511 = vmatpush.msra.mxu0 %v484
      %512 = vmatpush.msra.mxu0 %v483
      %513 = vmatpush.msra.mxu0 %v482
      %514 = vmatpush.msra.mxu0 %v481
      %515 = vmatpush.msra.mxu0 %v480
      %516 = vmatmul.f32.gmra.mxu0 %v458
      %v517 = vpop.f32.mrf.mxu0
      %v518 = vadd.f32 %v498, %v517
      %519 = vmatmul.f32.gmra.mxu0 %v459
      %v520 = vpop.f32.mrf.mxu0
      %v521 = vadd.f32 %v498, %v520
      %522 = vmatmul.f32.gmra.mxu0 %v460
      %v523 = vpop.f32.mrf.mxu0
      %v524 = vadd.f32 %v498, %v523
      %525 = vmatmul.f32.gmra.mxu0 %v461
      %v526 = vpop.f32.mrf.mxu0
      %v527 = vadd.f32 %v498, %v526
      %528 = vmatmul.f32.gmra.mxu0 %v462
      %v529 = vpop.f32.mrf.mxu0
      %v530 = vadd.f32 %v498, %v529
      %531 = vmatmul.f32.gmra.mxu0 %v463
      %v532 = vpop.f32.mrf.mxu0
      %v533 = vadd.f32 %v498, %v532
      %534 = vmatmul.f32.gmra.mxu0 %v464
      %v535 = vpop.f32.mrf.mxu0
      %v536 = vadd.f32 %v498, %v535
      %537 = vmatmul.f32.gmra.mxu0 %v465
      %v538 = vpop.f32.mrf.mxu0
      %v539 = vadd.f32 %v498, %v538
      %540 = vmatmul.f32.gmra.mxu0 %v466
      %v541 = vpop.f32.mrf.mxu0
      %v542 = vadd.f32 %v498, %v541
      %543 = vmatmul.f32.gmra.mxu0 %v467
      %v544 = vpop.f32.mrf.mxu0
      %v545 = vadd.f32 %v498, %v544
      %546 = vmatmul.f32.gmra.mxu0 %v468
      %v547 = vpop.f32.mrf.mxu0
      %v548 = vadd.f32 %v498, %v547
      %549 = vmatmul.f32.gmra.mxu0 %v469
      %v550 = vpop.f32.mrf.mxu0
      %v551 = vadd.f32 %v498, %v550
      %552 = vmatmul.f32.gmra.mxu0 %v470
      %v553 = vpop.f32.mrf.mxu0
      %v554 = vadd.f32 %v498, %v553
      %555 = vmatmul.f32.gmra.mxu0 %v471
      %v556 = vpop.f32.mrf.mxu0
      %v557 = vadd.f32 %v498, %v556
      %558 = vmatmul.f32.gmra.mxu0 %v472
      %v559 = vpop.f32.mrf.mxu0
      %v560 = vadd.f32 %v498, %v559
      %561 = vmatmul.f32.gmra.mxu0 %v473
      %v562 = vpop.f32.mrf.mxu0
      %v563 = vadd.f32 %v498, %v562
      %564 = vdwg.mxu0
      %v565 = vadd.f32 %v518, %v479
      %v566 = vadd.f32 %v521, %v479
      %v567 = vadd.f32 %v524, %v479
      %v568 = vadd.f32 %v527, %v479
      %v569 = vadd.f32 %v530, %v479
      %v570 = vadd.f32 %v533, %v479
      %v571 = vadd.f32 %v536, %v479
      %v572 = vadd.f32 %v539, %v479
      %v573 = vadd.f32 %v542, %v479
      %v574 = vadd.f32 %v545, %v479
      %v575 = vadd.f32 %v548, %v479
      %v576 = vadd.f32 %v551, %v479
      %v577 = vadd.f32 %v554, %v479
      %v578 = vadd.f32 %v557, %v479
      %v579 = vadd.f32 %v560, %v479
      %v580 = vadd.f32 %v563, %v479
      %v581 = vand.u32 2147483647, %v565
      %vm582 = vcmp.le.f32.partialorder %v581, 0.7853982
      %vm583 = vcmp.lt.s32.totalorder %v565, 0
      %v584 = vand.u32 %v565, 2139095040
      %v585 = vshrl.u32 %v584, 23
      %v586 = vsub.s32 %v585, 127
      %v587 = vand.u32 2147483647, %v565
      %v588 = vand.u32 %v587, 8388607
      %v589 = vor.u32 %v588, 8388608
      %v590 = vsub.s32 0, %v589
      %v591 = vadd.s32 %v586, 1
      %vm592 = vcmp.gt.s32.totalorder %v591, 0
      %v593 = vsel %vm592, %v591, 0
      %v594 = vshrl.u32 %v593, 5
      %v595 = vand.u32 %v593, 31
      %v596 = vsub.s32 32, %v595
      %v597 = vshrl.u32 683565275, %v596
      %v598 = vshll.u32 683565275, %v595
      %v599 = vshrl.u32 2475754826, %v596
      %v600 = vor.u32 %v598, %v599
      %v601 = vshll.u32 2475754826, %v595
      %v602 = vshrl.u32 2131351028, %v596
      %v603 = vor.u32 %v601, %v602
      %v604 = vshll.u32 2131351028, %v595
      %v605 = vshrl.u32 2102212464, %v596
      %v606 = vor.u32 %v604, %v605
      %v607 = vshll.u32 2102212464, %v595
      %v608 = vshrl.u32 920167782, %v596
      %v609 = vor.u32 %v607, %v608
      %v610 = vshll.u32 920167782, %v595
      %v611 = vshrl.u32 1326507024, %v596
      %v612 = vor.u32 %v610, %v611
      %vm613 = vcmp.lt.s32.totalorder %v594, 1
      %vm614 = vcmp.lt.s32.totalorder %v594, 2
      %vm615 = vcmp.lt.s32.totalorder %v594, 3
      %vm616 = vcmp.lt.s32.totalorder %v594, 4
      %v617 = vsel %vm613, %v597, %v600
      %v618 = vsel %vm616, %v606, 2102212464
      %v619 = vsel %vm615, %v603, %v618
      %v620 = vsel %vm614, %v617, %v619
      %v621 = vsel %vm613, %v600, %v603
      %v622 = vsel %vm616, %v609, 920167782
      %v623 = vsel %vm615, %v606, %v622
      %v624 = vsel %vm614, %v621, %v623
      %v625 = vsel %vm613, %v603, %v606
      %v626 = vsel %vm616, %v612, 1326507024
      %v627 = vsel %vm615, %v609, %v626
      %v628 = vsel %vm614, %v625, %v627
      %v629 = vshll.u32 %v589, 8
      %v630 = vand.u32 %v629, 65535
      %v631 = vshrl.u32 %v629, 16
      %v632 = vand.u32 %v628, 65535
      %v633 = vshrl.u32 %v628, 16
      %v634 = vmul.u32 %v630, %v632
      %v635 = vmul.u32 %v630, %v633
      %v636 = vmul.u32 %v631, %v632
      %v637 = vmul.u32 %v631, %v633
      %v638 = vshll.u32 %v635, 16
      %v639 = vshrl.u32 %v635, 16
      %v640 = vshll.u32 %v636, 16
      %v641 = vshrl.u32 %v636, 16
      %vm642 = vc.u32 %v634, %v638
      %v643 = vsel %vm642, 1, 0
      %v644 = vadd.s32 %v634, %v638
      %v645 = vadd.s32 %v637, %v643
      %vm646 = vc.u32 %v644, %v640
      %v647 = vsel %vm646, 1, 0
      %v648 = vadd.s32 %v644, %v640
      %v649 = vadd.s32 %v645, %v647
      %v650 = vadd.s32 %v649, %v639
      %v651 = vadd.s32 %v650, %v641
      %v652 = vand.u32 %v629, 65535
      %v653 = vshrl.u32 %v629, 16
      %v654 = vand.u32 %v624, 65535
      %v655 = vshrl.u32 %v624, 16
      %v656 = vmul.u32 %v652, %v654
      %v657 = vmul.u32 %v652, %v655
      %v658 = vmul.u32 %v653, %v654
      %v659 = vmul.u32 %v653, %v655
      %v660 = vshll.u32 %v657, 16
      %v661 = vshrl.u32 %v657, 16
      %v662 = vshll.u32 %v658, 16
      %v663 = vshrl.u32 %v658, 16
      %vm664 = vc.u32 %v656, %v660
      %v665 = vsel %vm664, 1, 0
      %v666 = vadd.s32 %v656, %v660
      %v667 = vadd.s32 %v659, %v665
      %vm668 = vc.u32 %v666, %v662
      %v669 = vsel %vm668, 1, 0
      %v670 = vadd.s32 %v666, %v662
      %v671 = vadd.s32 %v667, %v669
      %v672 = vadd.s32 %v671, %v661
      %v673 = vadd.s32 %v672, %v663
      %v674 = vmul.u32 %v629, %v620
      %v675 = vadd.s32 %v651, %v670
      %vm676 = vc.u32 %v651, %v670
      %v677 = vadd.s32 %v673, 1
      %v678 = vsel %vm676, %v677, %v673
      %v679 = vadd.s32 %v674, %v678
      %v680 = vadd.s32 %v679, 536870912
      %v681 = vshrl.u32 %v680, 30
      %v682 = vshll.u32 %v681, 30
      %v683 = vsub.s32 %v679, %v682
      %vm684 = vcmp.lt.s32.totalorder %v683, 0
      %v685 = vsub.s32 0, %v683
      %v686 = vsel %vm684, %v685, %v683
      %v687 = vclz %v686
      %v688 = vsub.s32 %v687, 2
      %vm689 = vcmp.gt.s32.totalorder 0, %v688
      %v690 = vsel %vm689, 0, %v688
      %v691 = vsub.s32 32, %v690
      %v692 = vshll.u32 %v683, %v690
      %v693 = vshrl.u32 %v675, %v691
      %v694 = vor.u32 %v692, %v693
      %v695 = vsub.s32 4294967266, %v690
      %v696 = vadd.s32 %v695, 127
      %v697 = vshll.u32 %v696, 23
      %v698 = vor.u32 4788187, %v697
      %v699 = vand.u32 2147483647, %v698
      %v701 = vcvt.s32.f32 %v694
      %v702 = vmul.f32 %v701, %v699
      %v703 = vxor.u32 %v702, 2147483648
      %v704 = vsel %vm583, %v703, %v702
      %v705 = vsub.s32 4, %v681
      %v706 = vsel %vm583, %v705, %v681
      %v707 = vsel %vm582, %v565, %v704
      %v708 = vsel %vm582, 0, %v706
      %v709 = vmul.f32 %v707, %v707
      %v710 = vmul.f32 %v709, -0.001358992
      %v711 = vadd.f32 %v710, 0.041655596
      %v712 = vmul.f32 %v709, %v711
      %v713 = vadd.f32 %v712, -0.4999988
      %v714 = vmul.f32 %v709, %v713
      %v715 = vadd.f32 1.0, %v714
      %v716 = vmul.f32 %v707, %v707
      %v717 = vmul.f32 %v716, -0.00019511016
      %v718 = vadd.f32 %v717, 0.008332121
      %v719 = vmul.f32 %v716, %v718
      %v720 = vadd.f32 %v719, -0.16666654
      %v721 = vmul.f32 %v716, %v720
      %v722 = vadd.f32 %v721, 1.0
      %v723 = vmul.f32 %v722, %v707
      %vm724 = vweird.f32 %v565
      %v725 = vand.u32 %v708, 3
      %vm726 = vcmp.lt.s32.totalorder %v725, 2
      %vm727 = vcmp.eq.s32.totalorder %v725, 0
      %v728 = vxor.u32 %v723, 2147483648
      %v729 = vsel %vm727, %v715, %v728
      %vm730 = vcmp.eq.s32.totalorder %v725, 2
      %v731 = vxor.u32 %v715, 2147483648
      %v732 = vsel %vm730, %v731, %v723
      %v733 = vsel %vm726, %v729, %v732
      %v734 = vsel %vm724, nan, %v733
      %v735 = vand.u32 2147483647, %v566
      %vm736 = vcmp.le.f32.partialorder %v735, 0.7853982
      %vm737 = vcmp.lt.s32.totalorder %v566, 0
      %v738 = vand.u32 %v566, 2139095040
      %v739 = vshrl.u32 %v738, 23
      %v740 = vsub.s32 %v739, 127
      %v741 = vand.u32 2147483647, %v566
      %v742 = vand.u32 %v741, 8388607
      %v743 = vor.u32 %v742, 8388608
      %v744 = vsub.s32 0, %v743
      %v745 = vadd.s32 %v740, 1
      %vm746 = vcmp.gt.s32.totalorder %v745, 0
      %v747 = vsel %vm746, %v745, 0
      %v748 = vshrl.u32 %v747, 5
      %v749 = vand.u32 %v747, 31
      %v750 = vsub.s32 32, %v749
      %v751 = vshrl.u32 683565275, %v750
      %v752 = vshll.u32 683565275, %v749
      %v753 = vshrl.u32 2475754826, %v750
      %v754 = vor.u32 %v752, %v753
      %v755 = vshll.u32 2475754826, %v749
      %v756 = vshrl.u32 2131351028, %v750
      %v757 = vor.u32 %v755, %v756
      %v758 = vshll.u32 2131351028, %v749
      %v759 = vshrl.u32 2102212464, %v750
      %v760 = vor.u32 %v758, %v759
      %v761 = vshll.u32 2102212464, %v749
      %v762 = vshrl.u32 920167782, %v750
      %v763 = vor.u32 %v761, %v762
      %v764 = vshll.u32 920167782, %v749
      %v765 = vshrl.u32 1326507024, %v750
      %v766 = vor.u32 %v764, %v765
      %vm767 = vcmp.lt.s32.totalorder %v748, 1
      %vm768 = vcmp.lt.s32.totalorder %v748, 2
      %vm769 = vcmp.lt.s32.totalorder %v748, 3
      %vm770 = vcmp.lt.s32.totalorder %v748, 4
      %v771 = vsel %vm767, %v751, %v754
      %v772 = vsel %vm770, %v760, 2102212464
      %v773 = vsel %vm769, %v757, %v772
      %v774 = vsel %vm768, %v771, %v773
      %v775 = vsel %vm767, %v754, %v757
      %v776 = vsel %vm770, %v763, 920167782
      %v777 = vsel %vm769, %v760, %v776
      %v778 = vsel %vm768, %v775, %v777
      %v779 = vsel %vm767, %v757, %v760
      %v780 = vsel %vm770, %v766, 1326507024
      %v781 = vsel %vm769, %v763, %v780
      %v782 = vsel %vm768, %v779, %v781
      %v783 = vshll.u32 %v743, 8
      %v784 = vand.u32 %v783, 65535
      %v785 = vshrl.u32 %v783, 16
      %v786 = vand.u32 %v782, 65535
      %v787 = vshrl.u32 %v782, 16
      %v788 = vmul.u32 %v784, %v786
      %v789 = vmul.u32 %v784, %v787
      %v790 = vmul.u32 %v785, %v786
      %v791 = vmul.u32 %v785, %v787
      %v792 = vshll.u32 %v789, 16
      %v793 = vshrl.u32 %v789, 16
      %v794 = vshll.u32 %v790, 16
      %v795 = vshrl.u32 %v790, 16
      %vm796 = vc.u32 %v788, %v792
      %v797 = vsel %vm796, 1, 0
      %v798 = vadd.s32 %v788, %v792
      %v799 = vadd.s32 %v791, %v797
      %vm800 = vc.u32 %v798, %v794
      %v801 = vsel %vm800, 1, 0
      %v802 = vadd.s32 %v798, %v794
      %v803 = vadd.s32 %v799, %v801
      %v804 = vadd.s32 %v803, %v793
      %v805 = vadd.s32 %v804, %v795
      %v806 = vand.u32 %v783, 65535
      %v807 = vshrl.u32 %v783, 16
      %v808 = vand.u32 %v778, 65535
      %v809 = vshrl.u32 %v778, 16
      %v810 = vmul.u32 %v806, %v808
      %v811 = vmul.u32 %v806, %v809
      %v812 = vmul.u32 %v807, %v808
      %v813 = vmul.u32 %v807, %v809
      %v814 = vshll.u32 %v811, 16
      %v815 = vshrl.u32 %v811, 16
      %v816 = vshll.u32 %v812, 16
      %v817 = vshrl.u32 %v812, 16
      %vm818 = vc.u32 %v810, %v814
      %v819 = vsel %vm818, 1, 0
      %v820 = vadd.s32 %v810, %v814
      %v821 = vadd.s32 %v813, %v819
      %vm822 = vc.u32 %v820, %v816
      %v823 = vsel %vm822, 1, 0
      %v824 = vadd.s32 %v820, %v816
      %v825 = vadd.s32 %v821, %v823
      %v826 = vadd.s32 %v825, %v815
      %v827 = vadd.s32 %v826, %v817
      %v828 = vmul.u32 %v783, %v774
      %v829 = vadd.s32 %v805, %v824
      %vm830 = vc.u32 %v805, %v824
      %v831 = vadd.s32 %v827, 1
      %v832 = vsel %vm830, %v831, %v827
      %v833 = vadd.s32 %v828, %v832
      %v834 = vadd.s32 %v833, 536870912
      %v835 = vshrl.u32 %v834, 30
      %v836 = vshll.u32 %v835, 30
      %v837 = vsub.s32 %v833, %v836
      %vm838 = vcmp.lt.s32.totalorder %v837, 0
      %v839 = vsub.s32 0, %v837
      %v840 = vsel %vm838, %v839, %v837
      %v841 = vclz %v840
      %v842 = vsub.s32 %v841, 2
      %vm843 = vcmp.gt.s32.totalorder 0, %v842
      %v844 = vsel %vm843, 0, %v842
      %v845 = vsub.s32 32, %v844
      %v846 = vshll.u32 %v837, %v844
      %v847 = vshrl.u32 %v829, %v845
      %v848 = vor.u32 %v846, %v847
      %v849 = vsub.s32 4294967266, %v844
      %v850 = vadd.s32 %v849, 127
      %v851 = vshll.u32 %v850, 23
      %v852 = vor.u32 4788187, %v851
      %v853 = vand.u32 2147483647, %v852
      %v855 = vcvt.s32.f32 %v848
      %v856 = vmul.f32 %v855, %v853
      %v857 = vxor.u32 %v856, 2147483648
      %v858 = vsel %vm737, %v857, %v856
      %v859 = vsub.s32 4, %v835
      %v860 = vsel %vm737, %v859, %v835
      %v861 = vsel %vm736, %v566, %v858
      %v862 = vsel %vm736, 0, %v860
      %v863 = vmul.f32 %v861, %v861
      %v864 = vmul.f32 %v863, -0.001358992
      %v865 = vadd.f32 %v864, 0.041655596
      %v866 = vmul.f32 %v863, %v865
      %v867 = vadd.f32 %v866, -0.4999988
      %v868 = vmul.f32 %v863, %v867
      %v869 = vadd.f32 1.0, %v868
      %v870 = vmul.f32 %v861, %v861
      %v871 = vmul.f32 %v870, -0.00019511016
      %v872 = vadd.f32 %v871, 0.008332121
      %v873 = vmul.f32 %v870, %v872
      %v874 = vadd.f32 %v873, -0.16666654
      %v875 = vmul.f32 %v870, %v874
      %v876 = vadd.f32 %v875, 1.0
      %v877 = vmul.f32 %v876, %v861
      %vm878 = vweird.f32 %v566
      %v879 = vand.u32 %v862, 3
      %vm880 = vcmp.lt.s32.totalorder %v879, 2
      %vm881 = vcmp.eq.s32.totalorder %v879, 0
      %v882 = vxor.u32 %v877, 2147483648
      %v883 = vsel %vm881, %v869, %v882
      %vm884 = vcmp.eq.s32.totalorder %v879, 2
      %v885 = vxor.u32 %v869, 2147483648
      %v886 = vsel %vm884, %v885, %v877
      %v887 = vsel %vm880, %v883, %v886
      %v888 = vsel %vm878, nan, %v887
      %v889 = vand.u32 2147483647, %v567
      %vm890 = vcmp.le.f32.partialorder %v889, 0.7853982
      %vm891 = vcmp.lt.s32.totalorder %v567, 0
      %v892 = vand.u32 %v567, 2139095040
      %v893 = vshrl.u32 %v892, 23
      %v894 = vsub.s32 %v893, 127
      %v895 = vand.u32 2147483647, %v567
      %v896 = vand.u32 %v895, 8388607
      %v897 = vor.u32 %v896, 8388608
      %v898 = vsub.s32 0, %v897
      %v899 = vadd.s32 %v894, 1
      %vm900 = vcmp.gt.s32.totalorder %v899, 0
      %v901 = vsel %vm900, %v899, 0
      %v902 = vshrl.u32 %v901, 5
      %v903 = vand.u32 %v901, 31
      %v904 = vsub.s32 32, %v903
      %v905 = vshrl.u32 683565275, %v904
      %v906 = vshll.u32 683565275, %v903
      %v907 = vshrl.u32 2475754826, %v904
      %v908 = vor.u32 %v906, %v907
      %v909 = vshll.u32 2475754826, %v903
      %v910 = vshrl.u32 2131351028, %v904
      %v911 = vor.u32 %v909, %v910
      %v912 = vshll.u32 2131351028, %v903
      %v913 = vshrl.u32 2102212464, %v904
      %v914 = vor.u32 %v912, %v913
      %v915 = vshll.u32 2102212464, %v903
      %v916 = vshrl.u32 920167782, %v904
      %v917 = vor.u32 %v915, %v916
      %v918 = vshll.u32 920167782, %v903
      %v919 = vshrl.u32 1326507024, %v904
      %v920 = vor.u32 %v918, %v919
      %vm921 = vcmp.lt.s32.totalorder %v902, 1
      %vm922 = vcmp.lt.s32.totalorder %v902, 2
      %vm923 = vcmp.lt.s32.totalorder %v902, 3
      %vm924 = vcmp.lt.s32.totalorder %v902, 4
      %v925 = vsel %vm921, %v905, %v908
      %v926 = vsel %vm924, %v914, 2102212464
      %v927 = vsel %vm923, %v911, %v926
      %v928 = vsel %vm922, %v925, %v927
      %v929 = vsel %vm921, %v908, %v911
      %v930 = vsel %vm924, %v917, 920167782
      %v931 = vsel %vm923, %v914, %v930
      %v932 = vsel %vm922, %v929, %v931
      %v933 = vsel %vm921, %v911, %v914
      %v934 = vsel %vm924, %v920, 1326507024
      %v935 = vsel %vm923, %v917, %v934
      %v936 = vsel %vm922, %v933, %v935
      %v937 = vshll.u32 %v897, 8
      %v938 = vand.u32 %v937, 65535
      %v939 = vshrl.u32 %v937, 16
      %v940 = vand.u32 %v936, 65535
      %v941 = vshrl.u32 %v936, 16
      %v942 = vmul.u32 %v938, %v940
      %v943 = vmul.u32 %v938, %v941
      %v944 = vmul.u32 %v939, %v940
      %v945 = vmul.u32 %v939, %v941
      %v946 = vshll.u32 %v943, 16
      %v947 = vshrl.u32 %v943, 16
      %v948 = vshll.u32 %v944, 16
      %v949 = vshrl.u32 %v944, 16
      %vm950 = vc.u32 %v942, %v946
      %v951 = vsel %vm950, 1, 0
      %v952 = vadd.s32 %v942, %v946
      %v953 = vadd.s32 %v945, %v951
      %vm954 = vc.u32 %v952, %v948
      %v955 = vsel %vm954, 1, 0
      %v956 = vadd.s32 %v952, %v948
      %v957 = vadd.s32 %v953, %v955
      %v958 = vadd.s32 %v957, %v947
      %v959 = vadd.s32 %v958, %v949
      %v960 = vand.u32 %v937, 65535
      %v961 = vshrl.u32 %v937, 16
      %v962 = vand.u32 %v932, 65535
      %v963 = vshrl.u32 %v932, 16
      %v964 = vmul.u32 %v960, %v962
      %v965 = vmul.u32 %v960, %v963
      %v966 = vmul.u32 %v961, %v962
      %v967 = vmul.u32 %v961, %v963
      %v968 = vshll.u32 %v965, 16
      %v969 = vshrl.u32 %v965, 16
      %v970 = vshll.u32 %v966, 16
      %v971 = vshrl.u32 %v966, 16
      %vm972 = vc.u32 %v964, %v968
      %v973 = vsel %vm972, 1, 0
      %v974 = vadd.s32 %v964, %v968
      %v975 = vadd.s32 %v967, %v973
      %vm976 = vc.u32 %v974, %v970
      %v977 = vsel %vm976, 1, 0
      %v978 = vadd.s32 %v974, %v970
      %v979 = vadd.s32 %v975, %v977
      %v980 = vadd.s32 %v979, %v969
      %v981 = vadd.s32 %v980, %v971
      %v982 = vmul.u32 %v937, %v928
      %v983 = vadd.s32 %v959, %v978
      %vm984 = vc.u32 %v959, %v978
      %v985 = vadd.s32 %v981, 1
      %v986 = vsel %vm984, %v985, %v981
      %v987 = vadd.s32 %v982, %v986
      %v988 = vadd.s32 %v987, 536870912
      %v989 = vshrl.u32 %v988, 30
      %v990 = vshll.u32 %v989, 30
      %v991 = vsub.s32 %v987, %v990
      %vm992 = vcmp.lt.s32.totalorder %v991, 0
      %v993 = vsub.s32 0, %v991
      %v994 = vsel %vm992, %v993, %v991
      %v995 = vclz %v994
      %v996 = vsub.s32 %v995, 2
      %vm997 = vcmp.gt.s32.totalorder 0, %v996
      %v998 = vsel %vm997, 0, %v996
      %v999 = vsub.s32 32, %v998
      %v1000 = vshll.u32 %v991, %v998
      %v1001 = vshrl.u32 %v983, %v999
      %v1002 = vor.u32 %v1000, %v1001
      %v1003 = vsub.s32 4294967266, %v998
      %v1004 = vadd.s32 %v1003, 127
      %v1005 = vshll.u32 %v1004, 23
      %v1006 = vor.u32 4788187, %v1005
      %v1007 = vand.u32 2147483647, %v1006
      %v1009 = vcvt.s32.f32 %v1002
      %v1010 = vmul.f32 %v1009, %v1007
      %v1011 = vxor.u32 %v1010, 2147483648
      %v1012 = vsel %vm891, %v1011, %v1010
      %v1013 = vsub.s32 4, %v989
      %v1014 = vsel %vm891, %v1013, %v989
      %v1015 = vsel %vm890, %v567, %v1012
      %v1016 = vsel %vm890, 0, %v1014
      %v1017 = vmul.f32 %v1015, %v1015
      %v1018 = vmul.f32 %v1017, -0.001358992
      %v1019 = vadd.f32 %v1018, 0.041655596
      %v1020 = vmul.f32 %v1017, %v1019
      %v1021 = vadd.f32 %v1020, -0.4999988
      %v1022 = vmul.f32 %v1017, %v1021
      %v1023 = vadd.f32 1.0, %v1022
      %v1024 = vmul.f32 %v1015, %v1015
      %v1025 = vmul.f32 %v1024, -0.00019511016
      %v1026 = vadd.f32 %v1025, 0.008332121
      %v1027 = vmul.f32 %v1024, %v1026
      %v1028 = vadd.f32 %v1027, -0.16666654
      %v1029 = vmul.f32 %v1024, %v1028
      %v1030 = vadd.f32 %v1029, 1.0
      %v1031 = vmul.f32 %v1030, %v1015
      %vm1032 = vweird.f32 %v567
      %v1033 = vand.u32 %v1016, 3
      %vm1034 = vcmp.lt.s32.totalorder %v1033, 2
      %vm1035 = vcmp.eq.s32.totalorder %v1033, 0
      %v1036 = vxor.u32 %v1031, 2147483648
      %v1037 = vsel %vm1035, %v1023, %v1036
      %vm1038 = vcmp.eq.s32.totalorder %v1033, 2
      %v1039 = vxor.u32 %v1023, 2147483648
      %v1040 = vsel %vm1038, %v1039, %v1031
      %v1041 = vsel %vm1034, %v1037, %v1040
      %v1042 = vsel %vm1032, nan, %v1041
      %v1043 = vand.u32 2147483647, %v568
      %vm1044 = vcmp.le.f32.partialorder %v1043, 0.7853982
      %vm1045 = vcmp.lt.s32.totalorder %v568, 0
      %v1046 = vand.u32 %v568, 2139095040
      %v1047 = vshrl.u32 %v1046, 23
      %v1048 = vsub.s32 %v1047, 127
      %v1049 = vand.u32 2147483647, %v568
      %v1050 = vand.u32 %v1049, 8388607
      %v1051 = vor.u32 %v1050, 8388608
      %v1052 = vsub.s32 0, %v1051
      %v1053 = vadd.s32 %v1048, 1
      %vm1054 = vcmp.gt.s32.totalorder %v1053, 0
      %v1055 = vsel %vm1054, %v1053, 0
      %v1056 = vshrl.u32 %v1055, 5
      %v1057 = vand.u32 %v1055, 31
      %v1058 = vsub.s32 32, %v1057
      %v1059 = vshrl.u32 683565275, %v1058
      %v1060 = vshll.u32 683565275, %v1057
      %v1061 = vshrl.u32 2475754826, %v1058
      %v1062 = vor.u32 %v1060, %v1061
      %v1063 = vshll.u32 2475754826, %v1057
      %v1064 = vshrl.u32 2131351028, %v1058
      %v1065 = vor.u32 %v1063, %v1064
      %v1066 = vshll.u32 2131351028, %v1057
      %v1067 = vshrl.u32 2102212464, %v1058
      %v1068 = vor.u32 %v1066, %v1067
      %v1069 = vshll.u32 2102212464, %v1057
      %v1070 = vshrl.u32 920167782, %v1058
      %v1071 = vor.u32 %v1069, %v1070
      %v1072 = vshll.u32 920167782, %v1057
      %v1073 = vshrl.u32 1326507024, %v1058
      %v1074 = vor.u32 %v1072, %v1073
      %vm1075 = vcmp.lt.s32.totalorder %v1056, 1
      %vm1076 = vcmp.lt.s32.totalorder %v1056, 2
      %vm1077 = vcmp.lt.s32.totalorder %v1056, 3
      %vm1078 = vcmp.lt.s32.totalorder %v1056, 4
      %v1079 = vsel %vm1075, %v1059, %v1062
      %v1080 = vsel %vm1078, %v1068, 2102212464
      %v1081 = vsel %vm1077, %v1065, %v1080
      %v1082 = vsel %vm1076, %v1079, %v1081
      %v1083 = vsel %vm1075, %v1062, %v1065
      %v1084 = vsel %vm1078, %v1071, 920167782
      %v1085 = vsel %vm1077, %v1068, %v1084
      %v1086 = vsel %vm1076, %v1083, %v1085
      %v1087 = vsel %vm1075, %v1065, %v1068
      %v1088 = vsel %vm1078, %v1074, 1326507024
      %v1089 = vsel %vm1077, %v1071, %v1088
      %v1090 = vsel %vm1076, %v1087, %v1089
      %v1091 = vshll.u32 %v1051, 8
      %v1092 = vand.u32 %v1091, 65535
      %v1093 = vshrl.u32 %v1091, 16
      %v1094 = vand.u32 %v1090, 65535
      %v1095 = vshrl.u32 %v1090, 16
      %v1096 = vmul.u32 %v1092, %v1094
      %v1097 = vmul.u32 %v1092, %v1095
      %v1098 = vmul.u32 %v1093, %v1094
      %v1099 = vmul.u32 %v1093, %v1095
      %v1100 = vshll.u32 %v1097, 16
      %v1101 = vshrl.u32 %v1097, 16
      %v1102 = vshll.u32 %v1098, 16
      %v1103 = vshrl.u32 %v1098, 16
      %vm1104 = vc.u32 %v1096, %v1100
      %v1105 = vsel %vm1104, 1, 0
      %v1106 = vadd.s32 %v1096, %v1100
      %v1107 = vadd.s32 %v1099, %v1105
      %vm1108 = vc.u32 %v1106, %v1102
      %v1109 = vsel %vm1108, 1, 0
      %v1110 = vadd.s32 %v1106, %v1102
      %v1111 = vadd.s32 %v1107, %v1109
      %v1112 = vadd.s32 %v1111, %v1101
      %v1113 = vadd.s32 %v1112, %v1103
      %v1114 = vand.u32 %v1091, 65535
      %v1115 = vshrl.u32 %v1091, 16
      %v1116 = vand.u32 %v1086, 65535
      %v1117 = vshrl.u32 %v1086, 16
      %v1118 = vmul.u32 %v1114, %v1116
      %v1119 = vmul.u32 %v1114, %v1117
      %v1120 = vmul.u32 %v1115, %v1116
      %v1121 = vmul.u32 %v1115, %v1117
      %v1122 = vshll.u32 %v1119, 16
      %v1123 = vshrl.u32 %v1119, 16
      %v1124 = vshll.u32 %v1120, 16
      %v1125 = vshrl.u32 %v1120, 16
      %vm1126 = vc.u32 %v1118, %v1122
      %v1127 = vsel %vm1126, 1, 0
      %v1128 = vadd.s32 %v1118, %v1122
      %v1129 = vadd.s32 %v1121, %v1127
      %vm1130 = vc.u32 %v1128, %v1124
      %v1131 = vsel %vm1130, 1, 0
      %v1132 = vadd.s32 %v1128, %v1124
      %v1133 = vadd.s32 %v1129, %v1131
      %v1134 = vadd.s32 %v1133, %v1123
      %v1135 = vadd.s32 %v1134, %v1125
      %v1136 = vmul.u32 %v1091, %v1082
      %v1137 = vadd.s32 %v1113, %v1132
      %vm1138 = vc.u32 %v1113, %v1132
      %v1139 = vadd.s32 %v1135, 1
      %v1140 = vsel %vm1138, %v1139, %v1135
      %v1141 = vadd.s32 %v1136, %v1140
      %v1142 = vadd.s32 %v1141, 536870912
      %v1143 = vshrl.u32 %v1142, 30
      %v1144 = vshll.u32 %v1143, 30
      %v1145 = vsub.s32 %v1141, %v1144
      %vm1146 = vcmp.lt.s32.totalorder %v1145, 0
      %v1147 = vsub.s32 0, %v1145
      %v1148 = vsel %vm1146, %v1147, %v1145
      %v1149 = vclz %v1148
      %v1150 = vsub.s32 %v1149, 2
      %vm1151 = vcmp.gt.s32.totalorder 0, %v1150
      %v1152 = vsel %vm1151, 0, %v1150
      %v1153 = vsub.s32 32, %v1152
      %v1154 = vshll.u32 %v1145, %v1152
      %v1155 = vshrl.u32 %v1137, %v1153
      %v1156 = vor.u32 %v1154, %v1155
      %v1157 = vsub.s32 4294967266, %v1152
      %v1158 = vadd.s32 %v1157, 127
      %v1159 = vshll.u32 %v1158, 23
      %v1160 = vor.u32 4788187, %v1159
      %v1161 = vand.u32 2147483647, %v1160
      %v1163 = vcvt.s32.f32 %v1156
      %v1164 = vmul.f32 %v1163, %v1161
      %v1165 = vxor.u32 %v1164, 2147483648
      %v1166 = vsel %vm1045, %v1165, %v1164
      %v1167 = vsub.s32 4, %v1143
      %v1168 = vsel %vm1045, %v1167, %v1143
      %v1169 = vsel %vm1044, %v568, %v1166
      %v1170 = vsel %vm1044, 0, %v1168
      %v1171 = vmul.f32 %v1169, %v1169
      %v1172 = vmul.f32 %v1171, -0.001358992
      %v1173 = vadd.f32 %v1172, 0.041655596
      %v1174 = vmul.f32 %v1171, %v1173
      %v1175 = vadd.f32 %v1174, -0.4999988
      %v1176 = vmul.f32 %v1171, %v1175
      %v1177 = vadd.f32 1.0, %v1176
      %v1178 = vmul.f32 %v1169, %v1169
      %v1179 = vmul.f32 %v1178, -0.00019511016
      %v1180 = vadd.f32 %v1179, 0.008332121
      %v1181 = vmul.f32 %v1178, %v1180
      %v1182 = vadd.f32 %v1181, -0.16666654
      %v1183 = vmul.f32 %v1178, %v1182
      %v1184 = vadd.f32 %v1183, 1.0
      %v1185 = vmul.f32 %v1184, %v1169
      %vm1186 = vweird.f32 %v568
      %v1187 = vand.u32 %v1170, 3
      %vm1188 = vcmp.lt.s32.totalorder %v1187, 2
      %vm1189 = vcmp.eq.s32.totalorder %v1187, 0
      %v1190 = vxor.u32 %v1185, 2147483648
      %v1191 = vsel %vm1189, %v1177, %v1190
      %vm1192 = vcmp.eq.s32.totalorder %v1187, 2
      %v1193 = vxor.u32 %v1177, 2147483648
      %v1194 = vsel %vm1192, %v1193, %v1185
      %v1195 = vsel %vm1188, %v1191, %v1194
      %v1196 = vsel %vm1186, nan, %v1195
      %v1197 = vand.u32 2147483647, %v569
      %vm1198 = vcmp.le.f32.partialorder %v1197, 0.7853982
      %vm1199 = vcmp.lt.s32.totalorder %v569, 0
      %v1200 = vand.u32 %v569, 2139095040
      %v1201 = vshrl.u32 %v1200, 23
      %v1202 = vsub.s32 %v1201, 127
      %v1203 = vand.u32 2147483647, %v569
      %v1204 = vand.u32 %v1203, 8388607
      %v1205 = vor.u32 %v1204, 8388608
      %v1206 = vsub.s32 0, %v1205
      %v1207 = vadd.s32 %v1202, 1
      %vm1208 = vcmp.gt.s32.totalorder %v1207, 0
      %v1209 = vsel %vm1208, %v1207, 0
      %v1210 = vshrl.u32 %v1209, 5
      %v1211 = vand.u32 %v1209, 31
      %v1212 = vsub.s32 32, %v1211
      %v1213 = vshrl.u32 683565275, %v1212
      %v1214 = vshll.u32 683565275, %v1211
      %v1215 = vshrl.u32 2475754826, %v1212
      %v1216 = vor.u32 %v1214, %v1215
      %v1217 = vshll.u32 2475754826, %v1211
      %v1218 = vshrl.u32 2131351028, %v1212
      %v1219 = vor.u32 %v1217, %v1218
      %v1220 = vshll.u32 2131351028, %v1211
      %v1221 = vshrl.u32 2102212464, %v1212
      %v1222 = vor.u32 %v1220, %v1221
      %v1223 = vshll.u32 2102212464, %v1211
      %v1224 = vshrl.u32 920167782, %v1212
      %v1225 = vor.u32 %v1223, %v1224
      %v1226 = vshll.u32 920167782, %v1211
      %v1227 = vshrl.u32 1326507024, %v1212
      %v1228 = vor.u32 %v1226, %v1227
      %vm1229 = vcmp.lt.s32.totalorder %v1210, 1
      %vm1230 = vcmp.lt.s32.totalorder %v1210, 2
      %vm1231 = vcmp.lt.s32.totalorder %v1210, 3
      %vm1232 = vcmp.lt.s32.totalorder %v1210, 4
      %v1233 = vsel %vm1229, %v1213, %v1216
      %v1234 = vsel %vm1232, %v1222, 2102212464
      %v1235 = vsel %vm1231, %v1219, %v1234
      %v1236 = vsel %vm1230, %v1233, %v1235
      %v1237 = vsel %vm1229, %v1216, %v1219
      %v1238 = vsel %vm1232, %v1225, 920167782
      %v1239 = vsel %vm1231, %v1222, %v1238
      %v1240 = vsel %vm1230, %v1237, %v1239
      %v1241 = vsel %vm1229, %v1219, %v1222
      %v1242 = vsel %vm1232, %v1228, 1326507024
      %v1243 = vsel %vm1231, %v1225, %v1242
      %v1244 = vsel %vm1230, %v1241, %v1243
      %v1245 = vshll.u32 %v1205, 8
      %v1246 = vand.u32 %v1245, 65535
      %v1247 = vshrl.u32 %v1245, 16
      %v1248 = vand.u32 %v1244, 65535
      %v1249 = vshrl.u32 %v1244, 16
      %v1250 = vmul.u32 %v1246, %v1248
      %v1251 = vmul.u32 %v1246, %v1249
      %v1252 = vmul.u32 %v1247, %v1248
      %v1253 = vmul.u32 %v1247, %v1249
      %v1254 = vshll.u32 %v1251, 16
      %v1255 = vshrl.u32 %v1251, 16
      %v1256 = vshll.u32 %v1252, 16
      %v1257 = vshrl.u32 %v1252, 16
      %vm1258 = vc.u32 %v1250, %v1254
      %v1259 = vsel %vm1258, 1, 0
      %v1260 = vadd.s32 %v1250, %v1254
      %v1261 = vadd.s32 %v1253, %v1259
      %vm1262 = vc.u32 %v1260, %v1256
      %v1263 = vsel %vm1262, 1, 0
      %v1264 = vadd.s32 %v1260, %v1256
      %v1265 = vadd.s32 %v1261, %v1263
      %v1266 = vadd.s32 %v1265, %v1255
      %v1267 = vadd.s32 %v1266, %v1257
      %v1268 = vand.u32 %v1245, 65535
      %v1269 = vshrl.u32 %v1245, 16
      %v1270 = vand.u32 %v1240, 65535
      %v1271 = vshrl.u32 %v1240, 16
      %v1272 = vmul.u32 %v1268, %v1270
      %v1273 = vmul.u32 %v1268, %v1271
      %v1274 = vmul.u32 %v1269, %v1270
      %v1275 = vmul.u32 %v1269, %v1271
      %v1276 = vshll.u32 %v1273, 16
      %v1277 = vshrl.u32 %v1273, 16
      %v1278 = vshll.u32 %v1274, 16
      %v1279 = vshrl.u32 %v1274, 16
      %vm1280 = vc.u32 %v1272, %v1276
      %v1281 = vsel %vm1280, 1, 0
      %v1282 = vadd.s32 %v1272, %v1276
      %v1283 = vadd.s32 %v1275, %v1281
      %vm1284 = vc.u32 %v1282, %v1278
      %v1285 = vsel %vm1284, 1, 0
      %v1286 = vadd.s32 %v1282, %v1278
      %v1287 = vadd.s32 %v1283, %v1285
      %v1288 = vadd.s32 %v1287, %v1277
      %v1289 = vadd.s32 %v1288, %v1279
      %v1290 = vmul.u32 %v1245, %v1236
      %v1291 = vadd.s32 %v1267, %v1286
      %vm1292 = vc.u32 %v1267, %v1286
      %v1293 = vadd.s32 %v1289, 1
      %v1294 = vsel %vm1292, %v1293, %v1289
      %v1295 = vadd.s32 %v1290, %v1294
      %v1296 = vadd.s32 %v1295, 536870912
      %v1297 = vshrl.u32 %v1296, 30
      %v1298 = vshll.u32 %v1297, 30
      %v1299 = vsub.s32 %v1295, %v1298
      %vm1300 = vcmp.lt.s32.totalorder %v1299, 0
      %v1301 = vsub.s32 0, %v1299
      %v1302 = vsel %vm1300, %v1301, %v1299
      %v1303 = vclz %v1302
      %v1304 = vsub.s32 %v1303, 2
      %vm1305 = vcmp.gt.s32.totalorder 0, %v1304
      %v1306 = vsel %vm1305, 0, %v1304
      %v1307 = vsub.s32 32, %v1306
      %v1308 = vshll.u32 %v1299, %v1306
      %v1309 = vshrl.u32 %v1291, %v1307
      %v1310 = vor.u32 %v1308, %v1309
      %v1311 = vsub.s32 4294967266, %v1306
      %v1312 = vadd.s32 %v1311, 127
      %v1313 = vshll.u32 %v1312, 23
      %v1314 = vor.u32 4788187, %v1313
      %v1315 = vand.u32 2147483647, %v1314
      %v1317 = vcvt.s32.f32 %v1310
      %v1318 = vmul.f32 %v1317, %v1315
      %v1319 = vxor.u32 %v1318, 2147483648
      %v1320 = vsel %vm1199, %v1319, %v1318
      %v1321 = vsub.s32 4, %v1297
      %v1322 = vsel %vm1199, %v1321, %v1297
      %v1323 = vsel %vm1198, %v569, %v1320
      %v1324 = vsel %vm1198, 0, %v1322
      %v1325 = vmul.f32 %v1323, %v1323
      %v1326 = vmul.f32 %v1325, -0.001358992
      %v1327 = vadd.f32 %v1326, 0.041655596
      %v1328 = vmul.f32 %v1325, %v1327
      %v1329 = vadd.f32 %v1328, -0.4999988
      %v1330 = vmul.f32 %v1325, %v1329
      %v1331 = vadd.f32 1.0, %v1330
      %v1332 = vmul.f32 %v1323, %v1323
      %v1333 = vmul.f32 %v1332, -0.00019511016
      %v1334 = vadd.f32 %v1333, 0.008332121
      %v1335 = vmul.f32 %v1332, %v1334
      %v1336 = vadd.f32 %v1335, -0.16666654
      %v1337 = vmul.f32 %v1332, %v1336
      %v1338 = vadd.f32 %v1337, 1.0
      %v1339 = vmul.f32 %v1338, %v1323
      %vm1340 = vweird.f32 %v569
      %v1341 = vand.u32 %v1324, 3
      %vm1342 = vcmp.lt.s32.totalorder %v1341, 2
      %vm1343 = vcmp.eq.s32.totalorder %v1341, 0
      %v1344 = vxor.u32 %v1339, 2147483648
      %v1345 = vsel %vm1343, %v1331, %v1344
      %vm1346 = vcmp.eq.s32.totalorder %v1341, 2
      %v1347 = vxor.u32 %v1331, 2147483648
      %v1348 = vsel %vm1346, %v1347, %v1339
      %v1349 = vsel %vm1342, %v1345, %v1348
      %v1350 = vsel %vm1340, nan, %v1349
      %v1351 = vand.u32 2147483647, %v570
      %vm1352 = vcmp.le.f32.partialorder %v1351, 0.7853982
      %vm1353 = vcmp.lt.s32.totalorder %v570, 0
      %v1354 = vand.u32 %v570, 2139095040
      %v1355 = vshrl.u32 %v1354, 23
      %v1356 = vsub.s32 %v1355, 127
      %v1357 = vand.u32 2147483647, %v570
      %v1358 = vand.u32 %v1357, 8388607
      %v1359 = vor.u32 %v1358, 8388608
      %v1360 = vsub.s32 0, %v1359
      %v1361 = vadd.s32 %v1356, 1
      %vm1362 = vcmp.gt.s32.totalorder %v1361, 0
      %v1363 = vsel %vm1362, %v1361, 0
      %v1364 = vshrl.u32 %v1363, 5
      %v1365 = vand.u32 %v1363, 31
      %v1366 = vsub.s32 32, %v1365
      %v1367 = vshrl.u32 683565275, %v1366
      %v1368 = vshll.u32 683565275, %v1365
      %v1369 = vshrl.u32 2475754826, %v1366
      %v1370 = vor.u32 %v1368, %v1369
      %v1371 = vshll.u32 2475754826, %v1365
      %v1372 = vshrl.u32 2131351028, %v1366
      %v1373 = vor.u32 %v1371, %v1372
      %v1374 = vshll.u32 2131351028, %v1365
      %v1375 = vshrl.u32 2102212464, %v1366
      %v1376 = vor.u32 %v1374, %v1375
      %v1377 = vshll.u32 2102212464, %v1365
      %v1378 = vshrl.u32 920167782, %v1366
      %v1379 = vor.u32 %v1377, %v1378
      %v1380 = vshll.u32 920167782, %v1365
      %v1381 = vshrl.u32 1326507024, %v1366
      %v1382 = vor.u32 %v1380, %v1381
      %vm1383 = vcmp.lt.s32.totalorder %v1364, 1
      %vm1384 = vcmp.lt.s32.totalorder %v1364, 2
      %vm1385 = vcmp.lt.s32.totalorder %v1364, 3
      %vm1386 = vcmp.lt.s32.totalorder %v1364, 4
      %v1387 = vsel %vm1383, %v1367, %v1370
      %v1388 = vsel %vm1386, %v1376, 2102212464
      %v1389 = vsel %vm1385, %v1373, %v1388
      %v1390 = vsel %vm1384, %v1387, %v1389
      %v1391 = vsel %vm1383, %v1370, %v1373
      %v1392 = vsel %vm1386, %v1379, 920167782
      %v1393 = vsel %vm1385, %v1376, %v1392
      %v1394 = vsel %vm1384, %v1391, %v1393
      %v1395 = vsel %vm1383, %v1373, %v1376
      %v1396 = vsel %vm1386, %v1382, 1326507024
      %v1397 = vsel %vm1385, %v1379, %v1396
      %v1398 = vsel %vm1384, %v1395, %v1397
      %v1399 = vshll.u32 %v1359, 8
      %v1400 = vand.u32 %v1399, 65535
      %v1401 = vshrl.u32 %v1399, 16
      %v1402 = vand.u32 %v1398, 65535
      %v1403 = vshrl.u32 %v1398, 16
      %v1404 = vmul.u32 %v1400, %v1402
      %v1405 = vmul.u32 %v1400, %v1403
      %v1406 = vmul.u32 %v1401, %v1402
      %v1407 = vmul.u32 %v1401, %v1403
      %v1408 = vshll.u32 %v1405, 16
      %v1409 = vshrl.u32 %v1405, 16
      %v1410 = vshll.u32 %v1406, 16
      %v1411 = vshrl.u32 %v1406, 16
      %vm1412 = vc.u32 %v1404, %v1408
      %v1413 = vsel %vm1412, 1, 0
      %v1414 = vadd.s32 %v1404, %v1408
      %v1415 = vadd.s32 %v1407, %v1413
      %vm1416 = vc.u32 %v1414, %v1410
      %v1417 = vsel %vm1416, 1, 0
      %v1418 = vadd.s32 %v1414, %v1410
      %v1419 = vadd.s32 %v1415, %v1417
      %v1420 = vadd.s32 %v1419, %v1409
      %v1421 = vadd.s32 %v1420, %v1411
      %v1422 = vand.u32 %v1399, 65535
      %v1423 = vshrl.u32 %v1399, 16
      %v1424 = vand.u32 %v1394, 65535
      %v1425 = vshrl.u32 %v1394, 16
      %v1426 = vmul.u32 %v1422, %v1424
      %v1427 = vmul.u32 %v1422, %v1425
      %v1428 = vmul.u32 %v1423, %v1424
      %v1429 = vmul.u32 %v1423, %v1425
      %v1430 = vshll.u32 %v1427, 16
      %v1431 = vshrl.u32 %v1427, 16
      %v1432 = vshll.u32 %v1428, 16
      %v1433 = vshrl.u32 %v1428, 16
      %vm1434 = vc.u32 %v1426, %v1430
      %v1435 = vsel %vm1434, 1, 0
      %v1436 = vadd.s32 %v1426, %v1430
      %v1437 = vadd.s32 %v1429, %v1435
      %vm1438 = vc.u32 %v1436, %v1432
      %v1439 = vsel %vm1438, 1, 0
      %v1440 = vadd.s32 %v1436, %v1432
      %v1441 = vadd.s32 %v1437, %v1439
      %v1442 = vadd.s32 %v1441, %v1431
      %v1443 = vadd.s32 %v1442, %v1433
      %v1444 = vmul.u32 %v1399, %v1390
      %v1445 = vadd.s32 %v1421, %v1440
      %vm1446 = vc.u32 %v1421, %v1440
      %v1447 = vadd.s32 %v1443, 1
      %v1448 = vsel %vm1446, %v1447, %v1443
      %v1449 = vadd.s32 %v1444, %v1448
      %v1450 = vadd.s32 %v1449, 536870912
      %v1451 = vshrl.u32 %v1450, 30
      %v1452 = vshll.u32 %v1451, 30
      %v1453 = vsub.s32 %v1449, %v1452
      %vm1454 = vcmp.lt.s32.totalorder %v1453, 0
      %v1455 = vsub.s32 0, %v1453
      %v1456 = vsel %vm1454, %v1455, %v1453
      %v1457 = vclz %v1456
      %v1458 = vsub.s32 %v1457, 2
      %vm1459 = vcmp.gt.s32.totalorder 0, %v1458
      %v1460 = vsel %vm1459, 0, %v1458
      %v1461 = vsub.s32 32, %v1460
      %v1462 = vshll.u32 %v1453, %v1460
      %v1463 = vshrl.u32 %v1445, %v1461
      %v1464 = vor.u32 %v1462, %v1463
      %v1465 = vsub.s32 4294967266, %v1460
      %v1466 = vadd.s32 %v1465, 127
      %v1467 = vshll.u32 %v1466, 23
      %v1468 = vor.u32 4788187, %v1467
      %v1469 = vand.u32 2147483647, %v1468
      %v1471 = vcvt.s32.f32 %v1464
      %v1472 = vmul.f32 %v1471, %v1469
      %v1473 = vxor.u32 %v1472, 2147483648
      %v1474 = vsel %vm1353, %v1473, %v1472
      %v1475 = vsub.s32 4, %v1451
      %v1476 = vsel %vm1353, %v1475, %v1451
      %v1477 = vsel %vm1352, %v570, %v1474
      %v1478 = vsel %vm1352, 0, %v1476
      %v1479 = vmul.f32 %v1477, %v1477
      %v1480 = vmul.f32 %v1479, -0.001358992
      %v1481 = vadd.f32 %v1480, 0.041655596
      %v1482 = vmul.f32 %v1479, %v1481
      %v1483 = vadd.f32 %v1482, -0.4999988
      %v1484 = vmul.f32 %v1479, %v1483
      %v1485 = vadd.f32 1.0, %v1484
      %v1486 = vmul.f32 %v1477, %v1477
      %v1487 = vmul.f32 %v1486, -0.00019511016
      %v1488 = vadd.f32 %v1487, 0.008332121
      %v1489 = vmul.f32 %v1486, %v1488
      %v1490 = vadd.f32 %v1489, -0.16666654
      %v1491 = vmul.f32 %v1486, %v1490
      %v1492 = vadd.f32 %v1491, 1.0
      %v1493 = vmul.f32 %v1492, %v1477
      %vm1494 = vweird.f32 %v570
      %v1495 = vand.u32 %v1478, 3
      %vm1496 = vcmp.lt.s32.totalorder %v1495, 2
      %vm1497 = vcmp.eq.s32.totalorder %v1495, 0
      %v1498 = vxor.u32 %v1493, 2147483648
      %v1499 = vsel %vm1497, %v1485, %v1498
      %vm1500 = vcmp.eq.s32.totalorder %v1495, 2
      %v1501 = vxor.u32 %v1485, 2147483648
      %v1502 = vsel %vm1500, %v1501, %v1493
      %v1503 = vsel %vm1496, %v1499, %v1502
      %v1504 = vsel %vm1494, nan, %v1503
      %v1505 = vand.u32 2147483647, %v571
      %vm1506 = vcmp.le.f32.partialorder %v1505, 0.7853982
      %vm1507 = vcmp.lt.s32.totalorder %v571, 0
      %v1508 = vand.u32 %v571, 2139095040
      %v1509 = vshrl.u32 %v1508, 23
      %v1510 = vsub.s32 %v1509, 127
      %v1511 = vand.u32 2147483647, %v571
      %v1512 = vand.u32 %v1511, 8388607
      %v1513 = vor.u32 %v1512, 8388608
      %v1514 = vsub.s32 0, %v1513
      %v1515 = vadd.s32 %v1510, 1
      %vm1516 = vcmp.gt.s32.totalorder %v1515, 0
      %v1517 = vsel %vm1516, %v1515, 0
      %v1518 = vshrl.u32 %v1517, 5
      %v1519 = vand.u32 %v1517, 31
      %v1520 = vsub.s32 32, %v1519
      %v1521 = vshrl.u32 683565275, %v1520
      %v1522 = vshll.u32 683565275, %v1519
      %v1523 = vshrl.u32 2475754826, %v1520
      %v1524 = vor.u32 %v1522, %v1523
      %v1525 = vshll.u32 2475754826, %v1519
      %v1526 = vshrl.u32 2131351028, %v1520
      %v1527 = vor.u32 %v1525, %v1526
      %v1528 = vshll.u32 2131351028, %v1519
      %v1529 = vshrl.u32 2102212464, %v1520
      %v1530 = vor.u32 %v1528, %v1529
      %v1531 = vshll.u32 2102212464, %v1519
      %v1532 = vshrl.u32 920167782, %v1520
      %v1533 = vor.u32 %v1531, %v1532
      %v1534 = vshll.u32 920167782, %v1519
      %v1535 = vshrl.u32 1326507024, %v1520
      %v1536 = vor.u32 %v1534, %v1535
      %vm1537 = vcmp.lt.s32.totalorder %v1518, 1
      %vm1538 = vcmp.lt.s32.totalorder %v1518, 2
      %vm1539 = vcmp.lt.s32.totalorder %v1518, 3
      %vm1540 = vcmp.lt.s32.totalorder %v1518, 4
      %v1541 = vsel %vm1537, %v1521, %v1524
      %v1542 = vsel %vm1540, %v1530, 2102212464
      %v1543 = vsel %vm1539, %v1527, %v1542
      %v1544 = vsel %vm1538, %v1541, %v1543
      %v1545 = vsel %vm1537, %v1524, %v1527
      %v1546 = vsel %vm1540, %v1533, 920167782
      %v1547 = vsel %vm1539, %v1530, %v1546
      %v1548 = vsel %vm1538, %v1545, %v1547
      %v1549 = vsel %vm1537, %v1527, %v1530
      %v1550 = vsel %vm1540, %v1536, 1326507024
      %v1551 = vsel %vm1539, %v1533, %v1550
      %v1552 = vsel %vm1538, %v1549, %v1551
      %v1553 = vshll.u32 %v1513, 8
      %v1554 = vand.u32 %v1553, 65535
      %v1555 = vshrl.u32 %v1553, 16
      %v1556 = vand.u32 %v1552, 65535
      %v1557 = vshrl.u32 %v1552, 16
      %v1558 = vmul.u32 %v1554, %v1556
      %v1559 = vmul.u32 %v1554, %v1557
      %v1560 = vmul.u32 %v1555, %v1556
      %v1561 = vmul.u32 %v1555, %v1557
      %v1562 = vshll.u32 %v1559, 16
      %v1563 = vshrl.u32 %v1559, 16
      %v1564 = vshll.u32 %v1560, 16
      %v1565 = vshrl.u32 %v1560, 16
      %vm1566 = vc.u32 %v1558, %v1562
      %v1567 = vsel %vm1566, 1, 0
      %v1568 = vadd.s32 %v1558, %v1562
      %v1569 = vadd.s32 %v1561, %v1567
      %vm1570 = vc.u32 %v1568, %v1564
      %v1571 = vsel %vm1570, 1, 0
      %v1572 = vadd.s32 %v1568, %v1564
      %v1573 = vadd.s32 %v1569, %v1571
      %v1574 = vadd.s32 %v1573, %v1563
      %v1575 = vadd.s32 %v1574, %v1565
      %v1576 = vand.u32 %v1553, 65535
      %v1577 = vshrl.u32 %v1553, 16
      %v1578 = vand.u32 %v1548, 65535
      %v1579 = vshrl.u32 %v1548, 16
      %v1580 = vmul.u32 %v1576, %v1578
      %v1581 = vmul.u32 %v1576, %v1579
      %v1582 = vmul.u32 %v1577, %v1578
      %v1583 = vmul.u32 %v1577, %v1579
      %v1584 = vshll.u32 %v1581, 16
      %v1585 = vshrl.u32 %v1581, 16
      %v1586 = vshll.u32 %v1582, 16
      %v1587 = vshrl.u32 %v1582, 16
      %vm1588 = vc.u32 %v1580, %v1584
      %v1589 = vsel %vm1588, 1, 0
      %v1590 = vadd.s32 %v1580, %v1584
      %v1591 = vadd.s32 %v1583, %v1589
      %vm1592 = vc.u32 %v1590, %v1586
      %v1593 = vsel %vm1592, 1, 0
      %v1594 = vadd.s32 %v1590, %v1586
      %v1595 = vadd.s32 %v1591, %v1593
      %v1596 = vadd.s32 %v1595, %v1585
      %v1597 = vadd.s32 %v1596, %v1587
      %v1598 = vmul.u32 %v1553, %v1544
      %v1599 = vadd.s32 %v1575, %v1594
      %vm1600 = vc.u32 %v1575, %v1594
      %v1601 = vadd.s32 %v1597, 1
      %v1602 = vsel %vm1600, %v1601, %v1597
      %v1603 = vadd.s32 %v1598, %v1602
      %v1604 = vadd.s32 %v1603, 536870912
      %v1605 = vshrl.u32 %v1604, 30
      %v1606 = vshll.u32 %v1605, 30
      %v1607 = vsub.s32 %v1603, %v1606
      %vm1608 = vcmp.lt.s32.totalorder %v1607, 0
      %v1609 = vsub.s32 0, %v1607
      %v1610 = vsel %vm1608, %v1609, %v1607
      %v1611 = vclz %v1610
      %v1612 = vsub.s32 %v1611, 2
      %vm1613 = vcmp.gt.s32.totalorder 0, %v1612
      %v1614 = vsel %vm1613, 0, %v1612
      %v1615 = vsub.s32 32, %v1614
      %v1616 = vshll.u32 %v1607, %v1614
      %v1617 = vshrl.u32 %v1599, %v1615
      %v1618 = vor.u32 %v1616, %v1617
      %v1619 = vsub.s32 4294967266, %v1614
      %v1620 = vadd.s32 %v1619, 127
      %v1621 = vshll.u32 %v1620, 23
      %v1622 = vor.u32 4788187, %v1621
      %v1623 = vand.u32 2147483647, %v1622
      %v1625 = vcvt.s32.f32 %v1618
      %v1626 = vmul.f32 %v1625, %v1623
      %v1627 = vxor.u32 %v1626, 2147483648
      %v1628 = vsel %vm1507, %v1627, %v1626
      %v1629 = vsub.s32 4, %v1605
      %v1630 = vsel %vm1507, %v1629, %v1605
      %v1631 = vsel %vm1506, %v571, %v1628
      %v1632 = vsel %vm1506, 0, %v1630
      %v1633 = vmul.f32 %v1631, %v1631
      %v1634 = vmul.f32 %v1633, -0.001358992
      %v1635 = vadd.f32 %v1634, 0.041655596
      %v1636 = vmul.f32 %v1633, %v1635
      %v1637 = vadd.f32 %v1636, -0.4999988
      %v1638 = vmul.f32 %v1633, %v1637
      %v1639 = vadd.f32 1.0, %v1638
      %v1640 = vmul.f32 %v1631, %v1631
      %v1641 = vmul.f32 %v1640, -0.00019511016
      %v1642 = vadd.f32 %v1641, 0.008332121
      %v1643 = vmul.f32 %v1640, %v1642
      %v1644 = vadd.f32 %v1643, -0.16666654
      %v1645 = vmul.f32 %v1640, %v1644
      %v1646 = vadd.f32 %v1645, 1.0
      %v1647 = vmul.f32 %v1646, %v1631
      %vm1648 = vweird.f32 %v571
      %v1649 = vand.u32 %v1632, 3
      %vm1650 = vcmp.lt.s32.totalorder %v1649, 2
      %vm1651 = vcmp.eq.s32.totalorder %v1649, 0
      %v1652 = vxor.u32 %v1647, 2147483648
      %v1653 = vsel %vm1651, %v1639, %v1652
      %vm1654 = vcmp.eq.s32.totalorder %v1649, 2
      %v1655 = vxor.u32 %v1639, 2147483648
      %v1656 = vsel %vm1654, %v1655, %v1647
      %v1657 = vsel %vm1650, %v1653, %v1656
      %v1658 = vsel %vm1648, nan, %v1657
      %v1659 = vand.u32 2147483647, %v572
      %vm1660 = vcmp.le.f32.partialorder %v1659, 0.7853982
      %vm1661 = vcmp.lt.s32.totalorder %v572, 0
      %v1662 = vand.u32 %v572, 2139095040
      %v1663 = vshrl.u32 %v1662, 23
      %v1664 = vsub.s32 %v1663, 127
      %v1665 = vand.u32 2147483647, %v572
      %v1666 = vand.u32 %v1665, 8388607
      %v1667 = vor.u32 %v1666, 8388608
      %v1668 = vsub.s32 0, %v1667
      %v1669 = vadd.s32 %v1664, 1
      %vm1670 = vcmp.gt.s32.totalorder %v1669, 0
      %v1671 = vsel %vm1670, %v1669, 0
      %v1672 = vshrl.u32 %v1671, 5
      %v1673 = vand.u32 %v1671, 31
      %v1674 = vsub.s32 32, %v1673
      %v1675 = vshrl.u32 683565275, %v1674
      %v1676 = vshll.u32 683565275, %v1673
      %v1677 = vshrl.u32 2475754826, %v1674
      %v1678 = vor.u32 %v1676, %v1677
      %v1679 = vshll.u32 2475754826, %v1673
      %v1680 = vshrl.u32 2131351028, %v1674
      %v1681 = vor.u32 %v1679, %v1680
      %v1682 = vshll.u32 2131351028, %v1673
      %v1683 = vshrl.u32 2102212464, %v1674
      %v1684 = vor.u32 %v1682, %v1683
      %v1685 = vshll.u32 2102212464, %v1673
      %v1686 = vshrl.u32 920167782, %v1674
      %v1687 = vor.u32 %v1685, %v1686
      %v1688 = vshll.u32 920167782, %v1673
      %v1689 = vshrl.u32 1326507024, %v1674
      %v1690 = vor.u32 %v1688, %v1689
      %vm1691 = vcmp.lt.s32.totalorder %v1672, 1
      %vm1692 = vcmp.lt.s32.totalorder %v1672, 2
      %vm1693 = vcmp.lt.s32.totalorder %v1672, 3
      %vm1694 = vcmp.lt.s32.totalorder %v1672, 4
      %v1695 = vsel %vm1691, %v1675, %v1678
      %v1696 = vsel %vm1694, %v1684, 2102212464
      %v1697 = vsel %vm1693, %v1681, %v1696
      %v1698 = vsel %vm1692, %v1695, %v1697
      %v1699 = vsel %vm1691, %v1678, %v1681
      %v1700 = vsel %vm1694, %v1687, 920167782
      %v1701 = vsel %vm1693, %v1684, %v1700
      %v1702 = vsel %vm1692, %v1699, %v1701
      %v1703 = vsel %vm1691, %v1681, %v1684
      %v1704 = vsel %vm1694, %v1690, 1326507024
      %v1705 = vsel %vm1693, %v1687, %v1704
      %v1706 = vsel %vm1692, %v1703, %v1705
      %v1707 = vshll.u32 %v1667, 8
      %v1708 = vand.u32 %v1707, 65535
      %v1709 = vshrl.u32 %v1707, 16
      %v1710 = vand.u32 %v1706, 65535
      %v1711 = vshrl.u32 %v1706, 16
      %v1712 = vmul.u32 %v1708, %v1710
      %v1713 = vmul.u32 %v1708, %v1711
      %v1714 = vmul.u32 %v1709, %v1710
      %v1715 = vmul.u32 %v1709, %v1711
      %v1716 = vshll.u32 %v1713, 16
      %v1717 = vshrl.u32 %v1713, 16
      %v1718 = vshll.u32 %v1714, 16
      %v1719 = vshrl.u32 %v1714, 16
      %vm1720 = vc.u32 %v1712, %v1716
      %v1721 = vsel %vm1720, 1, 0
      %v1722 = vadd.s32 %v1712, %v1716
      %v1723 = vadd.s32 %v1715, %v1721
      %vm1724 = vc.u32 %v1722, %v1718
      %v1725 = vsel %vm1724, 1, 0
      %v1726 = vadd.s32 %v1722, %v1718
      %v1727 = vadd.s32 %v1723, %v1725
      %v1728 = vadd.s32 %v1727, %v1717
      %v1729 = vadd.s32 %v1728, %v1719
      %v1730 = vand.u32 %v1707, 65535
      %v1731 = vshrl.u32 %v1707, 16
      %v1732 = vand.u32 %v1702, 65535
      %v1733 = vshrl.u32 %v1702, 16
      %v1734 = vmul.u32 %v1730, %v1732
      %v1735 = vmul.u32 %v1730, %v1733
      %v1736 = vmul.u32 %v1731, %v1732
      %v1737 = vmul.u32 %v1731, %v1733
      %v1738 = vshll.u32 %v1735, 16
      %v1739 = vshrl.u32 %v1735, 16
      %v1740 = vshll.u32 %v1736, 16
      %v1741 = vshrl.u32 %v1736, 16
      %vm1742 = vc.u32 %v1734, %v1738
      %v1743 = vsel %vm1742, 1, 0
      %v1744 = vadd.s32 %v1734, %v1738
      %v1745 = vadd.s32 %v1737, %v1743
      %vm1746 = vc.u32 %v1744, %v1740
      %v1747 = vsel %vm1746, 1, 0
      %v1748 = vadd.s32 %v1744, %v1740
      %v1749 = vadd.s32 %v1745, %v1747
      %v1750 = vadd.s32 %v1749, %v1739
      %v1751 = vadd.s32 %v1750, %v1741
      %v1752 = vmul.u32 %v1707, %v1698
      %v1753 = vadd.s32 %v1729, %v1748
      %vm1754 = vc.u32 %v1729, %v1748
      %v1755 = vadd.s32 %v1751, 1
      %v1756 = vsel %vm1754, %v1755, %v1751
      %v1757 = vadd.s32 %v1752, %v1756
      %v1758 = vadd.s32 %v1757, 536870912
      %v1759 = vshrl.u32 %v1758, 30
      %v1760 = vshll.u32 %v1759, 30
      %v1761 = vsub.s32 %v1757, %v1760
      %vm1762 = vcmp.lt.s32.totalorder %v1761, 0
      %v1763 = vsub.s32 0, %v1761
      %v1764 = vsel %vm1762, %v1763, %v1761
      %v1765 = vclz %v1764
      %v1766 = vsub.s32 %v1765, 2
      %vm1767 = vcmp.gt.s32.totalorder 0, %v1766
      %v1768 = vsel %vm1767, 0, %v1766
      %v1769 = vsub.s32 32, %v1768
      %v1770 = vshll.u32 %v1761, %v1768
      %v1771 = vshrl.u32 %v1753, %v1769
      %v1772 = vor.u32 %v1770, %v1771
      %v1773 = vsub.s32 4294967266, %v1768
      %v1774 = vadd.s32 %v1773, 127
      %v1775 = vshll.u32 %v1774, 23
      %v1776 = vor.u32 4788187, %v1775
      %v1777 = vand.u32 2147483647, %v1776
      %v1779 = vcvt.s32.f32 %v1772
      %v1780 = vmul.f32 %v1779, %v1777
      %v1781 = vxor.u32 %v1780, 2147483648
      %v1782 = vsel %vm1661, %v1781, %v1780
      %v1783 = vsub.s32 4, %v1759
      %v1784 = vsel %vm1661, %v1783, %v1759
      %v1785 = vsel %vm1660, %v572, %v1782
      %v1786 = vsel %vm1660, 0, %v1784
      %v1787 = vmul.f32 %v1785, %v1785
      %v1788 = vmul.f32 %v1787, -0.001358992
      %v1789 = vadd.f32 %v1788, 0.041655596
      %v1790 = vmul.f32 %v1787, %v1789
      %v1791 = vadd.f32 %v1790, -0.4999988
      %v1792 = vmul.f32 %v1787, %v1791
      %v1793 = vadd.f32 1.0, %v1792
      %v1794 = vmul.f32 %v1785, %v1785
      %v1795 = vmul.f32 %v1794, -0.00019511016
      %v1796 = vadd.f32 %v1795, 0.008332121
      %v1797 = vmul.f32 %v1794, %v1796
      %v1798 = vadd.f32 %v1797, -0.16666654
      %v1799 = vmul.f32 %v1794, %v1798
      %v1800 = vadd.f32 %v1799, 1.0
      %v1801 = vmul.f32 %v1800, %v1785
      %vm1802 = vweird.f32 %v572
      %v1803 = vand.u32 %v1786, 3
      %vm1804 = vcmp.lt.s32.totalorder %v1803, 2
      %vm1805 = vcmp.eq.s32.totalorder %v1803, 0
      %v1806 = vxor.u32 %v1801, 2147483648
      %v1807 = vsel %vm1805, %v1793, %v1806
      %vm1808 = vcmp.eq.s32.totalorder %v1803, 2
      %v1809 = vxor.u32 %v1793, 2147483648
      %v1810 = vsel %vm1808, %v1809, %v1801
      %v1811 = vsel %vm1804, %v1807, %v1810
      %v1812 = vsel %vm1802, nan, %v1811
      %v1813 = vand.u32 2147483647, %v573
      %vm1814 = vcmp.le.f32.partialorder %v1813, 0.7853982
      %vm1815 = vcmp.lt.s32.totalorder %v573, 0
      %v1816 = vand.u32 %v573, 2139095040
      %v1817 = vshrl.u32 %v1816, 23
      %v1818 = vsub.s32 %v1817, 127
      %v1819 = vand.u32 2147483647, %v573
      %v1820 = vand.u32 %v1819, 8388607
      %v1821 = vor.u32 %v1820, 8388608
      %v1822 = vsub.s32 0, %v1821
      %v1823 = vadd.s32 %v1818, 1
      %vm1824 = vcmp.gt.s32.totalorder %v1823, 0
      %v1825 = vsel %vm1824, %v1823, 0
      %v1826 = vshrl.u32 %v1825, 5
      %v1827 = vand.u32 %v1825, 31
      %v1828 = vsub.s32 32, %v1827
      %v1829 = vshrl.u32 683565275, %v1828
      %v1830 = vshll.u32 683565275, %v1827
      %v1831 = vshrl.u32 2475754826, %v1828
      %v1832 = vor.u32 %v1830, %v1831
      %v1833 = vshll.u32 2475754826, %v1827
      %v1834 = vshrl.u32 2131351028, %v1828
      %v1835 = vor.u32 %v1833, %v1834
      %v1836 = vshll.u32 2131351028, %v1827
      %v1837 = vshrl.u32 2102212464, %v1828
      %v1838 = vor.u32 %v1836, %v1837
      %v1839 = vshll.u32 2102212464, %v1827
      %v1840 = vshrl.u32 920167782, %v1828
      %v1841 = vor.u32 %v1839, %v1840
      %v1842 = vshll.u32 920167782, %v1827
      %v1843 = vshrl.u32 1326507024, %v1828
      %v1844 = vor.u32 %v1842, %v1843
      %vm1845 = vcmp.lt.s32.totalorder %v1826, 1
      %vm1846 = vcmp.lt.s32.totalorder %v1826, 2
      %vm1847 = vcmp.lt.s32.totalorder %v1826, 3
      %vm1848 = vcmp.lt.s32.totalorder %v1826, 4
      %v1849 = vsel %vm1845, %v1829, %v1832
      %v1850 = vsel %vm1848, %v1838, 2102212464
      %v1851 = vsel %vm1847, %v1835, %v1850
      %v1852 = vsel %vm1846, %v1849, %v1851
      %v1853 = vsel %vm1845, %v1832, %v1835
      %v1854 = vsel %vm1848, %v1841, 920167782
      %v1855 = vsel %vm1847, %v1838, %v1854
      %v1856 = vsel %vm1846, %v1853, %v1855
      %v1857 = vsel %vm1845, %v1835, %v1838
      %v1858 = vsel %vm1848, %v1844, 1326507024
      %v1859 = vsel %vm1847, %v1841, %v1858
      %v1860 = vsel %vm1846, %v1857, %v1859
      %v1861 = vshll.u32 %v1821, 8
      %v1862 = vand.u32 %v1861, 65535
      %v1863 = vshrl.u32 %v1861, 16
      %v1864 = vand.u32 %v1860, 65535
      %v1865 = vshrl.u32 %v1860, 16
      %v1866 = vmul.u32 %v1862, %v1864
      %v1867 = vmul.u32 %v1862, %v1865
      %v1868 = vmul.u32 %v1863, %v1864
      %v1869 = vmul.u32 %v1863, %v1865
      %v1870 = vshll.u32 %v1867, 16
      %v1871 = vshrl.u32 %v1867, 16
      %v1872 = vshll.u32 %v1868, 16
      %v1873 = vshrl.u32 %v1868, 16
      %vm1874 = vc.u32 %v1866, %v1870
      %v1875 = vsel %vm1874, 1, 0
      %v1876 = vadd.s32 %v1866, %v1870
      %v1877 = vadd.s32 %v1869, %v1875
      %vm1878 = vc.u32 %v1876, %v1872
      %v1879 = vsel %vm1878, 1, 0
      %v1880 = vadd.s32 %v1876, %v1872
      %v1881 = vadd.s32 %v1877, %v1879
      %v1882 = vadd.s32 %v1881, %v1871
      %v1883 = vadd.s32 %v1882, %v1873
      %v1884 = vand.u32 %v1861, 65535
      %v1885 = vshrl.u32 %v1861, 16
      %v1886 = vand.u32 %v1856, 65535
      %v1887 = vshrl.u32 %v1856, 16
      %v1888 = vmul.u32 %v1884, %v1886
      %v1889 = vmul.u32 %v1884, %v1887
      %v1890 = vmul.u32 %v1885, %v1886
      %v1891 = vmul.u32 %v1885, %v1887
      %v1892 = vshll.u32 %v1889, 16
      %v1893 = vshrl.u32 %v1889, 16
      %v1894 = vshll.u32 %v1890, 16
      %v1895 = vshrl.u32 %v1890, 16
      %vm1896 = vc.u32 %v1888, %v1892
      %v1897 = vsel %vm1896, 1, 0
      %v1898 = vadd.s32 %v1888, %v1892
      %v1899 = vadd.s32 %v1891, %v1897
      %vm1900 = vc.u32 %v1898, %v1894
      %v1901 = vsel %vm1900, 1, 0
      %v1902 = vadd.s32 %v1898, %v1894
      %v1903 = vadd.s32 %v1899, %v1901
      %v1904 = vadd.s32 %v1903, %v1893
      %v1905 = vadd.s32 %v1904, %v1895
      %v1906 = vmul.u32 %v1861, %v1852
      %v1907 = vadd.s32 %v1883, %v1902
      %vm1908 = vc.u32 %v1883, %v1902
      %v1909 = vadd.s32 %v1905, 1
      %v1910 = vsel %vm1908, %v1909, %v1905
      %v1911 = vadd.s32 %v1906, %v1910
      %v1912 = vadd.s32 %v1911, 536870912
      %v1913 = vshrl.u32 %v1912, 30
      %v1914 = vshll.u32 %v1913, 30
      %v1915 = vsub.s32 %v1911, %v1914
      %vm1916 = vcmp.lt.s32.totalorder %v1915, 0
      %v1917 = vsub.s32 0, %v1915
      %v1918 = vsel %vm1916, %v1917, %v1915
      %v1919 = vclz %v1918
      %v1920 = vsub.s32 %v1919, 2
      %vm1921 = vcmp.gt.s32.totalorder 0, %v1920
      %v1922 = vsel %vm1921, 0, %v1920
      %v1923 = vsub.s32 32, %v1922
      %v1924 = vshll.u32 %v1915, %v1922
      %v1925 = vshrl.u32 %v1907, %v1923
      %v1926 = vor.u32 %v1924, %v1925
      %v1927 = vsub.s32 4294967266, %v1922
      %v1928 = vadd.s32 %v1927, 127
      %v1929 = vshll.u32 %v1928, 23
      %v1930 = vor.u32 4788187, %v1929
      %v1931 = vand.u32 2147483647, %v1930
      %v1933 = vcvt.s32.f32 %v1926
      %v1934 = vmul.f32 %v1933, %v1931
      %v1935 = vxor.u32 %v1934, 2147483648
      %v1936 = vsel %vm1815, %v1935, %v1934
      %v1937 = vsub.s32 4, %v1913
      %v1938 = vsel %vm1815, %v1937, %v1913
      %v1939 = vsel %vm1814, %v573, %v1936
      %v1940 = vsel %vm1814, 0, %v1938
      %v1941 = vmul.f32 %v1939, %v1939
      %v1942 = vmul.f32 %v1941, -0.001358992
      %v1943 = vadd.f32 %v1942, 0.041655596
      %v1944 = vmul.f32 %v1941, %v1943
      %v1945 = vadd.f32 %v1944, -0.4999988
      %v1946 = vmul.f32 %v1941, %v1945
      %v1947 = vadd.f32 1.0, %v1946
      %v1948 = vmul.f32 %v1939, %v1939
      %v1949 = vmul.f32 %v1948, -0.00019511016
      %v1950 = vadd.f32 %v1949, 0.008332121
      %v1951 = vmul.f32 %v1948, %v1950
      %v1952 = vadd.f32 %v1951, -0.16666654
      %v1953 = vmul.f32 %v1948, %v1952
      %v1954 = vadd.f32 %v1953, 1.0
      %v1955 = vmul.f32 %v1954, %v1939
      %vm1956 = vweird.f32 %v573
      %v1957 = vand.u32 %v1940, 3
      %vm1958 = vcmp.lt.s32.totalorder %v1957, 2
      %vm1959 = vcmp.eq.s32.totalorder %v1957, 0
      %v1960 = vxor.u32 %v1955, 2147483648
      %v1961 = vsel %vm1959, %v1947, %v1960
      %vm1962 = vcmp.eq.s32.totalorder %v1957, 2
      %v1963 = vxor.u32 %v1947, 2147483648
      %v1964 = vsel %vm1962, %v1963, %v1955
      %v1965 = vsel %vm1958, %v1961, %v1964
      %v1966 = vsel %vm1956, nan, %v1965
      %v1967 = vand.u32 2147483647, %v574
      %vm1968 = vcmp.le.f32.partialorder %v1967, 0.7853982
      %vm1969 = vcmp.lt.s32.totalorder %v574, 0
      %v1970 = vand.u32 %v574, 2139095040
      %v1971 = vshrl.u32 %v1970, 23
      %v1972 = vsub.s32 %v1971, 127
      %v1973 = vand.u32 2147483647, %v574
      %v1974 = vand.u32 %v1973, 8388607
      %v1975 = vor.u32 %v1974, 8388608
      %v1976 = vsub.s32 0, %v1975
      %v1977 = vadd.s32 %v1972, 1
      %vm1978 = vcmp.gt.s32.totalorder %v1977, 0
      %v1979 = vsel %vm1978, %v1977, 0
      %v1980 = vshrl.u32 %v1979, 5
      %v1981 = vand.u32 %v1979, 31
      %v1982 = vsub.s32 32, %v1981
      %v1983 = vshrl.u32 683565275, %v1982
      %v1984 = vshll.u32 683565275, %v1981
      %v1985 = vshrl.u32 2475754826, %v1982
      %v1986 = vor.u32 %v1984, %v1985
      %v1987 = vshll.u32 2475754826, %v1981
      %v1988 = vshrl.u32 2131351028, %v1982
      %v1989 = vor.u32 %v1987, %v1988
      %v1990 = vshll.u32 2131351028, %v1981
      %v1991 = vshrl.u32 2102212464, %v1982
      %v1992 = vor.u32 %v1990, %v1991
      %v1993 = vshll.u32 2102212464, %v1981
      %v1994 = vshrl.u32 920167782, %v1982
      %v1995 = vor.u32 %v1993, %v1994
      %v1996 = vshll.u32 920167782, %v1981
      %v1997 = vshrl.u32 1326507024, %v1982
      %v1998 = vor.u32 %v1996, %v1997
      %vm1999 = vcmp.lt.s32.totalorder %v1980, 1
      %vm2000 = vcmp.lt.s32.totalorder %v1980, 2
      %vm2001 = vcmp.lt.s32.totalorder %v1980, 3
      %vm2002 = vcmp.lt.s32.totalorder %v1980, 4
      %v2003 = vsel %vm1999, %v1983, %v1986
      %v2004 = vsel %vm2002, %v1992, 2102212464
      %v2005 = vsel %vm2001, %v1989, %v2004
      %v2006 = vsel %vm2000, %v2003, %v2005
      %v2007 = vsel %vm1999, %v1986, %v1989
      %v2008 = vsel %vm2002, %v1995, 920167782
      %v2009 = vsel %vm2001, %v1992, %v2008
      %v2010 = vsel %vm2000, %v2007, %v2009
      %v2011 = vsel %vm1999, %v1989, %v1992
      %v2012 = vsel %vm2002, %v1998, 1326507024
      %v2013 = vsel %vm2001, %v1995, %v2012
      %v2014 = vsel %vm2000, %v2011, %v2013
      %v2015 = vshll.u32 %v1975, 8
      %v2016 = vand.u32 %v2015, 65535
      %v2017 = vshrl.u32 %v2015, 16
      %v2018 = vand.u32 %v2014, 65535
      %v2019 = vshrl.u32 %v2014, 16
      %v2020 = vmul.u32 %v2016, %v2018
      %v2021 = vmul.u32 %v2016, %v2019
      %v2022 = vmul.u32 %v2017, %v2018
      %v2023 = vmul.u32 %v2017, %v2019
      %v2024 = vshll.u32 %v2021, 16
      %v2025 = vshrl.u32 %v2021, 16
      %v2026 = vshll.u32 %v2022, 16
      %v2027 = vshrl.u32 %v2022, 16
      %vm2028 = vc.u32 %v2020, %v2024
      %v2029 = vsel %vm2028, 1, 0
      %v2030 = vadd.s32 %v2020, %v2024
      %v2031 = vadd.s32 %v2023, %v2029
      %vm2032 = vc.u32 %v2030, %v2026
      %v2033 = vsel %vm2032, 1, 0
      %v2034 = vadd.s32 %v2030, %v2026
      %v2035 = vadd.s32 %v2031, %v2033
      %v2036 = vadd.s32 %v2035, %v2025
      %v2037 = vadd.s32 %v2036, %v2027
      %v2038 = vand.u32 %v2015, 65535
      %v2039 = vshrl.u32 %v2015, 16
      %v2040 = vand.u32 %v2010, 65535
      %v2041 = vshrl.u32 %v2010, 16
      %v2042 = vmul.u32 %v2038, %v2040
      %v2043 = vmul.u32 %v2038, %v2041
      %v2044 = vmul.u32 %v2039, %v2040
      %v2045 = vmul.u32 %v2039, %v2041
      %v2046 = vshll.u32 %v2043, 16
      %v2047 = vshrl.u32 %v2043, 16
      %v2048 = vshll.u32 %v2044, 16
      %v2049 = vshrl.u32 %v2044, 16
      %vm2050 = vc.u32 %v2042, %v2046
      %v2051 = vsel %vm2050, 1, 0
      %v2052 = vadd.s32 %v2042, %v2046
      %v2053 = vadd.s32 %v2045, %v2051
      %vm2054 = vc.u32 %v2052, %v2048
      %v2055 = vsel %vm2054, 1, 0
      %v2056 = vadd.s32 %v2052, %v2048
      %v2057 = vadd.s32 %v2053, %v2055
      %v2058 = vadd.s32 %v2057, %v2047
      %v2059 = vadd.s32 %v2058, %v2049
      %v2060 = vmul.u32 %v2015, %v2006
      %v2061 = vadd.s32 %v2037, %v2056
      %vm2062 = vc.u32 %v2037, %v2056
      %v2063 = vadd.s32 %v2059, 1
      %v2064 = vsel %vm2062, %v2063, %v2059
      %v2065 = vadd.s32 %v2060, %v2064
      %v2066 = vadd.s32 %v2065, 536870912
      %v2067 = vshrl.u32 %v2066, 30
      %v2068 = vshll.u32 %v2067, 30
      %v2069 = vsub.s32 %v2065, %v2068
      %vm2070 = vcmp.lt.s32.totalorder %v2069, 0
      %v2071 = vsub.s32 0, %v2069
      %v2072 = vsel %vm2070, %v2071, %v2069
      %v2073 = vclz %v2072
      %v2074 = vsub.s32 %v2073, 2
      %vm2075 = vcmp.gt.s32.totalorder 0, %v2074
      %v2076 = vsel %vm2075, 0, %v2074
      %v2077 = vsub.s32 32, %v2076
      %v2078 = vshll.u32 %v2069, %v2076
      %v2079 = vshrl.u32 %v2061, %v2077
      %v2080 = vor.u32 %v2078, %v2079
      %v2081 = vsub.s32 4294967266, %v2076
      %v2082 = vadd.s32 %v2081, 127
      %v2083 = vshll.u32 %v2082, 23
      %v2084 = vor.u32 4788187, %v2083
      %v2085 = vand.u32 2147483647, %v2084
      %v2087 = vcvt.s32.f32 %v2080
      %v2088 = vmul.f32 %v2087, %v2085
      %v2089 = vxor.u32 %v2088, 2147483648
      %v2090 = vsel %vm1969, %v2089, %v2088
      %v2091 = vsub.s32 4, %v2067
      %v2092 = vsel %vm1969, %v2091, %v2067
      %v2093 = vsel %vm1968, %v574, %v2090
      %v2094 = vsel %vm1968, 0, %v2092
      %v2095 = vmul.f32 %v2093, %v2093
      %v2096 = vmul.f32 %v2095, -0.001358992
      %v2097 = vadd.f32 %v2096, 0.041655596
      %v2098 = vmul.f32 %v2095, %v2097
      %v2099 = vadd.f32 %v2098, -0.4999988
      %v2100 = vmul.f32 %v2095, %v2099
      %v2101 = vadd.f32 1.0, %v2100
      %v2102 = vmul.f32 %v2093, %v2093
      %v2103 = vmul.f32 %v2102, -0.00019511016
      %v2104 = vadd.f32 %v2103, 0.008332121
      %v2105 = vmul.f32 %v2102, %v2104
      %v2106 = vadd.f32 %v2105, -0.16666654
      %v2107 = vmul.f32 %v2102, %v2106
      %v2108 = vadd.f32 %v2107, 1.0
      %v2109 = vmul.f32 %v2108, %v2093
      %vm2110 = vweird.f32 %v574
      %v2111 = vand.u32 %v2094, 3
      %vm2112 = vcmp.lt.s32.totalorder %v2111, 2
      %vm2113 = vcmp.eq.s32.totalorder %v2111, 0
      %v2114 = vxor.u32 %v2109, 2147483648
      %v2115 = vsel %vm2113, %v2101, %v2114
      %vm2116 = vcmp.eq.s32.totalorder %v2111, 2
      %v2117 = vxor.u32 %v2101, 2147483648
      %v2118 = vsel %vm2116, %v2117, %v2109
      %v2119 = vsel %vm2112, %v2115, %v2118
      %v2120 = vsel %vm2110, nan, %v2119
      %v2121 = vand.u32 2147483647, %v575
      %vm2122 = vcmp.le.f32.partialorder %v2121, 0.7853982
      %vm2123 = vcmp.lt.s32.totalorder %v575, 0
      %v2124 = vand.u32 %v575, 2139095040
      %v2125 = vshrl.u32 %v2124, 23
      %v2126 = vsub.s32 %v2125, 127
      %v2127 = vand.u32 2147483647, %v575
      %v2128 = vand.u32 %v2127, 8388607
      %v2129 = vor.u32 %v2128, 8388608
      %v2130 = vsub.s32 0, %v2129
      %v2131 = vadd.s32 %v2126, 1
      %vm2132 = vcmp.gt.s32.totalorder %v2131, 0
      %v2133 = vsel %vm2132, %v2131, 0
      %v2134 = vshrl.u32 %v2133, 5
      %v2135 = vand.u32 %v2133, 31
      %v2136 = vsub.s32 32, %v2135
      %v2137 = vshrl.u32 683565275, %v2136
      %v2138 = vshll.u32 683565275, %v2135
      %v2139 = vshrl.u32 2475754826, %v2136
      %v2140 = vor.u32 %v2138, %v2139
      %v2141 = vshll.u32 2475754826, %v2135
      %v2142 = vshrl.u32 2131351028, %v2136
      %v2143 = vor.u32 %v2141, %v2142
      %v2144 = vshll.u32 2131351028, %v2135
      %v2145 = vshrl.u32 2102212464, %v2136
      %v2146 = vor.u32 %v2144, %v2145
      %v2147 = vshll.u32 2102212464, %v2135
      %v2148 = vshrl.u32 920167782, %v2136
      %v2149 = vor.u32 %v2147, %v2148
      %v2150 = vshll.u32 920167782, %v2135
      %v2151 = vshrl.u32 1326507024, %v2136
      %v2152 = vor.u32 %v2150, %v2151
      %vm2153 = vcmp.lt.s32.totalorder %v2134, 1
      %vm2154 = vcmp.lt.s32.totalorder %v2134, 2
      %vm2155 = vcmp.lt.s32.totalorder %v2134, 3
      %vm2156 = vcmp.lt.s32.totalorder %v2134, 4
      %v2157 = vsel %vm2153, %v2137, %v2140
      %v2158 = vsel %vm2156, %v2146, 2102212464
      %v2159 = vsel %vm2155, %v2143, %v2158
      %v2160 = vsel %vm2154, %v2157, %v2159
      %v2161 = vsel %vm2153, %v2140, %v2143
      %v2162 = vsel %vm2156, %v2149, 920167782
      %v2163 = vsel %vm2155, %v2146, %v2162
      %v2164 = vsel %vm2154, %v2161, %v2163
      %v2165 = vsel %vm2153, %v2143, %v2146
      %v2166 = vsel %vm2156, %v2152, 1326507024
      %v2167 = vsel %vm2155, %v2149, %v2166
      %v2168 = vsel %vm2154, %v2165, %v2167
      %v2169 = vshll.u32 %v2129, 8
      %v2170 = vand.u32 %v2169, 65535
      %v2171 = vshrl.u32 %v2169, 16
      %v2172 = vand.u32 %v2168, 65535
      %v2173 = vshrl.u32 %v2168, 16
      %v2174 = vmul.u32 %v2170, %v2172
      %v2175 = vmul.u32 %v2170, %v2173
      %v2176 = vmul.u32 %v2171, %v2172
      %v2177 = vmul.u32 %v2171, %v2173
      %v2178 = vshll.u32 %v2175, 16
      %v2179 = vshrl.u32 %v2175, 16
      %v2180 = vshll.u32 %v2176, 16
      %v2181 = vshrl.u32 %v2176, 16
      %vm2182 = vc.u32 %v2174, %v2178
      %v2183 = vsel %vm2182, 1, 0
      %v2184 = vadd.s32 %v2174, %v2178
      %v2185 = vadd.s32 %v2177, %v2183
      %vm2186 = vc.u32 %v2184, %v2180
      %v2187 = vsel %vm2186, 1, 0
      %v2188 = vadd.s32 %v2184, %v2180
      %v2189 = vadd.s32 %v2185, %v2187
      %v2190 = vadd.s32 %v2189, %v2179
      %v2191 = vadd.s32 %v2190, %v2181
      %v2192 = vand.u32 %v2169, 65535
      %v2193 = vshrl.u32 %v2169, 16
      %v2194 = vand.u32 %v2164, 65535
      %v2195 = vshrl.u32 %v2164, 16
      %v2196 = vmul.u32 %v2192, %v2194
      %v2197 = vmul.u32 %v2192, %v2195
      %v2198 = vmul.u32 %v2193, %v2194
      %v2199 = vmul.u32 %v2193, %v2195
      %v2200 = vshll.u32 %v2197, 16
      %v2201 = vshrl.u32 %v2197, 16
      %v2202 = vshll.u32 %v2198, 16
      %v2203 = vshrl.u32 %v2198, 16
      %vm2204 = vc.u32 %v2196, %v2200
      %v2205 = vsel %vm2204, 1, 0
      %v2206 = vadd.s32 %v2196, %v2200
      %v2207 = vadd.s32 %v2199, %v2205
      %vm2208 = vc.u32 %v2206, %v2202
      %v2209 = vsel %vm2208, 1, 0
      %v2210 = vadd.s32 %v2206, %v2202
      %v2211 = vadd.s32 %v2207, %v2209
      %v2212 = vadd.s32 %v2211, %v2201
      %v2213 = vadd.s32 %v2212, %v2203
      %v2214 = vmul.u32 %v2169, %v2160
      %v2215 = vadd.s32 %v2191, %v2210
      %vm2216 = vc.u32 %v2191, %v2210
      %v2217 = vadd.s32 %v2213, 1
      %v2218 = vsel %vm2216, %v2217, %v2213
      %v2219 = vadd.s32 %v2214, %v2218
      %v2220 = vadd.s32 %v2219, 536870912
      %v2221 = vshrl.u32 %v2220, 30
      %v2222 = vshll.u32 %v2221, 30
      %v2223 = vsub.s32 %v2219, %v2222
      %vm2224 = vcmp.lt.s32.totalorder %v2223, 0
      %v2225 = vsub.s32 0, %v2223
      %v2226 = vsel %vm2224, %v2225, %v2223
      %v2227 = vclz %v2226
      %v2228 = vsub.s32 %v2227, 2
      %vm2229 = vcmp.gt.s32.totalorder 0, %v2228
      %v2230 = vsel %vm2229, 0, %v2228
      %v2231 = vsub.s32 32, %v2230
      %v2232 = vshll.u32 %v2223, %v2230
      %v2233 = vshrl.u32 %v2215, %v2231
      %v2234 = vor.u32 %v2232, %v2233
      %v2235 = vsub.s32 4294967266, %v2230
      %v2236 = vadd.s32 %v2235, 127
      %v2237 = vshll.u32 %v2236, 23
      %v2238 = vor.u32 4788187, %v2237
      %v2239 = vand.u32 2147483647, %v2238
      %v2241 = vcvt.s32.f32 %v2234
      %v2242 = vmul.f32 %v2241, %v2239
      %v2243 = vxor.u32 %v2242, 2147483648
      %v2244 = vsel %vm2123, %v2243, %v2242
      %v2245 = vsub.s32 4, %v2221
      %v2246 = vsel %vm2123, %v2245, %v2221
      %v2247 = vsel %vm2122, %v575, %v2244
      %v2248 = vsel %vm2122, 0, %v2246
      %v2249 = vmul.f32 %v2247, %v2247
      %v2250 = vmul.f32 %v2249, -0.001358992
      %v2251 = vadd.f32 %v2250, 0.041655596
      %v2252 = vmul.f32 %v2249, %v2251
      %v2253 = vadd.f32 %v2252, -0.4999988
      %v2254 = vmul.f32 %v2249, %v2253
      %v2255 = vadd.f32 1.0, %v2254
      %v2256 = vmul.f32 %v2247, %v2247
      %v2257 = vmul.f32 %v2256, -0.00019511016
      %v2258 = vadd.f32 %v2257, 0.008332121
      %v2259 = vmul.f32 %v2256, %v2258
      %v2260 = vadd.f32 %v2259, -0.16666654
      %v2261 = vmul.f32 %v2256, %v2260
      %v2262 = vadd.f32 %v2261, 1.0
      %v2263 = vmul.f32 %v2262, %v2247
      %vm2264 = vweird.f32 %v575
      %v2265 = vand.u32 %v2248, 3
      %vm2266 = vcmp.lt.s32.totalorder %v2265, 2
      %vm2267 = vcmp.eq.s32.totalorder %v2265, 0
      %v2268 = vxor.u32 %v2263, 2147483648
      %v2269 = vsel %vm2267, %v2255, %v2268
      %vm2270 = vcmp.eq.s32.totalorder %v2265, 2
      %v2271 = vxor.u32 %v2255, 2147483648
      %v2272 = vsel %vm2270, %v2271, %v2263
      %v2273 = vsel %vm2266, %v2269, %v2272
      %v2274 = vsel %vm2264, nan, %v2273
      %v2275 = vand.u32 2147483647, %v576
      %vm2276 = vcmp.le.f32.partialorder %v2275, 0.7853982
      %vm2277 = vcmp.lt.s32.totalorder %v576, 0
      %v2278 = vand.u32 %v576, 2139095040
      %v2279 = vshrl.u32 %v2278, 23
      %v2280 = vsub.s32 %v2279, 127
      %v2281 = vand.u32 2147483647, %v576
      %v2282 = vand.u32 %v2281, 8388607
      %v2283 = vor.u32 %v2282, 8388608
      %v2284 = vsub.s32 0, %v2283
      %v2285 = vadd.s32 %v2280, 1
      %vm2286 = vcmp.gt.s32.totalorder %v2285, 0
      %v2287 = vsel %vm2286, %v2285, 0
      %v2288 = vshrl.u32 %v2287, 5
      %v2289 = vand.u32 %v2287, 31
      %v2290 = vsub.s32 32, %v2289
      %v2291 = vshrl.u32 683565275, %v2290
      %v2292 = vshll.u32 683565275, %v2289
      %v2293 = vshrl.u32 2475754826, %v2290
      %v2294 = vor.u32 %v2292, %v2293
      %v2295 = vshll.u32 2475754826, %v2289
      %v2296 = vshrl.u32 2131351028, %v2290
      %v2297 = vor.u32 %v2295, %v2296
      %v2298 = vshll.u32 2131351028, %v2289
      %v2299 = vshrl.u32 2102212464, %v2290
      %v2300 = vor.u32 %v2298, %v2299
      %v2301 = vshll.u32 2102212464, %v2289
      %v2302 = vshrl.u32 920167782, %v2290
      %v2303 = vor.u32 %v2301, %v2302
      %v2304 = vshll.u32 920167782, %v2289
      %v2305 = vshrl.u32 1326507024, %v2290
      %v2306 = vor.u32 %v2304, %v2305
      %vm2307 = vcmp.lt.s32.totalorder %v2288, 1
      %vm2308 = vcmp.lt.s32.totalorder %v2288, 2
      %vm2309 = vcmp.lt.s32.totalorder %v2288, 3
      %vm2310 = vcmp.lt.s32.totalorder %v2288, 4
      %v2311 = vsel %vm2307, %v2291, %v2294
      %v2312 = vsel %vm2310, %v2300, 2102212464
      %v2313 = vsel %vm2309, %v2297, %v2312
      %v2314 = vsel %vm2308, %v2311, %v2313
      %v2315 = vsel %vm2307, %v2294, %v2297
      %v2316 = vsel %vm2310, %v2303, 920167782
      %v2317 = vsel %vm2309, %v2300, %v2316
      %v2318 = vsel %vm2308, %v2315, %v2317
      %v2319 = vsel %vm2307, %v2297, %v2300
      %v2320 = vsel %vm2310, %v2306, 1326507024
      %v2321 = vsel %vm2309, %v2303, %v2320
      %v2322 = vsel %vm2308, %v2319, %v2321
      %v2323 = vshll.u32 %v2283, 8
      %v2324 = vand.u32 %v2323, 65535
      %v2325 = vshrl.u32 %v2323, 16
      %v2326 = vand.u32 %v2322, 65535
      %v2327 = vshrl.u32 %v2322, 16
      %v2328 = vmul.u32 %v2324, %v2326
      %v2329 = vmul.u32 %v2324, %v2327
      %v2330 = vmul.u32 %v2325, %v2326
      %v2331 = vmul.u32 %v2325, %v2327
      %v2332 = vshll.u32 %v2329, 16
      %v2333 = vshrl.u32 %v2329, 16
      %v2334 = vshll.u32 %v2330, 16
      %v2335 = vshrl.u32 %v2330, 16
      %vm2336 = vc.u32 %v2328, %v2332
      %v2337 = vsel %vm2336, 1, 0
      %v2338 = vadd.s32 %v2328, %v2332
      %v2339 = vadd.s32 %v2331, %v2337
      %vm2340 = vc.u32 %v2338, %v2334
      %v2341 = vsel %vm2340, 1, 0
      %v2342 = vadd.s32 %v2338, %v2334
      %v2343 = vadd.s32 %v2339, %v2341
      %v2344 = vadd.s32 %v2343, %v2333
      %v2345 = vadd.s32 %v2344, %v2335
      %v2346 = vand.u32 %v2323, 65535
      %v2347 = vshrl.u32 %v2323, 16
      %v2348 = vand.u32 %v2318, 65535
      %v2349 = vshrl.u32 %v2318, 16
      %v2350 = vmul.u32 %v2346, %v2348
      %v2351 = vmul.u32 %v2346, %v2349
      %v2352 = vmul.u32 %v2347, %v2348
      %v2353 = vmul.u32 %v2347, %v2349
      %v2354 = vshll.u32 %v2351, 16
      %v2355 = vshrl.u32 %v2351, 16
      %v2356 = vshll.u32 %v2352, 16
      %v2357 = vshrl.u32 %v2352, 16
      %vm2358 = vc.u32 %v2350, %v2354
      %v2359 = vsel %vm2358, 1, 0
      %v2360 = vadd.s32 %v2350, %v2354
      %v2361 = vadd.s32 %v2353, %v2359
      %vm2362 = vc.u32 %v2360, %v2356
      %v2363 = vsel %vm2362, 1, 0
      %v2364 = vadd.s32 %v2360, %v2356
      %v2365 = vadd.s32 %v2361, %v2363
      %v2366 = vadd.s32 %v2365, %v2355
      %v2367 = vadd.s32 %v2366, %v2357
      %v2368 = vmul.u32 %v2323, %v2314
      %v2369 = vadd.s32 %v2345, %v2364
      %vm2370 = vc.u32 %v2345, %v2364
      %v2371 = vadd.s32 %v2367, 1
      %v2372 = vsel %vm2370, %v2371, %v2367
      %v2373 = vadd.s32 %v2368, %v2372
      %v2374 = vadd.s32 %v2373, 536870912
      %v2375 = vshrl.u32 %v2374, 30
      %v2376 = vshll.u32 %v2375, 30
      %v2377 = vsub.s32 %v2373, %v2376
      %vm2378 = vcmp.lt.s32.totalorder %v2377, 0
      %v2379 = vsub.s32 0, %v2377
      %v2380 = vsel %vm2378, %v2379, %v2377
      %v2381 = vclz %v2380
      %v2382 = vsub.s32 %v2381, 2
      %vm2383 = vcmp.gt.s32.totalorder 0, %v2382
      %v2384 = vsel %vm2383, 0, %v2382
      %v2385 = vsub.s32 32, %v2384
      %v2386 = vshll.u32 %v2377, %v2384
      %v2387 = vshrl.u32 %v2369, %v2385
      %v2388 = vor.u32 %v2386, %v2387
      %v2389 = vsub.s32 4294967266, %v2384
      %v2390 = vadd.s32 %v2389, 127
      %v2391 = vshll.u32 %v2390, 23
      %v2392 = vor.u32 4788187, %v2391
      %v2393 = vand.u32 2147483647, %v2392
      %v2395 = vcvt.s32.f32 %v2388
      %v2396 = vmul.f32 %v2395, %v2393
      %v2397 = vxor.u32 %v2396, 2147483648
      %v2398 = vsel %vm2277, %v2397, %v2396
      %v2399 = vsub.s32 4, %v2375
      %v2400 = vsel %vm2277, %v2399, %v2375
      %v2401 = vsel %vm2276, %v576, %v2398
      %v2402 = vsel %vm2276, 0, %v2400
      %v2403 = vmul.f32 %v2401, %v2401
      %v2404 = vmul.f32 %v2403, -0.001358992
      %v2405 = vadd.f32 %v2404, 0.041655596
      %v2406 = vmul.f32 %v2403, %v2405
      %v2407 = vadd.f32 %v2406, -0.4999988
      %v2408 = vmul.f32 %v2403, %v2407
      %v2409 = vadd.f32 1.0, %v2408
      %v2410 = vmul.f32 %v2401, %v2401
      %v2411 = vmul.f32 %v2410, -0.00019511016
      %v2412 = vadd.f32 %v2411, 0.008332121
      %v2413 = vmul.f32 %v2410, %v2412
      %v2414 = vadd.f32 %v2413, -0.16666654
      %v2415 = vmul.f32 %v2410, %v2414
      %v2416 = vadd.f32 %v2415, 1.0
      %v2417 = vmul.f32 %v2416, %v2401
      %vm2418 = vweird.f32 %v576
      %v2419 = vand.u32 %v2402, 3
      %vm2420 = vcmp.lt.s32.totalorder %v2419, 2
      %vm2421 = vcmp.eq.s32.totalorder %v2419, 0
      %v2422 = vxor.u32 %v2417, 2147483648
      %v2423 = vsel %vm2421, %v2409, %v2422
      %vm2424 = vcmp.eq.s32.totalorder %v2419, 2
      %v2425 = vxor.u32 %v2409, 2147483648
      %v2426 = vsel %vm2424, %v2425, %v2417
      %v2427 = vsel %vm2420, %v2423, %v2426
      %v2428 = vsel %vm2418, nan, %v2427
      %v2429 = vand.u32 2147483647, %v577
      %vm2430 = vcmp.le.f32.partialorder %v2429, 0.7853982
      %vm2431 = vcmp.lt.s32.totalorder %v577, 0
      %v2432 = vand.u32 %v577, 2139095040
      %v2433 = vshrl.u32 %v2432, 23
      %v2434 = vsub.s32 %v2433, 127
      %v2435 = vand.u32 2147483647, %v577
      %v2436 = vand.u32 %v2435, 8388607
      %v2437 = vor.u32 %v2436, 8388608
      %v2438 = vsub.s32 0, %v2437
      %v2439 = vadd.s32 %v2434, 1
      %vm2440 = vcmp.gt.s32.totalorder %v2439, 0
      %v2441 = vsel %vm2440, %v2439, 0
      %v2442 = vshrl.u32 %v2441, 5
      %v2443 = vand.u32 %v2441, 31
      %v2444 = vsub.s32 32, %v2443
      %v2445 = vshrl.u32 683565275, %v2444
      %v2446 = vshll.u32 683565275, %v2443
      %v2447 = vshrl.u32 2475754826, %v2444
      %v2448 = vor.u32 %v2446, %v2447
      %v2449 = vshll.u32 2475754826, %v2443
      %v2450 = vshrl.u32 2131351028, %v2444
      %v2451 = vor.u32 %v2449, %v2450
      %v2452 = vshll.u32 2131351028, %v2443
      %v2453 = vshrl.u32 2102212464, %v2444
      %v2454 = vor.u32 %v2452, %v2453
      %v2455 = vshll.u32 2102212464, %v2443
      %v2456 = vshrl.u32 920167782, %v2444
      %v2457 = vor.u32 %v2455, %v2456
      %v2458 = vshll.u32 920167782, %v2443
      %v2459 = vshrl.u32 1326507024, %v2444
      %v2460 = vor.u32 %v2458, %v2459
      %vm2461 = vcmp.lt.s32.totalorder %v2442, 1
      %vm2462 = vcmp.lt.s32.totalorder %v2442, 2
      %vm2463 = vcmp.lt.s32.totalorder %v2442, 3
      %vm2464 = vcmp.lt.s32.totalorder %v2442, 4
      %v2465 = vsel %vm2461, %v2445, %v2448
      %v2466 = vsel %vm2464, %v2454, 2102212464
      %v2467 = vsel %vm2463, %v2451, %v2466
      %v2468 = vsel %vm2462, %v2465, %v2467
      %v2469 = vsel %vm2461, %v2448, %v2451
      %v2470 = vsel %vm2464, %v2457, 920167782
      %v2471 = vsel %vm2463, %v2454, %v2470
      %v2472 = vsel %vm2462, %v2469, %v2471
      %v2473 = vsel %vm2461, %v2451, %v2454
      %v2474 = vsel %vm2464, %v2460, 1326507024
      %v2475 = vsel %vm2463, %v2457, %v2474
      %v2476 = vsel %vm2462, %v2473, %v2475
      %v2477 = vshll.u32 %v2437, 8
      %v2478 = vand.u32 %v2477, 65535
      %v2479 = vshrl.u32 %v2477, 16
      %v2480 = vand.u32 %v2476, 65535
      %v2481 = vshrl.u32 %v2476, 16
      %v2482 = vmul.u32 %v2478, %v2480
      %v2483 = vmul.u32 %v2478, %v2481
      %v2484 = vmul.u32 %v2479, %v2480
      %v2485 = vmul.u32 %v2479, %v2481
      %v2486 = vshll.u32 %v2483, 16
      %v2487 = vshrl.u32 %v2483, 16
      %v2488 = vshll.u32 %v2484, 16
      %v2489 = vshrl.u32 %v2484, 16
      %vm2490 = vc.u32 %v2482, %v2486
      %v2491 = vsel %vm2490, 1, 0
      %v2492 = vadd.s32 %v2482, %v2486
      %v2493 = vadd.s32 %v2485, %v2491
      %vm2494 = vc.u32 %v2492, %v2488
      %v2495 = vsel %vm2494, 1, 0
      %v2496 = vadd.s32 %v2492, %v2488
      %v2497 = vadd.s32 %v2493, %v2495
      %v2498 = vadd.s32 %v2497, %v2487
      %v2499 = vadd.s32 %v2498, %v2489
      %v2500 = vand.u32 %v2477, 65535
      %v2501 = vshrl.u32 %v2477, 16
      %v2502 = vand.u32 %v2472, 65535
      %v2503 = vshrl.u32 %v2472, 16
      %v2504 = vmul.u32 %v2500, %v2502
      %v2505 = vmul.u32 %v2500, %v2503
      %v2506 = vmul.u32 %v2501, %v2502
      %v2507 = vmul.u32 %v2501, %v2503
      %v2508 = vshll.u32 %v2505, 16
      %v2509 = vshrl.u32 %v2505, 16
      %v2510 = vshll.u32 %v2506, 16
      %v2511 = vshrl.u32 %v2506, 16
      %vm2512 = vc.u32 %v2504, %v2508
      %v2513 = vsel %vm2512, 1, 0
      %v2514 = vadd.s32 %v2504, %v2508
      %v2515 = vadd.s32 %v2507, %v2513
      %vm2516 = vc.u32 %v2514, %v2510
      %v2517 = vsel %vm2516, 1, 0
      %v2518 = vadd.s32 %v2514, %v2510
      %v2519 = vadd.s32 %v2515, %v2517
      %v2520 = vadd.s32 %v2519, %v2509
      %v2521 = vadd.s32 %v2520, %v2511
      %v2522 = vmul.u32 %v2477, %v2468
      %v2523 = vadd.s32 %v2499, %v2518
      %vm2524 = vc.u32 %v2499, %v2518
      %v2525 = vadd.s32 %v2521, 1
      %v2526 = vsel %vm2524, %v2525, %v2521
      %v2527 = vadd.s32 %v2522, %v2526
      %v2528 = vadd.s32 %v2527, 536870912
      %v2529 = vshrl.u32 %v2528, 30
      %v2530 = vshll.u32 %v2529, 30
      %v2531 = vsub.s32 %v2527, %v2530
      %vm2532 = vcmp.lt.s32.totalorder %v2531, 0
      %v2533 = vsub.s32 0, %v2531
      %v2534 = vsel %vm2532, %v2533, %v2531
      %v2535 = vclz %v2534
      %v2536 = vsub.s32 %v2535, 2
      %vm2537 = vcmp.gt.s32.totalorder 0, %v2536
      %v2538 = vsel %vm2537, 0, %v2536
      %v2539 = vsub.s32 32, %v2538
      %v2540 = vshll.u32 %v2531, %v2538
      %v2541 = vshrl.u32 %v2523, %v2539
      %v2542 = vor.u32 %v2540, %v2541
      %v2543 = vsub.s32 4294967266, %v2538
      %v2544 = vadd.s32 %v2543, 127
      %v2545 = vshll.u32 %v2544, 23
      %v2546 = vor.u32 4788187, %v2545
      %v2547 = vand.u32 2147483647, %v2546
      %v2549 = vcvt.s32.f32 %v2542
      %v2550 = vmul.f32 %v2549, %v2547
      %v2551 = vxor.u32 %v2550, 2147483648
      %v2552 = vsel %vm2431, %v2551, %v2550
      %v2553 = vsub.s32 4, %v2529
      %v2554 = vsel %vm2431, %v2553, %v2529
      %v2555 = vsel %vm2430, %v577, %v2552
      %v2556 = vsel %vm2430, 0, %v2554
      %v2557 = vmul.f32 %v2555, %v2555
      %v2558 = vmul.f32 %v2557, -0.001358992
      %v2559 = vadd.f32 %v2558, 0.041655596
      %v2560 = vmul.f32 %v2557, %v2559
      %v2561 = vadd.f32 %v2560, -0.4999988
      %v2562 = vmul.f32 %v2557, %v2561
      %v2563 = vadd.f32 1.0, %v2562
      %v2564 = vmul.f32 %v2555, %v2555
      %v2565 = vmul.f32 %v2564, -0.00019511016
      %v2566 = vadd.f32 %v2565, 0.008332121
      %v2567 = vmul.f32 %v2564, %v2566
      %v2568 = vadd.f32 %v2567, -0.16666654
      %v2569 = vmul.f32 %v2564, %v2568
      %v2570 = vadd.f32 %v2569, 1.0
      %v2571 = vmul.f32 %v2570, %v2555
      %vm2572 = vweird.f32 %v577
      %v2573 = vand.u32 %v2556, 3
      %vm2574 = vcmp.lt.s32.totalorder %v2573, 2
      %vm2575 = vcmp.eq.s32.totalorder %v2573, 0
      %v2576 = vxor.u32 %v2571, 2147483648
      %v2577 = vsel %vm2575, %v2563, %v2576
      %vm2578 = vcmp.eq.s32.totalorder %v2573, 2
      %v2579 = vxor.u32 %v2563, 2147483648
      %v2580 = vsel %vm2578, %v2579, %v2571
      %v2581 = vsel %vm2574, %v2577, %v2580
      %v2582 = vsel %vm2572, nan, %v2581
      %v2583 = vand.u32 2147483647, %v578
      %vm2584 = vcmp.le.f32.partialorder %v2583, 0.7853982
      %vm2585 = vcmp.lt.s32.totalorder %v578, 0
      %v2586 = vand.u32 %v578, 2139095040
      %v2587 = vshrl.u32 %v2586, 23
      %v2588 = vsub.s32 %v2587, 127
      %v2589 = vand.u32 2147483647, %v578
      %v2590 = vand.u32 %v2589, 8388607
      %v2591 = vor.u32 %v2590, 8388608
      %v2592 = vsub.s32 0, %v2591
      %v2593 = vadd.s32 %v2588, 1
      %vm2594 = vcmp.gt.s32.totalorder %v2593, 0
      %v2595 = vsel %vm2594, %v2593, 0
      %v2596 = vshrl.u32 %v2595, 5
      %v2597 = vand.u32 %v2595, 31
      %v2598 = vsub.s32 32, %v2597
      %v2599 = vshrl.u32 683565275, %v2598
      %v2600 = vshll.u32 683565275, %v2597
      %v2601 = vshrl.u32 2475754826, %v2598
      %v2602 = vor.u32 %v2600, %v2601
      %v2603 = vshll.u32 2475754826, %v2597
      %v2604 = vshrl.u32 2131351028, %v2598
      %v2605 = vor.u32 %v2603, %v2604
      %v2606 = vshll.u32 2131351028, %v2597
      %v2607 = vshrl.u32 2102212464, %v2598
      %v2608 = vor.u32 %v2606, %v2607
      %v2609 = vshll.u32 2102212464, %v2597
      %v2610 = vshrl.u32 920167782, %v2598
      %v2611 = vor.u32 %v2609, %v2610
      %v2612 = vshll.u32 920167782, %v2597
      %v2613 = vshrl.u32 1326507024, %v2598
      %v2614 = vor.u32 %v2612, %v2613
      %vm2615 = vcmp.lt.s32.totalorder %v2596, 1
      %vm2616 = vcmp.lt.s32.totalorder %v2596, 2
      %vm2617 = vcmp.lt.s32.totalorder %v2596, 3
      %vm2618 = vcmp.lt.s32.totalorder %v2596, 4
      %v2619 = vsel %vm2615, %v2599, %v2602
      %v2620 = vsel %vm2618, %v2608, 2102212464
      %v2621 = vsel %vm2617, %v2605, %v2620
      %v2622 = vsel %vm2616, %v2619, %v2621
      %v2623 = vsel %vm2615, %v2602, %v2605
      %v2624 = vsel %vm2618, %v2611, 920167782
      %v2625 = vsel %vm2617, %v2608, %v2624
      %v2626 = vsel %vm2616, %v2623, %v2625
      %v2627 = vsel %vm2615, %v2605, %v2608
      %v2628 = vsel %vm2618, %v2614, 1326507024
      %v2629 = vsel %vm2617, %v2611, %v2628
      %v2630 = vsel %vm2616, %v2627, %v2629
      %v2631 = vshll.u32 %v2591, 8
      %v2632 = vand.u32 %v2631, 65535
      %v2633 = vshrl.u32 %v2631, 16
      %v2634 = vand.u32 %v2630, 65535
      %v2635 = vshrl.u32 %v2630, 16
      %v2636 = vmul.u32 %v2632, %v2634
      %v2637 = vmul.u32 %v2632, %v2635
      %v2638 = vmul.u32 %v2633, %v2634
      %v2639 = vmul.u32 %v2633, %v2635
      %v2640 = vshll.u32 %v2637, 16
      %v2641 = vshrl.u32 %v2637, 16
      %v2642 = vshll.u32 %v2638, 16
      %v2643 = vshrl.u32 %v2638, 16
      %vm2644 = vc.u32 %v2636, %v2640
      %v2645 = vsel %vm2644, 1, 0
      %v2646 = vadd.s32 %v2636, %v2640
      %v2647 = vadd.s32 %v2639, %v2645
      %vm2648 = vc.u32 %v2646, %v2642
      %v2649 = vsel %vm2648, 1, 0
      %v2650 = vadd.s32 %v2646, %v2642
      %v2651 = vadd.s32 %v2647, %v2649
      %v2652 = vadd.s32 %v2651, %v2641
      %v2653 = vadd.s32 %v2652, %v2643
      %v2654 = vand.u32 %v2631, 65535
      %v2655 = vshrl.u32 %v2631, 16
      %v2656 = vand.u32 %v2626, 65535
      %v2657 = vshrl.u32 %v2626, 16
      %v2658 = vmul.u32 %v2654, %v2656
      %v2659 = vmul.u32 %v2654, %v2657
      %v2660 = vmul.u32 %v2655, %v2656
      %v2661 = vmul.u32 %v2655, %v2657
      %v2662 = vshll.u32 %v2659, 16
      %v2663 = vshrl.u32 %v2659, 16
      %v2664 = vshll.u32 %v2660, 16
      %v2665 = vshrl.u32 %v2660, 16
      %vm2666 = vc.u32 %v2658, %v2662
      %v2667 = vsel %vm2666, 1, 0
      %v2668 = vadd.s32 %v2658, %v2662
      %v2669 = vadd.s32 %v2661, %v2667
      %vm2670 = vc.u32 %v2668, %v2664
      %v2671 = vsel %vm2670, 1, 0
      %v2672 = vadd.s32 %v2668, %v2664
      %v2673 = vadd.s32 %v2669, %v2671
      %v2674 = vadd.s32 %v2673, %v2663
      %v2675 = vadd.s32 %v2674, %v2665
      %v2676 = vmul.u32 %v2631, %v2622
      %v2677 = vadd.s32 %v2653, %v2672
      %vm2678 = vc.u32 %v2653, %v2672
      %v2679 = vadd.s32 %v2675, 1
      %v2680 = vsel %vm2678, %v2679, %v2675
      %v2681 = vadd.s32 %v2676, %v2680
      %v2682 = vadd.s32 %v2681, 536870912
      %v2683 = vshrl.u32 %v2682, 30
      %v2684 = vshll.u32 %v2683, 30
      %v2685 = vsub.s32 %v2681, %v2684
      %vm2686 = vcmp.lt.s32.totalorder %v2685, 0
      %v2687 = vsub.s32 0, %v2685
      %v2688 = vsel %vm2686, %v2687, %v2685
      %v2689 = vclz %v2688
      %v2690 = vsub.s32 %v2689, 2
      %vm2691 = vcmp.gt.s32.totalorder 0, %v2690
      %v2692 = vsel %vm2691, 0, %v2690
      %v2693 = vsub.s32 32, %v2692
      %v2694 = vshll.u32 %v2685, %v2692
      %v2695 = vshrl.u32 %v2677, %v2693
      %v2696 = vor.u32 %v2694, %v2695
      %v2697 = vsub.s32 4294967266, %v2692
      %v2698 = vadd.s32 %v2697, 127
      %v2699 = vshll.u32 %v2698, 23
      %v2700 = vor.u32 4788187, %v2699
      %v2701 = vand.u32 2147483647, %v2700
      %v2703 = vcvt.s32.f32 %v2696
      %v2704 = vmul.f32 %v2703, %v2701
      %v2705 = vxor.u32 %v2704, 2147483648
      %v2706 = vsel %vm2585, %v2705, %v2704
      %v2707 = vsub.s32 4, %v2683
      %v2708 = vsel %vm2585, %v2707, %v2683
      %v2709 = vsel %vm2584, %v578, %v2706
      %v2710 = vsel %vm2584, 0, %v2708
      %v2711 = vmul.f32 %v2709, %v2709
      %v2712 = vmul.f32 %v2711, -0.001358992
      %v2713 = vadd.f32 %v2712, 0.041655596
      %v2714 = vmul.f32 %v2711, %v2713
      %v2715 = vadd.f32 %v2714, -0.4999988
      %v2716 = vmul.f32 %v2711, %v2715
      %v2717 = vadd.f32 1.0, %v2716
      %v2718 = vmul.f32 %v2709, %v2709
      %v2719 = vmul.f32 %v2718, -0.00019511016
      %v2720 = vadd.f32 %v2719, 0.008332121
      %v2721 = vmul.f32 %v2718, %v2720
      %v2722 = vadd.f32 %v2721, -0.16666654
      %v2723 = vmul.f32 %v2718, %v2722
      %v2724 = vadd.f32 %v2723, 1.0
      %v2725 = vmul.f32 %v2724, %v2709
      %vm2726 = vweird.f32 %v578
      %v2727 = vand.u32 %v2710, 3
      %vm2728 = vcmp.lt.s32.totalorder %v2727, 2
      %vm2729 = vcmp.eq.s32.totalorder %v2727, 0
      %v2730 = vxor.u32 %v2725, 2147483648
      %v2731 = vsel %vm2729, %v2717, %v2730
      %vm2732 = vcmp.eq.s32.totalorder %v2727, 2
      %v2733 = vxor.u32 %v2717, 2147483648
      %v2734 = vsel %vm2732, %v2733, %v2725
      %v2735 = vsel %vm2728, %v2731, %v2734
      %v2736 = vsel %vm2726, nan, %v2735
      %v2737 = vand.u32 2147483647, %v579
      %vm2738 = vcmp.le.f32.partialorder %v2737, 0.7853982
      %vm2739 = vcmp.lt.s32.totalorder %v579, 0
      %v2740 = vand.u32 %v579, 2139095040
      %v2741 = vshrl.u32 %v2740, 23
      %v2742 = vsub.s32 %v2741, 127
      %v2743 = vand.u32 2147483647, %v579
      %v2744 = vand.u32 %v2743, 8388607
      %v2745 = vor.u32 %v2744, 8388608
      %v2746 = vsub.s32 0, %v2745
      %v2747 = vadd.s32 %v2742, 1
      %vm2748 = vcmp.gt.s32.totalorder %v2747, 0
      %v2749 = vsel %vm2748, %v2747, 0
      %v2750 = vshrl.u32 %v2749, 5
      %v2751 = vand.u32 %v2749, 31
      %v2752 = vsub.s32 32, %v2751
      %v2753 = vshrl.u32 683565275, %v2752
      %v2754 = vshll.u32 683565275, %v2751
      %v2755 = vshrl.u32 2475754826, %v2752
      %v2756 = vor.u32 %v2754, %v2755
      %v2757 = vshll.u32 2475754826, %v2751
      %v2758 = vshrl.u32 2131351028, %v2752
      %v2759 = vor.u32 %v2757, %v2758
      %v2760 = vshll.u32 2131351028, %v2751
      %v2761 = vshrl.u32 2102212464, %v2752
      %v2762 = vor.u32 %v2760, %v2761
      %v2763 = vshll.u32 2102212464, %v2751
      %v2764 = vshrl.u32 920167782, %v2752
      %v2765 = vor.u32 %v2763, %v2764
      %v2766 = vshll.u32 920167782, %v2751
      %v2767 = vshrl.u32 1326507024, %v2752
      %v2768 = vor.u32 %v2766, %v2767
      %vm2769 = vcmp.lt.s32.totalorder %v2750, 1
      %vm2770 = vcmp.lt.s32.totalorder %v2750, 2
      %vm2771 = vcmp.lt.s32.totalorder %v2750, 3
      %vm2772 = vcmp.lt.s32.totalorder %v2750, 4
      %v2773 = vsel %vm2769, %v2753, %v2756
      %v2774 = vsel %vm2772, %v2762, 2102212464
      %v2775 = vsel %vm2771, %v2759, %v2774
      %v2776 = vsel %vm2770, %v2773, %v2775
      %v2777 = vsel %vm2769, %v2756, %v2759
      %v2778 = vsel %vm2772, %v2765, 920167782
      %v2779 = vsel %vm2771, %v2762, %v2778
      %v2780 = vsel %vm2770, %v2777, %v2779
      %v2781 = vsel %vm2769, %v2759, %v2762
      %v2782 = vsel %vm2772, %v2768, 1326507024
      %v2783 = vsel %vm2771, %v2765, %v2782
      %v2784 = vsel %vm2770, %v2781, %v2783
      %v2785 = vshll.u32 %v2745, 8
      %v2786 = vand.u32 %v2785, 65535
      %v2787 = vshrl.u32 %v2785, 16
      %v2788 = vand.u32 %v2784, 65535
      %v2789 = vshrl.u32 %v2784, 16
      %v2790 = vmul.u32 %v2786, %v2788
      %v2791 = vmul.u32 %v2786, %v2789
      %v2792 = vmul.u32 %v2787, %v2788
      %v2793 = vmul.u32 %v2787, %v2789
      %v2794 = vshll.u32 %v2791, 16
      %v2795 = vshrl.u32 %v2791, 16
      %v2796 = vshll.u32 %v2792, 16
      %v2797 = vshrl.u32 %v2792, 16
      %vm2798 = vc.u32 %v2790, %v2794
      %v2799 = vsel %vm2798, 1, 0
      %v2800 = vadd.s32 %v2790, %v2794
      %v2801 = vadd.s32 %v2793, %v2799
      %vm2802 = vc.u32 %v2800, %v2796
      %v2803 = vsel %vm2802, 1, 0
      %v2804 = vadd.s32 %v2800, %v2796
      %v2805 = vadd.s32 %v2801, %v2803
      %v2806 = vadd.s32 %v2805, %v2795
      %v2807 = vadd.s32 %v2806, %v2797
      %v2808 = vand.u32 %v2785, 65535
      %v2809 = vshrl.u32 %v2785, 16
      %v2810 = vand.u32 %v2780, 65535
      %v2811 = vshrl.u32 %v2780, 16
      %v2812 = vmul.u32 %v2808, %v2810
      %v2813 = vmul.u32 %v2808, %v2811
      %v2814 = vmul.u32 %v2809, %v2810
      %v2815 = vmul.u32 %v2809, %v2811
      %v2816 = vshll.u32 %v2813, 16
      %v2817 = vshrl.u32 %v2813, 16
      %v2818 = vshll.u32 %v2814, 16
      %v2819 = vshrl.u32 %v2814, 16
      %vm2820 = vc.u32 %v2812, %v2816
      %v2821 = vsel %vm2820, 1, 0
      %v2822 = vadd.s32 %v2812, %v2816
      %v2823 = vadd.s32 %v2815, %v2821
      %vm2824 = vc.u32 %v2822, %v2818
      %v2825 = vsel %vm2824, 1, 0
      %v2826 = vadd.s32 %v2822, %v2818
      %v2827 = vadd.s32 %v2823, %v2825
      %v2828 = vadd.s32 %v2827, %v2817
      %v2829 = vadd.s32 %v2828, %v2819
      %v2830 = vmul.u32 %v2785, %v2776
      %v2831 = vadd.s32 %v2807, %v2826
      %vm2832 = vc.u32 %v2807, %v2826
      %v2833 = vadd.s32 %v2829, 1
      %v2834 = vsel %vm2832, %v2833, %v2829
      %v2835 = vadd.s32 %v2830, %v2834
      %v2836 = vadd.s32 %v2835, 536870912
      %v2837 = vshrl.u32 %v2836, 30
      %v2838 = vshll.u32 %v2837, 30
      %v2839 = vsub.s32 %v2835, %v2838
      %vm2840 = vcmp.lt.s32.totalorder %v2839, 0
      %v2841 = vsub.s32 0, %v2839
      %v2842 = vsel %vm2840, %v2841, %v2839
      %v2843 = vclz %v2842
      %v2844 = vsub.s32 %v2843, 2
      %vm2845 = vcmp.gt.s32.totalorder 0, %v2844
      %v2846 = vsel %vm2845, 0, %v2844
      %v2847 = vsub.s32 32, %v2846
      %v2848 = vshll.u32 %v2839, %v2846
      %v2849 = vshrl.u32 %v2831, %v2847
      %v2850 = vor.u32 %v2848, %v2849
      %v2851 = vsub.s32 4294967266, %v2846
      %v2852 = vadd.s32 %v2851, 127
      %v2853 = vshll.u32 %v2852, 23
      %v2854 = vor.u32 4788187, %v2853
      %v2855 = vand.u32 2147483647, %v2854
      %v2857 = vcvt.s32.f32 %v2850
      %v2858 = vmul.f32 %v2857, %v2855
      %v2859 = vxor.u32 %v2858, 2147483648
      %v2860 = vsel %vm2739, %v2859, %v2858
      %v2861 = vsub.s32 4, %v2837
      %v2862 = vsel %vm2739, %v2861, %v2837
      %v2863 = vsel %vm2738, %v579, %v2860
      %v2864 = vsel %vm2738, 0, %v2862
      %v2865 = vmul.f32 %v2863, %v2863
      %v2866 = vmul.f32 %v2865, -0.001358992
      %v2867 = vadd.f32 %v2866, 0.041655596
      %v2868 = vmul.f32 %v2865, %v2867
      %v2869 = vadd.f32 %v2868, -0.4999988
      %v2870 = vmul.f32 %v2865, %v2869
      %v2871 = vadd.f32 1.0, %v2870
      %v2872 = vmul.f32 %v2863, %v2863
      %v2873 = vmul.f32 %v2872, -0.00019511016
      %v2874 = vadd.f32 %v2873, 0.008332121
      %v2875 = vmul.f32 %v2872, %v2874
      %v2876 = vadd.f32 %v2875, -0.16666654
      %v2877 = vmul.f32 %v2872, %v2876
      %v2878 = vadd.f32 %v2877, 1.0
      %v2879 = vmul.f32 %v2878, %v2863
      %vm2880 = vweird.f32 %v579
      %v2881 = vand.u32 %v2864, 3
      %vm2882 = vcmp.lt.s32.totalorder %v2881, 2
      %vm2883 = vcmp.eq.s32.totalorder %v2881, 0
      %v2884 = vxor.u32 %v2879, 2147483648
      %v2885 = vsel %vm2883, %v2871, %v2884
      %vm2886 = vcmp.eq.s32.totalorder %v2881, 2
      %v2887 = vxor.u32 %v2871, 2147483648
      %v2888 = vsel %vm2886, %v2887, %v2879
      %v2889 = vsel %vm2882, %v2885, %v2888
      %v2890 = vsel %vm2880, nan, %v2889
      %v2891 = vand.u32 2147483647, %v580
      %vm2892 = vcmp.le.f32.partialorder %v2891, 0.7853982
      %vm2893 = vcmp.lt.s32.totalorder %v580, 0
      %v2894 = vand.u32 %v580, 2139095040
      %v2895 = vshrl.u32 %v2894, 23
      %v2896 = vsub.s32 %v2895, 127
      %v2897 = vand.u32 2147483647, %v580
      %v2898 = vand.u32 %v2897, 8388607
      %v2899 = vor.u32 %v2898, 8388608
      %v2900 = vsub.s32 0, %v2899
      %v2901 = vadd.s32 %v2896, 1
      %vm2902 = vcmp.gt.s32.totalorder %v2901, 0
      %v2903 = vsel %vm2902, %v2901, 0
      %v2904 = vshrl.u32 %v2903, 5
      %v2905 = vand.u32 %v2903, 31
      %v2906 = vsub.s32 32, %v2905
      %v2907 = vshrl.u32 683565275, %v2906
      %v2908 = vshll.u32 683565275, %v2905
      %v2909 = vshrl.u32 2475754826, %v2906
      %v2910 = vor.u32 %v2908, %v2909
      %v2911 = vshll.u32 2475754826, %v2905
      %v2912 = vshrl.u32 2131351028, %v2906
      %v2913 = vor.u32 %v2911, %v2912
      %v2914 = vshll.u32 2131351028, %v2905
      %v2915 = vshrl.u32 2102212464, %v2906
      %v2916 = vor.u32 %v2914, %v2915
      %v2917 = vshll.u32 2102212464, %v2905
      %v2918 = vshrl.u32 920167782, %v2906
      %v2919 = vor.u32 %v2917, %v2918
      %v2920 = vshll.u32 920167782, %v2905
      %v2921 = vshrl.u32 1326507024, %v2906
      %v2922 = vor.u32 %v2920, %v2921
      %vm2923 = vcmp.lt.s32.totalorder %v2904, 1
      %vm2924 = vcmp.lt.s32.totalorder %v2904, 2
      %vm2925 = vcmp.lt.s32.totalorder %v2904, 3
      %vm2926 = vcmp.lt.s32.totalorder %v2904, 4
      %v2927 = vsel %vm2923, %v2907, %v2910
      %v2928 = vsel %vm2926, %v2916, 2102212464
      %v2929 = vsel %vm2925, %v2913, %v2928
      %v2930 = vsel %vm2924, %v2927, %v2929
      %v2931 = vsel %vm2923, %v2910, %v2913
      %v2932 = vsel %vm2926, %v2919, 920167782
      %v2933 = vsel %vm2925, %v2916, %v2932
      %v2934 = vsel %vm2924, %v2931, %v2933
      %v2935 = vsel %vm2923, %v2913, %v2916
      %v2936 = vsel %vm2926, %v2922, 1326507024
      %v2937 = vsel %vm2925, %v2919, %v2936
      %v2938 = vsel %vm2924, %v2935, %v2937
      %v2939 = vshll.u32 %v2899, 8
      %v2940 = vand.u32 %v2939, 65535
      %v2941 = vshrl.u32 %v2939, 16
      %v2942 = vand.u32 %v2938, 65535
      %v2943 = vshrl.u32 %v2938, 16
      %v2944 = vmul.u32 %v2940, %v2942
      %v2945 = vmul.u32 %v2940, %v2943
      %v2946 = vmul.u32 %v2941, %v2942
      %v2947 = vmul.u32 %v2941, %v2943
      %v2948 = vshll.u32 %v2945, 16
      %v2949 = vshrl.u32 %v2945, 16
      %v2950 = vshll.u32 %v2946, 16
      %v2951 = vshrl.u32 %v2946, 16
      %vm2952 = vc.u32 %v2944, %v2948
      %v2953 = vsel %vm2952, 1, 0
      %v2954 = vadd.s32 %v2944, %v2948
      %v2955 = vadd.s32 %v2947, %v2953
      %vm2956 = vc.u32 %v2954, %v2950
      %v2957 = vsel %vm2956, 1, 0
      %v2958 = vadd.s32 %v2954, %v2950
      %v2959 = vadd.s32 %v2955, %v2957
      %v2960 = vadd.s32 %v2959, %v2949
      %v2961 = vadd.s32 %v2960, %v2951
      %v2962 = vand.u32 %v2939, 65535
      %v2963 = vshrl.u32 %v2939, 16
      %v2964 = vand.u32 %v2934, 65535
      %v2965 = vshrl.u32 %v2934, 16
      %v2966 = vmul.u32 %v2962, %v2964
      %v2967 = vmul.u32 %v2962, %v2965
      %v2968 = vmul.u32 %v2963, %v2964
      %v2969 = vmul.u32 %v2963, %v2965
      %v2970 = vshll.u32 %v2967, 16
      %v2971 = vshrl.u32 %v2967, 16
      %v2972 = vshll.u32 %v2968, 16
      %v2973 = vshrl.u32 %v2968, 16
      %vm2974 = vc.u32 %v2966, %v2970
      %v2975 = vsel %vm2974, 1, 0
      %v2976 = vadd.s32 %v2966, %v2970
      %v2977 = vadd.s32 %v2969, %v2975
      %vm2978 = vc.u32 %v2976, %v2972
      %v2979 = vsel %vm2978, 1, 0
      %v2980 = vadd.s32 %v2976, %v2972
      %v2981 = vadd.s32 %v2977, %v2979
      %v2982 = vadd.s32 %v2981, %v2971
      %v2983 = vadd.s32 %v2982, %v2973
      %v2984 = vmul.u32 %v2939, %v2930
      %v2985 = vadd.s32 %v2961, %v2980
      %vm2986 = vc.u32 %v2961, %v2980
      %v2987 = vadd.s32 %v2983, 1
      %v2988 = vsel %vm2986, %v2987, %v2983
      %v2989 = vadd.s32 %v2984, %v2988
      %v2990 = vadd.s32 %v2989, 536870912
      %v2991 = vshrl.u32 %v2990, 30
      %v2992 = vshll.u32 %v2991, 30
      %v2993 = vsub.s32 %v2989, %v2992
      %vm2994 = vcmp.lt.s32.totalorder %v2993, 0
      %v2995 = vsub.s32 0, %v2993
      %v2996 = vsel %vm2994, %v2995, %v2993
      %v2997 = vclz %v2996
      %v2998 = vsub.s32 %v2997, 2
      %vm2999 = vcmp.gt.s32.totalorder 0, %v2998
      %v3000 = vsel %vm2999, 0, %v2998
      %v3001 = vsub.s32 32, %v3000
      %v3002 = vshll.u32 %v2993, %v3000
      %v3003 = vshrl.u32 %v2985, %v3001
      %v3004 = vor.u32 %v3002, %v3003
      %v3005 = vsub.s32 4294967266, %v3000
      %v3006 = vadd.s32 %v3005, 127
      %v3007 = vshll.u32 %v3006, 23
      %v3008 = vor.u32 4788187, %v3007
      %v3009 = vand.u32 2147483647, %v3008
      %v3011 = vcvt.s32.f32 %v3004
      %v3012 = vmul.f32 %v3011, %v3009
      %v3013 = vxor.u32 %v3012, 2147483648
      %v3014 = vsel %vm2893, %v3013, %v3012
      %v3015 = vsub.s32 4, %v2991
      %v3016 = vsel %vm2893, %v3015, %v2991
      %v3017 = vsel %vm2892, %v580, %v3014
      %v3018 = vsel %vm2892, 0, %v3016
      %v3019 = vmul.f32 %v3017, %v3017
      %v3020 = vmul.f32 %v3019, -0.001358992
      %v3021 = vadd.f32 %v3020, 0.041655596
      %v3022 = vmul.f32 %v3019, %v3021
      %v3023 = vadd.f32 %v3022, -0.4999988
      %v3024 = vmul.f32 %v3019, %v3023
      %v3025 = vadd.f32 1.0, %v3024
      %v3026 = vmul.f32 %v3017, %v3017
      %v3027 = vmul.f32 %v3026, -0.00019511016
      %v3028 = vadd.f32 %v3027, 0.008332121
      %v3029 = vmul.f32 %v3026, %v3028
      %v3030 = vadd.f32 %v3029, -0.16666654
      %v3031 = vmul.f32 %v3026, %v3030
      %v3032 = vadd.f32 %v3031, 1.0
      %v3033 = vmul.f32 %v3032, %v3017
      %vm3034 = vweird.f32 %v580
      %v3035 = vand.u32 %v3018, 3
      %vm3036 = vcmp.lt.s32.totalorder %v3035, 2
      %vm3037 = vcmp.eq.s32.totalorder %v3035, 0
      %v3038 = vxor.u32 %v3033, 2147483648
      %v3039 = vsel %vm3037, %v3025, %v3038
      %vm3040 = vcmp.eq.s32.totalorder %v3035, 2
      %v3041 = vxor.u32 %v3025, 2147483648
      %v3042 = vsel %vm3040, %v3041, %v3033
      %v3043 = vsel %vm3036, %v3039, %v3042
      %v3044 = vsel %vm3034, nan, %v3043
      %v3045 = vmul.f32 %v518, 0.5
      %v3046 = vmul.f32 %v521, 0.5
      %v3047 = vmul.f32 %v524, 0.5
      %v3048 = vmul.f32 %v527, 0.5
      %v3049 = vmul.f32 %v530, 0.5
      %v3050 = vmul.f32 %v533, 0.5
      %v3051 = vmul.f32 %v536, 0.5
      %v3052 = vmul.f32 %v539, 0.5
      %v3053 = vmul.f32 %v542, 0.5
      %v3054 = vmul.f32 %v545, 0.5
      %v3055 = vmul.f32 %v548, 0.5
      %v3056 = vmul.f32 %v551, 0.5
      %v3057 = vmul.f32 %v554, 0.5
      %v3058 = vmul.f32 %v557, 0.5
      %v3059 = vmul.f32 %v560, 0.5
      %v3060 = vmul.f32 %v563, 0.5
      %v3061 = vrcp.pop 1.4142135
      %v3062 = vmul.f32 1.4142135, %v3061
      %v3063 = vsub.f32 1.0, %v3062
      %v3064 = vmul.f32 %v3061, %v3063
      %v3065 = vadd.f32 %v3061, %v3064
      %vm3066 = vweird.f32 %v3061
      %v3067 = vsel %vm3066, %v3061, %v3065
      %v3068 = vmul.f32 %v518, %v3067
      %v3069 = vmul.f32 %v521, %v3067
      %v3070 = vmul.f32 %v524, %v3067
      %v3071 = vmul.f32 %v527, %v3067
      %v3072 = vmul.f32 %v530, %v3067
      %v3073 = vmul.f32 %v533, %v3067
      %v3074 = vmul.f32 %v536, %v3067
      %v3075 = vmul.f32 %v539, %v3067
      %v3076 = vmul.f32 %v542, %v3067
      %v3077 = vmul.f32 %v545, %v3067
      %v3078 = vmul.f32 %v548, %v3067
      %v3079 = vmul.f32 %v551, %v3067
      %v3080 = vmul.f32 %v554, %v3067
      %v3081 = vmul.f32 %v557, %v3067
      %v3082 = vmul.f32 %v560, %v3067
      %v3083 = vmul.f32 %v563, %v3067
      %v3084 = vmul.f32 %v3068, %v3068
      %v3085 = vmin.f32 16.0, %v3084
      %v3086 = vmul.f32 %v3085, 2.1237322e-06
      %v3087 = vadd.f32 %v3086, 0.00028619796
      %v3088 = vmul.f32 %v3085, %v3087
      %v3089 = vadd.f32 %v3088, 0.0036580483
      %v3090 = vmul.f32 %v3085, %v3089
      %v3091 = vadd.f32 %v3090, 0.05243302
      %v3092 = vmul.f32 %v3085, %v3091
      %v3093 = vadd.f32 %v3092, 0.18741608
      %v3094 = vmul.f32 %v3085, %v3093
      %v3095 = vadd.f32 %v3094, 1.1283791
      %v3096 = vmul.f32 %v3068, %v3095
      %v3097 = vmul.f32 %v3085, 3.8918573e-05
      %v3098 = vadd.f32 %v3097, 0.001143296
      %v3099 = vmul.f32 %v3085, %v3098
      %v3100 = vadd.f32 %v3099, 0.014752088
      %v3101 = vmul.f32 %v3085, %v3100
      %v3102 = vadd.f32 %v3101, 0.112945676
      %v3103 = vmul.f32 %v3085, %v3102
      %v3104 = vadd.f32 %v3103, 0.4994258
      %v3105 = vmul.f32 %v3085, %v3104
      %v3106 = vadd.f32 %v3105, 1.0
      %v3107 = vrcp.pop %v3106
      %v3108 = vmul.f32 %v3106, %v3107
      %v3109 = vsub.f32 1.0, %v3108
      %v3110 = vmul.f32 %v3107, %v3109
      %v3111 = vadd.f32 %v3107, %v3110
      %vm3112 = vweird.f32 %v3106
      %vm3113 = vweird.f32 %v3107
      %vm3114 = vmor %vm3112, %vm3113
      %v3115 = vsel %vm3114, %v3107, %v3111
      %v3116 = vand.u32 2147483647, %v3106
      %vm3117 = vcmp.eq.f32.partialorder %v3116, 8.507059e+37
      %v3118 = vand.u32 %v3106, 2147483648
      %v3119 = vor.u32 1.1754944e-38, %v3118
      %v3120 = vsel %vm3117, %v3119, %v3115
      %v3121 = vmul.f32 %v3096, %v3120
      %v3122 = vmin.f32 %v3121, 1.0
      %v3123 = vmax.f32 %v3122, -1.0
      %v3124 = vmul.f32 %v3069, %v3069
      %v3125 = vmin.f32 16.0, %v3124
      %v3126 = vmul.f32 %v3125, 2.1237322e-06
      %v3127 = vadd.f32 %v3126, 0.00028619796
      %v3128 = vmul.f32 %v3125, %v3127
      %v3129 = vadd.f32 %v3128, 0.0036580483
      %v3130 = vmul.f32 %v3125, %v3129
      %v3131 = vadd.f32 %v3130, 0.05243302
      %v3132 = vmul.f32 %v3125, %v3131
      %v3133 = vadd.f32 %v3132, 0.18741608
      %v3134 = vmul.f32 %v3125, %v3133
      %v3135 = vadd.f32 %v3134, 1.1283791
      %v3136 = vmul.f32 %v3069, %v3135
      %v3137 = vmul.f32 %v3125, 3.8918573e-05
      %v3138 = vadd.f32 %v3137, 0.001143296
      %v3139 = vmul.f32 %v3125, %v3138
      %v3140 = vadd.f32 %v3139, 0.014752088
      %v3141 = vmul.f32 %v3125, %v3140
      %v3142 = vadd.f32 %v3141, 0.112945676
      %v3143 = vmul.f32 %v3125, %v3142
      %v3144 = vadd.f32 %v3143, 0.4994258
      %v3145 = vmul.f32 %v3125, %v3144
      %v3146 = vadd.f32 %v3145, 1.0
      %v3147 = vrcp.pop %v3146
      %v3148 = vmul.f32 %v3146, %v3147
      %v3149 = vsub.f32 1.0, %v3148
      %v3150 = vmul.f32 %v3147, %v3149
      %v3151 = vadd.f32 %v3147, %v3150
      %vm3152 = vweird.f32 %v3146
      %vm3153 = vweird.f32 %v3147
      %vm3154 = vmor %vm3152, %vm3153
      %v3155 = vsel %vm3154, %v3147, %v3151
      %v3156 = vand.u32 2147483647, %v3146
      %vm3157 = vcmp.eq.f32.partialorder %v3156, 8.507059e+37
      %v3158 = vand.u32 %v3146, 2147483648
      %v3159 = vor.u32 1.1754944e-38, %v3158
      %v3160 = vsel %vm3157, %v3159, %v3155
      %v3161 = vmul.f32 %v3136, %v3160
      %v3162 = vmin.f32 %v3161, 1.0
      %v3163 = vmax.f32 %v3162, -1.0
      %v3164 = vmul.f32 %v3070, %v3070
      %v3165 = vmin.f32 16.0, %v3164
      %v3166 = vmul.f32 %v3165, 2.1237322e-06
      %v3167 = vadd.f32 %v3166, 0.00028619796
      %v3168 = vmul.f32 %v3165, %v3167
      %v3169 = vadd.f32 %v3168, 0.0036580483
      %v3170 = vmul.f32 %v3165, %v3169
      %v3171 = vadd.f32 %v3170, 0.05243302
      %v3172 = vmul.f32 %v3165, %v3171
      %v3173 = vadd.f32 %v3172, 0.18741608
      %v3174 = vmul.f32 %v3165, %v3173
      %v3175 = vadd.f32 %v3174, 1.1283791
      %v3176 = vmul.f32 %v3070, %v3175
      %v3177 = vmul.f32 %v3165, 3.8918573e-05
      %v3178 = vadd.f32 %v3177, 0.001143296
      %v3179 = vmul.f32 %v3165, %v3178
      %v3180 = vadd.f32 %v3179, 0.014752088
      %v3181 = vmul.f32 %v3165, %v3180
      %v3182 = vadd.f32 %v3181, 0.112945676
      %v3183 = vmul.f32 %v3165, %v3182
      %v3184 = vadd.f32 %v3183, 0.4994258
      %v3185 = vmul.f32 %v3165, %v3184
      %v3186 = vadd.f32 %v3185, 1.0
      %v3187 = vrcp.pop %v3186
      %v3188 = vmul.f32 %v3186, %v3187
      %v3189 = vsub.f32 1.0, %v3188
      %v3190 = vmul.f32 %v3187, %v3189
      %v3191 = vadd.f32 %v3187, %v3190
      %vm3192 = vweird.f32 %v3186
      %vm3193 = vweird.f32 %v3187
      %vm3194 = vmor %vm3192, %vm3193
      %v3195 = vsel %vm3194, %v3187, %v3191
      %v3196 = vand.u32 2147483647, %v3186
      %vm3197 = vcmp.eq.f32.partialorder %v3196, 8.507059e+37
      %v3198 = vand.u32 %v3186, 2147483648
      %v3199 = vor.u32 1.1754944e-38, %v3198
      %v3200 = vsel %vm3197, %v3199, %v3195
      %v3201 = vmul.f32 %v3176, %v3200
      %v3202 = vmin.f32 %v3201, 1.0
      %v3203 = vmax.f32 %v3202, -1.0
      %v3204 = vmul.f32 %v3071, %v3071
      %v3205 = vmin.f32 16.0, %v3204
      %v3206 = vmul.f32 %v3205, 2.1237322e-06
      %v3207 = vadd.f32 %v3206, 0.00028619796
      %v3208 = vmul.f32 %v3205, %v3207
      %v3209 = vadd.f32 %v3208, 0.0036580483
      %v3210 = vmul.f32 %v3205, %v3209
      %v3211 = vadd.f32 %v3210, 0.05243302
      %v3212 = vmul.f32 %v3205, %v3211
      %v3213 = vadd.f32 %v3212, 0.18741608
      %v3214 = vmul.f32 %v3205, %v3213
      %v3215 = vadd.f32 %v3214, 1.1283791
      %v3216 = vmul.f32 %v3071, %v3215
      %v3217 = vmul.f32 %v3205, 3.8918573e-05
      %v3218 = vadd.f32 %v3217, 0.001143296
      %v3219 = vmul.f32 %v3205, %v3218
      %v3220 = vadd.f32 %v3219, 0.014752088
      %v3221 = vmul.f32 %v3205, %v3220
      %v3222 = vadd.f32 %v3221, 0.112945676
      %v3223 = vmul.f32 %v3205, %v3222
      %v3224 = vadd.f32 %v3223, 0.4994258
      %v3225 = vmul.f32 %v3205, %v3224
      %v3226 = vadd.f32 %v3225, 1.0
      %v3227 = vrcp.pop %v3226
      %v3228 = vmul.f32 %v3226, %v3227
      %v3229 = vsub.f32 1.0, %v3228
      %v3230 = vmul.f32 %v3227, %v3229
      %v3231 = vadd.f32 %v3227, %v3230
      %vm3232 = vweird.f32 %v3226
      %vm3233 = vweird.f32 %v3227
      %vm3234 = vmor %vm3232, %vm3233
      %v3235 = vsel %vm3234, %v3227, %v3231
      %v3236 = vand.u32 2147483647, %v3226
      %vm3237 = vcmp.eq.f32.partialorder %v3236, 8.507059e+37
      %v3238 = vand.u32 %v3226, 2147483648
      %v3239 = vor.u32 1.1754944e-38, %v3238
      %v3240 = vsel %vm3237, %v3239, %v3235
      %v3241 = vmul.f32 %v3216, %v3240
      %v3242 = vmin.f32 %v3241, 1.0
      %v3243 = vmax.f32 %v3242, -1.0
      %v3244 = vmul.f32 %v3072, %v3072
      %v3245 = vmin.f32 16.0, %v3244
      %v3246 = vmul.f32 %v3245, 2.1237322e-06
      %v3247 = vadd.f32 %v3246, 0.00028619796
      %v3248 = vmul.f32 %v3245, %v3247
      %v3249 = vadd.f32 %v3248, 0.0036580483
      %v3250 = vmul.f32 %v3245, %v3249
      %v3251 = vadd.f32 %v3250, 0.05243302
      %v3252 = vmul.f32 %v3245, %v3251
      %v3253 = vadd.f32 %v3252, 0.18741608
      %v3254 = vmul.f32 %v3245, %v3253
      %v3255 = vadd.f32 %v3254, 1.1283791
      %v3256 = vmul.f32 %v3072, %v3255
      %v3257 = vmul.f32 %v3245, 3.8918573e-05
      %v3258 = vadd.f32 %v3257, 0.001143296
      %v3259 = vmul.f32 %v3245, %v3258
      %v3260 = vadd.f32 %v3259, 0.014752088
      %v3261 = vmul.f32 %v3245, %v3260
      %v3262 = vadd.f32 %v3261, 0.112945676
      %v3263 = vmul.f32 %v3245, %v3262
      %v3264 = vadd.f32 %v3263, 0.4994258
      %v3265 = vmul.f32 %v3245, %v3264
      %v3266 = vadd.f32 %v3265, 1.0
      %v3267 = vrcp.pop %v3266
      %v3268 = vmul.f32 %v3266, %v3267
      %v3269 = vsub.f32 1.0, %v3268
      %v3270 = vmul.f32 %v3267, %v3269
      %v3271 = vadd.f32 %v3267, %v3270
      %vm3272 = vweird.f32 %v3266
      %vm3273 = vweird.f32 %v3267
      %vm3274 = vmor %vm3272, %vm3273
      %v3275 = vsel %vm3274, %v3267, %v3271
      %v3276 = vand.u32 2147483647, %v3266
      %vm3277 = vcmp.eq.f32.partialorder %v3276, 8.507059e+37
      %v3278 = vand.u32 %v3266, 2147483648
      %v3279 = vor.u32 1.1754944e-38, %v3278
      %v3280 = vsel %vm3277, %v3279, %v3275
      %v3281 = vmul.f32 %v3256, %v3280
      %v3282 = vmin.f32 %v3281, 1.0
      %v3283 = vmax.f32 %v3282, -1.0
      %v3284 = vmul.f32 %v3073, %v3073
      %v3285 = vmin.f32 16.0, %v3284
      %v3286 = vmul.f32 %v3285, 2.1237322e-06
      %v3287 = vadd.f32 %v3286, 0.00028619796
      %v3288 = vmul.f32 %v3285, %v3287
      %v3289 = vadd.f32 %v3288, 0.0036580483
      %v3290 = vmul.f32 %v3285, %v3289
      %v3291 = vadd.f32 %v3290, 0.05243302
      %v3292 = vmul.f32 %v3285, %v3291
      %v3293 = vadd.f32 %v3292, 0.18741608
      %v3294 = vmul.f32 %v3285, %v3293
      %v3295 = vadd.f32 %v3294, 1.1283791
      %v3296 = vmul.f32 %v3073, %v3295
      %v3297 = vmul.f32 %v3285, 3.8918573e-05
      %v3298 = vadd.f32 %v3297, 0.001143296
      %v3299 = vmul.f32 %v3285, %v3298
      %v3300 = vadd.f32 %v3299, 0.014752088
      %v3301 = vmul.f32 %v3285, %v3300
      %v3302 = vadd.f32 %v3301, 0.112945676
      %v3303 = vmul.f32 %v3285, %v3302
      %v3304 = vadd.f32 %v3303, 0.4994258
      %v3305 = vmul.f32 %v3285, %v3304
      %v3306 = vadd.f32 %v3305, 1.0
      %v3307 = vrcp.pop %v3306
      %v3308 = vmul.f32 %v3306, %v3307
      %v3309 = vsub.f32 1.0, %v3308
      %v3310 = vmul.f32 %v3307, %v3309
      %v3311 = vadd.f32 %v3307, %v3310
      %vm3312 = vweird.f32 %v3306
      %vm3313 = vweird.f32 %v3307
      %vm3314 = vmor %vm3312, %vm3313
      %v3315 = vsel %vm3314, %v3307, %v3311
      %v3316 = vand.u32 2147483647, %v3306
      %vm3317 = vcmp.eq.f32.partialorder %v3316, 8.507059e+37
      %v3318 = vand.u32 %v3306, 2147483648
      %v3319 = vor.u32 1.1754944e-38, %v3318
      %v3320 = vsel %vm3317, %v3319, %v3315
      %v3321 = vmul.f32 %v3296, %v3320
      %v3322 = vmin.f32 %v3321, 1.0
      %v3323 = vmax.f32 %v3322, -1.0
      %v3324 = vmul.f32 %v3074, %v3074
      %v3325 = vmin.f32 16.0, %v3324
      %v3326 = vmul.f32 %v3325, 2.1237322e-06
      %v3327 = vadd.f32 %v3326, 0.00028619796
      %v3328 = vmul.f32 %v3325, %v3327
      %v3329 = vadd.f32 %v3328, 0.0036580483
      %v3330 = vmul.f32 %v3325, %v3329
      %v3331 = vadd.f32 %v3330, 0.05243302
      %v3332 = vmul.f32 %v3325, %v3331
      %v3333 = vadd.f32 %v3332, 0.18741608
      %v3334 = vmul.f32 %v3325, %v3333
      %v3335 = vadd.f32 %v3334, 1.1283791
      %v3336 = vmul.f32 %v3074, %v3335
      %v3337 = vmul.f32 %v3325, 3.8918573e-05
      %v3338 = vadd.f32 %v3337, 0.001143296
      %v3339 = vmul.f32 %v3325, %v3338
      %v3340 = vadd.f32 %v3339, 0.014752088
      %v3341 = vmul.f32 %v3325, %v3340
      %v3342 = vadd.f32 %v3341, 0.112945676
      %v3343 = vmul.f32 %v3325, %v3342
      %v3344 = vadd.f32 %v3343, 0.4994258
      %v3345 = vmul.f32 %v3325, %v3344
      %v3346 = vadd.f32 %v3345, 1.0
      %v3347 = vrcp.pop %v3346
      %v3348 = vmul.f32 %v3346, %v3347
      %v3349 = vsub.f32 1.0, %v3348
      %v3350 = vmul.f32 %v3347, %v3349
      %v3351 = vadd.f32 %v3347, %v3350
      %vm3352 = vweird.f32 %v3346
      %vm3353 = vweird.f32 %v3347
      %vm3354 = vmor %vm3352, %vm3353
      %v3355 = vsel %vm3354, %v3347, %v3351
      %v3356 = vand.u32 2147483647, %v3346
      %vm3357 = vcmp.eq.f32.partialorder %v3356, 8.507059e+37
      %v3358 = vand.u32 %v3346, 2147483648
      %v3359 = vor.u32 1.1754944e-38, %v3358
      %v3360 = vsel %vm3357, %v3359, %v3355
      %v3361 = vmul.f32 %v3336, %v3360
      %v3362 = vmin.f32 %v3361, 1.0
      %v3363 = vmax.f32 %v3362, -1.0
      %v3364 = vmul.f32 %v3075, %v3075
      %v3365 = vmin.f32 16.0, %v3364
      %v3366 = vmul.f32 %v3365, 2.1237322e-06
      %v3367 = vadd.f32 %v3366, 0.00028619796
      %v3368 = vmul.f32 %v3365, %v3367
      %v3369 = vadd.f32 %v3368, 0.0036580483
      %v3370 = vmul.f32 %v3365, %v3369
      %v3371 = vadd.f32 %v3370, 0.05243302
      %v3372 = vmul.f32 %v3365, %v3371
      %v3373 = vadd.f32 %v3372, 0.18741608
      %v3374 = vmul.f32 %v3365, %v3373
      %v3375 = vadd.f32 %v3374, 1.1283791
      %v3376 = vmul.f32 %v3075, %v3375
      %v3377 = vmul.f32 %v3365, 3.8918573e-05
      %v3378 = vadd.f32 %v3377, 0.001143296
      %v3379 = vmul.f32 %v3365, %v3378
      %v3380 = vadd.f32 %v3379, 0.014752088
      %v3381 = vmul.f32 %v3365, %v3380
      %v3382 = vadd.f32 %v3381, 0.112945676
      %v3383 = vmul.f32 %v3365, %v3382
      %v3384 = vadd.f32 %v3383, 0.4994258
      %v3385 = vmul.f32 %v3365, %v3384
      %v3386 = vadd.f32 %v3385, 1.0
      %v3387 = vrcp.pop %v3386
      %v3388 = vmul.f32 %v3386, %v3387
      %v3389 = vsub.f32 1.0, %v3388
      %v3390 = vmul.f32 %v3387, %v3389
      %v3391 = vadd.f32 %v3387, %v3390
      %vm3392 = vweird.f32 %v3386
      %vm3393 = vweird.f32 %v3387
      %vm3394 = vmor %vm3392, %vm3393
      %v3395 = vsel %vm3394, %v3387, %v3391
      %v3396 = vand.u32 2147483647, %v3386
      %vm3397 = vcmp.eq.f32.partialorder %v3396, 8.507059e+37
      %v3398 = vand.u32 %v3386, 2147483648
      %v3399 = vor.u32 1.1754944e-38, %v3398
      %v3400 = vsel %vm3397, %v3399, %v3395
      %v3401 = vmul.f32 %v3376, %v3400
      %v3402 = vmin.f32 %v3401, 1.0
      %v3403 = vmax.f32 %v3402, -1.0
      %v3404 = vmul.f32 %v3076, %v3076
      %v3405 = vmin.f32 16.0, %v3404
      %v3406 = vmul.f32 %v3405, 2.1237322e-06
      %v3407 = vadd.f32 %v3406, 0.00028619796
      %v3408 = vmul.f32 %v3405, %v3407
      %v3409 = vadd.f32 %v3408, 0.0036580483
      %v3410 = vmul.f32 %v3405, %v3409
      %v3411 = vadd.f32 %v3410, 0.05243302
      %v3412 = vmul.f32 %v3405, %v3411
      %v3413 = vadd.f32 %v3412, 0.18741608
      %v3414 = vmul.f32 %v3405, %v3413
      %v3415 = vadd.f32 %v3414, 1.1283791
      %v3416 = vmul.f32 %v3076, %v3415
      %v3417 = vmul.f32 %v3405, 3.8918573e-05
      %v3418 = vadd.f32 %v3417, 0.001143296
      %v3419 = vmul.f32 %v3405, %v3418
      %v3420 = vadd.f32 %v3419, 0.014752088
      %v3421 = vmul.f32 %v3405, %v3420
      %v3422 = vadd.f32 %v3421, 0.112945676
      %v3423 = vmul.f32 %v3405, %v3422
      %v3424 = vadd.f32 %v3423, 0.4994258
      %v3425 = vmul.f32 %v3405, %v3424
      %v3426 = vadd.f32 %v3425, 1.0
      %v3427 = vrcp.pop %v3426
      %v3428 = vmul.f32 %v3426, %v3427
      %v3429 = vsub.f32 1.0, %v3428
      %v3430 = vmul.f32 %v3427, %v3429
      %v3431 = vadd.f32 %v3427, %v3430
      %vm3432 = vweird.f32 %v3426
      %vm3433 = vweird.f32 %v3427
      %vm3434 = vmor %vm3432, %vm3433
      %v3435 = vsel %vm3434, %v3427, %v3431
      %v3436 = vand.u32 2147483647, %v3426
      %vm3437 = vcmp.eq.f32.partialorder %v3436, 8.507059e+37
      %v3438 = vand.u32 %v3426, 2147483648
      %v3439 = vor.u32 1.1754944e-38, %v3438
      %v3440 = vsel %vm3437, %v3439, %v3435
      %v3441 = vmul.f32 %v3416, %v3440
      %v3442 = vmin.f32 %v3441, 1.0
      %v3443 = vmax.f32 %v3442, -1.0
      %v3444 = vmul.f32 %v3077, %v3077
      %v3445 = vmin.f32 16.0, %v3444
      %v3446 = vmul.f32 %v3445, 2.1237322e-06
      %v3447 = vadd.f32 %v3446, 0.00028619796
      %v3448 = vmul.f32 %v3445, %v3447
      %v3449 = vadd.f32 %v3448, 0.0036580483
      %v3450 = vmul.f32 %v3445, %v3449
      %v3451 = vadd.f32 %v3450, 0.05243302
      %v3452 = vmul.f32 %v3445, %v3451
      %v3453 = vadd.f32 %v3452, 0.18741608
      %v3454 = vmul.f32 %v3445, %v3453
      %v3455 = vadd.f32 %v3454, 1.1283791
      %v3456 = vmul.f32 %v3077, %v3455
      %v3457 = vmul.f32 %v3445, 3.8918573e-05
      %v3458 = vadd.f32 %v3457, 0.001143296
      %v3459 = vmul.f32 %v3445, %v3458
      %v3460 = vadd.f32 %v3459, 0.014752088
      %v3461 = vmul.f32 %v3445, %v3460
      %v3462 = vadd.f32 %v3461, 0.112945676
      %v3463 = vmul.f32 %v3445, %v3462
      %v3464 = vadd.f32 %v3463, 0.4994258
      %v3465 = vmul.f32 %v3445, %v3464
      %v3466 = vadd.f32 %v3465, 1.0
      %v3467 = vrcp.pop %v3466
      %v3468 = vmul.f32 %v3466, %v3467
      %v3469 = vsub.f32 1.0, %v3468
      %v3470 = vmul.f32 %v3467, %v3469
      %v3471 = vadd.f32 %v3467, %v3470
      %vm3472 = vweird.f32 %v3466
      %vm3473 = vweird.f32 %v3467
      %vm3474 = vmor %vm3472, %vm3473
      %v3475 = vsel %vm3474, %v3467, %v3471
      %v3476 = vand.u32 2147483647, %v3466
      %vm3477 = vcmp.eq.f32.partialorder %v3476, 8.507059e+37
      %v3478 = vand.u32 %v3466, 2147483648
      %v3479 = vor.u32 1.1754944e-38, %v3478
      %v3480 = vsel %vm3477, %v3479, %v3475
      %v3481 = vmul.f32 %v3456, %v3480
      %v3482 = vmin.f32 %v3481, 1.0
      %v3483 = vmax.f32 %v3482, -1.0
      %v3484 = vmul.f32 %v3078, %v3078
      %v3485 = vmin.f32 16.0, %v3484
      %v3486 = vmul.f32 %v3485, 2.1237322e-06
      %v3487 = vadd.f32 %v3486, 0.00028619796
      %v3488 = vmul.f32 %v3485, %v3487
      %v3489 = vadd.f32 %v3488, 0.0036580483
      %v3490 = vmul.f32 %v3485, %v3489
      %v3491 = vadd.f32 %v3490, 0.05243302
      %v3492 = vmul.f32 %v3485, %v3491
      %v3493 = vadd.f32 %v3492, 0.18741608
      %v3494 = vmul.f32 %v3485, %v3493
      %v3495 = vadd.f32 %v3494, 1.1283791
      %v3496 = vmul.f32 %v3078, %v3495
      %v3497 = vmul.f32 %v3485, 3.8918573e-05
      %v3498 = vadd.f32 %v3497, 0.001143296
      %v3499 = vmul.f32 %v3485, %v3498
      %v3500 = vadd.f32 %v3499, 0.014752088
      %v3501 = vmul.f32 %v3485, %v3500
      %v3502 = vadd.f32 %v3501, 0.112945676
      %v3503 = vmul.f32 %v3485, %v3502
      %v3504 = vadd.f32 %v3503, 0.4994258
      %v3505 = vmul.f32 %v3485, %v3504
      %v3506 = vadd.f32 %v3505, 1.0
      %v3507 = vrcp.pop %v3506
      %v3508 = vmul.f32 %v3506, %v3507
      %v3509 = vsub.f32 1.0, %v3508
      %v3510 = vmul.f32 %v3507, %v3509
      %v3511 = vadd.f32 %v3507, %v3510
      %vm3512 = vweird.f32 %v3506
      %vm3513 = vweird.f32 %v3507
      %vm3514 = vmor %vm3512, %vm3513
      %v3515 = vsel %vm3514, %v3507, %v3511
      %v3516 = vand.u32 2147483647, %v3506
      %vm3517 = vcmp.eq.f32.partialorder %v3516, 8.507059e+37
      %v3518 = vand.u32 %v3506, 2147483648
      %v3519 = vor.u32 1.1754944e-38, %v3518
      %v3520 = vsel %vm3517, %v3519, %v3515
      %v3521 = vmul.f32 %v3496, %v3520
      %v3522 = vmin.f32 %v3521, 1.0
      %v3523 = vmax.f32 %v3522, -1.0
      %v3524 = vmul.f32 %v3079, %v3079
      %v3525 = vmin.f32 16.0, %v3524
      %v3526 = vmul.f32 %v3525, 2.1237322e-06
      %v3527 = vadd.f32 %v3526, 0.00028619796
      %v3528 = vmul.f32 %v3525, %v3527
      %v3529 = vadd.f32 %v3528, 0.0036580483
      %v3530 = vmul.f32 %v3525, %v3529
      %v3531 = vadd.f32 %v3530, 0.05243302
      %v3532 = vmul.f32 %v3525, %v3531
      %v3533 = vadd.f32 %v3532, 0.18741608
      %v3534 = vmul.f32 %v3525, %v3533
      %v3535 = vadd.f32 %v3534, 1.1283791
      %v3536 = vmul.f32 %v3079, %v3535
      %v3537 = vmul.f32 %v3525, 3.8918573e-05
      %v3538 = vadd.f32 %v3537, 0.001143296
      %v3539 = vmul.f32 %v3525, %v3538
      %v3540 = vadd.f32 %v3539, 0.014752088
      %v3541 = vmul.f32 %v3525, %v3540
      %v3542 = vadd.f32 %v3541, 0.112945676
      %v3543 = vmul.f32 %v3525, %v3542
      %v3544 = vadd.f32 %v3543, 0.4994258
      %v3545 = vmul.f32 %v3525, %v3544
      %v3546 = vadd.f32 %v3545, 1.0
      %v3547 = vrcp.pop %v3546
      %v3548 = vmul.f32 %v3546, %v3547
      %v3549 = vsub.f32 1.0, %v3548
      %v3550 = vmul.f32 %v3547, %v3549
      %v3551 = vadd.f32 %v3547, %v3550
      %vm3552 = vweird.f32 %v3546
      %vm3553 = vweird.f32 %v3547
      %vm3554 = vmor %vm3552, %vm3553
      %v3555 = vsel %vm3554, %v3547, %v3551
      %v3556 = vand.u32 2147483647, %v3546
      %vm3557 = vcmp.eq.f32.partialorder %v3556, 8.507059e+37
      %v3558 = vand.u32 %v3546, 2147483648
      %v3559 = vor.u32 1.1754944e-38, %v3558
      %v3560 = vsel %vm3557, %v3559, %v3555
      %v3561 = vmul.f32 %v3536, %v3560
      %v3562 = vmin.f32 %v3561, 1.0
      %v3563 = vmax.f32 %v3562, -1.0
      %v3564 = vmul.f32 %v3080, %v3080
      %v3565 = vmin.f32 16.0, %v3564
      %v3566 = vmul.f32 %v3565, 2.1237322e-06
      %v3567 = vadd.f32 %v3566, 0.00028619796
      %v3568 = vmul.f32 %v3565, %v3567
      %v3569 = vadd.f32 %v3568, 0.0036580483
      %v3570 = vmul.f32 %v3565, %v3569
      %v3571 = vadd.f32 %v3570, 0.05243302
      %v3572 = vmul.f32 %v3565, %v3571
      %v3573 = vadd.f32 %v3572, 0.18741608
      %v3574 = vmul.f32 %v3565, %v3573
      %v3575 = vadd.f32 %v3574, 1.1283791
      %v3576 = vmul.f32 %v3080, %v3575
      %v3577 = vmul.f32 %v3565, 3.8918573e-05
      %v3578 = vadd.f32 %v3577, 0.001143296
      %v3579 = vmul.f32 %v3565, %v3578
      %v3580 = vadd.f32 %v3579, 0.014752088
      %v3581 = vmul.f32 %v3565, %v3580
      %v3582 = vadd.f32 %v3581, 0.112945676
      %v3583 = vmul.f32 %v3565, %v3582
      %v3584 = vadd.f32 %v3583, 0.4994258
      %v3585 = vmul.f32 %v3565, %v3584
      %v3586 = vadd.f32 %v3585, 1.0
      %v3587 = vrcp.pop %v3586
      %v3588 = vmul.f32 %v3586, %v3587
      %v3589 = vsub.f32 1.0, %v3588
      %v3590 = vmul.f32 %v3587, %v3589
      %v3591 = vadd.f32 %v3587, %v3590
      %vm3592 = vweird.f32 %v3586
      %vm3593 = vweird.f32 %v3587
      %vm3594 = vmor %vm3592, %vm3593
      %v3595 = vsel %vm3594, %v3587, %v3591
      %v3596 = vand.u32 2147483647, %v3586
      %vm3597 = vcmp.eq.f32.partialorder %v3596, 8.507059e+37
      %v3598 = vand.u32 %v3586, 2147483648
      %v3599 = vor.u32 1.1754944e-38, %v3598
      %v3600 = vsel %vm3597, %v3599, %v3595
      %v3601 = vmul.f32 %v3576, %v3600
      %v3602 = vmin.f32 %v3601, 1.0
      %v3603 = vmax.f32 %v3602, -1.0
      %v3604 = vmul.f32 %v3081, %v3081
      %v3605 = vmin.f32 16.0, %v3604
      %v3606 = vmul.f32 %v3605, 2.1237322e-06
      %v3607 = vadd.f32 %v3606, 0.00028619796
      %v3608 = vmul.f32 %v3605, %v3607
      %v3609 = vadd.f32 %v3608, 0.0036580483
      %v3610 = vmul.f32 %v3605, %v3609
      %v3611 = vadd.f32 %v3610, 0.05243302
      %v3612 = vmul.f32 %v3605, %v3611
      %v3613 = vadd.f32 %v3612, 0.18741608
      %v3614 = vmul.f32 %v3605, %v3613
      %v3615 = vadd.f32 %v3614, 1.1283791
      %v3616 = vmul.f32 %v3081, %v3615
      %v3617 = vmul.f32 %v3605, 3.8918573e-05
      %v3618 = vadd.f32 %v3617, 0.001143296
      %v3619 = vmul.f32 %v3605, %v3618
      %v3620 = vadd.f32 %v3619, 0.014752088
      %v3621 = vmul.f32 %v3605, %v3620
      %v3622 = vadd.f32 %v3621, 0.112945676
      %v3623 = vmul.f32 %v3605, %v3622
      %v3624 = vadd.f32 %v3623, 0.4994258
      %v3625 = vmul.f32 %v3605, %v3624
      %v3626 = vadd.f32 %v3625, 1.0
      %v3627 = vrcp.pop %v3626
      %v3628 = vmul.f32 %v3626, %v3627
      %v3629 = vsub.f32 1.0, %v3628
      %v3630 = vmul.f32 %v3627, %v3629
      %v3631 = vadd.f32 %v3627, %v3630
      %vm3632 = vweird.f32 %v3626
      %vm3633 = vweird.f32 %v3627
      %vm3634 = vmor %vm3632, %vm3633
      %v3635 = vsel %vm3634, %v3627, %v3631
      %v3636 = vand.u32 2147483647, %v3626
      %vm3637 = vcmp.eq.f32.partialorder %v3636, 8.507059e+37
      %v3638 = vand.u32 %v3626, 2147483648
      %v3639 = vor.u32 1.1754944e-38, %v3638
      %v3640 = vsel %vm3637, %v3639, %v3635
      %v3641 = vmul.f32 %v3616, %v3640
      %v3642 = vmin.f32 %v3641, 1.0
      %v3643 = vmax.f32 %v3642, -1.0
      %v3644 = vmul.f32 %v3082, %v3082
      %v3645 = vmin.f32 16.0, %v3644
      %v3646 = vmul.f32 %v3645, 2.1237322e-06
      %v3647 = vadd.f32 %v3646, 0.00028619796
      %v3648 = vmul.f32 %v3645, %v3647
      %v3649 = vadd.f32 %v3648, 0.0036580483
      %v3650 = vmul.f32 %v3645, %v3649
      %v3651 = vadd.f32 %v3650, 0.05243302
      %v3652 = vmul.f32 %v3645, %v3651
      %v3653 = vadd.f32 %v3652, 0.18741608
      %v3654 = vmul.f32 %v3645, %v3653
      %v3655 = vadd.f32 %v3654, 1.1283791
      %v3656 = vmul.f32 %v3082, %v3655
      %v3657 = vmul.f32 %v3645, 3.8918573e-05
      %v3658 = vadd.f32 %v3657, 0.001143296
      %v3659 = vmul.f32 %v3645, %v3658
      %v3660 = vadd.f32 %v3659, 0.014752088
      %v3661 = vmul.f32 %v3645, %v3660
      %v3662 = vadd.f32 %v3661, 0.112945676
      %v3663 = vmul.f32 %v3645, %v3662
      %v3664 = vadd.f32 %v3663, 0.4994258
      %v3665 = vmul.f32 %v3645, %v3664
      %v3666 = vadd.f32 %v3665, 1.0
      %v3667 = vrcp.pop %v3666
      %v3668 = vmul.f32 %v3666, %v3667
      %v3669 = vsub.f32 1.0, %v3668
      %v3670 = vmul.f32 %v3667, %v3669
      %v3671 = vadd.f32 %v3667, %v3670
      %vm3672 = vweird.f32 %v3666
      %vm3673 = vweird.f32 %v3667
      %vm3674 = vmor %vm3672, %vm3673
      %v3675 = vsel %vm3674, %v3667, %v3671
      %v3676 = vand.u32 2147483647, %v3666
      %vm3677 = vcmp.eq.f32.partialorder %v3676, 8.507059e+37
      %v3678 = vand.u32 %v3666, 2147483648
      %v3679 = vor.u32 1.1754944e-38, %v3678
      %v3680 = vsel %vm3677, %v3679, %v3675
      %v3681 = vmul.f32 %v3656, %v3680
      %v3682 = vmin.f32 %v3681, 1.0
      %v3683 = vmax.f32 %v3682, -1.0
      %v3684 = vmul.f32 %v3083, %v3083
      %v3685 = vmin.f32 16.0, %v3684
      %v3686 = vmul.f32 %v3685, 2.1237322e-06
      %v3687 = vadd.f32 %v3686, 0.00028619796
      %v3688 = vmul.f32 %v3685, %v3687
      %v3689 = vadd.f32 %v3688, 0.0036580483
      %v3690 = vmul.f32 %v3685, %v3689
      %v3691 = vadd.f32 %v3690, 0.05243302
      %v3692 = vmul.f32 %v3685, %v3691
      %v3693 = vadd.f32 %v3692, 0.18741608
      %v3694 = vmul.f32 %v3685, %v3693
      %v3695 = vadd.f32 %v3694, 1.1283791
      %v3696 = vmul.f32 %v3083, %v3695
      %v3697 = vmul.f32 %v3685, 3.8918573e-05
      %v3698 = vadd.f32 %v3697, 0.001143296
      %v3699 = vmul.f32 %v3685, %v3698
      %v3700 = vadd.f32 %v3699, 0.014752088
      %v3701 = vmul.f32 %v3685, %v3700
      %v3702 = vadd.f32 %v3701, 0.112945676
      %v3703 = vmul.f32 %v3685, %v3702
      %v3704 = vadd.f32 %v3703, 0.4994258
      %v3705 = vmul.f32 %v3685, %v3704
      %v3706 = vadd.f32 %v3705, 1.0
      %v3707 = vrcp.pop %v3706
      %v3708 = vmul.f32 %v3706, %v3707
      %v3709 = vsub.f32 1.0, %v3708
      %v3710 = vmul.f32 %v3707, %v3709
      %v3711 = vadd.f32 %v3707, %v3710
      %vm3712 = vweird.f32 %v3706
      %vm3713 = vweird.f32 %v3707
      %vm3714 = vmor %vm3712, %vm3713
      %v3715 = vsel %vm3714, %v3707, %v3711
      %v3716 = vand.u32 2147483647, %v3706
      %vm3717 = vcmp.eq.f32.partialorder %v3716, 8.507059e+37
      %v3718 = vand.u32 %v3706, 2147483648
      %v3719 = vor.u32 1.1754944e-38, %v3718
      %v3720 = vsel %vm3717, %v3719, %v3715
      %v3721 = vmul.f32 %v3696, %v3720
      %v3722 = vmin.f32 %v3721, 1.0
      %v3723 = vmax.f32 %v3722, -1.0
      %v3724 = vadd.f32 %v3123, 1.0
      %v3725 = vadd.f32 %v3163, 1.0
      %v3726 = vadd.f32 %v3203, 1.0
      %v3727 = vadd.f32 %v3243, 1.0
      %v3728 = vadd.f32 %v3283, 1.0
      %v3729 = vadd.f32 %v3323, 1.0
      %v3730 = vadd.f32 %v3363, 1.0
      %v3731 = vadd.f32 %v3403, 1.0
      %v3732 = vadd.f32 %v3443, 1.0
      %v3733 = vadd.f32 %v3483, 1.0
      %v3734 = vadd.f32 %v3523, 1.0
      %v3735 = vadd.f32 %v3563, 1.0
      %v3736 = vadd.f32 %v3603, 1.0
      %v3737 = vadd.f32 %v3643, 1.0
      %v3738 = vadd.f32 %v3683, 1.0
      %v3739 = vadd.f32 %v3723, 1.0
      %v3740 = vmul.f32 %v3045, %v3724
      %v3741 = vmul.f32 %v3046, %v3725
      %v3742 = vmul.f32 %v3047, %v3726
      %v3743 = vmul.f32 %v3048, %v3727
      %v3744 = vmul.f32 %v3049, %v3728
      %v3745 = vmul.f32 %v3050, %v3729
      %v3746 = vmul.f32 %v3051, %v3730
      %v3747 = vmul.f32 %v3052, %v3731
      %v3748 = vmul.f32 %v3053, %v3732
      %v3749 = vmul.f32 %v3054, %v3733
      %v3750 = vmul.f32 %v3055, %v3734
      %v3751 = vmul.f32 %v3056, %v3735
      %v3752 = vmul.f32 %v3057, %v3736
      %v3753 = vmul.f32 %v3058, %v3737
      %v3754 = vmul.f32 %v3059, %v3738
      %v3755 = vmul.f32 %v3060, %v3739
      %v3756 = vsel %vm476, %v734, %v3740
      %v3757 = vsel %vm476, %v888, %v3741
      %v3758 = vsel %vm476, %v1042, %v3742
      %v3759 = vsel %vm476, %v1196, %v3743
      %v3760 = vsel %vm476, %v1350, %v3744
      %v3761 = vsel %vm476, %v1504, %v3745
      %v3762 = vsel %vm476, %v1658, %v3746
      %v3763 = vsel %vm476, %v1812, %v3747
      %v3764 = vsel %vm476, %v1966, %v3748
      %v3765 = vsel %vm476, %v2120, %v3749
      %v3766 = vsel %vm476, %v2274, %v3750
      %v3767 = vsel %vm476, %v2428, %v3751
      %v3768 = vsel %vm476, %v2582, %v3752
      %v3769 = vsel %vm476, %v2736, %v3753
      %v3770 = vsel %vm476, %v2890, %v3754
      %v3771 = vsel %vm476, %v3044, %v3755
      %v3772 = vld [vmem:[%s5] sm:$0xff]
      %v3773 = vld [vmem:[%s5 + $0x8] sm:$0xff]
      %v3774 = vld [vmem:[%s5 + $0x10] sm:$0xff]
      %v3775 = vld [vmem:[%s5 + $0x18] sm:$0xff]
      %v3776 = vld [vmem:[%s5 + $0x20] sm:$0xff]
      %v3777 = vld [vmem:[%s5 + $0x28] sm:$0xff]
      %v3778 = vld [vmem:[%s5 + $0x30] sm:$0xff]
      %v3779 = vld [vmem:[%s5 + $0x38] sm:$0xff]
      %v3780 = vld [vmem:[%s5 + $0x40] sm:$0xff]
      %v3781 = vld [vmem:[%s5 + $0x48] sm:$0xff]
      %v3782 = vld [vmem:[%s5 + $0x50] sm:$0xff]
      %v3783 = vld [vmem:[%s5 + $0x58] sm:$0xff]
      %v3784 = vld [vmem:[%s5 + $0x60] sm:$0xff]
      %v3785 = vld [vmem:[%s5 + $0x68] sm:$0xff]
      %v3786 = vld [vmem:[%s5 + $0x70] sm:$0xff]
      %v3787 = vld [vmem:[%s5 + $0x78] sm:$0xff]
      %v3788 = vld [vmem:[%s6] sm:$0x1]
      %v3790 = vperm.slane %v3788, 0
      %3792 = vmatpush.msra.mxu0 %v3787
      %3793 = vmatpush.msra.mxu0 %v3786
      %3794 = vmatpush.msra.mxu0 %v3785
      %3795 = vmatpush.msra.mxu0 %v3784
      %3796 = vmatpush.msra.mxu0 %v3783
      %3797 = vmatpush.msra.mxu0 %v3782
      %3798 = vmatpush.msra.mxu0 %v3781
      %3799 = vmatpush.msra.mxu0 %v3780
      %3800 = vmatpush.msra.mxu0 %v3779
      %3801 = vmatpush.msra.mxu0 %v3778
      %3802 = vmatpush.msra.mxu0 %v3777
      %3803 = vmatpush.msra.mxu0 %v3776
      %3804 = vmatpush.msra.mxu0 %v3775
      %3805 = vmatpush.msra.mxu0 %v3774
      %3806 = vmatpush.msra.mxu0 %v3773
      %3807 = vmatpush.msra.mxu0 %v3772
      %3808 = vmatmul.f32.gmra.mxu0 %v3756
      %v3809 = vpop.f32.mrf.mxu0
      %v3810 = vadd.f32 %v3790, %v3809
      %3811 = vmatmul.f32.gmra.mxu0 %v3757
      %v3812 = vpop.f32.mrf.mxu0
      %v3813 = vadd.f32 %v3790, %v3812
      %3814 = vmatmul.f32.gmra.mxu0 %v3758
      %v3815 = vpop.f32.mrf.mxu0
      %v3816 = vadd.f32 %v3790, %v3815
      %3817 = vmatmul.f32.gmra.mxu0 %v3759
      %v3818 = vpop.f32.mrf.mxu0
      %v3819 = vadd.f32 %v3790, %v3818
      %3820 = vmatmul.f32.gmra.mxu0 %v3760
      %v3821 = vpop.f32.mrf.mxu0
      %v3822 = vadd.f32 %v3790, %v3821
      %3823 = vmatmul.f32.gmra.mxu0 %v3761
      %v3824 = vpop.f32.mrf.mxu0
      %v3825 = vadd.f32 %v3790, %v3824
      %3826 = vmatmul.f32.gmra.mxu0 %v3762
      %v3827 = vpop.f32.mrf.mxu0
      %v3828 = vadd.f32 %v3790, %v3827
      %3829 = vmatmul.f32.gmra.mxu0 %v3763
      %v3830 = vpop.f32.mrf.mxu0
      %v3831 = vadd.f32 %v3790, %v3830
      %3832 = vmatmul.f32.gmra.mxu0 %v3764
      %v3833 = vpop.f32.mrf.mxu0
      %v3834 = vadd.f32 %v3790, %v3833
      %3835 = vmatmul.f32.gmra.mxu0 %v3765
      %v3836 = vpop.f32.mrf.mxu0
      %v3837 = vadd.f32 %v3790, %v3836
      %3838 = vmatmul.f32.gmra.mxu0 %v3766
      %v3839 = vpop.f32.mrf.mxu0
      %v3840 = vadd.f32 %v3790, %v3839
      %3841 = vmatmul.f32.gmra.mxu0 %v3767
      %v3842 = vpop.f32.mrf.mxu0
      %v3843 = vadd.f32 %v3790, %v3842
      %3844 = vmatmul.f32.gmra.mxu0 %v3768
      %v3845 = vpop.f32.mrf.mxu0
      %v3846 = vadd.f32 %v3790, %v3845
      %3847 = vmatmul.f32.gmra.mxu0 %v3769
      %v3848 = vpop.f32.mrf.mxu0
      %v3849 = vadd.f32 %v3790, %v3848
      %3850 = vmatmul.f32.gmra.mxu0 %v3770
      %v3851 = vpop.f32.mrf.mxu0
      %v3852 = vadd.f32 %v3790, %v3851
      %3853 = vmatmul.f32.gmra.mxu0 %v3771
      %v3854 = vpop.f32.mrf.mxu0
      %v3855 = vadd.f32 %v3790, %v3854
      %3856 = vdwg.mxu0
      %v3857 = vadd.f32 %v3810, %v479
      %v3858 = vadd.f32 %v3813, %v479
      %v3859 = vadd.f32 %v3816, %v479
      %v3860 = vadd.f32 %v3819, %v479
      %v3861 = vadd.f32 %v3822, %v479
      %v3862 = vadd.f32 %v3825, %v479
      %v3863 = vadd.f32 %v3828, %v479
      %v3864 = vadd.f32 %v3831, %v479
      %v3865 = vadd.f32 %v3834, %v479
      %v3866 = vadd.f32 %v3837, %v479
      %v3867 = vadd.f32 %v3840, %v479
      %v3868 = vadd.f32 %v3843, %v479
      %v3869 = vadd.f32 %v3846, %v479
      %v3870 = vadd.f32 %v3849, %v479
      %v3871 = vadd.f32 %v3852, %v479
      %v3872 = vadd.f32 %v3855, %v479
      %v3873 = vand.u32 2147483647, %v3857
      %vm3874 = vcmp.le.f32.partialorder %v3873, 0.7853982
      %vm3875 = vcmp.lt.s32.totalorder %v3857, 0
      %v3876 = vand.u32 %v3857, 2139095040
      %v3877 = vshrl.u32 %v3876, 23
      %v3878 = vsub.s32 %v3877, 127
      %v3879 = vand.u32 2147483647, %v3857
      %v3880 = vand.u32 %v3879, 8388607
      %v3881 = vor.u32 %v3880, 8388608
      %v3882 = vsub.s32 0, %v3881
      %v3883 = vadd.s32 %v3878, 1
      %vm3884 = vcmp.gt.s32.totalorder %v3883, 0
      %v3885 = vsel %vm3884, %v3883, 0
      %v3886 = vshrl.u32 %v3885, 5
      %v3887 = vand.u32 %v3885, 31
      %v3888 = vsub.s32 32, %v3887
      %v3889 = vshrl.u32 683565275, %v3888
      %v3890 = vshll.u32 683565275, %v3887
      %v3891 = vshrl.u32 2475754826, %v3888
      %v3892 = vor.u32 %v3890, %v3891
      %v3893 = vshll.u32 2475754826, %v3887
      %v3894 = vshrl.u32 2131351028, %v3888
      %v3895 = vor.u32 %v3893, %v3894
      %v3896 = vshll.u32 2131351028, %v3887
      %v3897 = vshrl.u32 2102212464, %v3888
      %v3898 = vor.u32 %v3896, %v3897
      %v3899 = vshll.u32 2102212464, %v3887
      %v3900 = vshrl.u32 920167782, %v3888
      %v3901 = vor.u32 %v3899, %v3900
      %v3902 = vshll.u32 920167782, %v3887
      %v3903 = vshrl.u32 1326507024, %v3888
      %v3904 = vor.u32 %v3902, %v3903
      %vm3905 = vcmp.lt.s32.totalorder %v3886, 1
      %vm3906 = vcmp.lt.s32.totalorder %v3886, 2
      %vm3907 = vcmp.lt.s32.totalorder %v3886, 3
      %vm3908 = vcmp.lt.s32.totalorder %v3886, 4
      %v3909 = vsel %vm3905, %v3889, %v3892
      %v3910 = vsel %vm3908, %v3898, 2102212464
      %v3911 = vsel %vm3907, %v3895, %v3910
      %v3912 = vsel %vm3906, %v3909, %v3911
      %v3913 = vsel %vm3905, %v3892, %v3895
      %v3914 = vsel %vm3908, %v3901, 920167782
      %v3915 = vsel %vm3907, %v3898, %v3914
      %v3916 = vsel %vm3906, %v3913, %v3915
      %v3917 = vsel %vm3905, %v3895, %v3898
      %v3918 = vsel %vm3908, %v3904, 1326507024
      %v3919 = vsel %vm3907, %v3901, %v3918
      %v3920 = vsel %vm3906, %v3917, %v3919
      %v3921 = vshll.u32 %v3881, 8
      %v3922 = vand.u32 %v3921, 65535
      %v3923 = vshrl.u32 %v3921, 16
      %v3924 = vand.u32 %v3920, 65535
      %v3925 = vshrl.u32 %v3920, 16
      %v3926 = vmul.u32 %v3922, %v3924
      %v3927 = vmul.u32 %v3922, %v3925
      %v3928 = vmul.u32 %v3923, %v3924
      %v3929 = vmul.u32 %v3923, %v3925
      %v3930 = vshll.u32 %v3927, 16
      %v3931 = vshrl.u32 %v3927, 16
      %v3932 = vshll.u32 %v3928, 16
      %v3933 = vshrl.u32 %v3928, 16
      %vm3934 = vc.u32 %v3926, %v3930
      %v3935 = vsel %vm3934, 1, 0
      %v3936 = vadd.s32 %v3926, %v3930
      %v3937 = vadd.s32 %v3929, %v3935
      %vm3938 = vc.u32 %v3936, %v3932
      %v3939 = vsel %vm3938, 1, 0
      %v3940 = vadd.s32 %v3936, %v3932
      %v3941 = vadd.s32 %v3937, %v3939
      %v3942 = vadd.s32 %v3941, %v3931
      %v3943 = vadd.s32 %v3942, %v3933
      %v3944 = vand.u32 %v3921, 65535
      %v3945 = vshrl.u32 %v3921, 16
      %v3946 = vand.u32 %v3916, 65535
      %v3947 = vshrl.u32 %v3916, 16
      %v3948 = vmul.u32 %v3944, %v3946
      %v3949 = vmul.u32 %v3944, %v3947
      %v3950 = vmul.u32 %v3945, %v3946
      %v3951 = vmul.u32 %v3945, %v3947
      %v3952 = vshll.u32 %v3949, 16
      %v3953 = vshrl.u32 %v3949, 16
      %v3954 = vshll.u32 %v3950, 16
      %v3955 = vshrl.u32 %v3950, 16
      %vm3956 = vc.u32 %v3948, %v3952
      %v3957 = vsel %vm3956, 1, 0
      %v3958 = vadd.s32 %v3948, %v3952
      %v3959 = vadd.s32 %v3951, %v3957
      %vm3960 = vc.u32 %v3958, %v3954
      %v3961 = vsel %vm3960, 1, 0
      %v3962 = vadd.s32 %v3958, %v3954
      %v3963 = vadd.s32 %v3959, %v3961
      %v3964 = vadd.s32 %v3963, %v3953
      %v3965 = vadd.s32 %v3964, %v3955
      %v3966 = vmul.u32 %v3921, %v3912
      %v3967 = vadd.s32 %v3943, %v3962
      %vm3968 = vc.u32 %v3943, %v3962
      %v3969 = vadd.s32 %v3965, 1
      %v3970 = vsel %vm3968, %v3969, %v3965
      %v3971 = vadd.s32 %v3966, %v3970
      %v3972 = vadd.s32 %v3971, 536870912
      %v3973 = vshrl.u32 %v3972, 30
      %v3974 = vshll.u32 %v3973, 30
      %v3975 = vsub.s32 %v3971, %v3974
      %vm3976 = vcmp.lt.s32.totalorder %v3975, 0
      %v3977 = vsub.s32 0, %v3975
      %v3978 = vsel %vm3976, %v3977, %v3975
      %v3979 = vclz %v3978
      %v3980 = vsub.s32 %v3979, 2
      %vm3981 = vcmp.gt.s32.totalorder 0, %v3980
      %v3982 = vsel %vm3981, 0, %v3980
      %v3983 = vsub.s32 32, %v3982
      %v3984 = vshll.u32 %v3975, %v3982
      %v3985 = vshrl.u32 %v3967, %v3983
      %v3986 = vor.u32 %v3984, %v3985
      %v3987 = vsub.s32 4294967266, %v3982
      %v3988 = vadd.s32 %v3987, 127
      %v3989 = vshll.u32 %v3988, 23
      %v3990 = vor.u32 4788187, %v3989
      %v3991 = vand.u32 2147483647, %v3990
      %v3993 = vcvt.s32.f32 %v3986
      %v3994 = vmul.f32 %v3993, %v3991
      %v3995 = vxor.u32 %v3994, 2147483648
      %v3996 = vsel %vm3875, %v3995, %v3994
      %v3997 = vsub.s32 4, %v3973
      %v3998 = vsel %vm3875, %v3997, %v3973
      %v3999 = vsel %vm3874, %v3857, %v3996
      %v4000 = vsel %vm3874, 0, %v3998
      %v4001 = vmul.f32 %v3999, %v3999
      %v4002 = vmul.f32 %v4001, -0.001358992
      %v4003 = vadd.f32 %v4002, 0.041655596
      %v4004 = vmul.f32 %v4001, %v4003
      %v4005 = vadd.f32 %v4004, -0.4999988
      %v4006 = vmul.f32 %v4001, %v4005
      %v4007 = vadd.f32 1.0, %v4006
      %v4008 = vmul.f32 %v3999, %v3999
      %v4009 = vmul.f32 %v4008, -0.00019511016
      %v4010 = vadd.f32 %v4009, 0.008332121
      %v4011 = vmul.f32 %v4008, %v4010
      %v4012 = vadd.f32 %v4011, -0.16666654
      %v4013 = vmul.f32 %v4008, %v4012
      %v4014 = vadd.f32 %v4013, 1.0
      %v4015 = vmul.f32 %v4014, %v3999
      %vm4016 = vweird.f32 %v3857
      %v4017 = vand.u32 %v4000, 3
      %vm4018 = vcmp.lt.s32.totalorder %v4017, 2
      %vm4019 = vcmp.eq.s32.totalorder %v4017, 0
      %v4020 = vxor.u32 %v4015, 2147483648
      %v4021 = vsel %vm4019, %v4007, %v4020
      %vm4022 = vcmp.eq.s32.totalorder %v4017, 2
      %v4023 = vxor.u32 %v4007, 2147483648
      %v4024 = vsel %vm4022, %v4023, %v4015
      %v4025 = vsel %vm4018, %v4021, %v4024
      %v4026 = vsel %vm4016, nan, %v4025
      %v4027 = vand.u32 2147483647, %v3858
      %vm4028 = vcmp.le.f32.partialorder %v4027, 0.7853982
      %vm4029 = vcmp.lt.s32.totalorder %v3858, 0
      %v4030 = vand.u32 %v3858, 2139095040
      %v4031 = vshrl.u32 %v4030, 23
      %v4032 = vsub.s32 %v4031, 127
      %v4033 = vand.u32 2147483647, %v3858
      %v4034 = vand.u32 %v4033, 8388607
      %v4035 = vor.u32 %v4034, 8388608
      %v4036 = vsub.s32 0, %v4035
      %v4037 = vadd.s32 %v4032, 1
      %vm4038 = vcmp.gt.s32.totalorder %v4037, 0
      %v4039 = vsel %vm4038, %v4037, 0
      %v4040 = vshrl.u32 %v4039, 5
      %v4041 = vand.u32 %v4039, 31
      %v4042 = vsub.s32 32, %v4041
      %v4043 = vshrl.u32 683565275, %v4042
      %v4044 = vshll.u32 683565275, %v4041
      %v4045 = vshrl.u32 2475754826, %v4042
      %v4046 = vor.u32 %v4044, %v4045
      %v4047 = vshll.u32 2475754826, %v4041
      %v4048 = vshrl.u32 2131351028, %v4042
      %v4049 = vor.u32 %v4047, %v4048
      %v4050 = vshll.u32 2131351028, %v4041
      %v4051 = vshrl.u32 2102212464, %v4042
      %v4052 = vor.u32 %v4050, %v4051
      %v4053 = vshll.u32 2102212464, %v4041
      %v4054 = vshrl.u32 920167782, %v4042
      %v4055 = vor.u32 %v4053, %v4054
      %v4056 = vshll.u32 920167782, %v4041
      %v4057 = vshrl.u32 1326507024, %v4042
      %v4058 = vor.u32 %v4056, %v4057
      %vm4059 = vcmp.lt.s32.totalorder %v4040, 1
      %vm4060 = vcmp.lt.s32.totalorder %v4040, 2
      %vm4061 = vcmp.lt.s32.totalorder %v4040, 3
      %vm4062 = vcmp.lt.s32.totalorder %v4040, 4
      %v4063 = vsel %vm4059, %v4043, %v4046
      %v4064 = vsel %vm4062, %v4052, 2102212464
      %v4065 = vsel %vm4061, %v4049, %v4064
      %v4066 = vsel %vm4060, %v4063, %v4065
      %v4067 = vsel %vm4059, %v4046, %v4049
      %v4068 = vsel %vm4062, %v4055, 920167782
      %v4069 = vsel %vm4061, %v4052, %v4068
      %v4070 = vsel %vm4060, %v4067, %v4069
      %v4071 = vsel %vm4059, %v4049, %v4052
      %v4072 = vsel %vm4062, %v4058, 1326507024
      %v4073 = vsel %vm4061, %v4055, %v4072
      %v4074 = vsel %vm4060, %v4071, %v4073
      %v4075 = vshll.u32 %v4035, 8
      %v4076 = vand.u32 %v4075, 65535
      %v4077 = vshrl.u32 %v4075, 16
      %v4078 = vand.u32 %v4074, 65535
      %v4079 = vshrl.u32 %v4074, 16
      %v4080 = vmul.u32 %v4076, %v4078
      %v4081 = vmul.u32 %v4076, %v4079
      %v4082 = vmul.u32 %v4077, %v4078
      %v4083 = vmul.u32 %v4077, %v4079
      %v4084 = vshll.u32 %v4081, 16
      %v4085 = vshrl.u32 %v4081, 16
      %v4086 = vshll.u32 %v4082, 16
      %v4087 = vshrl.u32 %v4082, 16
      %vm4088 = vc.u32 %v4080, %v4084
      %v4089 = vsel %vm4088, 1, 0
      %v4090 = vadd.s32 %v4080, %v4084
      %v4091 = vadd.s32 %v4083, %v4089
      %vm4092 = vc.u32 %v4090, %v4086
      %v4093 = vsel %vm4092, 1, 0
      %v4094 = vadd.s32 %v4090, %v4086
      %v4095 = vadd.s32 %v4091, %v4093
      %v4096 = vadd.s32 %v4095, %v4085
      %v4097 = vadd.s32 %v4096, %v4087
      %v4098 = vand.u32 %v4075, 65535
      %v4099 = vshrl.u32 %v4075, 16
      %v4100 = vand.u32 %v4070, 65535
      %v4101 = vshrl.u32 %v4070, 16
      %v4102 = vmul.u32 %v4098, %v4100
      %v4103 = vmul.u32 %v4098, %v4101
      %v4104 = vmul.u32 %v4099, %v4100
      %v4105 = vmul.u32 %v4099, %v4101
      %v4106 = vshll.u32 %v4103, 16
      %v4107 = vshrl.u32 %v4103, 16
      %v4108 = vshll.u32 %v4104, 16
      %v4109 = vshrl.u32 %v4104, 16
      %vm4110 = vc.u32 %v4102, %v4106
      %v4111 = vsel %vm4110, 1, 0
      %v4112 = vadd.s32 %v4102, %v4106
      %v4113 = vadd.s32 %v4105, %v4111
      %vm4114 = vc.u32 %v4112, %v4108
      %v4115 = vsel %vm4114, 1, 0
      %v4116 = vadd.s32 %v4112, %v4108
      %v4117 = vadd.s32 %v4113, %v4115
      %v4118 = vadd.s32 %v4117, %v4107
      %v4119 = vadd.s32 %v4118, %v4109
      %v4120 = vmul.u32 %v4075, %v4066
      %v4121 = vadd.s32 %v4097, %v4116
      %vm4122 = vc.u32 %v4097, %v4116
      %v4123 = vadd.s32 %v4119, 1
      %v4124 = vsel %vm4122, %v4123, %v4119
      %v4125 = vadd.s32 %v4120, %v4124
      %v4126 = vadd.s32 %v4125, 536870912
      %v4127 = vshrl.u32 %v4126, 30
      %v4128 = vshll.u32 %v4127, 30
      %v4129 = vsub.s32 %v4125, %v4128
      %vm4130 = vcmp.lt.s32.totalorder %v4129, 0
      %v4131 = vsub.s32 0, %v4129
      %v4132 = vsel %vm4130, %v4131, %v4129
      %v4133 = vclz %v4132
      %v4134 = vsub.s32 %v4133, 2
      %vm4135 = vcmp.gt.s32.totalorder 0, %v4134
      %v4136 = vsel %vm4135, 0, %v4134
      %v4137 = vsub.s32 32, %v4136
      %v4138 = vshll.u32 %v4129, %v4136
      %v4139 = vshrl.u32 %v4121, %v4137
      %v4140 = vor.u32 %v4138, %v4139
      %v4141 = vsub.s32 4294967266, %v4136
      %v4142 = vadd.s32 %v4141, 127
      %v4143 = vshll.u32 %v4142, 23
      %v4144 = vor.u32 4788187, %v4143
      %v4145 = vand.u32 2147483647, %v4144
      %v4147 = vcvt.s32.f32 %v4140
      %v4148 = vmul.f32 %v4147, %v4145
      %v4149 = vxor.u32 %v4148, 2147483648
      %v4150 = vsel %vm4029, %v4149, %v4148
      %v4151 = vsub.s32 4, %v4127
      %v4152 = vsel %vm4029, %v4151, %v4127
      %v4153 = vsel %vm4028, %v3858, %v4150
      %v4154 = vsel %vm4028, 0, %v4152
      %v4155 = vmul.f32 %v4153, %v4153
      %v4156 = vmul.f32 %v4155, -0.001358992
      %v4157 = vadd.f32 %v4156, 0.041655596
      %v4158 = vmul.f32 %v4155, %v4157
      %v4159 = vadd.f32 %v4158, -0.4999988
      %v4160 = vmul.f32 %v4155, %v4159
      %v4161 = vadd.f32 1.0, %v4160
      %v4162 = vmul.f32 %v4153, %v4153
      %v4163 = vmul.f32 %v4162, -0.00019511016
      %v4164 = vadd.f32 %v4163, 0.008332121
      %v4165 = vmul.f32 %v4162, %v4164
      %v4166 = vadd.f32 %v4165, -0.16666654
      %v4167 = vmul.f32 %v4162, %v4166
      %v4168 = vadd.f32 %v4167, 1.0
      %v4169 = vmul.f32 %v4168, %v4153
      %vm4170 = vweird.f32 %v3858
      %v4171 = vand.u32 %v4154, 3
      %vm4172 = vcmp.lt.s32.totalorder %v4171, 2
      %vm4173 = vcmp.eq.s32.totalorder %v4171, 0
      %v4174 = vxor.u32 %v4169, 2147483648
      %v4175 = vsel %vm4173, %v4161, %v4174
      %vm4176 = vcmp.eq.s32.totalorder %v4171, 2
      %v4177 = vxor.u32 %v4161, 2147483648
      %v4178 = vsel %vm4176, %v4177, %v4169
      %v4179 = vsel %vm4172, %v4175, %v4178
      %v4180 = vsel %vm4170, nan, %v4179
      %v4181 = vand.u32 2147483647, %v3859
      %vm4182 = vcmp.le.f32.partialorder %v4181, 0.7853982
      %vm4183 = vcmp.lt.s32.totalorder %v3859, 0
      %v4184 = vand.u32 %v3859, 2139095040
      %v4185 = vshrl.u32 %v4184, 23
      %v4186 = vsub.s32 %v4185, 127
      %v4187 = vand.u32 2147483647, %v3859
      %v4188 = vand.u32 %v4187, 8388607
      %v4189 = vor.u32 %v4188, 8388608
      %v4190 = vsub.s32 0, %v4189
      %v4191 = vadd.s32 %v4186, 1
      %vm4192 = vcmp.gt.s32.totalorder %v4191, 0
      %v4193 = vsel %vm4192, %v4191, 0
      %v4194 = vshrl.u32 %v4193, 5
      %v4195 = vand.u32 %v4193, 31
      %v4196 = vsub.s32 32, %v4195
      %v4197 = vshrl.u32 683565275, %v4196
      %v4198 = vshll.u32 683565275, %v4195
      %v4199 = vshrl.u32 2475754826, %v4196
      %v4200 = vor.u32 %v4198, %v4199
      %v4201 = vshll.u32 2475754826, %v4195
      %v4202 = vshrl.u32 2131351028, %v4196
      %v4203 = vor.u32 %v4201, %v4202
      %v4204 = vshll.u32 2131351028, %v4195
      %v4205 = vshrl.u32 2102212464, %v4196
      %v4206 = vor.u32 %v4204, %v4205
      %v4207 = vshll.u32 2102212464, %v4195
      %v4208 = vshrl.u32 920167782, %v4196
      %v4209 = vor.u32 %v4207, %v4208
      %v4210 = vshll.u32 920167782, %v4195
      %v4211 = vshrl.u32 1326507024, %v4196
      %v4212 = vor.u32 %v4210, %v4211
      %vm4213 = vcmp.lt.s32.totalorder %v4194, 1
      %vm4214 = vcmp.lt.s32.totalorder %v4194, 2
      %vm4215 = vcmp.lt.s32.totalorder %v4194, 3
      %vm4216 = vcmp.lt.s32.totalorder %v4194, 4
      %v4217 = vsel %vm4213, %v4197, %v4200
      %v4218 = vsel %vm4216, %v4206, 2102212464
      %v4219 = vsel %vm4215, %v4203, %v4218
      %v4220 = vsel %vm4214, %v4217, %v4219
      %v4221 = vsel %vm4213, %v4200, %v4203
      %v4222 = vsel %vm4216, %v4209, 920167782
      %v4223 = vsel %vm4215, %v4206, %v4222
      %v4224 = vsel %vm4214, %v4221, %v4223
      %v4225 = vsel %vm4213, %v4203, %v4206
      %v4226 = vsel %vm4216, %v4212, 1326507024
      %v4227 = vsel %vm4215, %v4209, %v4226
      %v4228 = vsel %vm4214, %v4225, %v4227
      %v4229 = vshll.u32 %v4189, 8
      %v4230 = vand.u32 %v4229, 65535
      %v4231 = vshrl.u32 %v4229, 16
      %v4232 = vand.u32 %v4228, 65535
      %v4233 = vshrl.u32 %v4228, 16
      %v4234 = vmul.u32 %v4230, %v4232
      %v4235 = vmul.u32 %v4230, %v4233
      %v4236 = vmul.u32 %v4231, %v4232
      %v4237 = vmul.u32 %v4231, %v4233
      %v4238 = vshll.u32 %v4235, 16
      %v4239 = vshrl.u32 %v4235, 16
      %v4240 = vshll.u32 %v4236, 16
      %v4241 = vshrl.u32 %v4236, 16
      %vm4242 = vc.u32 %v4234, %v4238
      %v4243 = vsel %vm4242, 1, 0
      %v4244 = vadd.s32 %v4234, %v4238
      %v4245 = vadd.s32 %v4237, %v4243
      %vm4246 = vc.u32 %v4244, %v4240
      %v4247 = vsel %vm4246, 1, 0
      %v4248 = vadd.s32 %v4244, %v4240
      %v4249 = vadd.s32 %v4245, %v4247
      %v4250 = vadd.s32 %v4249, %v4239
      %v4251 = vadd.s32 %v4250, %v4241
      %v4252 = vand.u32 %v4229, 65535
      %v4253 = vshrl.u32 %v4229, 16
      %v4254 = vand.u32 %v4224, 65535
      %v4255 = vshrl.u32 %v4224, 16
      %v4256 = vmul.u32 %v4252, %v4254
      %v4257 = vmul.u32 %v4252, %v4255
      %v4258 = vmul.u32 %v4253, %v4254
      %v4259 = vmul.u32 %v4253, %v4255
      %v4260 = vshll.u32 %v4257, 16
      %v4261 = vshrl.u32 %v4257, 16
      %v4262 = vshll.u32 %v4258, 16
      %v4263 = vshrl.u32 %v4258, 16
      %vm4264 = vc.u32 %v4256, %v4260
      %v4265 = vsel %vm4264, 1, 0
      %v4266 = vadd.s32 %v4256, %v4260
      %v4267 = vadd.s32 %v4259, %v4265
      %vm4268 = vc.u32 %v4266, %v4262
      %v4269 = vsel %vm4268, 1, 0
      %v4270 = vadd.s32 %v4266, %v4262
      %v4271 = vadd.s32 %v4267, %v4269
      %v4272 = vadd.s32 %v4271, %v4261
      %v4273 = vadd.s32 %v4272, %v4263
      %v4274 = vmul.u32 %v4229, %v4220
      %v4275 = vadd.s32 %v4251, %v4270
      %vm4276 = vc.u32 %v4251, %v4270
      %v4277 = vadd.s32 %v4273, 1
      %v4278 = vsel %vm4276, %v4277, %v4273
      %v4279 = vadd.s32 %v4274, %v4278
      %v4280 = vadd.s32 %v4279, 536870912
      %v4281 = vshrl.u32 %v4280, 30
      %v4282 = vshll.u32 %v4281, 30
      %v4283 = vsub.s32 %v4279, %v4282
      %vm4284 = vcmp.lt.s32.totalorder %v4283, 0
      %v4285 = vsub.s32 0, %v4283
      %v4286 = vsel %vm4284, %v4285, %v4283
      %v4287 = vclz %v4286
      %v4288 = vsub.s32 %v4287, 2
      %vm4289 = vcmp.gt.s32.totalorder 0, %v4288
      %v4290 = vsel %vm4289, 0, %v4288
      %v4291 = vsub.s32 32, %v4290
      %v4292 = vshll.u32 %v4283, %v4290
      %v4293 = vshrl.u32 %v4275, %v4291
      %v4294 = vor.u32 %v4292, %v4293
      %v4295 = vsub.s32 4294967266, %v4290
      %v4296 = vadd.s32 %v4295, 127
      %v4297 = vshll.u32 %v4296, 23
      %v4298 = vor.u32 4788187, %v4297
      %v4299 = vand.u32 2147483647, %v4298
      %v4301 = vcvt.s32.f32 %v4294
      %v4302 = vmul.f32 %v4301, %v4299
      %v4303 = vxor.u32 %v4302, 2147483648
      %v4304 = vsel %vm4183, %v4303, %v4302
      %v4305 = vsub.s32 4, %v4281
      %v4306 = vsel %vm4183, %v4305, %v4281
      %v4307 = vsel %vm4182, %v3859, %v4304
      %v4308 = vsel %vm4182, 0, %v4306
      %v4309 = vmul.f32 %v4307, %v4307
      %v4310 = vmul.f32 %v4309, -0.001358992
      %v4311 = vadd.f32 %v4310, 0.041655596
      %v4312 = vmul.f32 %v4309, %v4311
      %v4313 = vadd.f32 %v4312, -0.4999988
      %v4314 = vmul.f32 %v4309, %v4313
      %v4315 = vadd.f32 1.0, %v4314
      %v4316 = vmul.f32 %v4307, %v4307
      %v4317 = vmul.f32 %v4316, -0.00019511016
      %v4318 = vadd.f32 %v4317, 0.008332121
      %v4319 = vmul.f32 %v4316, %v4318
      %v4320 = vadd.f32 %v4319, -0.16666654
      %v4321 = vmul.f32 %v4316, %v4320
      %v4322 = vadd.f32 %v4321, 1.0
      %v4323 = vmul.f32 %v4322, %v4307
      %vm4324 = vweird.f32 %v3859
      %v4325 = vand.u32 %v4308, 3
      %vm4326 = vcmp.lt.s32.totalorder %v4325, 2
      %vm4327 = vcmp.eq.s32.totalorder %v4325, 0
      %v4328 = vxor.u32 %v4323, 2147483648
      %v4329 = vsel %vm4327, %v4315, %v4328
      %vm4330 = vcmp.eq.s32.totalorder %v4325, 2
      %v4331 = vxor.u32 %v4315, 2147483648
      %v4332 = vsel %vm4330, %v4331, %v4323
      %v4333 = vsel %vm4326, %v4329, %v4332
      %v4334 = vsel %vm4324, nan, %v4333
      %v4335 = vand.u32 2147483647, %v3860
      %vm4336 = vcmp.le.f32.partialorder %v4335, 0.7853982
      %vm4337 = vcmp.lt.s32.totalorder %v3860, 0
      %v4338 = vand.u32 %v3860, 2139095040
      %v4339 = vshrl.u32 %v4338, 23
      %v4340 = vsub.s32 %v4339, 127
      %v4341 = vand.u32 2147483647, %v3860
      %v4342 = vand.u32 %v4341, 8388607
      %v4343 = vor.u32 %v4342, 8388608
      %v4344 = vsub.s32 0, %v4343
      %v4345 = vadd.s32 %v4340, 1
      %vm4346 = vcmp.gt.s32.totalorder %v4345, 0
      %v4347 = vsel %vm4346, %v4345, 0
      %v4348 = vshrl.u32 %v4347, 5
      %v4349 = vand.u32 %v4347, 31
      %v4350 = vsub.s32 32, %v4349
      %v4351 = vshrl.u32 683565275, %v4350
      %v4352 = vshll.u32 683565275, %v4349
      %v4353 = vshrl.u32 2475754826, %v4350
      %v4354 = vor.u32 %v4352, %v4353
      %v4355 = vshll.u32 2475754826, %v4349
      %v4356 = vshrl.u32 2131351028, %v4350
      %v4357 = vor.u32 %v4355, %v4356
      %v4358 = vshll.u32 2131351028, %v4349
      %v4359 = vshrl.u32 2102212464, %v4350
      %v4360 = vor.u32 %v4358, %v4359
      %v4361 = vshll.u32 2102212464, %v4349
      %v4362 = vshrl.u32 920167782, %v4350
      %v4363 = vor.u32 %v4361, %v4362
      %v4364 = vshll.u32 920167782, %v4349
      %v4365 = vshrl.u32 1326507024, %v4350
      %v4366 = vor.u32 %v4364, %v4365
      %vm4367 = vcmp.lt.s32.totalorder %v4348, 1
      %vm4368 = vcmp.lt.s32.totalorder %v4348, 2
      %vm4369 = vcmp.lt.s32.totalorder %v4348, 3
      %vm4370 = vcmp.lt.s32.totalorder %v4348, 4
      %v4371 = vsel %vm4367, %v4351, %v4354
      %v4372 = vsel %vm4370, %v4360, 2102212464
      %v4373 = vsel %vm4369, %v4357, %v4372
      %v4374 = vsel %vm4368, %v4371, %v4373
      %v4375 = vsel %vm4367, %v4354, %v4357
      %v4376 = vsel %vm4370, %v4363, 920167782
      %v4377 = vsel %vm4369, %v4360, %v4376
      %v4378 = vsel %vm4368, %v4375, %v4377
      %v4379 = vsel %vm4367, %v4357, %v4360
      %v4380 = vsel %vm4370, %v4366, 1326507024
      %v4381 = vsel %vm4369, %v4363, %v4380
      %v4382 = vsel %vm4368, %v4379, %v4381
      %v4383 = vshll.u32 %v4343, 8
      %v4384 = vand.u32 %v4383, 65535
      %v4385 = vshrl.u32 %v4383, 16
      %v4386 = vand.u32 %v4382, 65535
      %v4387 = vshrl.u32 %v4382, 16
      %v4388 = vmul.u32 %v4384, %v4386
      %v4389 = vmul.u32 %v4384, %v4387
      %v4390 = vmul.u32 %v4385, %v4386
      %v4391 = vmul.u32 %v4385, %v4387
      %v4392 = vshll.u32 %v4389, 16
      %v4393 = vshrl.u32 %v4389, 16
      %v4394 = vshll.u32 %v4390, 16
      %v4395 = vshrl.u32 %v4390, 16
      %vm4396 = vc.u32 %v4388, %v4392
      %v4397 = vsel %vm4396, 1, 0
      %v4398 = vadd.s32 %v4388, %v4392
      %v4399 = vadd.s32 %v4391, %v4397
      %vm4400 = vc.u32 %v4398, %v4394
      %v4401 = vsel %vm4400, 1, 0
      %v4402 = vadd.s32 %v4398, %v4394
      %v4403 = vadd.s32 %v4399, %v4401
      %v4404 = vadd.s32 %v4403, %v4393
      %v4405 = vadd.s32 %v4404, %v4395
      %v4406 = vand.u32 %v4383, 65535
      %v4407 = vshrl.u32 %v4383, 16
      %v4408 = vand.u32 %v4378, 65535
      %v4409 = vshrl.u32 %v4378, 16
      %v4410 = vmul.u32 %v4406, %v4408
      %v4411 = vmul.u32 %v4406, %v4409
      %v4412 = vmul.u32 %v4407, %v4408
      %v4413 = vmul.u32 %v4407, %v4409
      %v4414 = vshll.u32 %v4411, 16
      %v4415 = vshrl.u32 %v4411, 16
      %v4416 = vshll.u32 %v4412, 16
      %v4417 = vshrl.u32 %v4412, 16
      %vm4418 = vc.u32 %v4410, %v4414
      %v4419 = vsel %vm4418, 1, 0
      %v4420 = vadd.s32 %v4410, %v4414
      %v4421 = vadd.s32 %v4413, %v4419
      %vm4422 = vc.u32 %v4420, %v4416
      %v4423 = vsel %vm4422, 1, 0
      %v4424 = vadd.s32 %v4420, %v4416
      %v4425 = vadd.s32 %v4421, %v4423
      %v4426 = vadd.s32 %v4425, %v4415
      %v4427 = vadd.s32 %v4426, %v4417
      %v4428 = vmul.u32 %v4383, %v4374
      %v4429 = vadd.s32 %v4405, %v4424
      %vm4430 = vc.u32 %v4405, %v4424
      %v4431 = vadd.s32 %v4427, 1
      %v4432 = vsel %vm4430, %v4431, %v4427
      %v4433 = vadd.s32 %v4428, %v4432
      %v4434 = vadd.s32 %v4433, 536870912
      %v4435 = vshrl.u32 %v4434, 30
      %v4436 = vshll.u32 %v4435, 30
      %v4437 = vsub.s32 %v4433, %v4436
      %vm4438 = vcmp.lt.s32.totalorder %v4437, 0
      %v4439 = vsub.s32 0, %v4437
      %v4440 = vsel %vm4438, %v4439, %v4437
      %v4441 = vclz %v4440
      %v4442 = vsub.s32 %v4441, 2
      %vm4443 = vcmp.gt.s32.totalorder 0, %v4442
      %v4444 = vsel %vm4443, 0, %v4442
      %v4445 = vsub.s32 32, %v4444
      %v4446 = vshll.u32 %v4437, %v4444
      %v4447 = vshrl.u32 %v4429, %v4445
      %v4448 = vor.u32 %v4446, %v4447
      %v4449 = vsub.s32 4294967266, %v4444
      %v4450 = vadd.s32 %v4449, 127
      %v4451 = vshll.u32 %v4450, 23
      %v4452 = vor.u32 4788187, %v4451
      %v4453 = vand.u32 2147483647, %v4452
      %v4455 = vcvt.s32.f32 %v4448
      %v4456 = vmul.f32 %v4455, %v4453
      %v4457 = vxor.u32 %v4456, 2147483648
      %v4458 = vsel %vm4337, %v4457, %v4456
      %v4459 = vsub.s32 4, %v4435
      %v4460 = vsel %vm4337, %v4459, %v4435
      %v4461 = vsel %vm4336, %v3860, %v4458
      %v4462 = vsel %vm4336, 0, %v4460
      %v4463 = vmul.f32 %v4461, %v4461
      %v4464 = vmul.f32 %v4463, -0.001358992
      %v4465 = vadd.f32 %v4464, 0.041655596
      %v4466 = vmul.f32 %v4463, %v4465
      %v4467 = vadd.f32 %v4466, -0.4999988
      %v4468 = vmul.f32 %v4463, %v4467
      %v4469 = vadd.f32 1.0, %v4468
      %v4470 = vmul.f32 %v4461, %v4461
      %v4471 = vmul.f32 %v4470, -0.00019511016
      %v4472 = vadd.f32 %v4471, 0.008332121
      %v4473 = vmul.f32 %v4470, %v4472
      %v4474 = vadd.f32 %v4473, -0.16666654
      %v4475 = vmul.f32 %v4470, %v4474
      %v4476 = vadd.f32 %v4475, 1.0
      %v4477 = vmul.f32 %v4476, %v4461
      %vm4478 = vweird.f32 %v3860
      %v4479 = vand.u32 %v4462, 3
      %vm4480 = vcmp.lt.s32.totalorder %v4479, 2
      %vm4481 = vcmp.eq.s32.totalorder %v4479, 0
      %v4482 = vxor.u32 %v4477, 2147483648
      %v4483 = vsel %vm4481, %v4469, %v4482
      %vm4484 = vcmp.eq.s32.totalorder %v4479, 2
      %v4485 = vxor.u32 %v4469, 2147483648
      %v4486 = vsel %vm4484, %v4485, %v4477
      %v4487 = vsel %vm4480, %v4483, %v4486
      %v4488 = vsel %vm4478, nan, %v4487
      %v4489 = vand.u32 2147483647, %v3861
      %vm4490 = vcmp.le.f32.partialorder %v4489, 0.7853982
      %vm4491 = vcmp.lt.s32.totalorder %v3861, 0
      %v4492 = vand.u32 %v3861, 2139095040
      %v4493 = vshrl.u32 %v4492, 23
      %v4494 = vsub.s32 %v4493, 127
      %v4495 = vand.u32 2147483647, %v3861
      %v4496 = vand.u32 %v4495, 8388607
      %v4497 = vor.u32 %v4496, 8388608
      %v4498 = vsub.s32 0, %v4497
      %v4499 = vadd.s32 %v4494, 1
      %vm4500 = vcmp.gt.s32.totalorder %v4499, 0
      %v4501 = vsel %vm4500, %v4499, 0
      %v4502 = vshrl.u32 %v4501, 5
      %v4503 = vand.u32 %v4501, 31
      %v4504 = vsub.s32 32, %v4503
      %v4505 = vshrl.u32 683565275, %v4504
      %v4506 = vshll.u32 683565275, %v4503
      %v4507 = vshrl.u32 2475754826, %v4504
      %v4508 = vor.u32 %v4506, %v4507
      %v4509 = vshll.u32 2475754826, %v4503
      %v4510 = vshrl.u32 2131351028, %v4504
      %v4511 = vor.u32 %v4509, %v4510
      %v4512 = vshll.u32 2131351028, %v4503
      %v4513 = vshrl.u32 2102212464, %v4504
      %v4514 = vor.u32 %v4512, %v4513
      %v4515 = vshll.u32 2102212464, %v4503
      %v4516 = vshrl.u32 920167782, %v4504
      %v4517 = vor.u32 %v4515, %v4516
      %v4518 = vshll.u32 920167782, %v4503
      %v4519 = vshrl.u32 1326507024, %v4504
      %v4520 = vor.u32 %v4518, %v4519
      %vm4521 = vcmp.lt.s32.totalorder %v4502, 1
      %vm4522 = vcmp.lt.s32.totalorder %v4502, 2
      %vm4523 = vcmp.lt.s32.totalorder %v4502, 3
      %vm4524 = vcmp.lt.s32.totalorder %v4502, 4
      %v4525 = vsel %vm4521, %v4505, %v4508
      %v4526 = vsel %vm4524, %v4514, 2102212464
      %v4527 = vsel %vm4523, %v4511, %v4526
      %v4528 = vsel %vm4522, %v4525, %v4527
      %v4529 = vsel %vm4521, %v4508, %v4511
      %v4530 = vsel %vm4524, %v4517, 920167782
      %v4531 = vsel %vm4523, %v4514, %v4530
      %v4532 = vsel %vm4522, %v4529, %v4531
      %v4533 = vsel %vm4521, %v4511, %v4514
      %v4534 = vsel %vm4524, %v4520, 1326507024
      %v4535 = vsel %vm4523, %v4517, %v4534
      %v4536 = vsel %vm4522, %v4533, %v4535
      %v4537 = vshll.u32 %v4497, 8
      %v4538 = vand.u32 %v4537, 65535
      %v4539 = vshrl.u32 %v4537, 16
      %v4540 = vand.u32 %v4536, 65535
      %v4541 = vshrl.u32 %v4536, 16
      %v4542 = vmul.u32 %v4538, %v4540
      %v4543 = vmul.u32 %v4538, %v4541
      %v4544 = vmul.u32 %v4539, %v4540
      %v4545 = vmul.u32 %v4539, %v4541
      %v4546 = vshll.u32 %v4543, 16
      %v4547 = vshrl.u32 %v4543, 16
      %v4548 = vshll.u32 %v4544, 16
      %v4549 = vshrl.u32 %v4544, 16
      %vm4550 = vc.u32 %v4542, %v4546
      %v4551 = vsel %vm4550, 1, 0
      %v4552 = vadd.s32 %v4542, %v4546
      %v4553 = vadd.s32 %v4545, %v4551
      %vm4554 = vc.u32 %v4552, %v4548
      %v4555 = vsel %vm4554, 1, 0
      %v4556 = vadd.s32 %v4552, %v4548
      %v4557 = vadd.s32 %v4553, %v4555
      %v4558 = vadd.s32 %v4557, %v4547
      %v4559 = vadd.s32 %v4558, %v4549
      %v4560 = vand.u32 %v4537, 65535
      %v4561 = vshrl.u32 %v4537, 16
      %v4562 = vand.u32 %v4532, 65535
      %v4563 = vshrl.u32 %v4532, 16
      %v4564 = vmul.u32 %v4560, %v4562
      %v4565 = vmul.u32 %v4560, %v4563
      %v4566 = vmul.u32 %v4561, %v4562
      %v4567 = vmul.u32 %v4561, %v4563
      %v4568 = vshll.u32 %v4565, 16
      %v4569 = vshrl.u32 %v4565, 16
      %v4570 = vshll.u32 %v4566, 16
      %v4571 = vshrl.u32 %v4566, 16
      %vm4572 = vc.u32 %v4564, %v4568
      %v4573 = vsel %vm4572, 1, 0
      %v4574 = vadd.s32 %v4564, %v4568
      %v4575 = vadd.s32 %v4567, %v4573
      %vm4576 = vc.u32 %v4574, %v4570
      %v4577 = vsel %vm4576, 1, 0
      %v4578 = vadd.s32 %v4574, %v4570
      %v4579 = vadd.s32 %v4575, %v4577
      %v4580 = vadd.s32 %v4579, %v4569
      %v4581 = vadd.s32 %v4580, %v4571
      %v4582 = vmul.u32 %v4537, %v4528
      %v4583 = vadd.s32 %v4559, %v4578
      %vm4584 = vc.u32 %v4559, %v4578
      %v4585 = vadd.s32 %v4581, 1
      %v4586 = vsel %vm4584, %v4585, %v4581
      %v4587 = vadd.s32 %v4582, %v4586
      %v4588 = vadd.s32 %v4587, 536870912
      %v4589 = vshrl.u32 %v4588, 30
      %v4590 = vshll.u32 %v4589, 30
      %v4591 = vsub.s32 %v4587, %v4590
      %vm4592 = vcmp.lt.s32.totalorder %v4591, 0
      %v4593 = vsub.s32 0, %v4591
      %v4594 = vsel %vm4592, %v4593, %v4591
      %v4595 = vclz %v4594
      %v4596 = vsub.s32 %v4595, 2
      %vm4597 = vcmp.gt.s32.totalorder 0, %v4596
      %v4598 = vsel %vm4597, 0, %v4596
      %v4599 = vsub.s32 32, %v4598
      %v4600 = vshll.u32 %v4591, %v4598
      %v4601 = vshrl.u32 %v4583, %v4599
      %v4602 = vor.u32 %v4600, %v4601
      %v4603 = vsub.s32 4294967266, %v4598
      %v4604 = vadd.s32 %v4603, 127
      %v4605 = vshll.u32 %v4604, 23
      %v4606 = vor.u32 4788187, %v4605
      %v4607 = vand.u32 2147483647, %v4606
      %v4609 = vcvt.s32.f32 %v4602
      %v4610 = vmul.f32 %v4609, %v4607
      %v4611 = vxor.u32 %v4610, 2147483648
      %v4612 = vsel %vm4491, %v4611, %v4610
      %v4613 = vsub.s32 4, %v4589
      %v4614 = vsel %vm4491, %v4613, %v4589
      %v4615 = vsel %vm4490, %v3861, %v4612
      %v4616 = vsel %vm4490, 0, %v4614
      %v4617 = vmul.f32 %v4615, %v4615
      %v4618 = vmul.f32 %v4617, -0.001358992
      %v4619 = vadd.f32 %v4618, 0.041655596
      %v4620 = vmul.f32 %v4617, %v4619
      %v4621 = vadd.f32 %v4620, -0.4999988
      %v4622 = vmul.f32 %v4617, %v4621
      %v4623 = vadd.f32 1.0, %v4622
      %v4624 = vmul.f32 %v4615, %v4615
      %v4625 = vmul.f32 %v4624, -0.00019511016
      %v4626 = vadd.f32 %v4625, 0.008332121
      %v4627 = vmul.f32 %v4624, %v4626
      %v4628 = vadd.f32 %v4627, -0.16666654
      %v4629 = vmul.f32 %v4624, %v4628
      %v4630 = vadd.f32 %v4629, 1.0
      %v4631 = vmul.f32 %v4630, %v4615
      %vm4632 = vweird.f32 %v3861
      %v4633 = vand.u32 %v4616, 3
      %vm4634 = vcmp.lt.s32.totalorder %v4633, 2
      %vm4635 = vcmp.eq.s32.totalorder %v4633, 0
      %v4636 = vxor.u32 %v4631, 2147483648
      %v4637 = vsel %vm4635, %v4623, %v4636
      %vm4638 = vcmp.eq.s32.totalorder %v4633, 2
      %v4639 = vxor.u32 %v4623, 2147483648
      %v4640 = vsel %vm4638, %v4639, %v4631
      %v4641 = vsel %vm4634, %v4637, %v4640
      %v4642 = vsel %vm4632, nan, %v4641
      %v4643 = vand.u32 2147483647, %v3862
      %vm4644 = vcmp.le.f32.partialorder %v4643, 0.7853982
      %vm4645 = vcmp.lt.s32.totalorder %v3862, 0
      %v4646 = vand.u32 %v3862, 2139095040
      %v4647 = vshrl.u32 %v4646, 23
      %v4648 = vsub.s32 %v4647, 127
      %v4649 = vand.u32 2147483647, %v3862
      %v4650 = vand.u32 %v4649, 8388607
      %v4651 = vor.u32 %v4650, 8388608
      %v4652 = vsub.s32 0, %v4651
      %v4653 = vadd.s32 %v4648, 1
      %vm4654 = vcmp.gt.s32.totalorder %v4653, 0
      %v4655 = vsel %vm4654, %v4653, 0
      %v4656 = vshrl.u32 %v4655, 5
      %v4657 = vand.u32 %v4655, 31
      %v4658 = vsub.s32 32, %v4657
      %v4659 = vshrl.u32 683565275, %v4658
      %v4660 = vshll.u32 683565275, %v4657
      %v4661 = vshrl.u32 2475754826, %v4658
      %v4662 = vor.u32 %v4660, %v4661
      %v4663 = vshll.u32 2475754826, %v4657
      %v4664 = vshrl.u32 2131351028, %v4658
      %v4665 = vor.u32 %v4663, %v4664
      %v4666 = vshll.u32 2131351028, %v4657
      %v4667 = vshrl.u32 2102212464, %v4658
      %v4668 = vor.u32 %v4666, %v4667
      %v4669 = vshll.u32 2102212464, %v4657
      %v4670 = vshrl.u32 920167782, %v4658
      %v4671 = vor.u32 %v4669, %v4670
      %v4672 = vshll.u32 920167782, %v4657
      %v4673 = vshrl.u32 1326507024, %v4658
      %v4674 = vor.u32 %v4672, %v4673
      %vm4675 = vcmp.lt.s32.totalorder %v4656, 1
      %vm4676 = vcmp.lt.s32.totalorder %v4656, 2
      %vm4677 = vcmp.lt.s32.totalorder %v4656, 3
      %vm4678 = vcmp.lt.s32.totalorder %v4656, 4
      %v4679 = vsel %vm4675, %v4659, %v4662
      %v4680 = vsel %vm4678, %v4668, 2102212464
      %v4681 = vsel %vm4677, %v4665, %v4680
      %v4682 = vsel %vm4676, %v4679, %v4681
      %v4683 = vsel %vm4675, %v4662, %v4665
      %v4684 = vsel %vm4678, %v4671, 920167782
      %v4685 = vsel %vm4677, %v4668, %v4684
      %v4686 = vsel %vm4676, %v4683, %v4685
      %v4687 = vsel %vm4675, %v4665, %v4668
      %v4688 = vsel %vm4678, %v4674, 1326507024
      %v4689 = vsel %vm4677, %v4671, %v4688
      %v4690 = vsel %vm4676, %v4687, %v4689
      %v4691 = vshll.u32 %v4651, 8
      %v4692 = vand.u32 %v4691, 65535
      %v4693 = vshrl.u32 %v4691, 16
      %v4694 = vand.u32 %v4690, 65535
      %v4695 = vshrl.u32 %v4690, 16
      %v4696 = vmul.u32 %v4692, %v4694
      %v4697 = vmul.u32 %v4692, %v4695
      %v4698 = vmul.u32 %v4693, %v4694
      %v4699 = vmul.u32 %v4693, %v4695
      %v4700 = vshll.u32 %v4697, 16
      %v4701 = vshrl.u32 %v4697, 16
      %v4702 = vshll.u32 %v4698, 16
      %v4703 = vshrl.u32 %v4698, 16
      %vm4704 = vc.u32 %v4696, %v4700
      %v4705 = vsel %vm4704, 1, 0
      %v4706 = vadd.s32 %v4696, %v4700
      %v4707 = vadd.s32 %v4699, %v4705
      %vm4708 = vc.u32 %v4706, %v4702
      %v4709 = vsel %vm4708, 1, 0
      %v4710 = vadd.s32 %v4706, %v4702
      %v4711 = vadd.s32 %v4707, %v4709
      %v4712 = vadd.s32 %v4711, %v4701
      %v4713 = vadd.s32 %v4712, %v4703
      %v4714 = vand.u32 %v4691, 65535
      %v4715 = vshrl.u32 %v4691, 16
      %v4716 = vand.u32 %v4686, 65535
      %v4717 = vshrl.u32 %v4686, 16
      %v4718 = vmul.u32 %v4714, %v4716
      %v4719 = vmul.u32 %v4714, %v4717
      %v4720 = vmul.u32 %v4715, %v4716
      %v4721 = vmul.u32 %v4715, %v4717
      %v4722 = vshll.u32 %v4719, 16
      %v4723 = vshrl.u32 %v4719, 16
      %v4724 = vshll.u32 %v4720, 16
      %v4725 = vshrl.u32 %v4720, 16
      %vm4726 = vc.u32 %v4718, %v4722
      %v4727 = vsel %vm4726, 1, 0
      %v4728 = vadd.s32 %v4718, %v4722
      %v4729 = vadd.s32 %v4721, %v4727
      %vm4730 = vc.u32 %v4728, %v4724
      %v4731 = vsel %vm4730, 1, 0
      %v4732 = vadd.s32 %v4728, %v4724
      %v4733 = vadd.s32 %v4729, %v4731
      %v4734 = vadd.s32 %v4733, %v4723
      %v4735 = vadd.s32 %v4734, %v4725
      %v4736 = vmul.u32 %v4691, %v4682
      %v4737 = vadd.s32 %v4713, %v4732
      %vm4738 = vc.u32 %v4713, %v4732
      %v4739 = vadd.s32 %v4735, 1
      %v4740 = vsel %vm4738, %v4739, %v4735
      %v4741 = vadd.s32 %v4736, %v4740
      %v4742 = vadd.s32 %v4741, 536870912
      %v4743 = vshrl.u32 %v4742, 30
      %v4744 = vshll.u32 %v4743, 30
      %v4745 = vsub.s32 %v4741, %v4744
      %vm4746 = vcmp.lt.s32.totalorder %v4745, 0
      %v4747 = vsub.s32 0, %v4745
      %v4748 = vsel %vm4746, %v4747, %v4745
      %v4749 = vclz %v4748
      %v4750 = vsub.s32 %v4749, 2
      %vm4751 = vcmp.gt.s32.totalorder 0, %v4750
      %v4752 = vsel %vm4751, 0, %v4750
      %v4753 = vsub.s32 32, %v4752
      %v4754 = vshll.u32 %v4745, %v4752
      %v4755 = vshrl.u32 %v4737, %v4753
      %v4756 = vor.u32 %v4754, %v4755
      %v4757 = vsub.s32 4294967266, %v4752
      %v4758 = vadd.s32 %v4757, 127
      %v4759 = vshll.u32 %v4758, 23
      %v4760 = vor.u32 4788187, %v4759
      %v4761 = vand.u32 2147483647, %v4760
      %v4763 = vcvt.s32.f32 %v4756
      %v4764 = vmul.f32 %v4763, %v4761
      %v4765 = vxor.u32 %v4764, 2147483648
      %v4766 = vsel %vm4645, %v4765, %v4764
      %v4767 = vsub.s32 4, %v4743
      %v4768 = vsel %vm4645, %v4767, %v4743
      %v4769 = vsel %vm4644, %v3862, %v4766
      %v4770 = vsel %vm4644, 0, %v4768
      %v4771 = vmul.f32 %v4769, %v4769
      %v4772 = vmul.f32 %v4771, -0.001358992
      %v4773 = vadd.f32 %v4772, 0.041655596
      %v4774 = vmul.f32 %v4771, %v4773
      %v4775 = vadd.f32 %v4774, -0.4999988
      %v4776 = vmul.f32 %v4771, %v4775
      %v4777 = vadd.f32 1.0, %v4776
      %v4778 = vmul.f32 %v4769, %v4769
      %v4779 = vmul.f32 %v4778, -0.00019511016
      %v4780 = vadd.f32 %v4779, 0.008332121
      %v4781 = vmul.f32 %v4778, %v4780
      %v4782 = vadd.f32 %v4781, -0.16666654
      %v4783 = vmul.f32 %v4778, %v4782
      %v4784 = vadd.f32 %v4783, 1.0
      %v4785 = vmul.f32 %v4784, %v4769
      %vm4786 = vweird.f32 %v3862
      %v4787 = vand.u32 %v4770, 3
      %vm4788 = vcmp.lt.s32.totalorder %v4787, 2
      %vm4789 = vcmp.eq.s32.totalorder %v4787, 0
      %v4790 = vxor.u32 %v4785, 2147483648
      %v4791 = vsel %vm4789, %v4777, %v4790
      %vm4792 = vcmp.eq.s32.totalorder %v4787, 2
      %v4793 = vxor.u32 %v4777, 2147483648
      %v4794 = vsel %vm4792, %v4793, %v4785
      %v4795 = vsel %vm4788, %v4791, %v4794
      %v4796 = vsel %vm4786, nan, %v4795
      %v4797 = vand.u32 2147483647, %v3863
      %vm4798 = vcmp.le.f32.partialorder %v4797, 0.7853982
      %vm4799 = vcmp.lt.s32.totalorder %v3863, 0
      %v4800 = vand.u32 %v3863, 2139095040
      %v4801 = vshrl.u32 %v4800, 23
      %v4802 = vsub.s32 %v4801, 127
      %v4803 = vand.u32 2147483647, %v3863
      %v4804 = vand.u32 %v4803, 8388607
      %v4805 = vor.u32 %v4804, 8388608
      %v4806 = vsub.s32 0, %v4805
      %v4807 = vadd.s32 %v4802, 1
      %vm4808 = vcmp.gt.s32.totalorder %v4807, 0
      %v4809 = vsel %vm4808, %v4807, 0
      %v4810 = vshrl.u32 %v4809, 5
      %v4811 = vand.u32 %v4809, 31
      %v4812 = vsub.s32 32, %v4811
      %v4813 = vshrl.u32 683565275, %v4812
      %v4814 = vshll.u32 683565275, %v4811
      %v4815 = vshrl.u32 2475754826, %v4812
      %v4816 = vor.u32 %v4814, %v4815
      %v4817 = vshll.u32 2475754826, %v4811
      %v4818 = vshrl.u32 2131351028, %v4812
      %v4819 = vor.u32 %v4817, %v4818
      %v4820 = vshll.u32 2131351028, %v4811
      %v4821 = vshrl.u32 2102212464, %v4812
      %v4822 = vor.u32 %v4820, %v4821
      %v4823 = vshll.u32 2102212464, %v4811
      %v4824 = vshrl.u32 920167782, %v4812
      %v4825 = vor.u32 %v4823, %v4824
      %v4826 = vshll.u32 920167782, %v4811
      %v4827 = vshrl.u32 1326507024, %v4812
      %v4828 = vor.u32 %v4826, %v4827
      %vm4829 = vcmp.lt.s32.totalorder %v4810, 1
      %vm4830 = vcmp.lt.s32.totalorder %v4810, 2
      %vm4831 = vcmp.lt.s32.totalorder %v4810, 3
      %vm4832 = vcmp.lt.s32.totalorder %v4810, 4
      %v4833 = vsel %vm4829, %v4813, %v4816
      %v4834 = vsel %vm4832, %v4822, 2102212464
      %v4835 = vsel %vm4831, %v4819, %v4834
      %v4836 = vsel %vm4830, %v4833, %v4835
      %v4837 = vsel %vm4829, %v4816, %v4819
      %v4838 = vsel %vm4832, %v4825, 920167782
      %v4839 = vsel %vm4831, %v4822, %v4838
      %v4840 = vsel %vm4830, %v4837, %v4839
      %v4841 = vsel %vm4829, %v4819, %v4822
      %v4842 = vsel %vm4832, %v4828, 1326507024
      %v4843 = vsel %vm4831, %v4825, %v4842
      %v4844 = vsel %vm4830, %v4841, %v4843
      %v4845 = vshll.u32 %v4805, 8
      %v4846 = vand.u32 %v4845, 65535
      %v4847 = vshrl.u32 %v4845, 16
      %v4848 = vand.u32 %v4844, 65535
      %v4849 = vshrl.u32 %v4844, 16
      %v4850 = vmul.u32 %v4846, %v4848
      %v4851 = vmul.u32 %v4846, %v4849
      %v4852 = vmul.u32 %v4847, %v4848
      %v4853 = vmul.u32 %v4847, %v4849
      %v4854 = vshll.u32 %v4851, 16
      %v4855 = vshrl.u32 %v4851, 16
      %v4856 = vshll.u32 %v4852, 16
      %v4857 = vshrl.u32 %v4852, 16
      %vm4858 = vc.u32 %v4850, %v4854
      %v4859 = vsel %vm4858, 1, 0
      %v4860 = vadd.s32 %v4850, %v4854
      %v4861 = vadd.s32 %v4853, %v4859
      %vm4862 = vc.u32 %v4860, %v4856
      %v4863 = vsel %vm4862, 1, 0
      %v4864 = vadd.s32 %v4860, %v4856
      %v4865 = vadd.s32 %v4861, %v4863
      %v4866 = vadd.s32 %v4865, %v4855
      %v4867 = vadd.s32 %v4866, %v4857
      %v4868 = vand.u32 %v4845, 65535
      %v4869 = vshrl.u32 %v4845, 16
      %v4870 = vand.u32 %v4840, 65535
      %v4871 = vshrl.u32 %v4840, 16
      %v4872 = vmul.u32 %v4868, %v4870
      %v4873 = vmul.u32 %v4868, %v4871
      %v4874 = vmul.u32 %v4869, %v4870
      %v4875 = vmul.u32 %v4869, %v4871
      %v4876 = vshll.u32 %v4873, 16
      %v4877 = vshrl.u32 %v4873, 16
      %v4878 = vshll.u32 %v4874, 16
      %v4879 = vshrl.u32 %v4874, 16
      %vm4880 = vc.u32 %v4872, %v4876
      %v4881 = vsel %vm4880, 1, 0
      %v4882 = vadd.s32 %v4872, %v4876
      %v4883 = vadd.s32 %v4875, %v4881
      %vm4884 = vc.u32 %v4882, %v4878
      %v4885 = vsel %vm4884, 1, 0
      %v4886 = vadd.s32 %v4882, %v4878
      %v4887 = vadd.s32 %v4883, %v4885
      %v4888 = vadd.s32 %v4887, %v4877
      %v4889 = vadd.s32 %v4888, %v4879
      %v4890 = vmul.u32 %v4845, %v4836
      %v4891 = vadd.s32 %v4867, %v4886
      %vm4892 = vc.u32 %v4867, %v4886
      %v4893 = vadd.s32 %v4889, 1
      %v4894 = vsel %vm4892, %v4893, %v4889
      %v4895 = vadd.s32 %v4890, %v4894
      %v4896 = vadd.s32 %v4895, 536870912
      %v4897 = vshrl.u32 %v4896, 30
      %v4898 = vshll.u32 %v4897, 30
      %v4899 = vsub.s32 %v4895, %v4898
      %vm4900 = vcmp.lt.s32.totalorder %v4899, 0
      %v4901 = vsub.s32 0, %v4899
      %v4902 = vsel %vm4900, %v4901, %v4899
      %v4903 = vclz %v4902
      %v4904 = vsub.s32 %v4903, 2
      %vm4905 = vcmp.gt.s32.totalorder 0, %v4904
      %v4906 = vsel %vm4905, 0, %v4904
      %v4907 = vsub.s32 32, %v4906
      %v4908 = vshll.u32 %v4899, %v4906
      %v4909 = vshrl.u32 %v4891, %v4907
      %v4910 = vor.u32 %v4908, %v4909
      %v4911 = vsub.s32 4294967266, %v4906
      %v4912 = vadd.s32 %v4911, 127
      %v4913 = vshll.u32 %v4912, 23
      %v4914 = vor.u32 4788187, %v4913
      %v4915 = vand.u32 2147483647, %v4914
      %v4917 = vcvt.s32.f32 %v4910
      %v4918 = vmul.f32 %v4917, %v4915
      %v4919 = vxor.u32 %v4918, 2147483648
      %v4920 = vsel %vm4799, %v4919, %v4918
      %v4921 = vsub.s32 4, %v4897
      %v4922 = vsel %vm4799, %v4921, %v4897
      %v4923 = vsel %vm4798, %v3863, %v4920
      %v4924 = vsel %vm4798, 0, %v4922
      %v4925 = vmul.f32 %v4923, %v4923
      %v4926 = vmul.f32 %v4925, -0.001358992
      %v4927 = vadd.f32 %v4926, 0.041655596
      %v4928 = vmul.f32 %v4925, %v4927
      %v4929 = vadd.f32 %v4928, -0.4999988
      %v4930 = vmul.f32 %v4925, %v4929
      %v4931 = vadd.f32 1.0, %v4930
      %v4932 = vmul.f32 %v4923, %v4923
      %v4933 = vmul.f32 %v4932, -0.00019511016
      %v4934 = vadd.f32 %v4933, 0.008332121
      %v4935 = vmul.f32 %v4932, %v4934
      %v4936 = vadd.f32 %v4935, -0.16666654
      %v4937 = vmul.f32 %v4932, %v4936
      %v4938 = vadd.f32 %v4937, 1.0
      %v4939 = vmul.f32 %v4938, %v4923
      %vm4940 = vweird.f32 %v3863
      %v4941 = vand.u32 %v4924, 3
      %vm4942 = vcmp.lt.s32.totalorder %v4941, 2
      %vm4943 = vcmp.eq.s32.totalorder %v4941, 0
      %v4944 = vxor.u32 %v4939, 2147483648
      %v4945 = vsel %vm4943, %v4931, %v4944
      %vm4946 = vcmp.eq.s32.totalorder %v4941, 2
      %v4947 = vxor.u32 %v4931, 2147483648
      %v4948 = vsel %vm4946, %v4947, %v4939
      %v4949 = vsel %vm4942, %v4945, %v4948
      %v4950 = vsel %vm4940, nan, %v4949
      %v4951 = vand.u32 2147483647, %v3864
      %vm4952 = vcmp.le.f32.partialorder %v4951, 0.7853982
      %vm4953 = vcmp.lt.s32.totalorder %v3864, 0
      %v4954 = vand.u32 %v3864, 2139095040
      %v4955 = vshrl.u32 %v4954, 23
      %v4956 = vsub.s32 %v4955, 127
      %v4957 = vand.u32 2147483647, %v3864
      %v4958 = vand.u32 %v4957, 8388607
      %v4959 = vor.u32 %v4958, 8388608
      %v4960 = vsub.s32 0, %v4959
      %v4961 = vadd.s32 %v4956, 1
      %vm4962 = vcmp.gt.s32.totalorder %v4961, 0
      %v4963 = vsel %vm4962, %v4961, 0
      %v4964 = vshrl.u32 %v4963, 5
      %v4965 = vand.u32 %v4963, 31
      %v4966 = vsub.s32 32, %v4965
      %v4967 = vshrl.u32 683565275, %v4966
      %v4968 = vshll.u32 683565275, %v4965
      %v4969 = vshrl.u32 2475754826, %v4966
      %v4970 = vor.u32 %v4968, %v4969
      %v4971 = vshll.u32 2475754826, %v4965
      %v4972 = vshrl.u32 2131351028, %v4966
      %v4973 = vor.u32 %v4971, %v4972
      %v4974 = vshll.u32 2131351028, %v4965
      %v4975 = vshrl.u32 2102212464, %v4966
      %v4976 = vor.u32 %v4974, %v4975
      %v4977 = vshll.u32 2102212464, %v4965
      %v4978 = vshrl.u32 920167782, %v4966
      %v4979 = vor.u32 %v4977, %v4978
      %v4980 = vshll.u32 920167782, %v4965
      %v4981 = vshrl.u32 1326507024, %v4966
      %v4982 = vor.u32 %v4980, %v4981
      %vm4983 = vcmp.lt.s32.totalorder %v4964, 1
      %vm4984 = vcmp.lt.s32.totalorder %v4964, 2
      %vm4985 = vcmp.lt.s32.totalorder %v4964, 3
      %vm4986 = vcmp.lt.s32.totalorder %v4964, 4
      %v4987 = vsel %vm4983, %v4967, %v4970
      %v4988 = vsel %vm4986, %v4976, 2102212464
      %v4989 = vsel %vm4985, %v4973, %v4988
      %v4990 = vsel %vm4984, %v4987, %v4989
      %v4991 = vsel %vm4983, %v4970, %v4973
      %v4992 = vsel %vm4986, %v4979, 920167782
      %v4993 = vsel %vm4985, %v4976, %v4992
      %v4994 = vsel %vm4984, %v4991, %v4993
      %v4995 = vsel %vm4983, %v4973, %v4976
      %v4996 = vsel %vm4986, %v4982, 1326507024
      %v4997 = vsel %vm4985, %v4979, %v4996
      %v4998 = vsel %vm4984, %v4995, %v4997
      %v4999 = vshll.u32 %v4959, 8
      %v5000 = vand.u32 %v4999, 65535
      %v5001 = vshrl.u32 %v4999, 16
      %v5002 = vand.u32 %v4998, 65535
      %v5003 = vshrl.u32 %v4998, 16
      %v5004 = vmul.u32 %v5000, %v5002
      %v5005 = vmul.u32 %v5000, %v5003
      %v5006 = vmul.u32 %v5001, %v5002
      %v5007 = vmul.u32 %v5001, %v5003
      %v5008 = vshll.u32 %v5005, 16
      %v5009 = vshrl.u32 %v5005, 16
      %v5010 = vshll.u32 %v5006, 16
      %v5011 = vshrl.u32 %v5006, 16
      %vm5012 = vc.u32 %v5004, %v5008
      %v5013 = vsel %vm5012, 1, 0
      %v5014 = vadd.s32 %v5004, %v5008
      %v5015 = vadd.s32 %v5007, %v5013
      %vm5016 = vc.u32 %v5014, %v5010
      %v5017 = vsel %vm5016, 1, 0
      %v5018 = vadd.s32 %v5014, %v5010
      %v5019 = vadd.s32 %v5015, %v5017
      %v5020 = vadd.s32 %v5019, %v5009
      %v5021 = vadd.s32 %v5020, %v5011
      %v5022 = vand.u32 %v4999, 65535
      %v5023 = vshrl.u32 %v4999, 16
      %v5024 = vand.u32 %v4994, 65535
      %v5025 = vshrl.u32 %v4994, 16
      %v5026 = vmul.u32 %v5022, %v5024
      %v5027 = vmul.u32 %v5022, %v5025
      %v5028 = vmul.u32 %v5023, %v5024
      %v5029 = vmul.u32 %v5023, %v5025
      %v5030 = vshll.u32 %v5027, 16
      %v5031 = vshrl.u32 %v5027, 16
      %v5032 = vshll.u32 %v5028, 16
      %v5033 = vshrl.u32 %v5028, 16
      %vm5034 = vc.u32 %v5026, %v5030
      %v5035 = vsel %vm5034, 1, 0
      %v5036 = vadd.s32 %v5026, %v5030
      %v5037 = vadd.s32 %v5029, %v5035
      %vm5038 = vc.u32 %v5036, %v5032
      %v5039 = vsel %vm5038, 1, 0
      %v5040 = vadd.s32 %v5036, %v5032
      %v5041 = vadd.s32 %v5037, %v5039
      %v5042 = vadd.s32 %v5041, %v5031
      %v5043 = vadd.s32 %v5042, %v5033
      %v5044 = vmul.u32 %v4999, %v4990
      %v5045 = vadd.s32 %v5021, %v5040
      %vm5046 = vc.u32 %v5021, %v5040
      %v5047 = vadd.s32 %v5043, 1
      %v5048 = vsel %vm5046, %v5047, %v5043
      %v5049 = vadd.s32 %v5044, %v5048
      %v5050 = vadd.s32 %v5049, 536870912
      %v5051 = vshrl.u32 %v5050, 30
      %v5052 = vshll.u32 %v5051, 30
      %v5053 = vsub.s32 %v5049, %v5052
      %vm5054 = vcmp.lt.s32.totalorder %v5053, 0
      %v5055 = vsub.s32 0, %v5053
      %v5056 = vsel %vm5054, %v5055, %v5053
      %v5057 = vclz %v5056
      %v5058 = vsub.s32 %v5057, 2
      %vm5059 = vcmp.gt.s32.totalorder 0, %v5058
      %v5060 = vsel %vm5059, 0, %v5058
      %v5061 = vsub.s32 32, %v5060
      %v5062 = vshll.u32 %v5053, %v5060
      %v5063 = vshrl.u32 %v5045, %v5061
      %v5064 = vor.u32 %v5062, %v5063
      %v5065 = vsub.s32 4294967266, %v5060
      %v5066 = vadd.s32 %v5065, 127
      %v5067 = vshll.u32 %v5066, 23
      %v5068 = vor.u32 4788187, %v5067
      %v5069 = vand.u32 2147483647, %v5068
      %v5071 = vcvt.s32.f32 %v5064
      %v5072 = vmul.f32 %v5071, %v5069
      %v5073 = vxor.u32 %v5072, 2147483648
      %v5074 = vsel %vm4953, %v5073, %v5072
      %v5075 = vsub.s32 4, %v5051
      %v5076 = vsel %vm4953, %v5075, %v5051
      %v5077 = vsel %vm4952, %v3864, %v5074
      %v5078 = vsel %vm4952, 0, %v5076
      %v5079 = vmul.f32 %v5077, %v5077
      %v5080 = vmul.f32 %v5079, -0.001358992
      %v5081 = vadd.f32 %v5080, 0.041655596
      %v5082 = vmul.f32 %v5079, %v5081
      %v5083 = vadd.f32 %v5082, -0.4999988
      %v5084 = vmul.f32 %v5079, %v5083
      %v5085 = vadd.f32 1.0, %v5084
      %v5086 = vmul.f32 %v5077, %v5077
      %v5087 = vmul.f32 %v5086, -0.00019511016
      %v5088 = vadd.f32 %v5087, 0.008332121
      %v5089 = vmul.f32 %v5086, %v5088
      %v5090 = vadd.f32 %v5089, -0.16666654
      %v5091 = vmul.f32 %v5086, %v5090
      %v5092 = vadd.f32 %v5091, 1.0
      %v5093 = vmul.f32 %v5092, %v5077
      %vm5094 = vweird.f32 %v3864
      %v5095 = vand.u32 %v5078, 3
      %vm5096 = vcmp.lt.s32.totalorder %v5095, 2
      %vm5097 = vcmp.eq.s32.totalorder %v5095, 0
      %v5098 = vxor.u32 %v5093, 2147483648
      %v5099 = vsel %vm5097, %v5085, %v5098
      %vm5100 = vcmp.eq.s32.totalorder %v5095, 2
      %v5101 = vxor.u32 %v5085, 2147483648
      %v5102 = vsel %vm5100, %v5101, %v5093
      %v5103 = vsel %vm5096, %v5099, %v5102
      %v5104 = vsel %vm5094, nan, %v5103
      %v5105 = vand.u32 2147483647, %v3865
      %vm5106 = vcmp.le.f32.partialorder %v5105, 0.7853982
      %vm5107 = vcmp.lt.s32.totalorder %v3865, 0
      %v5108 = vand.u32 %v3865, 2139095040
      %v5109 = vshrl.u32 %v5108, 23
      %v5110 = vsub.s32 %v5109, 127
      %v5111 = vand.u32 2147483647, %v3865
      %v5112 = vand.u32 %v5111, 8388607
      %v5113 = vor.u32 %v5112, 8388608
      %v5114 = vsub.s32 0, %v5113
      %v5115 = vadd.s32 %v5110, 1
      %vm5116 = vcmp.gt.s32.totalorder %v5115, 0
      %v5117 = vsel %vm5116, %v5115, 0
      %v5118 = vshrl.u32 %v5117, 5
      %v5119 = vand.u32 %v5117, 31
      %v5120 = vsub.s32 32, %v5119
      %v5121 = vshrl.u32 683565275, %v5120
      %v5122 = vshll.u32 683565275, %v5119
      %v5123 = vshrl.u32 2475754826, %v5120
      %v5124 = vor.u32 %v5122, %v5123
      %v5125 = vshll.u32 2475754826, %v5119
      %v5126 = vshrl.u32 2131351028, %v5120
      %v5127 = vor.u32 %v5125, %v5126
      %v5128 = vshll.u32 2131351028, %v5119
      %v5129 = vshrl.u32 2102212464, %v5120
      %v5130 = vor.u32 %v5128, %v5129
      %v5131 = vshll.u32 2102212464, %v5119
      %v5132 = vshrl.u32 920167782, %v5120
      %v5133 = vor.u32 %v5131, %v5132
      %v5134 = vshll.u32 920167782, %v5119
      %v5135 = vshrl.u32 1326507024, %v5120
      %v5136 = vor.u32 %v5134, %v5135
      %vm5137 = vcmp.lt.s32.totalorder %v5118, 1
      %vm5138 = vcmp.lt.s32.totalorder %v5118, 2
      %vm5139 = vcmp.lt.s32.totalorder %v5118, 3
      %vm5140 = vcmp.lt.s32.totalorder %v5118, 4
      %v5141 = vsel %vm5137, %v5121, %v5124
      %v5142 = vsel %vm5140, %v5130, 2102212464
      %v5143 = vsel %vm5139, %v5127, %v5142
      %v5144 = vsel %vm5138, %v5141, %v5143
      %v5145 = vsel %vm5137, %v5124, %v5127
      %v5146 = vsel %vm5140, %v5133, 920167782
      %v5147 = vsel %vm5139, %v5130, %v5146
      %v5148 = vsel %vm5138, %v5145, %v5147
      %v5149 = vsel %vm5137, %v5127, %v5130
      %v5150 = vsel %vm5140, %v5136, 1326507024
      %v5151 = vsel %vm5139, %v5133, %v5150
      %v5152 = vsel %vm5138, %v5149, %v5151
      %v5153 = vshll.u32 %v5113, 8
      %v5154 = vand.u32 %v5153, 65535
      %v5155 = vshrl.u32 %v5153, 16
      %v5156 = vand.u32 %v5152, 65535
      %v5157 = vshrl.u32 %v5152, 16
      %v5158 = vmul.u32 %v5154, %v5156
      %v5159 = vmul.u32 %v5154, %v5157
      %v5160 = vmul.u32 %v5155, %v5156
      %v5161 = vmul.u32 %v5155, %v5157
      %v5162 = vshll.u32 %v5159, 16
      %v5163 = vshrl.u32 %v5159, 16
      %v5164 = vshll.u32 %v5160, 16
      %v5165 = vshrl.u32 %v5160, 16
      %vm5166 = vc.u32 %v5158, %v5162
      %v5167 = vsel %vm5166, 1, 0
      %v5168 = vadd.s32 %v5158, %v5162
      %v5169 = vadd.s32 %v5161, %v5167
      %vm5170 = vc.u32 %v5168, %v5164
      %v5171 = vsel %vm5170, 1, 0
      %v5172 = vadd.s32 %v5168, %v5164
      %v5173 = vadd.s32 %v5169, %v5171
      %v5174 = vadd.s32 %v5173, %v5163
      %v5175 = vadd.s32 %v5174, %v5165
      %v5176 = vand.u32 %v5153, 65535
      %v5177 = vshrl.u32 %v5153, 16
      %v5178 = vand.u32 %v5148, 65535
      %v5179 = vshrl.u32 %v5148, 16
      %v5180 = vmul.u32 %v5176, %v5178
      %v5181 = vmul.u32 %v5176, %v5179
      %v5182 = vmul.u32 %v5177, %v5178
      %v5183 = vmul.u32 %v5177, %v5179
      %v5184 = vshll.u32 %v5181, 16
      %v5185 = vshrl.u32 %v5181, 16
      %v5186 = vshll.u32 %v5182, 16
      %v5187 = vshrl.u32 %v5182, 16
      %vm5188 = vc.u32 %v5180, %v5184
      %v5189 = vsel %vm5188, 1, 0
      %v5190 = vadd.s32 %v5180, %v5184
      %v5191 = vadd.s32 %v5183, %v5189
      %vm5192 = vc.u32 %v5190, %v5186
      %v5193 = vsel %vm5192, 1, 0
      %v5194 = vadd.s32 %v5190, %v5186
      %v5195 = vadd.s32 %v5191, %v5193
      %v5196 = vadd.s32 %v5195, %v5185
      %v5197 = vadd.s32 %v5196, %v5187
      %v5198 = vmul.u32 %v5153, %v5144
      %v5199 = vadd.s32 %v5175, %v5194
      %vm5200 = vc.u32 %v5175, %v5194
      %v5201 = vadd.s32 %v5197, 1
      %v5202 = vsel %vm5200, %v5201, %v5197
      %v5203 = vadd.s32 %v5198, %v5202
      %v5204 = vadd.s32 %v5203, 536870912
      %v5205 = vshrl.u32 %v5204, 30
      %v5206 = vshll.u32 %v5205, 30
      %v5207 = vsub.s32 %v5203, %v5206
      %vm5208 = vcmp.lt.s32.totalorder %v5207, 0
      %v5209 = vsub.s32 0, %v5207
      %v5210 = vsel %vm5208, %v5209, %v5207
      %v5211 = vclz %v5210
      %v5212 = vsub.s32 %v5211, 2
      %vm5213 = vcmp.gt.s32.totalorder 0, %v5212
      %v5214 = vsel %vm5213, 0, %v5212
      %v5215 = vsub.s32 32, %v5214
      %v5216 = vshll.u32 %v5207, %v5214
      %v5217 = vshrl.u32 %v5199, %v5215
      %v5218 = vor.u32 %v5216, %v5217
      %v5219 = vsub.s32 4294967266, %v5214
      %v5220 = vadd.s32 %v5219, 127
      %v5221 = vshll.u32 %v5220, 23
      %v5222 = vor.u32 4788187, %v5221
      %v5223 = vand.u32 2147483647, %v5222
      %v5225 = vcvt.s32.f32 %v5218
      %v5226 = vmul.f32 %v5225, %v5223
      %v5227 = vxor.u32 %v5226, 2147483648
      %v5228 = vsel %vm5107, %v5227, %v5226
      %v5229 = vsub.s32 4, %v5205
      %v5230 = vsel %vm5107, %v5229, %v5205
      %v5231 = vsel %vm5106, %v3865, %v5228
      %v5232 = vsel %vm5106, 0, %v5230
      %v5233 = vmul.f32 %v5231, %v5231
      %v5234 = vmul.f32 %v5233, -0.001358992
      %v5235 = vadd.f32 %v5234, 0.041655596
      %v5236 = vmul.f32 %v5233, %v5235
      %v5237 = vadd.f32 %v5236, -0.4999988
      %v5238 = vmul.f32 %v5233, %v5237
      %v5239 = vadd.f32 1.0, %v5238
      %v5240 = vmul.f32 %v5231, %v5231
      %v5241 = vmul.f32 %v5240, -0.00019511016
      %v5242 = vadd.f32 %v5241, 0.008332121
      %v5243 = vmul.f32 %v5240, %v5242
      %v5244 = vadd.f32 %v5243, -0.16666654
      %v5245 = vmul.f32 %v5240, %v5244
      %v5246 = vadd.f32 %v5245, 1.0
      %v5247 = vmul.f32 %v5246, %v5231
      %vm5248 = vweird.f32 %v3865
      %v5249 = vand.u32 %v5232, 3
      %vm5250 = vcmp.lt.s32.totalorder %v5249, 2
      %vm5251 = vcmp.eq.s32.totalorder %v5249, 0
      %v5252 = vxor.u32 %v5247, 2147483648
      %v5253 = vsel %vm5251, %v5239, %v5252
      %vm5254 = vcmp.eq.s32.totalorder %v5249, 2
      %v5255 = vxor.u32 %v5239, 2147483648
      %v5256 = vsel %vm5254, %v5255, %v5247
      %v5257 = vsel %vm5250, %v5253, %v5256
      %v5258 = vsel %vm5248, nan, %v5257
      %v5259 = vand.u32 2147483647, %v3866
      %vm5260 = vcmp.le.f32.partialorder %v5259, 0.7853982
      %vm5261 = vcmp.lt.s32.totalorder %v3866, 0
      %v5262 = vand.u32 %v3866, 2139095040
      %v5263 = vshrl.u32 %v5262, 23
      %v5264 = vsub.s32 %v5263, 127
      %v5265 = vand.u32 2147483647, %v3866
      %v5266 = vand.u32 %v5265, 8388607
      %v5267 = vor.u32 %v5266, 8388608
      %v5268 = vsub.s32 0, %v5267
      %v5269 = vadd.s32 %v5264, 1
      %vm5270 = vcmp.gt.s32.totalorder %v5269, 0
      %v5271 = vsel %vm5270, %v5269, 0
      %v5272 = vshrl.u32 %v5271, 5
      %v5273 = vand.u32 %v5271, 31
      %v5274 = vsub.s32 32, %v5273
      %v5275 = vshrl.u32 683565275, %v5274
      %v5276 = vshll.u32 683565275, %v5273
      %v5277 = vshrl.u32 2475754826, %v5274
      %v5278 = vor.u32 %v5276, %v5277
      %v5279 = vshll.u32 2475754826, %v5273
      %v5280 = vshrl.u32 2131351028, %v5274
      %v5281 = vor.u32 %v5279, %v5280
      %v5282 = vshll.u32 2131351028, %v5273
      %v5283 = vshrl.u32 2102212464, %v5274
      %v5284 = vor.u32 %v5282, %v5283
      %v5285 = vshll.u32 2102212464, %v5273
      %v5286 = vshrl.u32 920167782, %v5274
      %v5287 = vor.u32 %v5285, %v5286
      %v5288 = vshll.u32 920167782, %v5273
      %v5289 = vshrl.u32 1326507024, %v5274
      %v5290 = vor.u32 %v5288, %v5289
      %vm5291 = vcmp.lt.s32.totalorder %v5272, 1
      %vm5292 = vcmp.lt.s32.totalorder %v5272, 2
      %vm5293 = vcmp.lt.s32.totalorder %v5272, 3
      %vm5294 = vcmp.lt.s32.totalorder %v5272, 4
      %v5295 = vsel %vm5291, %v5275, %v5278
      %v5296 = vsel %vm5294, %v5284, 2102212464
      %v5297 = vsel %vm5293, %v5281, %v5296
      %v5298 = vsel %vm5292, %v5295, %v5297
      %v5299 = vsel %vm5291, %v5278, %v5281
      %v5300 = vsel %vm5294, %v5287, 920167782
      %v5301 = vsel %vm5293, %v5284, %v5300
      %v5302 = vsel %vm5292, %v5299, %v5301
      %v5303 = vsel %vm5291, %v5281, %v5284
      %v5304 = vsel %vm5294, %v5290, 1326507024
      %v5305 = vsel %vm5293, %v5287, %v5304
      %v5306 = vsel %vm5292, %v5303, %v5305
      %v5307 = vshll.u32 %v5267, 8
      %v5308 = vand.u32 %v5307, 65535
      %v5309 = vshrl.u32 %v5307, 16
      %v5310 = vand.u32 %v5306, 65535
      %v5311 = vshrl.u32 %v5306, 16
      %v5312 = vmul.u32 %v5308, %v5310
      %v5313 = vmul.u32 %v5308, %v5311
      %v5314 = vmul.u32 %v5309, %v5310
      %v5315 = vmul.u32 %v5309, %v5311
      %v5316 = vshll.u32 %v5313, 16
      %v5317 = vshrl.u32 %v5313, 16
      %v5318 = vshll.u32 %v5314, 16
      %v5319 = vshrl.u32 %v5314, 16
      %vm5320 = vc.u32 %v5312, %v5316
      %v5321 = vsel %vm5320, 1, 0
      %v5322 = vadd.s32 %v5312, %v5316
      %v5323 = vadd.s32 %v5315, %v5321
      %vm5324 = vc.u32 %v5322, %v5318
      %v5325 = vsel %vm5324, 1, 0
      %v5326 = vadd.s32 %v5322, %v5318
      %v5327 = vadd.s32 %v5323, %v5325
      %v5328 = vadd.s32 %v5327, %v5317
      %v5329 = vadd.s32 %v5328, %v5319
      %v5330 = vand.u32 %v5307, 65535
      %v5331 = vshrl.u32 %v5307, 16
      %v5332 = vand.u32 %v5302, 65535
      %v5333 = vshrl.u32 %v5302, 16
      %v5334 = vmul.u32 %v5330, %v5332
      %v5335 = vmul.u32 %v5330, %v5333
      %v5336 = vmul.u32 %v5331, %v5332
      %v5337 = vmul.u32 %v5331, %v5333
      %v5338 = vshll.u32 %v5335, 16
      %v5339 = vshrl.u32 %v5335, 16
      %v5340 = vshll.u32 %v5336, 16
      %v5341 = vshrl.u32 %v5336, 16
      %vm5342 = vc.u32 %v5334, %v5338
      %v5343 = vsel %vm5342, 1, 0
      %v5344 = vadd.s32 %v5334, %v5338
      %v5345 = vadd.s32 %v5337, %v5343
      %vm5346 = vc.u32 %v5344, %v5340
      %v5347 = vsel %vm5346, 1, 0
      %v5348 = vadd.s32 %v5344, %v5340
      %v5349 = vadd.s32 %v5345, %v5347
      %v5350 = vadd.s32 %v5349, %v5339
      %v5351 = vadd.s32 %v5350, %v5341
      %v5352 = vmul.u32 %v5307, %v5298
      %v5353 = vadd.s32 %v5329, %v5348
      %vm5354 = vc.u32 %v5329, %v5348
      %v5355 = vadd.s32 %v5351, 1
      %v5356 = vsel %vm5354, %v5355, %v5351
      %v5357 = vadd.s32 %v5352, %v5356
      %v5358 = vadd.s32 %v5357, 536870912
      %v5359 = vshrl.u32 %v5358, 30
      %v5360 = vshll.u32 %v5359, 30
      %v5361 = vsub.s32 %v5357, %v5360
      %vm5362 = vcmp.lt.s32.totalorder %v5361, 0
      %v5363 = vsub.s32 0, %v5361
      %v5364 = vsel %vm5362, %v5363, %v5361
      %v5365 = vclz %v5364
      %v5366 = vsub.s32 %v5365, 2
      %vm5367 = vcmp.gt.s32.totalorder 0, %v5366
      %v5368 = vsel %vm5367, 0, %v5366
      %v5369 = vsub.s32 32, %v5368
      %v5370 = vshll.u32 %v5361, %v5368
      %v5371 = vshrl.u32 %v5353, %v5369
      %v5372 = vor.u32 %v5370, %v5371
      %v5373 = vsub.s32 4294967266, %v5368
      %v5374 = vadd.s32 %v5373, 127
      %v5375 = vshll.u32 %v5374, 23
      %v5376 = vor.u32 4788187, %v5375
      %v5377 = vand.u32 2147483647, %v5376
      %v5379 = vcvt.s32.f32 %v5372
      %v5380 = vmul.f32 %v5379, %v5377
      %v5381 = vxor.u32 %v5380, 2147483648
      %v5382 = vsel %vm5261, %v5381, %v5380
      %v5383 = vsub.s32 4, %v5359
      %v5384 = vsel %vm5261, %v5383, %v5359
      %v5385 = vsel %vm5260, %v3866, %v5382
      %v5386 = vsel %vm5260, 0, %v5384
      %v5387 = vmul.f32 %v5385, %v5385
      %v5388 = vmul.f32 %v5387, -0.001358992
      %v5389 = vadd.f32 %v5388, 0.041655596
      %v5390 = vmul.f32 %v5387, %v5389
      %v5391 = vadd.f32 %v5390, -0.4999988
      %v5392 = vmul.f32 %v5387, %v5391
      %v5393 = vadd.f32 1.0, %v5392
      %v5394 = vmul.f32 %v5385, %v5385
      %v5395 = vmul.f32 %v5394, -0.00019511016
      %v5396 = vadd.f32 %v5395, 0.008332121
      %v5397 = vmul.f32 %v5394, %v5396
      %v5398 = vadd.f32 %v5397, -0.16666654
      %v5399 = vmul.f32 %v5394, %v5398
      %v5400 = vadd.f32 %v5399, 1.0
      %v5401 = vmul.f32 %v5400, %v5385
      %vm5402 = vweird.f32 %v3866
      %v5403 = vand.u32 %v5386, 3
      %vm5404 = vcmp.lt.s32.totalorder %v5403, 2
      %vm5405 = vcmp.eq.s32.totalorder %v5403, 0
      %v5406 = vxor.u32 %v5401, 2147483648
      %v5407 = vsel %vm5405, %v5393, %v5406
      %vm5408 = vcmp.eq.s32.totalorder %v5403, 2
      %v5409 = vxor.u32 %v5393, 2147483648
      %v5410 = vsel %vm5408, %v5409, %v5401
      %v5411 = vsel %vm5404, %v5407, %v5410
      %v5412 = vsel %vm5402, nan, %v5411
      %v5413 = vand.u32 2147483647, %v3867
      %vm5414 = vcmp.le.f32.partialorder %v5413, 0.7853982
      %vm5415 = vcmp.lt.s32.totalorder %v3867, 0
      %v5416 = vand.u32 %v3867, 2139095040
      %v5417 = vshrl.u32 %v5416, 23
      %v5418 = vsub.s32 %v5417, 127
      %v5419 = vand.u32 2147483647, %v3867
      %v5420 = vand.u32 %v5419, 8388607
      %v5421 = vor.u32 %v5420, 8388608
      %v5422 = vsub.s32 0, %v5421
      %v5423 = vadd.s32 %v5418, 1
      %vm5424 = vcmp.gt.s32.totalorder %v5423, 0
      %v5425 = vsel %vm5424, %v5423, 0
      %v5426 = vshrl.u32 %v5425, 5
      %v5427 = vand.u32 %v5425, 31
      %v5428 = vsub.s32 32, %v5427
      %v5429 = vshrl.u32 683565275, %v5428
      %v5430 = vshll.u32 683565275, %v5427
      %v5431 = vshrl.u32 2475754826, %v5428
      %v5432 = vor.u32 %v5430, %v5431
      %v5433 = vshll.u32 2475754826, %v5427
      %v5434 = vshrl.u32 2131351028, %v5428
      %v5435 = vor.u32 %v5433, %v5434
      %v5436 = vshll.u32 2131351028, %v5427
      %v5437 = vshrl.u32 2102212464, %v5428
      %v5438 = vor.u32 %v5436, %v5437
      %v5439 = vshll.u32 2102212464, %v5427
      %v5440 = vshrl.u32 920167782, %v5428
      %v5441 = vor.u32 %v5439, %v5440
      %v5442 = vshll.u32 920167782, %v5427
      %v5443 = vshrl.u32 1326507024, %v5428
      %v5444 = vor.u32 %v5442, %v5443
      %vm5445 = vcmp.lt.s32.totalorder %v5426, 1
      %vm5446 = vcmp.lt.s32.totalorder %v5426, 2
      %vm5447 = vcmp.lt.s32.totalorder %v5426, 3
      %vm5448 = vcmp.lt.s32.totalorder %v5426, 4
      %v5449 = vsel %vm5445, %v5429, %v5432
      %v5450 = vsel %vm5448, %v5438, 2102212464
      %v5451 = vsel %vm5447, %v5435, %v5450
      %v5452 = vsel %vm5446, %v5449, %v5451
      %v5453 = vsel %vm5445, %v5432, %v5435
      %v5454 = vsel %vm5448, %v5441, 920167782
      %v5455 = vsel %vm5447, %v5438, %v5454
      %v5456 = vsel %vm5446, %v5453, %v5455
      %v5457 = vsel %vm5445, %v5435, %v5438
      %v5458 = vsel %vm5448, %v5444, 1326507024
      %v5459 = vsel %vm5447, %v5441, %v5458
      %v5460 = vsel %vm5446, %v5457, %v5459
      %v5461 = vshll.u32 %v5421, 8
      %v5462 = vand.u32 %v5461, 65535
      %v5463 = vshrl.u32 %v5461, 16
      %v5464 = vand.u32 %v5460, 65535
      %v5465 = vshrl.u32 %v5460, 16
      %v5466 = vmul.u32 %v5462, %v5464
      %v5467 = vmul.u32 %v5462, %v5465
      %v5468 = vmul.u32 %v5463, %v5464
      %v5469 = vmul.u32 %v5463, %v5465
      %v5470 = vshll.u32 %v5467, 16
      %v5471 = vshrl.u32 %v5467, 16
      %v5472 = vshll.u32 %v5468, 16
      %v5473 = vshrl.u32 %v5468, 16
      %vm5474 = vc.u32 %v5466, %v5470
      %v5475 = vsel %vm5474, 1, 0
      %v5476 = vadd.s32 %v5466, %v5470
      %v5477 = vadd.s32 %v5469, %v5475
      %vm5478 = vc.u32 %v5476, %v5472
      %v5479 = vsel %vm5478, 1, 0
      %v5480 = vadd.s32 %v5476, %v5472
      %v5481 = vadd.s32 %v5477, %v5479
      %v5482 = vadd.s32 %v5481, %v5471
      %v5483 = vadd.s32 %v5482, %v5473
      %v5484 = vand.u32 %v5461, 65535
      %v5485 = vshrl.u32 %v5461, 16
      %v5486 = vand.u32 %v5456, 65535
      %v5487 = vshrl.u32 %v5456, 16
      %v5488 = vmul.u32 %v5484, %v5486
      %v5489 = vmul.u32 %v5484, %v5487
      %v5490 = vmul.u32 %v5485, %v5486
      %v5491 = vmul.u32 %v5485, %v5487
      %v5492 = vshll.u32 %v5489, 16
      %v5493 = vshrl.u32 %v5489, 16
      %v5494 = vshll.u32 %v5490, 16
      %v5495 = vshrl.u32 %v5490, 16
      %vm5496 = vc.u32 %v5488, %v5492
      %v5497 = vsel %vm5496, 1, 0
      %v5498 = vadd.s32 %v5488, %v5492
      %v5499 = vadd.s32 %v5491, %v5497
      %vm5500 = vc.u32 %v5498, %v5494
      %v5501 = vsel %vm5500, 1, 0
      %v5502 = vadd.s32 %v5498, %v5494
      %v5503 = vadd.s32 %v5499, %v5501
      %v5504 = vadd.s32 %v5503, %v5493
      %v5505 = vadd.s32 %v5504, %v5495
      %v5506 = vmul.u32 %v5461, %v5452
      %v5507 = vadd.s32 %v5483, %v5502
      %vm5508 = vc.u32 %v5483, %v5502
      %v5509 = vadd.s32 %v5505, 1
      %v5510 = vsel %vm5508, %v5509, %v5505
      %v5511 = vadd.s32 %v5506, %v5510
      %v5512 = vadd.s32 %v5511, 536870912
      %v5513 = vshrl.u32 %v5512, 30
      %v5514 = vshll.u32 %v5513, 30
      %v5515 = vsub.s32 %v5511, %v5514
      %vm5516 = vcmp.lt.s32.totalorder %v5515, 0
      %v5517 = vsub.s32 0, %v5515
      %v5518 = vsel %vm5516, %v5517, %v5515
      %v5519 = vclz %v5518
      %v5520 = vsub.s32 %v5519, 2
      %vm5521 = vcmp.gt.s32.totalorder 0, %v5520
      %v5522 = vsel %vm5521, 0, %v5520
      %v5523 = vsub.s32 32, %v5522
      %v5524 = vshll.u32 %v5515, %v5522
      %v5525 = vshrl.u32 %v5507, %v5523
      %v5526 = vor.u32 %v5524, %v5525
      %v5527 = vsub.s32 4294967266, %v5522
      %v5528 = vadd.s32 %v5527, 127
      %v5529 = vshll.u32 %v5528, 23
      %v5530 = vor.u32 4788187, %v5529
      %v5531 = vand.u32 2147483647, %v5530
      %v5533 = vcvt.s32.f32 %v5526
      %v5534 = vmul.f32 %v5533, %v5531
      %v5535 = vxor.u32 %v5534, 2147483648
      %v5536 = vsel %vm5415, %v5535, %v5534
      %v5537 = vsub.s32 4, %v5513
      %v5538 = vsel %vm5415, %v5537, %v5513
      %v5539 = vsel %vm5414, %v3867, %v5536
      %v5540 = vsel %vm5414, 0, %v5538
      %v5541 = vmul.f32 %v5539, %v5539
      %v5542 = vmul.f32 %v5541, -0.001358992
      %v5543 = vadd.f32 %v5542, 0.041655596
      %v5544 = vmul.f32 %v5541, %v5543
      %v5545 = vadd.f32 %v5544, -0.4999988
      %v5546 = vmul.f32 %v5541, %v5545
      %v5547 = vadd.f32 1.0, %v5546
      %v5548 = vmul.f32 %v5539, %v5539
      %v5549 = vmul.f32 %v5548, -0.00019511016
      %v5550 = vadd.f32 %v5549, 0.008332121
      %v5551 = vmul.f32 %v5548, %v5550
      %v5552 = vadd.f32 %v5551, -0.16666654
      %v5553 = vmul.f32 %v5548, %v5552
      %v5554 = vadd.f32 %v5553, 1.0
      %v5555 = vmul.f32 %v5554, %v5539
      %vm5556 = vweird.f32 %v3867
      %v5557 = vand.u32 %v5540, 3
      %vm5558 = vcmp.lt.s32.totalorder %v5557, 2
      %vm5559 = vcmp.eq.s32.totalorder %v5557, 0
      %v5560 = vxor.u32 %v5555, 2147483648
      %v5561 = vsel %vm5559, %v5547, %v5560
      %vm5562 = vcmp.eq.s32.totalorder %v5557, 2
      %v5563 = vxor.u32 %v5547, 2147483648
      %v5564 = vsel %vm5562, %v5563, %v5555
      %v5565 = vsel %vm5558, %v5561, %v5564
      %v5566 = vsel %vm5556, nan, %v5565
      %v5567 = vand.u32 2147483647, %v3868
      %vm5568 = vcmp.le.f32.partialorder %v5567, 0.7853982
      %vm5569 = vcmp.lt.s32.totalorder %v3868, 0
      %v5570 = vand.u32 %v3868, 2139095040
      %v5571 = vshrl.u32 %v5570, 23
      %v5572 = vsub.s32 %v5571, 127
      %v5573 = vand.u32 2147483647, %v3868
      %v5574 = vand.u32 %v5573, 8388607
      %v5575 = vor.u32 %v5574, 8388608
      %v5576 = vsub.s32 0, %v5575
      %v5577 = vadd.s32 %v5572, 1
      %vm5578 = vcmp.gt.s32.totalorder %v5577, 0
      %v5579 = vsel %vm5578, %v5577, 0
      %v5580 = vshrl.u32 %v5579, 5
      %v5581 = vand.u32 %v5579, 31
      %v5582 = vsub.s32 32, %v5581
      %v5583 = vshrl.u32 683565275, %v5582
      %v5584 = vshll.u32 683565275, %v5581
      %v5585 = vshrl.u32 2475754826, %v5582
      %v5586 = vor.u32 %v5584, %v5585
      %v5587 = vshll.u32 2475754826, %v5581
      %v5588 = vshrl.u32 2131351028, %v5582
      %v5589 = vor.u32 %v5587, %v5588
      %v5590 = vshll.u32 2131351028, %v5581
      %v5591 = vshrl.u32 2102212464, %v5582
      %v5592 = vor.u32 %v5590, %v5591
      %v5593 = vshll.u32 2102212464, %v5581
      %v5594 = vshrl.u32 920167782, %v5582
      %v5595 = vor.u32 %v5593, %v5594
      %v5596 = vshll.u32 920167782, %v5581
      %v5597 = vshrl.u32 1326507024, %v5582
      %v5598 = vor.u32 %v5596, %v5597
      %vm5599 = vcmp.lt.s32.totalorder %v5580, 1
      %vm5600 = vcmp.lt.s32.totalorder %v5580, 2
      %vm5601 = vcmp.lt.s32.totalorder %v5580, 3
      %vm5602 = vcmp.lt.s32.totalorder %v5580, 4
      %v5603 = vsel %vm5599, %v5583, %v5586
      %v5604 = vsel %vm5602, %v5592, 2102212464
      %v5605 = vsel %vm5601, %v5589, %v5604
      %v5606 = vsel %vm5600, %v5603, %v5605
      %v5607 = vsel %vm5599, %v5586, %v5589
      %v5608 = vsel %vm5602, %v5595, 920167782
      %v5609 = vsel %vm5601, %v5592, %v5608
      %v5610 = vsel %vm5600, %v5607, %v5609
      %v5611 = vsel %vm5599, %v5589, %v5592
      %v5612 = vsel %vm5602, %v5598, 1326507024
      %v5613 = vsel %vm5601, %v5595, %v5612
      %v5614 = vsel %vm5600, %v5611, %v5613
      %v5615 = vshll.u32 %v5575, 8
      %v5616 = vand.u32 %v5615, 65535
      %v5617 = vshrl.u32 %v5615, 16
      %v5618 = vand.u32 %v5614, 65535
      %v5619 = vshrl.u32 %v5614, 16
      %v5620 = vmul.u32 %v5616, %v5618
      %v5621 = vmul.u32 %v5616, %v5619
      %v5622 = vmul.u32 %v5617, %v5618
      %v5623 = vmul.u32 %v5617, %v5619
      %v5624 = vshll.u32 %v5621, 16
      %v5625 = vshrl.u32 %v5621, 16
      %v5626 = vshll.u32 %v5622, 16
      %v5627 = vshrl.u32 %v5622, 16
      %vm5628 = vc.u32 %v5620, %v5624
      %v5629 = vsel %vm5628, 1, 0
      %v5630 = vadd.s32 %v5620, %v5624
      %v5631 = vadd.s32 %v5623, %v5629
      %vm5632 = vc.u32 %v5630, %v5626
      %v5633 = vsel %vm5632, 1, 0
      %v5634 = vadd.s32 %v5630, %v5626
      %v5635 = vadd.s32 %v5631, %v5633
      %v5636 = vadd.s32 %v5635, %v5625
      %v5637 = vadd.s32 %v5636, %v5627
      %v5638 = vand.u32 %v5615, 65535
      %v5639 = vshrl.u32 %v5615, 16
      %v5640 = vand.u32 %v5610, 65535
      %v5641 = vshrl.u32 %v5610, 16
      %v5642 = vmul.u32 %v5638, %v5640
      %v5643 = vmul.u32 %v5638, %v5641
      %v5644 = vmul.u32 %v5639, %v5640
      %v5645 = vmul.u32 %v5639, %v5641
      %v5646 = vshll.u32 %v5643, 16
      %v5647 = vshrl.u32 %v5643, 16
      %v5648 = vshll.u32 %v5644, 16
      %v5649 = vshrl.u32 %v5644, 16
      %vm5650 = vc.u32 %v5642, %v5646
      %v5651 = vsel %vm5650, 1, 0
      %v5652 = vadd.s32 %v5642, %v5646
      %v5653 = vadd.s32 %v5645, %v5651
      %vm5654 = vc.u32 %v5652, %v5648
      %v5655 = vsel %vm5654, 1, 0
      %v5656 = vadd.s32 %v5652, %v5648
      %v5657 = vadd.s32 %v5653, %v5655
      %v5658 = vadd.s32 %v5657, %v5647
      %v5659 = vadd.s32 %v5658, %v5649
      %v5660 = vmul.u32 %v5615, %v5606
      %v5661 = vadd.s32 %v5637, %v5656
      %vm5662 = vc.u32 %v5637, %v5656
      %v5663 = vadd.s32 %v5659, 1
      %v5664 = vsel %vm5662, %v5663, %v5659
      %v5665 = vadd.s32 %v5660, %v5664
      %v5666 = vadd.s32 %v5665, 536870912
      %v5667 = vshrl.u32 %v5666, 30
      %v5668 = vshll.u32 %v5667, 30
      %v5669 = vsub.s32 %v5665, %v5668
      %vm5670 = vcmp.lt.s32.totalorder %v5669, 0
      %v5671 = vsub.s32 0, %v5669
      %v5672 = vsel %vm5670, %v5671, %v5669
      %v5673 = vclz %v5672
      %v5674 = vsub.s32 %v5673, 2
      %vm5675 = vcmp.gt.s32.totalorder 0, %v5674
      %v5676 = vsel %vm5675, 0, %v5674
      %v5677 = vsub.s32 32, %v5676
      %v5678 = vshll.u32 %v5669, %v5676
      %v5679 = vshrl.u32 %v5661, %v5677
      %v5680 = vor.u32 %v5678, %v5679
      %v5681 = vsub.s32 4294967266, %v5676
      %v5682 = vadd.s32 %v5681, 127
      %v5683 = vshll.u32 %v5682, 23
      %v5684 = vor.u32 4788187, %v5683
      %v5685 = vand.u32 2147483647, %v5684
      %v5687 = vcvt.s32.f32 %v5680
      %v5688 = vmul.f32 %v5687, %v5685
      %v5689 = vxor.u32 %v5688, 2147483648
      %v5690 = vsel %vm5569, %v5689, %v5688
      %v5691 = vsub.s32 4, %v5667
      %v5692 = vsel %vm5569, %v5691, %v5667
      %v5693 = vsel %vm5568, %v3868, %v5690
      %v5694 = vsel %vm5568, 0, %v5692
      %v5695 = vmul.f32 %v5693, %v5693
      %v5696 = vmul.f32 %v5695, -0.001358992
      %v5697 = vadd.f32 %v5696, 0.041655596
      %v5698 = vmul.f32 %v5695, %v5697
      %v5699 = vadd.f32 %v5698, -0.4999988
      %v5700 = vmul.f32 %v5695, %v5699
      %v5701 = vadd.f32 1.0, %v5700
      %v5702 = vmul.f32 %v5693, %v5693
      %v5703 = vmul.f32 %v5702, -0.00019511016
      %v5704 = vadd.f32 %v5703, 0.008332121
      %v5705 = vmul.f32 %v5702, %v5704
      %v5706 = vadd.f32 %v5705, -0.16666654
      %v5707 = vmul.f32 %v5702, %v5706
      %v5708 = vadd.f32 %v5707, 1.0
      %v5709 = vmul.f32 %v5708, %v5693
      %vm5710 = vweird.f32 %v3868
      %v5711 = vand.u32 %v5694, 3
      %vm5712 = vcmp.lt.s32.totalorder %v5711, 2
      %vm5713 = vcmp.eq.s32.totalorder %v5711, 0
      %v5714 = vxor.u32 %v5709, 2147483648
      %v5715 = vsel %vm5713, %v5701, %v5714
      %vm5716 = vcmp.eq.s32.totalorder %v5711, 2
      %v5717 = vxor.u32 %v5701, 2147483648
      %v5718 = vsel %vm5716, %v5717, %v5709
      %v5719 = vsel %vm5712, %v5715, %v5718
      %v5720 = vsel %vm5710, nan, %v5719
      %v5721 = vand.u32 2147483647, %v3869
      %vm5722 = vcmp.le.f32.partialorder %v5721, 0.7853982
      %vm5723 = vcmp.lt.s32.totalorder %v3869, 0
      %v5724 = vand.u32 %v3869, 2139095040
      %v5725 = vshrl.u32 %v5724, 23
      %v5726 = vsub.s32 %v5725, 127
      %v5727 = vand.u32 2147483647, %v3869
      %v5728 = vand.u32 %v5727, 8388607
      %v5729 = vor.u32 %v5728, 8388608
      %v5730 = vsub.s32 0, %v5729
      %v5731 = vadd.s32 %v5726, 1
      %vm5732 = vcmp.gt.s32.totalorder %v5731, 0
      %v5733 = vsel %vm5732, %v5731, 0
      %v5734 = vshrl.u32 %v5733, 5
      %v5735 = vand.u32 %v5733, 31
      %v5736 = vsub.s32 32, %v5735
      %v5737 = vshrl.u32 683565275, %v5736
      %v5738 = vshll.u32 683565275, %v5735
      %v5739 = vshrl.u32 2475754826, %v5736
      %v5740 = vor.u32 %v5738, %v5739
      %v5741 = vshll.u32 2475754826, %v5735
      %v5742 = vshrl.u32 2131351028, %v5736
      %v5743 = vor.u32 %v5741, %v5742
      %v5744 = vshll.u32 2131351028, %v5735
      %v5745 = vshrl.u32 2102212464, %v5736
      %v5746 = vor.u32 %v5744, %v5745
      %v5747 = vshll.u32 2102212464, %v5735
      %v5748 = vshrl.u32 920167782, %v5736
      %v5749 = vor.u32 %v5747, %v5748
      %v5750 = vshll.u32 920167782, %v5735
      %v5751 = vshrl.u32 1326507024, %v5736
      %v5752 = vor.u32 %v5750, %v5751
      %vm5753 = vcmp.lt.s32.totalorder %v5734, 1
      %vm5754 = vcmp.lt.s32.totalorder %v5734, 2
      %vm5755 = vcmp.lt.s32.totalorder %v5734, 3
      %vm5756 = vcmp.lt.s32.totalorder %v5734, 4
      %v5757 = vsel %vm5753, %v5737, %v5740
      %v5758 = vsel %vm5756, %v5746, 2102212464
      %v5759 = vsel %vm5755, %v5743, %v5758
      %v5760 = vsel %vm5754, %v5757, %v5759
      %v5761 = vsel %vm5753, %v5740, %v5743
      %v5762 = vsel %vm5756, %v5749, 920167782
      %v5763 = vsel %vm5755, %v5746, %v5762
      %v5764 = vsel %vm5754, %v5761, %v5763
      %v5765 = vsel %vm5753, %v5743, %v5746
      %v5766 = vsel %vm5756, %v5752, 1326507024
      %v5767 = vsel %vm5755, %v5749, %v5766
      %v5768 = vsel %vm5754, %v5765, %v5767
      %v5769 = vshll.u32 %v5729, 8
      %v5770 = vand.u32 %v5769, 65535
      %v5771 = vshrl.u32 %v5769, 16
      %v5772 = vand.u32 %v5768, 65535
      %v5773 = vshrl.u32 %v5768, 16
      %v5774 = vmul.u32 %v5770, %v5772
      %v5775 = vmul.u32 %v5770, %v5773
      %v5776 = vmul.u32 %v5771, %v5772
      %v5777 = vmul.u32 %v5771, %v5773
      %v5778 = vshll.u32 %v5775, 16
      %v5779 = vshrl.u32 %v5775, 16
      %v5780 = vshll.u32 %v5776, 16
      %v5781 = vshrl.u32 %v5776, 16
      %vm5782 = vc.u32 %v5774, %v5778
      %v5783 = vsel %vm5782, 1, 0
      %v5784 = vadd.s32 %v5774, %v5778
      %v5785 = vadd.s32 %v5777, %v5783
      %vm5786 = vc.u32 %v5784, %v5780
      %v5787 = vsel %vm5786, 1, 0
      %v5788 = vadd.s32 %v5784, %v5780
      %v5789 = vadd.s32 %v5785, %v5787
      %v5790 = vadd.s32 %v5789, %v5779
      %v5791 = vadd.s32 %v5790, %v5781
      %v5792 = vand.u32 %v5769, 65535
      %v5793 = vshrl.u32 %v5769, 16
      %v5794 = vand.u32 %v5764, 65535
      %v5795 = vshrl.u32 %v5764, 16
      %v5796 = vmul.u32 %v5792, %v5794
      %v5797 = vmul.u32 %v5792, %v5795
      %v5798 = vmul.u32 %v5793, %v5794
      %v5799 = vmul.u32 %v5793, %v5795
      %v5800 = vshll.u32 %v5797, 16
      %v5801 = vshrl.u32 %v5797, 16
      %v5802 = vshll.u32 %v5798, 16
      %v5803 = vshrl.u32 %v5798, 16
      %vm5804 = vc.u32 %v5796, %v5800
      %v5805 = vsel %vm5804, 1, 0
      %v5806 = vadd.s32 %v5796, %v5800
      %v5807 = vadd.s32 %v5799, %v5805
      %vm5808 = vc.u32 %v5806, %v5802
      %v5809 = vsel %vm5808, 1, 0
      %v5810 = vadd.s32 %v5806, %v5802
      %v5811 = vadd.s32 %v5807, %v5809
      %v5812 = vadd.s32 %v5811, %v5801
      %v5813 = vadd.s32 %v5812, %v5803
      %v5814 = vmul.u32 %v5769, %v5760
      %v5815 = vadd.s32 %v5791, %v5810
      %vm5816 = vc.u32 %v5791, %v5810
      %v5817 = vadd.s32 %v5813, 1
      %v5818 = vsel %vm5816, %v5817, %v5813
      %v5819 = vadd.s32 %v5814, %v5818
      %v5820 = vadd.s32 %v5819, 536870912
      %v5821 = vshrl.u32 %v5820, 30
      %v5822 = vshll.u32 %v5821, 30
      %v5823 = vsub.s32 %v5819, %v5822
      %vm5824 = vcmp.lt.s32.totalorder %v5823, 0
      %v5825 = vsub.s32 0, %v5823
      %v5826 = vsel %vm5824, %v5825, %v5823
      %v5827 = vclz %v5826
      %v5828 = vsub.s32 %v5827, 2
      %vm5829 = vcmp.gt.s32.totalorder 0, %v5828
      %v5830 = vsel %vm5829, 0, %v5828
      %v5831 = vsub.s32 32, %v5830
      %v5832 = vshll.u32 %v5823, %v5830
      %v5833 = vshrl.u32 %v5815, %v5831
      %v5834 = vor.u32 %v5832, %v5833
      %v5835 = vsub.s32 4294967266, %v5830
      %v5836 = vadd.s32 %v5835, 127
      %v5837 = vshll.u32 %v5836, 23
      %v5838 = vor.u32 4788187, %v5837
      %v5839 = vand.u32 2147483647, %v5838
      %v5841 = vcvt.s32.f32 %v5834
      %v5842 = vmul.f32 %v5841, %v5839
      %v5843 = vxor.u32 %v5842, 2147483648
      %v5844 = vsel %vm5723, %v5843, %v5842
      %v5845 = vsub.s32 4, %v5821
      %v5846 = vsel %vm5723, %v5845, %v5821
      %v5847 = vsel %vm5722, %v3869, %v5844
      %v5848 = vsel %vm5722, 0, %v5846
      %v5849 = vmul.f32 %v5847, %v5847
      %v5850 = vmul.f32 %v5849, -0.001358992
      %v5851 = vadd.f32 %v5850, 0.041655596
      %v5852 = vmul.f32 %v5849, %v5851
      %v5853 = vadd.f32 %v5852, -0.4999988
      %v5854 = vmul.f32 %v5849, %v5853
      %v5855 = vadd.f32 1.0, %v5854
      %v5856 = vmul.f32 %v5847, %v5847
      %v5857 = vmul.f32 %v5856, -0.00019511016
      %v5858 = vadd.f32 %v5857, 0.008332121
      %v5859 = vmul.f32 %v5856, %v5858
      %v5860 = vadd.f32 %v5859, -0.16666654
      %v5861 = vmul.f32 %v5856, %v5860
      %v5862 = vadd.f32 %v5861, 1.0
      %v5863 = vmul.f32 %v5862, %v5847
      %vm5864 = vweird.f32 %v3869
      %v5865 = vand.u32 %v5848, 3
      %vm5866 = vcmp.lt.s32.totalorder %v5865, 2
      %vm5867 = vcmp.eq.s32.totalorder %v5865, 0
      %v5868 = vxor.u32 %v5863, 2147483648
      %v5869 = vsel %vm5867, %v5855, %v5868
      %vm5870 = vcmp.eq.s32.totalorder %v5865, 2
      %v5871 = vxor.u32 %v5855, 2147483648
      %v5872 = vsel %vm5870, %v5871, %v5863
      %v5873 = vsel %vm5866, %v5869, %v5872
      %v5874 = vsel %vm5864, nan, %v5873
      %v5875 = vand.u32 2147483647, %v3870
      %vm5876 = vcmp.le.f32.partialorder %v5875, 0.7853982
      %vm5877 = vcmp.lt.s32.totalorder %v3870, 0
      %v5878 = vand.u32 %v3870, 2139095040
      %v5879 = vshrl.u32 %v5878, 23
      %v5880 = vsub.s32 %v5879, 127
      %v5881 = vand.u32 2147483647, %v3870
      %v5882 = vand.u32 %v5881, 8388607
      %v5883 = vor.u32 %v5882, 8388608
      %v5884 = vsub.s32 0, %v5883
      %v5885 = vadd.s32 %v5880, 1
      %vm5886 = vcmp.gt.s32.totalorder %v5885, 0
      %v5887 = vsel %vm5886, %v5885, 0
      %v5888 = vshrl.u32 %v5887, 5
      %v5889 = vand.u32 %v5887, 31
      %v5890 = vsub.s32 32, %v5889
      %v5891 = vshrl.u32 683565275, %v5890
      %v5892 = vshll.u32 683565275, %v5889
      %v5893 = vshrl.u32 2475754826, %v5890
      %v5894 = vor.u32 %v5892, %v5893
      %v5895 = vshll.u32 2475754826, %v5889
      %v5896 = vshrl.u32 2131351028, %v5890
      %v5897 = vor.u32 %v5895, %v5896
      %v5898 = vshll.u32 2131351028, %v5889
      %v5899 = vshrl.u32 2102212464, %v5890
      %v5900 = vor.u32 %v5898, %v5899
      %v5901 = vshll.u32 2102212464, %v5889
      %v5902 = vshrl.u32 920167782, %v5890
      %v5903 = vor.u32 %v5901, %v5902
      %v5904 = vshll.u32 920167782, %v5889
      %v5905 = vshrl.u32 1326507024, %v5890
      %v5906 = vor.u32 %v5904, %v5905
      %vm5907 = vcmp.lt.s32.totalorder %v5888, 1
      %vm5908 = vcmp.lt.s32.totalorder %v5888, 2
      %vm5909 = vcmp.lt.s32.totalorder %v5888, 3
      %vm5910 = vcmp.lt.s32.totalorder %v5888, 4
      %v5911 = vsel %vm5907, %v5891, %v5894
      %v5912 = vsel %vm5910, %v5900, 2102212464
      %v5913 = vsel %vm5909, %v5897, %v5912
      %v5914 = vsel %vm5908, %v5911, %v5913
      %v5915 = vsel %vm5907, %v5894, %v5897
      %v5916 = vsel %vm5910, %v5903, 920167782
      %v5917 = vsel %vm5909, %v5900, %v5916
      %v5918 = vsel %vm5908, %v5915, %v5917
      %v5919 = vsel %vm5907, %v5897, %v5900
      %v5920 = vsel %vm5910, %v5906, 1326507024
      %v5921 = vsel %vm5909, %v5903, %v5920
      %v5922 = vsel %vm5908, %v5919, %v5921
      %v5923 = vshll.u32 %v5883, 8
      %v5924 = vand.u32 %v5923, 65535
      %v5925 = vshrl.u32 %v5923, 16
      %v5926 = vand.u32 %v5922, 65535
      %v5927 = vshrl.u32 %v5922, 16
      %v5928 = vmul.u32 %v5924, %v5926
      %v5929 = vmul.u32 %v5924, %v5927
      %v5930 = vmul.u32 %v5925, %v5926
      %v5931 = vmul.u32 %v5925, %v5927
      %v5932 = vshll.u32 %v5929, 16
      %v5933 = vshrl.u32 %v5929, 16
      %v5934 = vshll.u32 %v5930, 16
      %v5935 = vshrl.u32 %v5930, 16
      %vm5936 = vc.u32 %v5928, %v5932
      %v5937 = vsel %vm5936, 1, 0
      %v5938 = vadd.s32 %v5928, %v5932
      %v5939 = vadd.s32 %v5931, %v5937
      %vm5940 = vc.u32 %v5938, %v5934
      %v5941 = vsel %vm5940, 1, 0
      %v5942 = vadd.s32 %v5938, %v5934
      %v5943 = vadd.s32 %v5939, %v5941
      %v5944 = vadd.s32 %v5943, %v5933
      %v5945 = vadd.s32 %v5944, %v5935
      %v5946 = vand.u32 %v5923, 65535
      %v5947 = vshrl.u32 %v5923, 16
      %v5948 = vand.u32 %v5918, 65535
      %v5949 = vshrl.u32 %v5918, 16
      %v5950 = vmul.u32 %v5946, %v5948
      %v5951 = vmul.u32 %v5946, %v5949
      %v5952 = vmul.u32 %v5947, %v5948
      %v5953 = vmul.u32 %v5947, %v5949
      %v5954 = vshll.u32 %v5951, 16
      %v5955 = vshrl.u32 %v5951, 16
      %v5956 = vshll.u32 %v5952, 16
      %v5957 = vshrl.u32 %v5952, 16
      %vm5958 = vc.u32 %v5950, %v5954
      %v5959 = vsel %vm5958, 1, 0
      %v5960 = vadd.s32 %v5950, %v5954
      %v5961 = vadd.s32 %v5953, %v5959
      %vm5962 = vc.u32 %v5960, %v5956
      %v5963 = vsel %vm5962, 1, 0
      %v5964 = vadd.s32 %v5960, %v5956
      %v5965 = vadd.s32 %v5961, %v5963
      %v5966 = vadd.s32 %v5965, %v5955
      %v5967 = vadd.s32 %v5966, %v5957
      %v5968 = vmul.u32 %v5923, %v5914
      %v5969 = vadd.s32 %v5945, %v5964
      %vm5970 = vc.u32 %v5945, %v5964
      %v5971 = vadd.s32 %v5967, 1
      %v5972 = vsel %vm5970, %v5971, %v5967
      %v5973 = vadd.s32 %v5968, %v5972
      %v5974 = vadd.s32 %v5973, 536870912
      %v5975 = vshrl.u32 %v5974, 30
      %v5976 = vshll.u32 %v5975, 30
      %v5977 = vsub.s32 %v5973, %v5976
      %vm5978 = vcmp.lt.s32.totalorder %v5977, 0
      %v5979 = vsub.s32 0, %v5977
      %v5980 = vsel %vm5978, %v5979, %v5977
      %v5981 = vclz %v5980
      %v5982 = vsub.s32 %v5981, 2
      %vm5983 = vcmp.gt.s32.totalorder 0, %v5982
      %v5984 = vsel %vm5983, 0, %v5982
      %v5985 = vsub.s32 32, %v5984
      %v5986 = vshll.u32 %v5977, %v5984
      %v5987 = vshrl.u32 %v5969, %v5985
      %v5988 = vor.u32 %v5986, %v5987
      %v5989 = vsub.s32 4294967266, %v5984
      %v5990 = vadd.s32 %v5989, 127
      %v5991 = vshll.u32 %v5990, 23
      %v5992 = vor.u32 4788187, %v5991
      %v5993 = vand.u32 2147483647, %v5992
      %v5995 = vcvt.s32.f32 %v5988
      %v5996 = vmul.f32 %v5995, %v5993
      %v5997 = vxor.u32 %v5996, 2147483648
      %v5998 = vsel %vm5877, %v5997, %v5996
      %v5999 = vsub.s32 4, %v5975
      %v6000 = vsel %vm5877, %v5999, %v5975
      %v6001 = vsel %vm5876, %v3870, %v5998
      %v6002 = vsel %vm5876, 0, %v6000
      %v6003 = vmul.f32 %v6001, %v6001
      %v6004 = vmul.f32 %v6003, -0.001358992
      %v6005 = vadd.f32 %v6004, 0.041655596
      %v6006 = vmul.f32 %v6003, %v6005
      %v6007 = vadd.f32 %v6006, -0.4999988
      %v6008 = vmul.f32 %v6003, %v6007
      %v6009 = vadd.f32 1.0, %v6008
      %v6010 = vmul.f32 %v6001, %v6001
      %v6011 = vmul.f32 %v6010, -0.00019511016
      %v6012 = vadd.f32 %v6011, 0.008332121
      %v6013 = vmul.f32 %v6010, %v6012
      %v6014 = vadd.f32 %v6013, -0.16666654
      %v6015 = vmul.f32 %v6010, %v6014
      %v6016 = vadd.f32 %v6015, 1.0
      %v6017 = vmul.f32 %v6016, %v6001
      %vm6018 = vweird.f32 %v3870
      %v6019 = vand.u32 %v6002, 3
      %vm6020 = vcmp.lt.s32.totalorder %v6019, 2
      %vm6021 = vcmp.eq.s32.totalorder %v6019, 0
      %v6022 = vxor.u32 %v6017, 2147483648
      %v6023 = vsel %vm6021, %v6009, %v6022
      %vm6024 = vcmp.eq.s32.totalorder %v6019, 2
      %v6025 = vxor.u32 %v6009, 2147483648
      %v6026 = vsel %vm6024, %v6025, %v6017
      %v6027 = vsel %vm6020, %v6023, %v6026
      %v6028 = vsel %vm6018, nan, %v6027
      %v6029 = vand.u32 2147483647, %v3871
      %vm6030 = vcmp.le.f32.partialorder %v6029, 0.7853982
      %vm6031 = vcmp.lt.s32.totalorder %v3871, 0
      %v6032 = vand.u32 %v3871, 2139095040
      %v6033 = vshrl.u32 %v6032, 23
      %v6034 = vsub.s32 %v6033, 127
      %v6035 = vand.u32 2147483647, %v3871
      %v6036 = vand.u32 %v6035, 8388607
      %v6037 = vor.u32 %v6036, 8388608
      %v6038 = vsub.s32 0, %v6037
      %v6039 = vadd.s32 %v6034, 1
      %vm6040 = vcmp.gt.s32.totalorder %v6039, 0
      %v6041 = vsel %vm6040, %v6039, 0
      %v6042 = vshrl.u32 %v6041, 5
      %v6043 = vand.u32 %v6041, 31
      %v6044 = vsub.s32 32, %v6043
      %v6045 = vshrl.u32 683565275, %v6044
      %v6046 = vshll.u32 683565275, %v6043
      %v6047 = vshrl.u32 2475754826, %v6044
      %v6048 = vor.u32 %v6046, %v6047
      %v6049 = vshll.u32 2475754826, %v6043
      %v6050 = vshrl.u32 2131351028, %v6044
      %v6051 = vor.u32 %v6049, %v6050
      %v6052 = vshll.u32 2131351028, %v6043
      %v6053 = vshrl.u32 2102212464, %v6044
      %v6054 = vor.u32 %v6052, %v6053
      %v6055 = vshll.u32 2102212464, %v6043
      %v6056 = vshrl.u32 920167782, %v6044
      %v6057 = vor.u32 %v6055, %v6056
      %v6058 = vshll.u32 920167782, %v6043
      %v6059 = vshrl.u32 1326507024, %v6044
      %v6060 = vor.u32 %v6058, %v6059
      %vm6061 = vcmp.lt.s32.totalorder %v6042, 1
      %vm6062 = vcmp.lt.s32.totalorder %v6042, 2
      %vm6063 = vcmp.lt.s32.totalorder %v6042, 3
      %vm6064 = vcmp.lt.s32.totalorder %v6042, 4
      %v6065 = vsel %vm6061, %v6045, %v6048
      %v6066 = vsel %vm6064, %v6054, 2102212464
      %v6067 = vsel %vm6063, %v6051, %v6066
      %v6068 = vsel %vm6062, %v6065, %v6067
      %v6069 = vsel %vm6061, %v6048, %v6051
      %v6070 = vsel %vm6064, %v6057, 920167782
      %v6071 = vsel %vm6063, %v6054, %v6070
      %v6072 = vsel %vm6062, %v6069, %v6071
      %v6073 = vsel %vm6061, %v6051, %v6054
      %v6074 = vsel %vm6064, %v6060, 1326507024
      %v6075 = vsel %vm6063, %v6057, %v6074
      %v6076 = vsel %vm6062, %v6073, %v6075
      %v6077 = vshll.u32 %v6037, 8
      %v6078 = vand.u32 %v6077, 65535
      %v6079 = vshrl.u32 %v6077, 16
      %v6080 = vand.u32 %v6076, 65535
      %v6081 = vshrl.u32 %v6076, 16
      %v6082 = vmul.u32 %v6078, %v6080
      %v6083 = vmul.u32 %v6078, %v6081
      %v6084 = vmul.u32 %v6079, %v6080
      %v6085 = vmul.u32 %v6079, %v6081
      %v6086 = vshll.u32 %v6083, 16
      %v6087 = vshrl.u32 %v6083, 16
      %v6088 = vshll.u32 %v6084, 16
      %v6089 = vshrl.u32 %v6084, 16
      %vm6090 = vc.u32 %v6082, %v6086
      %v6091 = vsel %vm6090, 1, 0
      %v6092 = vadd.s32 %v6082, %v6086
      %v6093 = vadd.s32 %v6085, %v6091
      %vm6094 = vc.u32 %v6092, %v6088
      %v6095 = vsel %vm6094, 1, 0
      %v6096 = vadd.s32 %v6092, %v6088
      %v6097 = vadd.s32 %v6093, %v6095
      %v6098 = vadd.s32 %v6097, %v6087
      %v6099 = vadd.s32 %v6098, %v6089
      %v6100 = vand.u32 %v6077, 65535
      %v6101 = vshrl.u32 %v6077, 16
      %v6102 = vand.u32 %v6072, 65535
      %v6103 = vshrl.u32 %v6072, 16
      %v6104 = vmul.u32 %v6100, %v6102
      %v6105 = vmul.u32 %v6100, %v6103
      %v6106 = vmul.u32 %v6101, %v6102
      %v6107 = vmul.u32 %v6101, %v6103
      %v6108 = vshll.u32 %v6105, 16
      %v6109 = vshrl.u32 %v6105, 16
      %v6110 = vshll.u32 %v6106, 16
      %v6111 = vshrl.u32 %v6106, 16
      %vm6112 = vc.u32 %v6104, %v6108
      %v6113 = vsel %vm6112, 1, 0
      %v6114 = vadd.s32 %v6104, %v6108
      %v6115 = vadd.s32 %v6107, %v6113
      %vm6116 = vc.u32 %v6114, %v6110
      %v6117 = vsel %vm6116, 1, 0
      %v6118 = vadd.s32 %v6114, %v6110
      %v6119 = vadd.s32 %v6115, %v6117
      %v6120 = vadd.s32 %v6119, %v6109
      %v6121 = vadd.s32 %v6120, %v6111
      %v6122 = vmul.u32 %v6077, %v6068
      %v6123 = vadd.s32 %v6099, %v6118
      %vm6124 = vc.u32 %v6099, %v6118
      %v6125 = vadd.s32 %v6121, 1
      %v6126 = vsel %vm6124, %v6125, %v6121
      %v6127 = vadd.s32 %v6122, %v6126
      %v6128 = vadd.s32 %v6127, 536870912
      %v6129 = vshrl.u32 %v6128, 30
      %v6130 = vshll.u32 %v6129, 30
      %v6131 = vsub.s32 %v6127, %v6130
      %vm6132 = vcmp.lt.s32.totalorder %v6131, 0
      %v6133 = vsub.s32 0, %v6131
      %v6134 = vsel %vm6132, %v6133, %v6131
      %v6135 = vclz %v6134
      %v6136 = vsub.s32 %v6135, 2
      %vm6137 = vcmp.gt.s32.totalorder 0, %v6136
      %v6138 = vsel %vm6137, 0, %v6136
      %v6139 = vsub.s32 32, %v6138
      %v6140 = vshll.u32 %v6131, %v6138
      %v6141 = vshrl.u32 %v6123, %v6139
      %v6142 = vor.u32 %v6140, %v6141
      %v6143 = vsub.s32 4294967266, %v6138
      %v6144 = vadd.s32 %v6143, 127
      %v6145 = vshll.u32 %v6144, 23
      %v6146 = vor.u32 4788187, %v6145
      %v6147 = vand.u32 2147483647, %v6146
      %v6149 = vcvt.s32.f32 %v6142
      %v6150 = vmul.f32 %v6149, %v6147
      %v6151 = vxor.u32 %v6150, 2147483648
      %v6152 = vsel %vm6031, %v6151, %v6150
      %v6153 = vsub.s32 4, %v6129
      %v6154 = vsel %vm6031, %v6153, %v6129
      %v6155 = vsel %vm6030, %v3871, %v6152
      %v6156 = vsel %vm6030, 0, %v6154
      %v6157 = vmul.f32 %v6155, %v6155
      %v6158 = vmul.f32 %v6157, -0.001358992
      %v6159 = vadd.f32 %v6158, 0.041655596
      %v6160 = vmul.f32 %v6157, %v6159
      %v6161 = vadd.f32 %v6160, -0.4999988
      %v6162 = vmul.f32 %v6157, %v6161
      %v6163 = vadd.f32 1.0, %v6162
      %v6164 = vmul.f32 %v6155, %v6155
      %v6165 = vmul.f32 %v6164, -0.00019511016
      %v6166 = vadd.f32 %v6165, 0.008332121
      %v6167 = vmul.f32 %v6164, %v6166
      %v6168 = vadd.f32 %v6167, -0.16666654
      %v6169 = vmul.f32 %v6164, %v6168
      %v6170 = vadd.f32 %v6169, 1.0
      %v6171 = vmul.f32 %v6170, %v6155
      %vm6172 = vweird.f32 %v3871
      %v6173 = vand.u32 %v6156, 3
      %vm6174 = vcmp.lt.s32.totalorder %v6173, 2
      %vm6175 = vcmp.eq.s32.totalorder %v6173, 0
      %v6176 = vxor.u32 %v6171, 2147483648
      %v6177 = vsel %vm6175, %v6163, %v6176
      %vm6178 = vcmp.eq.s32.totalorder %v6173, 2
      %v6179 = vxor.u32 %v6163, 2147483648
      %v6180 = vsel %vm6178, %v6179, %v6171
      %v6181 = vsel %vm6174, %v6177, %v6180
      %v6182 = vsel %vm6172, nan, %v6181
      %v6183 = vand.u32 2147483647, %v3872
      %vm6184 = vcmp.le.f32.partialorder %v6183, 0.7853982
      %vm6185 = vcmp.lt.s32.totalorder %v3872, 0
      %v6186 = vand.u32 %v3872, 2139095040
      %v6187 = vshrl.u32 %v6186, 23
      %v6188 = vsub.s32 %v6187, 127
      %v6189 = vand.u32 2147483647, %v3872
      %v6190 = vand.u32 %v6189, 8388607
      %v6191 = vor.u32 %v6190, 8388608
      %v6192 = vsub.s32 0, %v6191
      %v6193 = vadd.s32 %v6188, 1
      %vm6194 = vcmp.gt.s32.totalorder %v6193, 0
      %v6195 = vsel %vm6194, %v6193, 0
      %v6196 = vshrl.u32 %v6195, 5
      %v6197 = vand.u32 %v6195, 31
      %v6198 = vsub.s32 32, %v6197
      %v6199 = vshrl.u32 683565275, %v6198
      %v6200 = vshll.u32 683565275, %v6197
      %v6201 = vshrl.u32 2475754826, %v6198
      %v6202 = vor.u32 %v6200, %v6201
      %v6203 = vshll.u32 2475754826, %v6197
      %v6204 = vshrl.u32 2131351028, %v6198
      %v6205 = vor.u32 %v6203, %v6204
      %v6206 = vshll.u32 2131351028, %v6197
      %v6207 = vshrl.u32 2102212464, %v6198
      %v6208 = vor.u32 %v6206, %v6207
      %v6209 = vshll.u32 2102212464, %v6197
      %v6210 = vshrl.u32 920167782, %v6198
      %v6211 = vor.u32 %v6209, %v6210
      %v6212 = vshll.u32 920167782, %v6197
      %v6213 = vshrl.u32 1326507024, %v6198
      %v6214 = vor.u32 %v6212, %v6213
      %vm6215 = vcmp.lt.s32.totalorder %v6196, 1
      %vm6216 = vcmp.lt.s32.totalorder %v6196, 2
      %vm6217 = vcmp.lt.s32.totalorder %v6196, 3
      %vm6218 = vcmp.lt.s32.totalorder %v6196, 4
      %v6219 = vsel %vm6215, %v6199, %v6202
      %v6220 = vsel %vm6218, %v6208, 2102212464
      %v6221 = vsel %vm6217, %v6205, %v6220
      %v6222 = vsel %vm6216, %v6219, %v6221
      %v6223 = vsel %vm6215, %v6202, %v6205
      %v6224 = vsel %vm6218, %v6211, 920167782
      %v6225 = vsel %vm6217, %v6208, %v6224
      %v6226 = vsel %vm6216, %v6223, %v6225
      %v6227 = vsel %vm6215, %v6205, %v6208
      %v6228 = vsel %vm6218, %v6214, 1326507024
      %v6229 = vsel %vm6217, %v6211, %v6228
      %v6230 = vsel %vm6216, %v6227, %v6229
      %v6231 = vshll.u32 %v6191, 8
      %v6232 = vand.u32 %v6231, 65535
      %v6233 = vshrl.u32 %v6231, 16
      %v6234 = vand.u32 %v6230, 65535
      %v6235 = vshrl.u32 %v6230, 16
      %v6236 = vmul.u32 %v6232, %v6234
      %v6237 = vmul.u32 %v6232, %v6235
      %v6238 = vmul.u32 %v6233, %v6234
      %v6239 = vmul.u32 %v6233, %v6235
      %v6240 = vshll.u32 %v6237, 16
      %v6241 = vshrl.u32 %v6237, 16
      %v6242 = vshll.u32 %v6238, 16
      %v6243 = vshrl.u32 %v6238, 16
      %vm6244 = vc.u32 %v6236, %v6240
      %v6245 = vsel %vm6244, 1, 0
      %v6246 = vadd.s32 %v6236, %v6240
      %v6247 = vadd.s32 %v6239, %v6245
      %vm6248 = vc.u32 %v6246, %v6242
      %v6249 = vsel %vm6248, 1, 0
      %v6250 = vadd.s32 %v6246, %v6242
      %v6251 = vadd.s32 %v6247, %v6249
      %v6252 = vadd.s32 %v6251, %v6241
      %v6253 = vadd.s32 %v6252, %v6243
      %v6254 = vand.u32 %v6231, 65535
      %v6255 = vshrl.u32 %v6231, 16
      %v6256 = vand.u32 %v6226, 65535
      %v6257 = vshrl.u32 %v6226, 16
      %v6258 = vmul.u32 %v6254, %v6256
      %v6259 = vmul.u32 %v6254, %v6257
      %v6260 = vmul.u32 %v6255, %v6256
      %v6261 = vmul.u32 %v6255, %v6257
      %v6262 = vshll.u32 %v6259, 16
      %v6263 = vshrl.u32 %v6259, 16
      %v6264 = vshll.u32 %v6260, 16
      %v6265 = vshrl.u32 %v6260, 16
      %vm6266 = vc.u32 %v6258, %v6262
      %v6267 = vsel %vm6266, 1, 0
      %v6268 = vadd.s32 %v6258, %v6262
      %v6269 = vadd.s32 %v6261, %v6267
      %vm6270 = vc.u32 %v6268, %v6264
      %v6271 = vsel %vm6270, 1, 0
      %v6272 = vadd.s32 %v6268, %v6264
      %v6273 = vadd.s32 %v6269, %v6271
      %v6274 = vadd.s32 %v6273, %v6263
      %v6275 = vadd.s32 %v6274, %v6265
      %v6276 = vmul.u32 %v6231, %v6222
      %v6277 = vadd.s32 %v6253, %v6272
      %vm6278 = vc.u32 %v6253, %v6272
      %v6279 = vadd.s32 %v6275, 1
      %v6280 = vsel %vm6278, %v6279, %v6275
      %v6281 = vadd.s32 %v6276, %v6280
      %v6282 = vadd.s32 %v6281, 536870912
      %v6283 = vshrl.u32 %v6282, 30
      %v6284 = vshll.u32 %v6283, 30
      %v6285 = vsub.s32 %v6281, %v6284
      %vm6286 = vcmp.lt.s32.totalorder %v6285, 0
      %v6287 = vsub.s32 0, %v6285
      %v6288 = vsel %vm6286, %v6287, %v6285
      %v6289 = vclz %v6288
      %v6290 = vsub.s32 %v6289, 2
      %vm6291 = vcmp.gt.s32.totalorder 0, %v6290
      %v6292 = vsel %vm6291, 0, %v6290
      %v6293 = vsub.s32 32, %v6292
      %v6294 = vshll.u32 %v6285, %v6292
      %v6295 = vshrl.u32 %v6277, %v6293
      %v6296 = vor.u32 %v6294, %v6295
      %v6297 = vsub.s32 4294967266, %v6292
      %v6298 = vadd.s32 %v6297, 127
      %v6299 = vshll.u32 %v6298, 23
      %v6300 = vor.u32 4788187, %v6299
      %v6301 = vand.u32 2147483647, %v6300
      %v6303 = vcvt.s32.f32 %v6296
      %v6304 = vmul.f32 %v6303, %v6301
      %v6305 = vxor.u32 %v6304, 2147483648
      %v6306 = vsel %vm6185, %v6305, %v6304
      %v6307 = vsub.s32 4, %v6283
      %v6308 = vsel %vm6185, %v6307, %v6283
      %v6309 = vsel %vm6184, %v3872, %v6306
      %v6310 = vsel %vm6184, 0, %v6308
      %v6311 = vmul.f32 %v6309, %v6309
      %v6312 = vmul.f32 %v6311, -0.001358992
      %v6313 = vadd.f32 %v6312, 0.041655596
      %v6314 = vmul.f32 %v6311, %v6313
      %v6315 = vadd.f32 %v6314, -0.4999988
      %v6316 = vmul.f32 %v6311, %v6315
      %v6317 = vadd.f32 1.0, %v6316
      %v6318 = vmul.f32 %v6309, %v6309
      %v6319 = vmul.f32 %v6318, -0.00019511016
      %v6320 = vadd.f32 %v6319, 0.008332121
      %v6321 = vmul.f32 %v6318, %v6320
      %v6322 = vadd.f32 %v6321, -0.16666654
      %v6323 = vmul.f32 %v6318, %v6322
      %v6324 = vadd.f32 %v6323, 1.0
      %v6325 = vmul.f32 %v6324, %v6309
      %vm6326 = vweird.f32 %v3872
      %v6327 = vand.u32 %v6310, 3
      %vm6328 = vcmp.lt.s32.totalorder %v6327, 2
      %vm6329 = vcmp.eq.s32.totalorder %v6327, 0
      %v6330 = vxor.u32 %v6325, 2147483648
      %v6331 = vsel %vm6329, %v6317, %v6330
      %vm6332 = vcmp.eq.s32.totalorder %v6327, 2
      %v6333 = vxor.u32 %v6317, 2147483648
      %v6334 = vsel %vm6332, %v6333, %v6325
      %v6335 = vsel %vm6328, %v6331, %v6334
      %v6336 = vsel %vm6326, nan, %v6335
      %v6337 = vmul.f32 %v3810, 0.5
      %v6338 = vmul.f32 %v3813, 0.5
      %v6339 = vmul.f32 %v3816, 0.5
      %v6340 = vmul.f32 %v3819, 0.5
      %v6341 = vmul.f32 %v3822, 0.5
      %v6342 = vmul.f32 %v3825, 0.5
      %v6343 = vmul.f32 %v3828, 0.5
      %v6344 = vmul.f32 %v3831, 0.5
      %v6345 = vmul.f32 %v3834, 0.5
      %v6346 = vmul.f32 %v3837, 0.5
      %v6347 = vmul.f32 %v3840, 0.5
      %v6348 = vmul.f32 %v3843, 0.5
      %v6349 = vmul.f32 %v3846, 0.5
      %v6350 = vmul.f32 %v3849, 0.5
      %v6351 = vmul.f32 %v3852, 0.5
      %v6352 = vmul.f32 %v3855, 0.5
      %v6353 = vmul.f32 %v3810, %v3067
      %v6354 = vmul.f32 %v3813, %v3067
      %v6355 = vmul.f32 %v3816, %v3067
      %v6356 = vmul.f32 %v3819, %v3067
      %v6357 = vmul.f32 %v3822, %v3067
      %v6358 = vmul.f32 %v3825, %v3067
      %v6359 = vmul.f32 %v3828, %v3067
      %v6360 = vmul.f32 %v3831, %v3067
      %v6361 = vmul.f32 %v3834, %v3067
      %v6362 = vmul.f32 %v3837, %v3067
      %v6363 = vmul.f32 %v3840, %v3067
      %v6364 = vmul.f32 %v3843, %v3067
      %v6365 = vmul.f32 %v3846, %v3067
      %v6366 = vmul.f32 %v3849, %v3067
      %v6367 = vmul.f32 %v3852, %v3067
      %v6368 = vmul.f32 %v3855, %v3067
      %v6369 = vmul.f32 %v6353, %v6353
      %v6370 = vmin.f32 16.0, %v6369
      %v6371 = vmul.f32 %v6370, 2.1237322e-06
      %v6372 = vadd.f32 %v6371, 0.00028619796
      %v6373 = vmul.f32 %v6370, %v6372
      %v6374 = vadd.f32 %v6373, 0.0036580483
      %v6375 = vmul.f32 %v6370, %v6374
      %v6376 = vadd.f32 %v6375, 0.05243302
      %v6377 = vmul.f32 %v6370, %v6376
      %v6378 = vadd.f32 %v6377, 0.18741608
      %v6379 = vmul.f32 %v6370, %v6378
      %v6380 = vadd.f32 %v6379, 1.1283791
      %v6381 = vmul.f32 %v6353, %v6380
      %v6382 = vmul.f32 %v6370, 3.8918573e-05
      %v6383 = vadd.f32 %v6382, 0.001143296
      %v6384 = vmul.f32 %v6370, %v6383
      %v6385 = vadd.f32 %v6384, 0.014752088
      %v6386 = vmul.f32 %v6370, %v6385
      %v6387 = vadd.f32 %v6386, 0.112945676
      %v6388 = vmul.f32 %v6370, %v6387
      %v6389 = vadd.f32 %v6388, 0.4994258
      %v6390 = vmul.f32 %v6370, %v6389
      %v6391 = vadd.f32 %v6390, 1.0
      %v6392 = vrcp.pop %v6391
      %v6393 = vmul.f32 %v6391, %v6392
      %v6394 = vsub.f32 1.0, %v6393
      %v6395 = vmul.f32 %v6392, %v6394
      %v6396 = vadd.f32 %v6392, %v6395
      %vm6397 = vweird.f32 %v6391
      %vm6398 = vweird.f32 %v6392
      %vm6399 = vmor %vm6397, %vm6398
      %v6400 = vsel %vm6399, %v6392, %v6396
      %v6401 = vand.u32 2147483647, %v6391
      %vm6402 = vcmp.eq.f32.partialorder %v6401, 8.507059e+37
      %v6403 = vand.u32 %v6391, 2147483648
      %v6404 = vor.u32 1.1754944e-38, %v6403
      %v6405 = vsel %vm6402, %v6404, %v6400
      %v6406 = vmul.f32 %v6381, %v6405
      %v6407 = vmin.f32 %v6406, 1.0
      %v6408 = vmax.f32 %v6407, -1.0
      %v6409 = vmul.f32 %v6354, %v6354
      %v6410 = vmin.f32 16.0, %v6409
      %v6411 = vmul.f32 %v6410, 2.1237322e-06
      %v6412 = vadd.f32 %v6411, 0.00028619796
      %v6413 = vmul.f32 %v6410, %v6412
      %v6414 = vadd.f32 %v6413, 0.0036580483
      %v6415 = vmul.f32 %v6410, %v6414
      %v6416 = vadd.f32 %v6415, 0.05243302
      %v6417 = vmul.f32 %v6410, %v6416
      %v6418 = vadd.f32 %v6417, 0.18741608
      %v6419 = vmul.f32 %v6410, %v6418
      %v6420 = vadd.f32 %v6419, 1.1283791
      %v6421 = vmul.f32 %v6354, %v6420
      %v6422 = vmul.f32 %v6410, 3.8918573e-05
      %v6423 = vadd.f32 %v6422, 0.001143296
      %v6424 = vmul.f32 %v6410, %v6423
      %v6425 = vadd.f32 %v6424, 0.014752088
      %v6426 = vmul.f32 %v6410, %v6425
      %v6427 = vadd.f32 %v6426, 0.112945676
      %v6428 = vmul.f32 %v6410, %v6427
      %v6429 = vadd.f32 %v6428, 0.4994258
      %v6430 = vmul.f32 %v6410, %v6429
      %v6431 = vadd.f32 %v6430, 1.0
      %v6432 = vrcp.pop %v6431
      %v6433 = vmul.f32 %v6431, %v6432
      %v6434 = vsub.f32 1.0, %v6433
      %v6435 = vmul.f32 %v6432, %v6434
      %v6436 = vadd.f32 %v6432, %v6435
      %vm6437 = vweird.f32 %v6431
      %vm6438 = vweird.f32 %v6432
      %vm6439 = vmor %vm6437, %vm6438
      %v6440 = vsel %vm6439, %v6432, %v6436
      %v6441 = vand.u32 2147483647, %v6431
      %vm6442 = vcmp.eq.f32.partialorder %v6441, 8.507059e+37
      %v6443 = vand.u32 %v6431, 2147483648
      %v6444 = vor.u32 1.1754944e-38, %v6443
      %v6445 = vsel %vm6442, %v6444, %v6440
      %v6446 = vmul.f32 %v6421, %v6445
      %v6447 = vmin.f32 %v6446, 1.0
      %v6448 = vmax.f32 %v6447, -1.0
      %v6449 = vmul.f32 %v6355, %v6355
      %v6450 = vmin.f32 16.0, %v6449
      %v6451 = vmul.f32 %v6450, 2.1237322e-06
      %v6452 = vadd.f32 %v6451, 0.00028619796
      %v6453 = vmul.f32 %v6450, %v6452
      %v6454 = vadd.f32 %v6453, 0.0036580483
      %v6455 = vmul.f32 %v6450, %v6454
      %v6456 = vadd.f32 %v6455, 0.05243302
      %v6457 = vmul.f32 %v6450, %v6456
      %v6458 = vadd.f32 %v6457, 0.18741608
      %v6459 = vmul.f32 %v6450, %v6458
      %v6460 = vadd.f32 %v6459, 1.1283791
      %v6461 = vmul.f32 %v6355, %v6460
      %v6462 = vmul.f32 %v6450, 3.8918573e-05
      %v6463 = vadd.f32 %v6462, 0.001143296
      %v6464 = vmul.f32 %v6450, %v6463
      %v6465 = vadd.f32 %v6464, 0.014752088
      %v6466 = vmul.f32 %v6450, %v6465
      %v6467 = vadd.f32 %v6466, 0.112945676
      %v6468 = vmul.f32 %v6450, %v6467
      %v6469 = vadd.f32 %v6468, 0.4994258
      %v6470 = vmul.f32 %v6450, %v6469
      %v6471 = vadd.f32 %v6470, 1.0
      %v6472 = vrcp.pop %v6471
      %v6473 = vmul.f32 %v6471, %v6472
      %v6474 = vsub.f32 1.0, %v6473
      %v6475 = vmul.f32 %v6472, %v6474
      %v6476 = vadd.f32 %v6472, %v6475
      %vm6477 = vweird.f32 %v6471
      %vm6478 = vweird.f32 %v6472
      %vm6479 = vmor %vm6477, %vm6478
      %v6480 = vsel %vm6479, %v6472, %v6476
      %v6481 = vand.u32 2147483647, %v6471
      %vm6482 = vcmp.eq.f32.partialorder %v6481, 8.507059e+37
      %v6483 = vand.u32 %v6471, 2147483648
      %v6484 = vor.u32 1.1754944e-38, %v6483
      %v6485 = vsel %vm6482, %v6484, %v6480
      %v6486 = vmul.f32 %v6461, %v6485
      %v6487 = vmin.f32 %v6486, 1.0
      %v6488 = vmax.f32 %v6487, -1.0
      %v6489 = vmul.f32 %v6356, %v6356
      %v6490 = vmin.f32 16.0, %v6489
      %v6491 = vmul.f32 %v6490, 2.1237322e-06
      %v6492 = vadd.f32 %v6491, 0.00028619796
      %v6493 = vmul.f32 %v6490, %v6492
      %v6494 = vadd.f32 %v6493, 0.0036580483
      %v6495 = vmul.f32 %v6490, %v6494
      %v6496 = vadd.f32 %v6495, 0.05243302
      %v6497 = vmul.f32 %v6490, %v6496
      %v6498 = vadd.f32 %v6497, 0.18741608
      %v6499 = vmul.f32 %v6490, %v6498
      %v6500 = vadd.f32 %v6499, 1.1283791
      %v6501 = vmul.f32 %v6356, %v6500
      %v6502 = vmul.f32 %v6490, 3.8918573e-05
      %v6503 = vadd.f32 %v6502, 0.001143296
      %v6504 = vmul.f32 %v6490, %v6503
      %v6505 = vadd.f32 %v6504, 0.014752088
      %v6506 = vmul.f32 %v6490, %v6505
      %v6507 = vadd.f32 %v6506, 0.112945676
      %v6508 = vmul.f32 %v6490, %v6507
      %v6509 = vadd.f32 %v6508, 0.4994258
      %v6510 = vmul.f32 %v6490, %v6509
      %v6511 = vadd.f32 %v6510, 1.0
      %v6512 = vrcp.pop %v6511
      %v6513 = vmul.f32 %v6511, %v6512
      %v6514 = vsub.f32 1.0, %v6513
      %v6515 = vmul.f32 %v6512, %v6514
      %v6516 = vadd.f32 %v6512, %v6515
      %vm6517 = vweird.f32 %v6511
      %vm6518 = vweird.f32 %v6512
      %vm6519 = vmor %vm6517, %vm6518
      %v6520 = vsel %vm6519, %v6512, %v6516
      %v6521 = vand.u32 2147483647, %v6511
      %vm6522 = vcmp.eq.f32.partialorder %v6521, 8.507059e+37
      %v6523 = vand.u32 %v6511, 2147483648
      %v6524 = vor.u32 1.1754944e-38, %v6523
      %v6525 = vsel %vm6522, %v6524, %v6520
      %v6526 = vmul.f32 %v6501, %v6525
      %v6527 = vmin.f32 %v6526, 1.0
      %v6528 = vmax.f32 %v6527, -1.0
      %v6529 = vmul.f32 %v6357, %v6357
      %v6530 = vmin.f32 16.0, %v6529
      %v6531 = vmul.f32 %v6530, 2.1237322e-06
      %v6532 = vadd.f32 %v6531, 0.00028619796
      %v6533 = vmul.f32 %v6530, %v6532
      %v6534 = vadd.f32 %v6533, 0.0036580483
      %v6535 = vmul.f32 %v6530, %v6534
      %v6536 = vadd.f32 %v6535, 0.05243302
      %v6537 = vmul.f32 %v6530, %v6536
      %v6538 = vadd.f32 %v6537, 0.18741608
      %v6539 = vmul.f32 %v6530, %v6538
      %v6540 = vadd.f32 %v6539, 1.1283791
      %v6541 = vmul.f32 %v6357, %v6540
      %v6542 = vmul.f32 %v6530, 3.8918573e-05
      %v6543 = vadd.f32 %v6542, 0.001143296
      %v6544 = vmul.f32 %v6530, %v6543
      %v6545 = vadd.f32 %v6544, 0.014752088
      %v6546 = vmul.f32 %v6530, %v6545
      %v6547 = vadd.f32 %v6546, 0.112945676
      %v6548 = vmul.f32 %v6530, %v6547
      %v6549 = vadd.f32 %v6548, 0.4994258
      %v6550 = vmul.f32 %v6530, %v6549
      %v6551 = vadd.f32 %v6550, 1.0
      %v6552 = vrcp.pop %v6551
      %v6553 = vmul.f32 %v6551, %v6552
      %v6554 = vsub.f32 1.0, %v6553
      %v6555 = vmul.f32 %v6552, %v6554
      %v6556 = vadd.f32 %v6552, %v6555
      %vm6557 = vweird.f32 %v6551
      %vm6558 = vweird.f32 %v6552
      %vm6559 = vmor %vm6557, %vm6558
      %v6560 = vsel %vm6559, %v6552, %v6556
      %v6561 = vand.u32 2147483647, %v6551
      %vm6562 = vcmp.eq.f32.partialorder %v6561, 8.507059e+37
      %v6563 = vand.u32 %v6551, 2147483648
      %v6564 = vor.u32 1.1754944e-38, %v6563
      %v6565 = vsel %vm6562, %v6564, %v6560
      %v6566 = vmul.f32 %v6541, %v6565
      %v6567 = vmin.f32 %v6566, 1.0
      %v6568 = vmax.f32 %v6567, -1.0
      %v6569 = vmul.f32 %v6358, %v6358
      %v6570 = vmin.f32 16.0, %v6569
      %v6571 = vmul.f32 %v6570, 2.1237322e-06
      %v6572 = vadd.f32 %v6571, 0.00028619796
      %v6573 = vmul.f32 %v6570, %v6572
      %v6574 = vadd.f32 %v6573, 0.0036580483
      %v6575 = vmul.f32 %v6570, %v6574
      %v6576 = vadd.f32 %v6575, 0.05243302
      %v6577 = vmul.f32 %v6570, %v6576
      %v6578 = vadd.f32 %v6577, 0.18741608
      %v6579 = vmul.f32 %v6570, %v6578
      %v6580 = vadd.f32 %v6579, 1.1283791
      %v6581 = vmul.f32 %v6358, %v6580
      %v6582 = vmul.f32 %v6570, 3.8918573e-05
      %v6583 = vadd.f32 %v6582, 0.001143296
      %v6584 = vmul.f32 %v6570, %v6583
      %v6585 = vadd.f32 %v6584, 0.014752088
      %v6586 = vmul.f32 %v6570, %v6585
      %v6587 = vadd.f32 %v6586, 0.112945676
      %v6588 = vmul.f32 %v6570, %v6587
      %v6589 = vadd.f32 %v6588, 0.4994258
      %v6590 = vmul.f32 %v6570, %v6589
      %v6591 = vadd.f32 %v6590, 1.0
      %v6592 = vrcp.pop %v6591
      %v6593 = vmul.f32 %v6591, %v6592
      %v6594 = vsub.f32 1.0, %v6593
      %v6595 = vmul.f32 %v6592, %v6594
      %v6596 = vadd.f32 %v6592, %v6595
      %vm6597 = vweird.f32 %v6591
      %vm6598 = vweird.f32 %v6592
      %vm6599 = vmor %vm6597, %vm6598
      %v6600 = vsel %vm6599, %v6592, %v6596
      %v6601 = vand.u32 2147483647, %v6591
      %vm6602 = vcmp.eq.f32.partialorder %v6601, 8.507059e+37
      %v6603 = vand.u32 %v6591, 2147483648
      %v6604 = vor.u32 1.1754944e-38, %v6603
      %v6605 = vsel %vm6602, %v6604, %v6600
      %v6606 = vmul.f32 %v6581, %v6605
      %v6607 = vmin.f32 %v6606, 1.0
      %v6608 = vmax.f32 %v6607, -1.0
      %v6609 = vmul.f32 %v6359, %v6359
      %v6610 = vmin.f32 16.0, %v6609
      %v6611 = vmul.f32 %v6610, 2.1237322e-06
      %v6612 = vadd.f32 %v6611, 0.00028619796
      %v6613 = vmul.f32 %v6610, %v6612
      %v6614 = vadd.f32 %v6613, 0.0036580483
      %v6615 = vmul.f32 %v6610, %v6614
      %v6616 = vadd.f32 %v6615, 0.05243302
      %v6617 = vmul.f32 %v6610, %v6616
      %v6618 = vadd.f32 %v6617, 0.18741608
      %v6619 = vmul.f32 %v6610, %v6618
      %v6620 = vadd.f32 %v6619, 1.1283791
      %v6621 = vmul.f32 %v6359, %v6620
      %v6622 = vmul.f32 %v6610, 3.8918573e-05
      %v6623 = vadd.f32 %v6622, 0.001143296
      %v6624 = vmul.f32 %v6610, %v6623
      %v6625 = vadd.f32 %v6624, 0.014752088
      %v6626 = vmul.f32 %v6610, %v6625
      %v6627 = vadd.f32 %v6626, 0.112945676
      %v6628 = vmul.f32 %v6610, %v6627
      %v6629 = vadd.f32 %v6628, 0.4994258
      %v6630 = vmul.f32 %v6610, %v6629
      %v6631 = vadd.f32 %v6630, 1.0
      %v6632 = vrcp.pop %v6631
      %v6633 = vmul.f32 %v6631, %v6632
      %v6634 = vsub.f32 1.0, %v6633
      %v6635 = vmul.f32 %v6632, %v6634
      %v6636 = vadd.f32 %v6632, %v6635
      %vm6637 = vweird.f32 %v6631
      %vm6638 = vweird.f32 %v6632
      %vm6639 = vmor %vm6637, %vm6638
      %v6640 = vsel %vm6639, %v6632, %v6636
      %v6641 = vand.u32 2147483647, %v6631
      %vm6642 = vcmp.eq.f32.partialorder %v6641, 8.507059e+37
      %v6643 = vand.u32 %v6631, 2147483648
      %v6644 = vor.u32 1.1754944e-38, %v6643
      %v6645 = vsel %vm6642, %v6644, %v6640
      %v6646 = vmul.f32 %v6621, %v6645
      %v6647 = vmin.f32 %v6646, 1.0
      %v6648 = vmax.f32 %v6647, -1.0
      %v6649 = vmul.f32 %v6360, %v6360
      %v6650 = vmin.f32 16.0, %v6649
      %v6651 = vmul.f32 %v6650, 2.1237322e-06
      %v6652 = vadd.f32 %v6651, 0.00028619796
      %v6653 = vmul.f32 %v6650, %v6652
      %v6654 = vadd.f32 %v6653, 0.0036580483
      %v6655 = vmul.f32 %v6650, %v6654
      %v6656 = vadd.f32 %v6655, 0.05243302
      %v6657 = vmul.f32 %v6650, %v6656
      %v6658 = vadd.f32 %v6657, 0.18741608
      %v6659 = vmul.f32 %v6650, %v6658
      %v6660 = vadd.f32 %v6659, 1.1283791
      %v6661 = vmul.f32 %v6360, %v6660
      %v6662 = vmul.f32 %v6650, 3.8918573e-05
      %v6663 = vadd.f32 %v6662, 0.001143296
      %v6664 = vmul.f32 %v6650, %v6663
      %v6665 = vadd.f32 %v6664, 0.014752088
      %v6666 = vmul.f32 %v6650, %v6665
      %v6667 = vadd.f32 %v6666, 0.112945676
      %v6668 = vmul.f32 %v6650, %v6667
      %v6669 = vadd.f32 %v6668, 0.4994258
      %v6670 = vmul.f32 %v6650, %v6669
      %v6671 = vadd.f32 %v6670, 1.0
      %v6672 = vrcp.pop %v6671
      %v6673 = vmul.f32 %v6671, %v6672
      %v6674 = vsub.f32 1.0, %v6673
      %v6675 = vmul.f32 %v6672, %v6674
      %v6676 = vadd.f32 %v6672, %v6675
      %vm6677 = vweird.f32 %v6671
      %vm6678 = vweird.f32 %v6672
      %vm6679 = vmor %vm6677, %vm6678
      %v6680 = vsel %vm6679, %v6672, %v6676
      %v6681 = vand.u32 2147483647, %v6671
      %vm6682 = vcmp.eq.f32.partialorder %v6681, 8.507059e+37
      %v6683 = vand.u32 %v6671, 2147483648
      %v6684 = vor.u32 1.1754944e-38, %v6683
      %v6685 = vsel %vm6682, %v6684, %v6680
      %v6686 = vmul.f32 %v6661, %v6685
      %v6687 = vmin.f32 %v6686, 1.0
      %v6688 = vmax.f32 %v6687, -1.0
      %v6689 = vmul.f32 %v6361, %v6361
      %v6690 = vmin.f32 16.0, %v6689
      %v6691 = vmul.f32 %v6690, 2.1237322e-06
      %v6692 = vadd.f32 %v6691, 0.00028619796
      %v6693 = vmul.f32 %v6690, %v6692
      %v6694 = vadd.f32 %v6693, 0.0036580483
      %v6695 = vmul.f32 %v6690, %v6694
      %v6696 = vadd.f32 %v6695, 0.05243302
      %v6697 = vmul.f32 %v6690, %v6696
      %v6698 = vadd.f32 %v6697, 0.18741608
      %v6699 = vmul.f32 %v6690, %v6698
      %v6700 = vadd.f32 %v6699, 1.1283791
      %v6701 = vmul.f32 %v6361, %v6700
      %v6702 = vmul.f32 %v6690, 3.8918573e-05
      %v6703 = vadd.f32 %v6702, 0.001143296
      %v6704 = vmul.f32 %v6690, %v6703
      %v6705 = vadd.f32 %v6704, 0.014752088
      %v6706 = vmul.f32 %v6690, %v6705
      %v6707 = vadd.f32 %v6706, 0.112945676
      %v6708 = vmul.f32 %v6690, %v6707
      %v6709 = vadd.f32 %v6708, 0.4994258
      %v6710 = vmul.f32 %v6690, %v6709
      %v6711 = vadd.f32 %v6710, 1.0
      %v6712 = vrcp.pop %v6711
      %v6713 = vmul.f32 %v6711, %v6712
      %v6714 = vsub.f32 1.0, %v6713
      %v6715 = vmul.f32 %v6712, %v6714
      %v6716 = vadd.f32 %v6712, %v6715
      %vm6717 = vweird.f32 %v6711
      %vm6718 = vweird.f32 %v6712
      %vm6719 = vmor %vm6717, %vm6718
      %v6720 = vsel %vm6719, %v6712, %v6716
      %v6721 = vand.u32 2147483647, %v6711
      %vm6722 = vcmp.eq.f32.partialorder %v6721, 8.507059e+37
      %v6723 = vand.u32 %v6711, 2147483648
      %v6724 = vor.u32 1.1754944e-38, %v6723
      %v6725 = vsel %vm6722, %v6724, %v6720
      %v6726 = vmul.f32 %v6701, %v6725
      %v6727 = vmin.f32 %v6726, 1.0
      %v6728 = vmax.f32 %v6727, -1.0
      %v6729 = vmul.f32 %v6362, %v6362
      %v6730 = vmin.f32 16.0, %v6729
      %v6731 = vmul.f32 %v6730, 2.1237322e-06
      %v6732 = vadd.f32 %v6731, 0.00028619796
      %v6733 = vmul.f32 %v6730, %v6732
      %v6734 = vadd.f32 %v6733, 0.0036580483
      %v6735 = vmul.f32 %v6730, %v6734
      %v6736 = vadd.f32 %v6735, 0.05243302
      %v6737 = vmul.f32 %v6730, %v6736
      %v6738 = vadd.f32 %v6737, 0.18741608
      %v6739 = vmul.f32 %v6730, %v6738
      %v6740 = vadd.f32 %v6739, 1.1283791
      %v6741 = vmul.f32 %v6362, %v6740
      %v6742 = vmul.f32 %v6730, 3.8918573e-05
      %v6743 = vadd.f32 %v6742, 0.001143296
      %v6744 = vmul.f32 %v6730, %v6743
      %v6745 = vadd.f32 %v6744, 0.014752088
      %v6746 = vmul.f32 %v6730, %v6745
      %v6747 = vadd.f32 %v6746, 0.112945676
      %v6748 = vmul.f32 %v6730, %v6747
      %v6749 = vadd.f32 %v6748, 0.4994258
      %v6750 = vmul.f32 %v6730, %v6749
      %v6751 = vadd.f32 %v6750, 1.0
      %v6752 = vrcp.pop %v6751
      %v6753 = vmul.f32 %v6751, %v6752
      %v6754 = vsub.f32 1.0, %v6753
      %v6755 = vmul.f32 %v6752, %v6754
      %v6756 = vadd.f32 %v6752, %v6755
      %vm6757 = vweird.f32 %v6751
      %vm6758 = vweird.f32 %v6752
      %vm6759 = vmor %vm6757, %vm6758
      %v6760 = vsel %vm6759, %v6752, %v6756
      %v6761 = vand.u32 2147483647, %v6751
      %vm6762 = vcmp.eq.f32.partialorder %v6761, 8.507059e+37
      %v6763 = vand.u32 %v6751, 2147483648
      %v6764 = vor.u32 1.1754944e-38, %v6763
      %v6765 = vsel %vm6762, %v6764, %v6760
      %v6766 = vmul.f32 %v6741, %v6765
      %v6767 = vmin.f32 %v6766, 1.0
      %v6768 = vmax.f32 %v6767, -1.0
      %v6769 = vmul.f32 %v6363, %v6363
      %v6770 = vmin.f32 16.0, %v6769
      %v6771 = vmul.f32 %v6770, 2.1237322e-06
      %v6772 = vadd.f32 %v6771, 0.00028619796
      %v6773 = vmul.f32 %v6770, %v6772
      %v6774 = vadd.f32 %v6773, 0.0036580483
      %v6775 = vmul.f32 %v6770, %v6774
      %v6776 = vadd.f32 %v6775, 0.05243302
      %v6777 = vmul.f32 %v6770, %v6776
      %v6778 = vadd.f32 %v6777, 0.18741608
      %v6779 = vmul.f32 %v6770, %v6778
      %v6780 = vadd.f32 %v6779, 1.1283791
      %v6781 = vmul.f32 %v6363, %v6780
      %v6782 = vmul.f32 %v6770, 3.8918573e-05
      %v6783 = vadd.f32 %v6782, 0.001143296
      %v6784 = vmul.f32 %v6770, %v6783
      %v6785 = vadd.f32 %v6784, 0.014752088
      %v6786 = vmul.f32 %v6770, %v6785
      %v6787 = vadd.f32 %v6786, 0.112945676
      %v6788 = vmul.f32 %v6770, %v6787
      %v6789 = vadd.f32 %v6788, 0.4994258
      %v6790 = vmul.f32 %v6770, %v6789
      %v6791 = vadd.f32 %v6790, 1.0
      %v6792 = vrcp.pop %v6791
      %v6793 = vmul.f32 %v6791, %v6792
      %v6794 = vsub.f32 1.0, %v6793
      %v6795 = vmul.f32 %v6792, %v6794
      %v6796 = vadd.f32 %v6792, %v6795
      %vm6797 = vweird.f32 %v6791
      %vm6798 = vweird.f32 %v6792
      %vm6799 = vmor %vm6797, %vm6798
      %v6800 = vsel %vm6799, %v6792, %v6796
      %v6801 = vand.u32 2147483647, %v6791
      %vm6802 = vcmp.eq.f32.partialorder %v6801, 8.507059e+37
      %v6803 = vand.u32 %v6791, 2147483648
      %v6804 = vor.u32 1.1754944e-38, %v6803
      %v6805 = vsel %vm6802, %v6804, %v6800
      %v6806 = vmul.f32 %v6781, %v6805
      %v6807 = vmin.f32 %v6806, 1.0
      %v6808 = vmax.f32 %v6807, -1.0
      %v6809 = vmul.f32 %v6364, %v6364
      %v6810 = vmin.f32 16.0, %v6809
      %v6811 = vmul.f32 %v6810, 2.1237322e-06
      %v6812 = vadd.f32 %v6811, 0.00028619796
      %v6813 = vmul.f32 %v6810, %v6812
      %v6814 = vadd.f32 %v6813, 0.0036580483
      %v6815 = vmul.f32 %v6810, %v6814
      %v6816 = vadd.f32 %v6815, 0.05243302
      %v6817 = vmul.f32 %v6810, %v6816
      %v6818 = vadd.f32 %v6817, 0.18741608
      %v6819 = vmul.f32 %v6810, %v6818
      %v6820 = vadd.f32 %v6819, 1.1283791
      %v6821 = vmul.f32 %v6364, %v6820
      %v6822 = vmul.f32 %v6810, 3.8918573e-05
      %v6823 = vadd.f32 %v6822, 0.001143296
      %v6824 = vmul.f32 %v6810, %v6823
      %v6825 = vadd.f32 %v6824, 0.014752088
      %v6826 = vmul.f32 %v6810, %v6825
      %v6827 = vadd.f32 %v6826, 0.112945676
      %v6828 = vmul.f32 %v6810, %v6827
      %v6829 = vadd.f32 %v6828, 0.4994258
      %v6830 = vmul.f32 %v6810, %v6829
      %v6831 = vadd.f32 %v6830, 1.0
      %v6832 = vrcp.pop %v6831
      %v6833 = vmul.f32 %v6831, %v6832
      %v6834 = vsub.f32 1.0, %v6833
      %v6835 = vmul.f32 %v6832, %v6834
      %v6836 = vadd.f32 %v6832, %v6835
      %vm6837 = vweird.f32 %v6831
      %vm6838 = vweird.f32 %v6832
      %vm6839 = vmor %vm6837, %vm6838
      %v6840 = vsel %vm6839, %v6832, %v6836
      %v6841 = vand.u32 2147483647, %v6831
      %vm6842 = vcmp.eq.f32.partialorder %v6841, 8.507059e+37
      %v6843 = vand.u32 %v6831, 2147483648
      %v6844 = vor.u32 1.1754944e-38, %v6843
      %v6845 = vsel %vm6842, %v6844, %v6840
      %v6846 = vmul.f32 %v6821, %v6845
      %v6847 = vmin.f32 %v6846, 1.0
      %v6848 = vmax.f32 %v6847, -1.0
      %v6849 = vmul.f32 %v6365, %v6365
      %v6850 = vmin.f32 16.0, %v6849
      %v6851 = vmul.f32 %v6850, 2.1237322e-06
      %v6852 = vadd.f32 %v6851, 0.00028619796
      %v6853 = vmul.f32 %v6850, %v6852
      %v6854 = vadd.f32 %v6853, 0.0036580483
      %v6855 = vmul.f32 %v6850, %v6854
      %v6856 = vadd.f32 %v6855, 0.05243302
      %v6857 = vmul.f32 %v6850, %v6856
      %v6858 = vadd.f32 %v6857, 0.18741608
      %v6859 = vmul.f32 %v6850, %v6858
      %v6860 = vadd.f32 %v6859, 1.1283791
      %v6861 = vmul.f32 %v6365, %v6860
      %v6862 = vmul.f32 %v6850, 3.8918573e-05
      %v6863 = vadd.f32 %v6862, 0.001143296
      %v6864 = vmul.f32 %v6850, %v6863
      %v6865 = vadd.f32 %v6864, 0.014752088
      %v6866 = vmul.f32 %v6850, %v6865
      %v6867 = vadd.f32 %v6866, 0.112945676
      %v6868 = vmul.f32 %v6850, %v6867
      %v6869 = vadd.f32 %v6868, 0.4994258
      %v6870 = vmul.f32 %v6850, %v6869
      %v6871 = vadd.f32 %v6870, 1.0
      %v6872 = vrcp.pop %v6871
      %v6873 = vmul.f32 %v6871, %v6872
      %v6874 = vsub.f32 1.0, %v6873
      %v6875 = vmul.f32 %v6872, %v6874
      %v6876 = vadd.f32 %v6872, %v6875
      %vm6877 = vweird.f32 %v6871
      %vm6878 = vweird.f32 %v6872
      %vm6879 = vmor %vm6877, %vm6878
      %v6880 = vsel %vm6879, %v6872, %v6876
      %v6881 = vand.u32 2147483647, %v6871
      %vm6882 = vcmp.eq.f32.partialorder %v6881, 8.507059e+37
      %v6883 = vand.u32 %v6871, 2147483648
      %v6884 = vor.u32 1.1754944e-38, %v6883
      %v6885 = vsel %vm6882, %v6884, %v6880
      %v6886 = vmul.f32 %v6861, %v6885
      %v6887 = vmin.f32 %v6886, 1.0
      %v6888 = vmax.f32 %v6887, -1.0
      %v6889 = vmul.f32 %v6366, %v6366
      %v6890 = vmin.f32 16.0, %v6889
      %v6891 = vmul.f32 %v6890, 2.1237322e-06
      %v6892 = vadd.f32 %v6891, 0.00028619796
      %v6893 = vmul.f32 %v6890, %v6892
      %v6894 = vadd.f32 %v6893, 0.0036580483
      %v6895 = vmul.f32 %v6890, %v6894
      %v6896 = vadd.f32 %v6895, 0.05243302
      %v6897 = vmul.f32 %v6890, %v6896
      %v6898 = vadd.f32 %v6897, 0.18741608
      %v6899 = vmul.f32 %v6890, %v6898
      %v6900 = vadd.f32 %v6899, 1.1283791
      %v6901 = vmul.f32 %v6366, %v6900
      %v6902 = vmul.f32 %v6890, 3.8918573e-05
      %v6903 = vadd.f32 %v6902, 0.001143296
      %v6904 = vmul.f32 %v6890, %v6903
      %v6905 = vadd.f32 %v6904, 0.014752088
      %v6906 = vmul.f32 %v6890, %v6905
      %v6907 = vadd.f32 %v6906, 0.112945676
      %v6908 = vmul.f32 %v6890, %v6907
      %v6909 = vadd.f32 %v6908, 0.4994258
      %v6910 = vmul.f32 %v6890, %v6909
      %v6911 = vadd.f32 %v6910, 1.0
      %v6912 = vrcp.pop %v6911
      %v6913 = vmul.f32 %v6911, %v6912
      %v6914 = vsub.f32 1.0, %v6913
      %v6915 = vmul.f32 %v6912, %v6914
      %v6916 = vadd.f32 %v6912, %v6915
      %vm6917 = vweird.f32 %v6911
      %vm6918 = vweird.f32 %v6912
      %vm6919 = vmor %vm6917, %vm6918
      %v6920 = vsel %vm6919, %v6912, %v6916
      %v6921 = vand.u32 2147483647, %v6911
      %vm6922 = vcmp.eq.f32.partialorder %v6921, 8.507059e+37
      %v6923 = vand.u32 %v6911, 2147483648
      %v6924 = vor.u32 1.1754944e-38, %v6923
      %v6925 = vsel %vm6922, %v6924, %v6920
      %v6926 = vmul.f32 %v6901, %v6925
      %v6927 = vmin.f32 %v6926, 1.0
      %v6928 = vmax.f32 %v6927, -1.0
      %v6929 = vmul.f32 %v6367, %v6367
      %v6930 = vmin.f32 16.0, %v6929
      %v6931 = vmul.f32 %v6930, 2.1237322e-06
      %v6932 = vadd.f32 %v6931, 0.00028619796
      %v6933 = vmul.f32 %v6930, %v6932
      %v6934 = vadd.f32 %v6933, 0.0036580483
      %v6935 = vmul.f32 %v6930, %v6934
      %v6936 = vadd.f32 %v6935, 0.05243302
      %v6937 = vmul.f32 %v6930, %v6936
      %v6938 = vadd.f32 %v6937, 0.18741608
      %v6939 = vmul.f32 %v6930, %v6938
      %v6940 = vadd.f32 %v6939, 1.1283791
      %v6941 = vmul.f32 %v6367, %v6940
      %v6942 = vmul.f32 %v6930, 3.8918573e-05
      %v6943 = vadd.f32 %v6942, 0.001143296
      %v6944 = vmul.f32 %v6930, %v6943
      %v6945 = vadd.f32 %v6944, 0.014752088
      %v6946 = vmul.f32 %v6930, %v6945
      %v6947 = vadd.f32 %v6946, 0.112945676
      %v6948 = vmul.f32 %v6930, %v6947
      %v6949 = vadd.f32 %v6948, 0.4994258
      %v6950 = vmul.f32 %v6930, %v6949
      %v6951 = vadd.f32 %v6950, 1.0
      %v6952 = vrcp.pop %v6951
      %v6953 = vmul.f32 %v6951, %v6952
      %v6954 = vsub.f32 1.0, %v6953
      %v6955 = vmul.f32 %v6952, %v6954
      %v6956 = vadd.f32 %v6952, %v6955
      %vm6957 = vweird.f32 %v6951
      %vm6958 = vweird.f32 %v6952
      %vm6959 = vmor %vm6957, %vm6958
      %v6960 = vsel %vm6959, %v6952, %v6956
      %v6961 = vand.u32 2147483647, %v6951
      %vm6962 = vcmp.eq.f32.partialorder %v6961, 8.507059e+37
      %v6963 = vand.u32 %v6951, 2147483648
      %v6964 = vor.u32 1.1754944e-38, %v6963
      %v6965 = vsel %vm6962, %v6964, %v6960
      %v6966 = vmul.f32 %v6941, %v6965
      %v6967 = vmin.f32 %v6966, 1.0
      %v6968 = vmax.f32 %v6967, -1.0
      %v6969 = vmul.f32 %v6368, %v6368
      %v6970 = vmin.f32 16.0, %v6969
      %v6971 = vmul.f32 %v6970, 2.1237322e-06
      %v6972 = vadd.f32 %v6971, 0.00028619796
      %v6973 = vmul.f32 %v6970, %v6972
      %v6974 = vadd.f32 %v6973, 0.0036580483
      %v6975 = vmul.f32 %v6970, %v6974
      %v6976 = vadd.f32 %v6975, 0.05243302
      %v6977 = vmul.f32 %v6970, %v6976
      %v6978 = vadd.f32 %v6977, 0.18741608
      %v6979 = vmul.f32 %v6970, %v6978
      %v6980 = vadd.f32 %v6979, 1.1283791
      %v6981 = vmul.f32 %v6368, %v6980
      %v6982 = vmul.f32 %v6970, 3.8918573e-05
      %v6983 = vadd.f32 %v6982, 0.001143296
      %v6984 = vmul.f32 %v6970, %v6983
      %v6985 = vadd.f32 %v6984, 0.014752088
      %v6986 = vmul.f32 %v6970, %v6985
      %v6987 = vadd.f32 %v6986, 0.112945676
      %v6988 = vmul.f32 %v6970, %v6987
      %v6989 = vadd.f32 %v6988, 0.4994258
      %v6990 = vmul.f32 %v6970, %v6989
      %v6991 = vadd.f32 %v6990, 1.0
      %v6992 = vrcp.pop %v6991
      %v6993 = vmul.f32 %v6991, %v6992
      %v6994 = vsub.f32 1.0, %v6993
      %v6995 = vmul.f32 %v6992, %v6994
      %v6996 = vadd.f32 %v6992, %v6995
      %vm6997 = vweird.f32 %v6991
      %vm6998 = vweird.f32 %v6992
      %vm6999 = vmor %vm6997, %vm6998
      %v7000 = vsel %vm6999, %v6992, %v6996
      %v7001 = vand.u32 2147483647, %v6991
      %vm7002 = vcmp.eq.f32.partialorder %v7001, 8.507059e+37
      %v7003 = vand.u32 %v6991, 2147483648
      %v7004 = vor.u32 1.1754944e-38, %v7003
      %v7005 = vsel %vm7002, %v7004, %v7000
      %v7006 = vmul.f32 %v6981, %v7005
      %v7007 = vmin.f32 %v7006, 1.0
      %v7008 = vmax.f32 %v7007, -1.0
      %v7009 = vadd.f32 %v6408, 1.0
      %v7010 = vadd.f32 %v6448, 1.0
      %v7011 = vadd.f32 %v6488, 1.0
      %v7012 = vadd.f32 %v6528, 1.0
      %v7013 = vadd.f32 %v6568, 1.0
      %v7014 = vadd.f32 %v6608, 1.0
      %v7015 = vadd.f32 %v6648, 1.0
      %v7016 = vadd.f32 %v6688, 1.0
      %v7017 = vadd.f32 %v6728, 1.0
      %v7018 = vadd.f32 %v6768, 1.0
      %v7019 = vadd.f32 %v6808, 1.0
      %v7020 = vadd.f32 %v6848, 1.0
      %v7021 = vadd.f32 %v6888, 1.0
      %v7022 = vadd.f32 %v6928, 1.0
      %v7023 = vadd.f32 %v6968, 1.0
      %v7024 = vadd.f32 %v7008, 1.0
      %v7025 = vmul.f32 %v6337, %v7009
      %v7026 = vmul.f32 %v6338, %v7010
      %v7027 = vmul.f32 %v6339, %v7011
      %v7028 = vmul.f32 %v6340, %v7012
      %v7029 = vmul.f32 %v6341, %v7013
      %v7030 = vmul.f32 %v6342, %v7014
      %v7031 = vmul.f32 %v6343, %v7015
      %v7032 = vmul.f32 %v6344, %v7016
      %v7033 = vmul.f32 %v6345, %v7017
      %v7034 = vmul.f32 %v6346, %v7018
      %v7035 = vmul.f32 %v6347, %v7019
      %v7036 = vmul.f32 %v6348, %v7020
      %v7037 = vmul.f32 %v6349, %v7021
      %v7038 = vmul.f32 %v6350, %v7022
      %v7039 = vmul.f32 %v6351, %v7023
      %v7040 = vmul.f32 %v6352, %v7024
      %v7041 = vsel %vm476, %v4026, %v7025
      %v7042 = vsel %vm476, %v4180, %v7026
      %v7043 = vsel %vm476, %v4334, %v7027
      %v7044 = vsel %vm476, %v4488, %v7028
      %v7045 = vsel %vm476, %v4642, %v7029
      %v7046 = vsel %vm476, %v4796, %v7030
      %v7047 = vsel %vm476, %v4950, %v7031
      %v7048 = vsel %vm476, %v5104, %v7032
      %v7049 = vsel %vm476, %v5258, %v7033
      %v7050 = vsel %vm476, %v5412, %v7034
      %v7051 = vsel %vm476, %v5566, %v7035
      %v7052 = vsel %vm476, %v5720, %v7036
      %v7053 = vsel %vm476, %v5874, %v7037
      %v7054 = vsel %vm476, %v6028, %v7038
      %v7055 = vsel %vm476, %v6182, %v7039
      %v7056 = vsel %vm476, %v6336, %v7040
      %v7057 = vld [vmem:[%s7] sm:$0xff]
      %v7058 = vld [vmem:[%s7 + $0x8] sm:$0xff]
      %v7059 = vld [vmem:[%s7 + $0x10] sm:$0xff]
      %v7060 = vld [vmem:[%s7 + $0x18] sm:$0xff]
      %v7061 = vld [vmem:[%s7 + $0x20] sm:$0xff]
      %v7062 = vld [vmem:[%s7 + $0x28] sm:$0xff]
      %v7063 = vld [vmem:[%s7 + $0x30] sm:$0xff]
      %v7064 = vld [vmem:[%s7 + $0x38] sm:$0xff]
      %v7065 = vld [vmem:[%s7 + $0x40] sm:$0xff]
      %v7066 = vld [vmem:[%s7 + $0x48] sm:$0xff]
      %v7067 = vld [vmem:[%s7 + $0x50] sm:$0xff]
      %v7068 = vld [vmem:[%s7 + $0x58] sm:$0xff]
      %v7069 = vld [vmem:[%s7 + $0x60] sm:$0xff]
      %v7070 = vld [vmem:[%s7 + $0x68] sm:$0xff]
      %v7071 = vld [vmem:[%s7 + $0x70] sm:$0xff]
      %v7072 = vld [vmem:[%s7 + $0x78] sm:$0xff]
      %v7073 = vld [vmem:[#allocation2] sm:$0x1]
      %v7075 = vperm.slane %v7073, 0
      %7077 = vmatpush.msra.mxu0 %v7072
      %7078 = vmatpush.msra.mxu0 %v7071
      %7079 = vmatpush.msra.mxu0 %v7070
      %7080 = vmatpush.msra.mxu0 %v7069
      %7081 = vmatpush.msra.mxu0 %v7068
      %7082 = vmatpush.msra.mxu0 %v7067
      %7083 = vmatpush.msra.mxu0 %v7066
      %7084 = vmatpush.msra.mxu0 %v7065
      %7085 = vmatpush.msra.mxu0 %v7064
      %7086 = vmatpush.msra.mxu0 %v7063
      %7087 = vmatpush.msra.mxu0 %v7062
      %7088 = vmatpush.msra.mxu0 %v7061
      %7089 = vmatpush.msra.mxu0 %v7060
      %7090 = vmatpush.msra.mxu0 %v7059
      %7091 = vmatpush.msra.mxu0 %v7058
      %7092 = vmatpush.msra.mxu0 %v7057
      %7093 = vmatmul.f32.gmra.mxu0 %v7041
      %v7094 = vpop.f32.mrf.mxu0
      %v7095 = vadd.f32 %v7075, %v7094
      %7096 = vmatmul.f32.gmra.mxu0 %v7042
      %v7097 = vpop.f32.mrf.mxu0
      %v7098 = vadd.f32 %v7075, %v7097
      %7099 = vmatmul.f32.gmra.mxu0 %v7043
      %v7100 = vpop.f32.mrf.mxu0
      %v7101 = vadd.f32 %v7075, %v7100
      %7102 = vmatmul.f32.gmra.mxu0 %v7044
      %v7103 = vpop.f32.mrf.mxu0
      %v7104 = vadd.f32 %v7075, %v7103
      %7105 = vmatmul.f32.gmra.mxu0 %v7045
      %v7106 = vpop.f32.mrf.mxu0
      %v7107 = vadd.f32 %v7075, %v7106
      %7108 = vmatmul.f32.gmra.mxu0 %v7046
      %v7109 = vpop.f32.mrf.mxu0
      %v7110 = vadd.f32 %v7075, %v7109
      %7111 = vmatmul.f32.gmra.mxu0 %v7047
      %v7112 = vpop.f32.mrf.mxu0
      %v7113 = vadd.f32 %v7075, %v7112
      %7114 = vmatmul.f32.gmra.mxu0 %v7048
      %v7115 = vpop.f32.mrf.mxu0
      %v7116 = vadd.f32 %v7075, %v7115
      %7117 = vmatmul.f32.gmra.mxu0 %v7049
      %v7118 = vpop.f32.mrf.mxu0
      %v7119 = vadd.f32 %v7075, %v7118
      %7120 = vmatmul.f32.gmra.mxu0 %v7050
      %v7121 = vpop.f32.mrf.mxu0
      %v7122 = vadd.f32 %v7075, %v7121
      %7123 = vmatmul.f32.gmra.mxu0 %v7051
      %v7124 = vpop.f32.mrf.mxu0
      %v7125 = vadd.f32 %v7075, %v7124
      %7126 = vmatmul.f32.gmra.mxu0 %v7052
      %v7127 = vpop.f32.mrf.mxu0
      %v7128 = vadd.f32 %v7075, %v7127
      %7129 = vmatmul.f32.gmra.mxu0 %v7053
      %v7130 = vpop.f32.mrf.mxu0
      %v7131 = vadd.f32 %v7075, %v7130
      %7132 = vmatmul.f32.gmra.mxu0 %v7054
      %v7133 = vpop.f32.mrf.mxu0
      %v7134 = vadd.f32 %v7075, %v7133
      %7135 = vmatmul.f32.gmra.mxu0 %v7055
      %v7136 = vpop.f32.mrf.mxu0
      %v7137 = vadd.f32 %v7075, %v7136
      %7138 = vmatmul.f32.gmra.mxu0 %v7056
      %v7139 = vpop.f32.mrf.mxu0
      %v7140 = vadd.f32 %v7075, %v7139
      %7141 = vdwg.mxu0
      %vm7142 = vcmask 7168
      %7143 = vst.msk [vmem:[%s336] sm:$0xff] %vm7142, %v7095
      %7144 = vst.msk [vmem:[%s336 + $0x8] sm:$0xff] %vm7142, %v7098
      %7145 = vst.msk [vmem:[%s336 + $0x10] sm:$0xff] %vm7142, %v7101
      %7146 = vst.msk [vmem:[%s336 + $0x18] sm:$0xff] %vm7142, %v7104
      %7147 = vst.msk [vmem:[%s336 + $0x20] sm:$0xff] %vm7142, %v7107
      %7148 = vst.msk [vmem:[%s336 + $0x28] sm:$0xff] %vm7142, %v7110
      %7149 = vst.msk [vmem:[%s336 + $0x30] sm:$0xff] %vm7142, %v7113
      %7150 = vst.msk [vmem:[%s336 + $0x38] sm:$0xff] %vm7142, %v7116
      %7151 = vst.msk [vmem:[%s336 + $0x40] sm:$0xff] %vm7142, %v7119
      %7152 = vst.msk [vmem:[%s336 + $0x48] sm:$0xff] %vm7142, %v7122
      %7153 = vst.msk [vmem:[%s336 + $0x50] sm:$0xff] %vm7142, %v7125
      %7154 = vst.msk [vmem:[%s336 + $0x58] sm:$0xff] %vm7142, %v7128
      %7155 = vst.msk [vmem:[%s336 + $0x60] sm:$0xff] %vm7142, %v7131
      %7156 = vst.msk [vmem:[%s336 + $0x68] sm:$0xff] %vm7142, %v7134
      %7157 = vst.msk [vmem:[%s336 + $0x70] sm:$0xff] %vm7142, %v7137
      %7158 = vst.msk [vmem:[%s336 + $0x78] sm:$0xff] %vm7142, %v7140
      %s7159 = smul.u32 16, %s22
      %p7160 = scmp.lt.s32.totalorder %s7159, 31
      %s7161 = scalar_select %p7160, %s7159, 31
      %s7162 = smul.addr %s7161, 8
      %s7163 = scalar_lea.vmem %s9, %s7162
      // Predicated region
      $region57: #{fan_forward.1} parent=55 // pred_check
        %p7164 = pneg %p234
      $region58: #{fan_forward.1} parent=55 // pred_check_branch
        %7166 = sbr.rel (%p7164) target = $region60
      $region59: #{fan_forward.1} parent=55 // pred_region
        %s7167 = smul.u32 16, %s22
      $region60: #{fan_forward.1} parent=55 // pred_fallthru
        _
    $region56: #{fan_forward.1} parent=5 // pred_fallthru
      _
    %p7168 = scmp.le.s32.totalorder 2, %s17
    // Predicated region
    $region61: #{fan_forward.1} parent=5 // pred_check
      %p7169 = pneg %p7168
    $region62: #{fan_forward.1} parent=5 // pred_check_branch
      %7171 = sbr.rel (%p7169) target = $region64
    $region63: #{fan_forward.1} parent=5 // pred_region
      %s7172 = ssub.s32 %s17, 2
      // Predicated region
      $region65: #{fan_forward.1} parent=63 // pred_check
        %p7173 = pneg %p240
      $region66: #{fan_forward.1} parent=63 // pred_check_branch
        %7175 = sbr.rel (%p7173) target = $region68
      $region67: #{fan_forward.1} parent=63 // pred_region
        %s7176 = smul.u32 16, %s23
        %p7177 = scmp.lt.s32.totalorder %s7176, 31
        %s7178 = scalar_select %p7177, %s7176, 31
        %s7179 = smul.addr %s7178, 8
        %s7180 = scalar_lea.vmem %s9, %s7179
      $region68: #{fan_forward.1} parent=63 // pred_fallthru
        _
    $region64: #{fan_forward.1} parent=5 // pred_fallthru
      _
  $region6: #{fan_forward.1} parent=0 // loop_footer
    %s21 = sadd.s32 1, %s17
  $region7: #{fan_forward.1} parent=0 // loop_footer_branch
    %16 = sbr.rel target = $region3
  $region8: #{fan_forward.1} parent=0 // loop_exit
    _

</llo_original>
